<compile_context>
chip_gen: v7x
topology: tpu7x:2x2x1
jax: 0.10.0
libtpu: 0.0.40
codegen_flags: <defaults>
</compile_context>

<pallas_src>
import functools
import math

import jax
import jax.numpy as jnp
from jax.experimental import pallas as pl
from jax.experimental.pallas import tpu as pltpu

LANE = 128


def _round_up(x, m):
    return ((x + m - 1) // m) * m


def _uniform(key, shape, bound):
    return jax.random.uniform(key, shape, jnp.float32, -bound, bound)


# ----------------------------------------------------------------------------
# Pallas kernel 1: fused conv (in-VMEM im2col) + bias + ReLU.
#   stride == 1 : x_ref is (Hp, Wp, Cin)                       (one batch elem)
#   stride  > 1 : x_ref is (Hp/s, s, Wp/s, s*Cin)  space-to-depth view, so all
#                 slices below are contiguous (no strided loads needed).
#   w_ref : (kh*kw, Cin, Cout_pad) per-tap weight matrices
#   b_ref : (1, Cout_pad)
#   o_ref : (Ho*Wo, Cout_pad)      lane-dense output tile
# ----------------------------------------------------------------------------
def _conv_relu_kernel(x_ref, w_ref, b_ref, o_ref, *, kh, kw, stride, Ho, Wo,
                      Cin, compute_dtype):
    Cout = o_ref.shape[-1]
    acc = jnp.zeros((Ho * Wo, Cout), jnp.float32)
    if stride == 1:
        for i in range(kh):
            for j in range(kw):
                xs = x_ref[pl.ds(i, Ho), pl.ds(j, Wo), :]
                xs = xs.reshape(Ho * Wo, Cin).astype(compute_dtype)
                wt = w_ref[i * kw + j].astype(compute_dtype)     # (Cin, Cout)
                acc = acc + jnp.dot(xs, wt,
                                    preferred_element_type=jnp.float32)
    else:
        s = stride
        for i in range(kh):
            a, rh = divmod(i, s)          # input row = (h_out + a) * s + rh
            for j in range(kw):
                q, rw = divmod(j, s)      # input col = (w_out + q) * s + rw
                xs = x_ref[pl.ds(a, Ho), rh, pl.ds(q, Wo),
                           pl.ds(rw * Cin, Cin)]
                xs = xs.reshape(Ho * Wo, Cin).astype(compute_dtype)
                wt = w_ref[i * kw + j].astype(compute_dtype)
                acc = acc + jnp.dot(xs, wt,
                                    preferred_element_type=jnp.float32)
    acc = jnp.maximum(acc + b_ref[...], 0.0)
    o_ref[...] = acc.astype(o_ref.dtype)


def conv2d_relu(x_nhwc, w_taps, b_row, *, kernel, stride, padding,
                compute_dtype=jnp.float32):
    """x_nhwc: (N,H,W,Cin) -> (N,Ho,Wo,Cout_pad), fused conv+bias+relu."""
    N, H, W, Cin = x_nhwc.shape
    kk, Cin_w, Cout = w_taps.shape
    assert kk == kernel * kernel and Cin_w == Cin
    Ho = (H + 2 * padding - kernel) // stride + 1
    Wo = (W + 2 * padding - kernel) // stride + 1
    Hp, Wp = H + 2 * padding, W + 2 * padding

    if stride == 1:
        xp = jnp.pad(x_nhwc,
                     ((0, 0), (padding, padding), (padding, padding), (0, 0)))
        x_spec = pl.BlockSpec((None, Hp, Wp, Cin), lambda n: (n, 0, 0, 0))
    else:
        # Pad spatial dims up to a multiple of stride, then take a FREE
        # row-major reshape into space-to-depth form so the kernel only needs
        # contiguous slices.  The extra pad rows/cols are never read.
        Hp2, Wp2 = _round_up(Hp, stride), _round_up(Wp, stride)
        xp = jnp.pad(x_nhwc,
                     ((0, 0),
                      (padding, padding + (Hp2 - Hp)),
                      (padding, padding + (Wp2 - Wp)),
                      (0, 0)))
        xp = xp.reshape(N, Hp2 // stride, stride, Wp2 // stride, stride * Cin)
        x_spec = pl.BlockSpec(
            (None, Hp2 // stride, stride, Wp2 // stride, stride * Cin),
            lambda n: (n, 0, 0, 0, 0))

    body = functools.partial(_conv_relu_kernel, kh=kernel, kw=kernel,
                             stride=stride, Ho=Ho, Wo=Wo, Cin=Cin,
                             compute_dtype=compute_dtype)
    # TODO(synk): for very large images also tile the output rows (second
    # grid axis) so the per-step VMEM footprint stays bounded.
    out = pl.pallas_call(
        body,
        out_shape=jax.ShapeDtypeStruct((N, Ho * Wo, Cout), jnp.float32),
        grid=(N,),
        in_specs=[
            x_spec,
            pl.BlockSpec((kk, Cin, Cout), lambda n: (0, 0, 0)),
            pl.BlockSpec((1, Cout), lambda n: (0, 0)),
        ],
        out_specs=pl.BlockSpec((None, Ho * Wo, Cout), lambda n: (n, 0, 0)),
        compiler_params=pltpu.CompilerParams(
            dimension_semantics=("parallel",)),
    )(xp, w_taps, b_row)
    return out.reshape(N, Ho, Wo, Cout)                     # free reshape


# ----------------------------------------------------------------------------
# Pallas kernel 2: fused FC stack  out = relu(...relu(x@W0+b0)...) @ W_last + b
#   refs = (x, w0, b0, w1, b1, ..., out);  weights are VMEM-resident blocks.
# ----------------------------------------------------------------------------
def _fc_stack_kernel(*refs, num_layers, compute_dtype):
    o_ref = refs[-1]
    h = refs[0][...].astype(jnp.float32)
    for l in range(num_layers):
        w = refs[1 + 2 * l][...].astype(compute_dtype)
        b = refs[2 + 2 * l][...]
        h = jnp.dot(h.astype(compute_dtype), w,
                    preferred_element_type=jnp.float32) + b
        if l < num_layers - 1:
            h = jnp.maximum(h, 0.0)
    o_ref[...] = h.astype(o_ref.dtype)


def fc_stack(x, fc_w, fc_b, *, compute_dtype=jnp.float32, tm=256):
    """x: (M, K0); fc_w[l]: (K_l, N_l); fc_b[l]: (1, N_l)  ->  (M, N_last)."""
    M, K0 = x.shape
    L = len(fc_w)
    N_out = fc_w[-1].shape[1]
    TM = M if M <= tm else tm
    in_specs = [pl.BlockSpec((TM, K0), lambda i: (i, 0))]
    args = [x]
    for w, b in zip(fc_w, fc_b):
        in_specs.append(pl.BlockSpec(w.shape, lambda i: (0, 0)))
        in_specs.append(pl.BlockSpec(b.shape, lambda i: (0, 0)))
        args += [w, b]
    body = functools.partial(_fc_stack_kernel, num_layers=L,
                             compute_dtype=compute_dtype)
    # TODO(synk): if the first FC weight ever outgrows VMEM, add a K-axis grid
    # dimension with an accumulator scratch instead of keeping it resident.
    return pl.pallas_call(
        body,
        out_shape=jax.ShapeDtypeStruct((M, N_out), jnp.float32),
        grid=(pl.cdiv(M, TM),),
        in_specs=in_specs,
        out_specs=pl.BlockSpec((TM, N_out), lambda i: (i, 0)),
        compiler_params=pltpu.CompilerParams(
            dimension_semantics=("parallel",)),
    )(*args)


# ----------------------------------------------------------------------------
# Parameter construction: PyTorch-style init, then one-time weight prep
# (reshape / permute / lane-pad / flatten-order fold) so the inference path
# does zero layout work.
# ----------------------------------------------------------------------------
def init_params(key, input_channels, input_height, input_width, output_dim,
                conv_layers, fc_layers):
    conv_taps, conv_bias = [], []
    ref_conv_w, ref_conv_b = [], []
    conv_meta = []
    c_real, c_pad = input_channels, input_channels
    cur_h, cur_w = input_height, input_width
    for layer in conv_layers:
        out_c, k, s = layer[0], layer[1], layer[2]
        p = layer[3] if len(layer) > 3 else 0
        key, k_w, k_b = jax.random.split(key, 3)
        bound = 1.0 / math.sqrt(c_real * k * k)
        Wt = _uniform(k_w, (out_c, c_real, k, k), bound)     # PyTorch OIHW
        bt = _uniform(k_b, (out_c,), bound)
        out_c_pad = _round_up(out_c, LANE)
        # per-tap matrices, features ordered (kh, kw, c) to match NHWC slices
        taps = jnp.transpose(Wt, (2, 3, 1, 0)).reshape(k * k, c_real, out_c)
        taps = jnp.pad(taps, ((0, 0), (0, c_pad - c_real),
                              (0, out_c_pad - out_c)))
        brow = jnp.pad(bt, (0, out_c_pad - out_c)).reshape(1, out_c_pad)
        conv_taps.append(taps)
        conv_bias.append(brow)
        ref_conv_w.append(Wt)
        ref_conv_b.append(bt)
        conv_meta.append((k, s, p))
        c_real, c_pad = out_c, out_c_pad
        cur_h = (cur_h + 2 * p - k) // s + 1
        cur_w = (cur_w + 2 * p - k) // s + 1
        if cur_h <= 0 or cur_w <= 0:
            raise ValueError("Conv settings give a non-positive dimension.")

    num_flat = c_real * cur_h * cur_w          # PyTorch flatten size
    num_flat_pad = c_pad * cur_h * cur_w       # lane-padded flatten size

    dims = [num_flat] + list(fc_layers) + [output_dim]
    fc_w, fc_b, ref_fc_w, ref_fc_b = [], [], [], []
    in_pad_prev = num_flat_pad
    for idx, (fi, fo) in enumerate(zip(dims[:-1], dims[1:])):
        key, k_w, k_b = jax.random.split(key, 3)
        bound = 1.0 / math.sqrt(fi)
        Wt = _uniform(k_w, (fo, fi), bound)                  # PyTorch (out, in)
        bt = _uniform(k_b, (fo,), bound)
        fo_pad = _round_up(fo, LANE)
        if idx == 0:
            # Fold PyTorch's NCHW flatten order AND the conv lane padding into
            # the weight: the lane-padded NHWC activation is consumed directly
            # by a free reshape (no slice, no transpose on the hot path).
            Wp = (Wt.reshape(fo, c_real, cur_h, cur_w)
                    .transpose(2, 3, 1, 0))                  # (h, w, c, fo)
            Wp = jnp.pad(Wp, ((0, 0), (0, 0), (0, c_pad - c_real), (0, 0)))
            Wp = Wp.reshape(num_flat_pad, fo)
        else:
            Wp = jnp.pad(Wt.T, ((0, in_pad_prev - fi), (0, 0)))
        Wp = jnp.pad(Wp, ((0, 0), (0, fo_pad - fo)))
        fc_w.append(Wp)
        fc_b.append(jnp.pad(bt, (0, fo_pad - fo)).reshape(1, fo_pad))
        ref_fc_w.append(Wt)
        ref_fc_b.append(bt)
        in_pad_prev = fo_pad

    weights = dict(conv_taps=conv_taps, conv_bias=conv_bias,
                   fc_w=fc_w, fc_b=fc_b,
                   ref_conv_w=ref_conv_w, ref_conv_b=ref_conv_b,
                   ref_fc_w=ref_fc_w, ref_fc_b=ref_fc_b)
    meta = dict(conv=conv_meta,
                flatten=(cur_h, cur_w, c_real, c_pad),
                num_flattened_features=num_flat,
                output_dim=output_dim)
    return weights, meta


# ----------------------------------------------------------------------------
# Forward pass (mirrors CNNDDQNAgent.forward)
# ----------------------------------------------------------------------------
def forward(weights, x_nchw, *, meta, compute_dtype=jnp.float32):
    """x_nchw: (N, C, H, W) float32 -> (N, output_dim) float32."""
    x = jnp.transpose(x_nchw, (0, 2, 3, 1))                  # NCHW -> NHWC once
    for taps, brow, (k, s, p) in zip(weights["conv_taps"],
                                     weights["conv_bias"], meta["conv"]):
        x = conv2d_relu(x, taps, brow, kernel=k, stride=s, padding=p,
                        compute_dtype=compute_dtype)
    # Free row-major flatten of the lane-padded NHWC activation; the padding
    # and the NCHW flatten order are folded into fc_w[0].
    x = x.reshape(x.shape[0], -1)
    out = fc_stack(x, weights["fc_w"], weights["fc_b"],
                   compute_dtype=compute_dtype)
    return out[:, :meta["output_dim"]]                       # drop lane padding


# Plain-JAX reference mirroring the PyTorch module (for numerical sanity).
def forward_reference(weights, x_nchw, *, meta):
    x = x_nchw
    for Wt, bt, (k, s, p) in zip(weights["ref_conv_w"], weights["ref_conv_b"],
                                 meta["conv"]):
        x = jax.lax.conv_general_dilated(
            x, Wt, window_strides=(s, s), padding=[(p, p), (p, p)],
            dimension_numbers=("NCHW", "OIHW", "NCHW"),
            precision=jax.lax.Precision.HIGHEST)
        x = jnp.maximum(x + bt.reshape(1, -1, 1, 1), 0.0)
    x = x.reshape(x.shape[0], -1)
    n_fc = len(weights["ref_fc_w"])
    for idx, (Wt, bt) in enumerate(zip(weights["ref_fc_w"],
                                       weights["ref_fc_b"])):
        x = jnp.dot(x, Wt.T, precision=jax.lax.Precision.HIGHEST) + bt
        if idx < n_fc - 1:
            x = jnp.maximum(x, 0.0)
    return x


if __name__ == "__main__":
    # Small synthetic configuration.
    batch, in_c, H, W = 2, 4, 16, 16
    conv_layers = [(8, 3, 1, 1),     # (out_c, k, stride, padding) -> 16x16
                   (16, 3, 2, 1)]    # -> 8x8
    fc_layers = [32]
    output_dim = 6

    key = jax.random.PRNGKey(0)
    key_params, key_x = jax.random.split(key)
    weights, meta = init_params(key_params, in_c, H, W, output_dim,
                                conv_layers, fc_layers)
    x = jax.random.normal(key_x, (batch, in_c, H, W), jnp.float32)

    fwd = jax.jit(functools.partial(forward, meta=meta))
    out = jax.block_until_ready(fwd(weights, x))
    assert out.shape == (batch, output_dim)
    assert out.dtype == jnp.float32

    # Numerical sanity check against the plain-JAX PyTorch-equivalent model.
    ref = jax.block_until_ready(forward_reference(weights, x, meta=meta))
    scale = max(1.0, float(jnp.max(jnp.abs(ref))))
    err = float(jnp.max(jnp.abs(out - ref)))
    assert err <= 3e-2 * scale, f"kernel/reference mismatch: {err} vs {scale}"

    print("KERNEL_OK")
</pallas_src>

<mosaic_0001>
module attributes {stable_mosaic.version = 11 : i64} {
  func.func @_conv_relu_kernel(%arg0: i32, %arg1: memref<1x18x18x4xf32, #tpu.memory_space<vmem>>, %arg2: memref<9x4x128xf32, #tpu.memory_space<vmem>>, %arg3: memref<1x128xf32, #tpu.memory_space<vmem>>, %arg4: memref<1x256x128xf32, #tpu.memory_space<vmem>>) attributes {dimension_semantics = [#tpu.dimension_semantics<parallel>], iteration_bounds = array<i64: 2>, scalar_prefetch = 0 : i64, scratch_operands = 0 : i64, tpu.core_type = #tpu.core_type<tc>, window_params = [{transform_indices = @transform_0, window_bounds = array<i64: 1, 18, 18, 4>}, {pipeline_mode = #tpu.pipeline_mode<synchronous>, transform_indices = @transform_1, window_bounds = array<i64: 9, 4, 128>}, {pipeline_mode = #tpu.pipeline_mode<synchronous>, transform_indices = @transform_2, window_bounds = array<i64: 1, 128>}, {transform_indices = @transform_3, window_bounds = array<i64: 1, 256, 128>}]} {
    %cst = arith.constant 0.000000e+00 : f32
    %0 = vector.broadcast %cst : f32 to vector<256x128xf32>
    %c0 = arith.constant 0 : index
    %c0_0 = arith.constant 0 : index
    %c0_1 = arith.constant 0 : index
    %c0_2 = arith.constant 0 : index
    %1 = vector.load %arg1[%c0, %c0_0, %c0_1, %c0_2] : memref<1x18x18x4xf32, #tpu.memory_space<vmem>>, vector<1x16x16x4xf32>
    %2 = vector.shape_cast %1 : vector<1x16x16x4xf32> to vector<16x16x4xf32>
    %3 = vector.shape_cast %2 : vector<16x16x4xf32> to vector<256x4xf32>
    %c0_3 = arith.constant 0 : index
    %c0_4 = arith.constant 0 : index
    %c0_5 = arith.constant 0 : index
    %4 = vector.load %arg2[%c0_3, %c0_4, %c0_5] : memref<9x4x128xf32, #tpu.memory_space<vmem>>, vector<1x4x128xf32>
    %5 = vector.shape_cast %4 : vector<1x4x128xf32> to vector<4x128xf32>
    %cst_6 = arith.constant dense<0.000000e+00> : vector<256x128xf32>
    %6 = tpu.matmul %3, %5, %cst_6 {dimension_numbers = #tpu.dot_dimension_numbers<[1], [0], [0], [1], [0, 0, 1, 1], [], []>} : vector<256x4xf32>, vector<4x128xf32>, vector<256x128xf32> -> vector<256x128xf32>
    %7 = arith.addf %0, %6 : vector<256x128xf32>
    %c0_7 = arith.constant 0 : index
    %c0_8 = arith.constant 0 : index
    %c1 = arith.constant 1 : index
    %c0_9 = arith.constant 0 : index
    %8 = vector.load %arg1[%c0_7, %c0_8, %c1, %c0_9] : memref<1x18x18x4xf32, #tpu.memory_space<vmem>>, vector<1x16x16x4xf32>
    %9 = vector.shape_cast %8 : vector<1x16x16x4xf32> to vector<16x16x4xf32>
    %10 = vector.shape_cast %9 : vector<16x16x4xf32> to vector<256x4xf32>
    %c1_10 = arith.constant 1 : index
    %c0_11 = arith.constant 0 : index
    %c0_12 = arith.constant 0 : index
    %11 = vector.load %arg2[%c1_10, %c0_11, %c0_12] : memref<9x4x128xf32, #tpu.memory_space<vmem>>, vector<1x4x128xf32>
    %12 = vector.shape_cast %11 : vector<1x4x128xf32> to vector<4x128xf32>
    %cst_13 = arith.constant dense<0.000000e+00> : vector<256x128xf32>
    %13 = tpu.matmul %10, %12, %cst_13 {dimension_numbers = #tpu.dot_dimension_numbers<[1], [0], [0], [1], [0, 0, 1, 1], [], []>} : vector<256x4xf32>, vector<4x128xf32>, vector<256x128xf32> -> vector<256x128xf32>
    %14 = arith.addf %7, %13 : vector<256x128xf32>
    %c0_14 = arith.constant 0 : index
    %c0_15 = arith.constant 0 : index
    %c2 = arith.constant 2 : index
    %c0_16 = arith.constant 0 : index
    %15 = vector.load %arg1[%c0_14, %c0_15, %c2, %c0_16] : memref<1x18x18x4xf32, #tpu.memory_space<vmem>>, vector<1x16x16x4xf32>
    %16 = vector.shape_cast %15 : vector<1x16x16x4xf32> to vector<16x16x4xf32>
    %17 = vector.shape_cast %16 : vector<16x16x4xf32> to vector<256x4xf32>
    %c2_17 = arith.constant 2 : index
    %c0_18 = arith.constant 0 : index
    %c0_19 = arith.constant 0 : index
    %18 = vector.load %arg2[%c2_17, %c0_18, %c0_19] : memref<9x4x128xf32, #tpu.memory_space<vmem>>, vector<1x4x128xf32>
    %19 = vector.shape_cast %18 : vector<1x4x128xf32> to vector<4x128xf32>
    %cst_20 = arith.constant dense<0.000000e+00> : vector<256x128xf32>
    %20 = tpu.matmul %17, %19, %cst_20 {dimension_numbers = #tpu.dot_dimension_numbers<[1], [0], [0], [1], [0, 0, 1, 1], [], []>} : vector<256x4xf32>, vector<4x128xf32>, vector<256x128xf32> -> vector<256x128xf32>
    %21 = arith.addf %14, %20 : vector<256x128xf32>
    %c0_21 = arith.constant 0 : index
    %c1_22 = arith.constant 1 : index
    %c0_23 = arith.constant 0 : index
    %c0_24 = arith.constant 0 : index
    %22 = vector.load %arg1[%c0_21, %c1_22, %c0_23, %c0_24] : memref<1x18x18x4xf32, #tpu.memory_space<vmem>>, vector<1x16x16x4xf32>
    %23 = vector.shape_cast %22 : vector<1x16x16x4xf32> to vector<16x16x4xf32>
    %24 = vector.shape_cast %23 : vector<16x16x4xf32> to vector<256x4xf32>
    %c3 = arith.constant 3 : index
    %c0_25 = arith.constant 0 : index
    %c0_26 = arith.constant 0 : index
    %25 = vector.load %arg2[%c3, %c0_25, %c0_26] : memref<9x4x128xf32, #tpu.memory_space<vmem>>, vector<1x4x128xf32>
    %26 = vector.shape_cast %25 : vector<1x4x128xf32> to vector<4x128xf32>
    %cst_27 = arith.constant dense<0.000000e+00> : vector<256x128xf32>
    %27 = tpu.matmul %24, %26, %cst_27 {dimension_numbers = #tpu.dot_dimension_numbers<[1], [0], [0], [1], [0, 0, 1, 1], [], []>} : vector<256x4xf32>, vector<4x128xf32>, vector<256x128xf32> -> vector<256x128xf32>
    %28 = arith.addf %21, %27 : vector<256x128xf32>
    %c0_28 = arith.constant 0 : index
    %c1_29 = arith.constant 1 : index
    %c1_30 = arith.constant 1 : index
    %c0_31 = arith.constant 0 : index
    %29 = vector.load %arg1[%c0_28, %c1_29, %c1_30, %c0_31] : memref<1x18x18x4xf32, #tpu.memory_space<vmem>>, vector<1x16x16x4xf32>
    %30 = vector.shape_cast %29 : vector<1x16x16x4xf32> to vector<16x16x4xf32>
    %31 = vector.shape_cast %30 : vector<16x16x4xf32> to vector<256x4xf32>
    %c4 = arith.constant 4 : index
    %c0_32 = arith.constant 0 : index
    %c0_33 = arith.constant 0 : index
    %32 = vector.load %arg2[%c4, %c0_32, %c0_33] : memref<9x4x128xf32, #tpu.memory_space<vmem>>, vector<1x4x128xf32>
    %33 = vector.shape_cast %32 : vector<1x4x128xf32> to vector<4x128xf32>
    %cst_34 = arith.constant dense<0.000000e+00> : vector<256x128xf32>
    %34 = tpu.matmul %31, %33, %cst_34 {dimension_numbers = #tpu.dot_dimension_numbers<[1], [0], [0], [1], [0, 0, 1, 1], [], []>} : vector<256x4xf32>, vector<4x128xf32>, vector<256x128xf32> -> vector<256x128xf32>
    %35 = arith.addf %28, %34 : vector<256x128xf32>
    %c0_35 = arith.constant 0 : index
    %c1_36 = arith.constant 1 : index
    %c2_37 = arith.constant 2 : index
    %c0_38 = arith.constant 0 : index
    %36 = vector.load %arg1[%c0_35, %c1_36, %c2_37, %c0_38] : memref<1x18x18x4xf32, #tpu.memory_space<vmem>>, vector<1x16x16x4xf32>
    %37 = vector.shape_cast %36 : vector<1x16x16x4xf32> to vector<16x16x4xf32>
    %38 = vector.shape_cast %37 : vector<16x16x4xf32> to vector<256x4xf32>
    %c5 = arith.constant 5 : index
    %c0_39 = arith.constant 0 : index
    %c0_40 = arith.constant 0 : index
    %39 = vector.load %arg2[%c5, %c0_39, %c0_40] : memref<9x4x128xf32, #tpu.memory_space<vmem>>, vector<1x4x128xf32>
    %40 = vector.shape_cast %39 : vector<1x4x128xf32> to vector<4x128xf32>
    %cst_41 = arith.constant dense<0.000000e+00> : vector<256x128xf32>
    %41 = tpu.matmul %38, %40, %cst_41 {dimension_numbers = #tpu.dot_dimension_numbers<[1], [0], [0], [1], [0, 0, 1, 1], [], []>} : vector<256x4xf32>, vector<4x128xf32>, vector<256x128xf32> -> vector<256x128xf32>
    %42 = arith.addf %35, %41 : vector<256x128xf32>
    %c0_42 = arith.constant 0 : index
    %c2_43 = arith.constant 2 : index
    %c0_44 = arith.constant 0 : index
    %c0_45 = arith.constant 0 : index
    %43 = vector.load %arg1[%c0_42, %c2_43, %c0_44, %c0_45] : memref<1x18x18x4xf32, #tpu.memory_space<vmem>>, vector<1x16x16x4xf32>
    %44 = vector.shape_cast %43 : vector<1x16x16x4xf32> to vector<16x16x4xf32>
    %45 = vector.shape_cast %44 : vector<16x16x4xf32> to vector<256x4xf32>
    %c6 = arith.constant 6 : index
    %c0_46 = arith.constant 0 : index
    %c0_47 = arith.constant 0 : index
    %46 = vector.load %arg2[%c6, %c0_46, %c0_47] : memref<9x4x128xf32, #tpu.memory_space<vmem>>, vector<1x4x128xf32>
    %47 = vector.shape_cast %46 : vector<1x4x128xf32> to vector<4x128xf32>
    %cst_48 = arith.constant dense<0.000000e+00> : vector<256x128xf32>
    %48 = tpu.matmul %45, %47, %cst_48 {dimension_numbers = #tpu.dot_dimension_numbers<[1], [0], [0], [1], [0, 0, 1, 1], [], []>} : vector<256x4xf32>, vector<4x128xf32>, vector<256x128xf32> -> vector<256x128xf32>
    %49 = arith.addf %42, %48 : vector<256x128xf32>
    %c0_49 = arith.constant 0 : index
    %c2_50 = arith.constant 2 : index
    %c1_51 = arith.constant 1 : index
    %c0_52 = arith.constant 0 : index
    %50 = vector.load %arg1[%c0_49, %c2_50, %c1_51, %c0_52] : memref<1x18x18x4xf32, #tpu.memory_space<vmem>>, vector<1x16x16x4xf32>
    %51 = vector.shape_cast %50 : vector<1x16x16x4xf32> to vector<16x16x4xf32>
    %52 = vector.shape_cast %51 : vector<16x16x4xf32> to vector<256x4xf32>
    %c7 = arith.constant 7 : index
    %c0_53 = arith.constant 0 : index
    %c0_54 = arith.constant 0 : index
    %53 = vector.load %arg2[%c7, %c0_53, %c0_54] : memref<9x4x128xf32, #tpu.memory_space<vmem>>, vector<1x4x128xf32>
    %54 = vector.shape_cast %53 : vector<1x4x128xf32> to vector<4x128xf32>
    %cst_55 = arith.constant dense<0.000000e+00> : vector<256x128xf32>
    %55 = tpu.matmul %52, %54, %cst_55 {dimension_numbers = #tpu.dot_dimension_numbers<[1], [0], [0], [1], [0, 0, 1, 1], [], []>} : vector<256x4xf32>, vector<4x128xf32>, vector<256x128xf32> -> vector<256x128xf32>
    %56 = arith.addf %49, %55 : vector<256x128xf32>
    %c0_56 = arith.constant 0 : index
    %c2_57 = arith.constant 2 : index
    %c2_58 = arith.constant 2 : index
    %c0_59 = arith.constant 0 : index
    %57 = vector.load %arg1[%c0_56, %c2_57, %c2_58, %c0_59] : memref<1x18x18x4xf32, #tpu.memory_space<vmem>>, vector<1x16x16x4xf32>
    %58 = vector.shape_cast %57 : vector<1x16x16x4xf32> to vector<16x16x4xf32>
    %59 = vector.shape_cast %58 : vector<16x16x4xf32> to vector<256x4xf32>
    %c8 = arith.constant 8 : index
    %c0_60 = arith.constant 0 : index
    %c0_61 = arith.constant 0 : index
    %60 = vector.load %arg2[%c8, %c0_60, %c0_61] : memref<9x4x128xf32, #tpu.memory_space<vmem>>, vector<1x4x128xf32>
    %61 = vector.shape_cast %60 : vector<1x4x128xf32> to vector<4x128xf32>
    %cst_62 = arith.constant dense<0.000000e+00> : vector<256x128xf32>
    %62 = tpu.matmul %59, %61, %cst_62 {dimension_numbers = #tpu.dot_dimension_numbers<[1], [0], [0], [1], [0, 0, 1, 1], [], []>} : vector<256x4xf32>, vector<4x128xf32>, vector<256x128xf32> -> vector<256x128xf32>
    %63 = arith.addf %56, %62 : vector<256x128xf32>
    %c0_63 = arith.constant 0 : index
    %c0_64 = arith.constant 0 : index
    %64 = vector.load %arg3[%c0_63, %c0_64] : memref<1x128xf32, #tpu.memory_space<vmem>>, vector<1x128xf32>
    %65 = vector.broadcast %64 : vector<1x128xf32> to vector<256x128xf32>
    %66 = arith.addf %63, %65 : vector<256x128xf32>
    %cst_65 = arith.constant 0.000000e+00 : f32
    %67 = vector.broadcast %cst_65 : f32 to vector<256x128xf32>
    %68 = arith.maximumf %66, %67 : vector<256x128xf32>
    %c0_66 = arith.constant 0 : index
    %c0_67 = arith.constant 0 : index
    %c0_68 = arith.constant 0 : index
    %69 = vector.load %arg4[%c0_66, %c0_67, %c0_68] : memref<1x256x128xf32, #tpu.memory_space<vmem>>, vector<1x256x128xf32>
    %70 = vector.shape_cast %69 : vector<1x256x128xf32> to vector<256x128xf32>
    %71 = vector.shape_cast %68 : vector<256x128xf32> to vector<1x256x128xf32>
    tpu.vector_store %arg4[%c0_66, %c0_67, %c0_68], %71 {strides = array<i32>} : memref<1x256x128xf32, #tpu.memory_space<vmem>>, vector<1x256x128xf32>,
    return
  }
  func.func @transform_0(%arg0: i32) -> (i32, i32, i32, i32) {
    %c0_i32 = arith.constant 0 : i32
    %c0_i32_0 = arith.constant 0 : i32
    %c0_i32_1 = arith.constant 0 : i32
    %c0_i32_2 = arith.constant 0 : i32
    return %arg0, %c0_i32, %c0_i32_0, %c0_i32_1 : i32, i32, i32, i32
  }
  func.func @transform_1(%arg0: i32) -> (i32, i32, i32) {
    %c0_i32 = arith.constant 0 : i32
    %c0_i32_0 = arith.constant 0 : i32
    %c0_i32_1 = arith.constant 0 : i32
    %c0_i32_2 = arith.constant 0 : i32
    return %c0_i32, %c0_i32_0, %c0_i32_1 : i32, i32, i32
  }
  func.func @transform_2(%arg0: i32) -> (i32, i32) {
    %c0_i32 = arith.constant 0 : i32
    %c0_i32_0 = arith.constant 0 : i32
    %c0_i32_1 = arith.constant 0 : i32
    return %c0_i32, %c0_i32_0 : i32, i32
  }
  func.func @transform_3(%arg0: i32) -> (i32, i32, i32) {
    %c0_i32 = arith.constant 0 : i32
    %c0_i32_0 = arith.constant 0 : i32
    %c0_i32_1 = arith.constant 0 : i32
    return %arg0, %c0_i32, %c0_i32_0 : i32, i32, i32
  }
}

module attributes {stable_mosaic.version = 11 : i64} {
  func.func @_conv_relu_kernel(%arg0: i32, %arg1: memref<1x9x2x9x256xf32, #tpu.memory_space<vmem>>, %arg2: memref<9x128x128xf32, #tpu.memory_space<vmem>>, %arg3: memref<1x128xf32, #tpu.memory_space<vmem>>, %arg4: memref<1x64x128xf32, #tpu.memory_space<vmem>>) attributes {dimension_semantics = [#tpu.dimension_semantics<parallel>], iteration_bounds = array<i64: 2>, scalar_prefetch = 0 : i64, scratch_operands = 0 : i64, tpu.core_type = #tpu.core_type<tc>, window_params = [{transform_indices = @transform_0, window_bounds = array<i64: 1, 9, 2, 9, 256>}, {pipeline_mode = #tpu.pipeline_mode<synchronous>, transform_indices = @transform_1, window_bounds = array<i64: 9, 128, 128>}, {pipeline_mode = #tpu.pipeline_mode<synchronous>, transform_indices = @transform_2, window_bounds = array<i64: 1, 128>}, {transform_indices = @transform_3, window_bounds = array<i64: 1, 64, 128>}]} {
    %cst = arith.constant 0.000000e+00 : f32
    %0 = vector.broadcast %cst : f32 to vector<64x128xf32>
    %c0 = arith.constant 0 : index
    %c0_0 = arith.constant 0 : index
    %c0_1 = arith.constant 0 : index
    %c0_2 = arith.constant 0 : index
    %c0_3 = arith.constant 0 : index
    %1 = vector.load %arg1[%c0, %c0_0, %c0_1, %c0_2, %c0_3] : memref<1x9x2x9x256xf32, #tpu.memory_space<vmem>>, vector<1x8x1x8x128xf32>
    %2 = vector.shape_cast %1 : vector<1x8x1x8x128xf32> to vector<8x8x128xf32>
    %3 = vector.shape_cast %2 : vector<8x8x128xf32> to vector<64x128xf32>
    %c0_4 = arith.constant 0 : index
    %c0_5 = arith.constant 0 : index
    %c0_6 = arith.constant 0 : index
    %4 = vector.load %arg2[%c0_4, %c0_5, %c0_6] : memref<9x128x128xf32, #tpu.memory_space<vmem>>, vector<1x128x128xf32>
    %5 = vector.shape_cast %4 : vector<1x128x128xf32> to vector<128x128xf32>
    %cst_7 = arith.constant dense<0.000000e+00> : vector<64x128xf32>
    %6 = tpu.matmul %3, %5, %cst_7 {dimension_numbers = #tpu.dot_dimension_numbers<[1], [0], [0], [1], [0, 0, 1, 1], [], []>} : vector<64x128xf32>, vector<128x128xf32>, vector<64x128xf32> -> vector<64x128xf32>
    %7 = arith.addf %0, %6 : vector<64x128xf32>
    %c0_8 = arith.constant 0 : index
    %c0_9 = arith.constant 0 : index
    %c0_10 = arith.constant 0 : index
    %c0_11 = arith.constant 0 : index
    %c128 = arith.constant 128 : index
    %8 = vector.load %arg1[%c0_8, %c0_9, %c0_10, %c0_11, %c128] : memref<1x9x2x9x256xf32, #tpu.memory_space<vmem>>, vector<1x8x1x8x128xf32>
    %9 = vector.shape_cast %8 : vector<1x8x1x8x128xf32> to vector<8x8x128xf32>
    %10 = vector.shape_cast %9 : vector<8x8x128xf32> to vector<64x128xf32>
    %c1 = arith.constant 1 : index
    %c0_12 = arith.constant 0 : index
    %c0_13 = arith.constant 0 : index
    %11 = vector.load %arg2[%c1, %c0_12, %c0_13] : memref<9x128x128xf32, #tpu.memory_space<vmem>>, vector<1x128x128xf32>
    %12 = vector.shape_cast %11 : vector<1x128x128xf32> to vector<128x128xf32>
    %cst_14 = arith.constant dense<0.000000e+00> : vector<64x128xf32>
    %13 = tpu.matmul %10, %12, %cst_14 {dimension_numbers = #tpu.dot_dimension_numbers<[1], [0], [0], [1], [0, 0, 1, 1], [], []>} : vector<64x128xf32>, vector<128x128xf32>, vector<64x128xf32> -> vector<64x128xf32>
    %14 = arith.addf %7, %13 : vector<64x128xf32>
    %c0_15 = arith.constant 0 : index
    %c0_16 = arith.constant 0 : index
    %c0_17 = arith.constant 0 : index
    %c1_18 = arith.constant 1 : index
    %c0_19 = arith.constant 0 : index
    %15 = vector.load %arg1[%c0_15, %c0_16, %c0_17, %c1_18, %c0_19] : memref<1x9x2x9x256xf32, #tpu.memory_space<vmem>>, vector<1x8x1x8x128xf32>
    %16 = vector.shape_cast %15 : vector<1x8x1x8x128xf32> to vector<8x8x128xf32>
    %17 = vector.shape_cast %16 : vector<8x8x128xf32> to vector<64x128xf32>
    %c2 = arith.constant 2 : index
    %c0_20 = arith.constant 0 : index
    %c0_21 = arith.constant 0 : index
    %18 = vector.load %arg2[%c2, %c0_20, %c0_21] : memref<9x128x128xf32, #tpu.memory_space<vmem>>, vector<1x128x128xf32>
    %19 = vector.shape_cast %18 : vector<1x128x128xf32> to vector<128x128xf32>
    %cst_22 = arith.constant dense<0.000000e+00> : vector<64x128xf32>
    %20 = tpu.matmul %17, %19, %cst_22 {dimension_numbers = #tpu.dot_dimension_numbers<[1], [0], [0], [1], [0, 0, 1, 1], [], []>} : vector<64x128xf32>, vector<128x128xf32>, vector<64x128xf32> -> vector<64x128xf32>
    %21 = arith.addf %14, %20 : vector<64x128xf32>
    %c0_23 = arith.constant 0 : index
    %c0_24 = arith.constant 0 : index
    %c1_25 = arith.constant 1 : index
    %c0_26 = arith.constant 0 : index
    %c0_27 = arith.constant 0 : index
    %22 = vector.load %arg1[%c0_23, %c0_24, %c1_25, %c0_26, %c0_27] : memref<1x9x2x9x256xf32, #tpu.memory_space<vmem>>, vector<1x8x1x8x128xf32>
    %23 = vector.shape_cast %22 : vector<1x8x1x8x128xf32> to vector<8x8x128xf32>
    %24 = vector.shape_cast %23 : vector<8x8x128xf32> to vector<64x128xf32>
    %c3 = arith.constant 3 : index
    %c0_28 = arith.constant 0 : index
    %c0_29 = arith.constant 0 : index
    %25 = vector.load %arg2[%c3, %c0_28, %c0_29] : memref<9x128x128xf32, #tpu.memory_space<vmem>>, vector<1x128x128xf32>
    %26 = vector.shape_cast %25 : vector<1x128x128xf32> to vector<128x128xf32>
    %cst_30 = arith.constant dense<0.000000e+00> : vector<64x128xf32>
    %27 = tpu.matmul %24, %26, %cst_30 {dimension_numbers = #tpu.dot_dimension_numbers<[1], [0], [0], [1], [0, 0, 1, 1], [], []>} : vector<64x128xf32>, vector<128x128xf32>, vector<64x128xf32> -> vector<64x128xf32>
    %28 = arith.addf %21, %27 : vector<64x128xf32>
    %c0_31 = arith.constant 0 : index
    %c0_32 = arith.constant 0 : index
    %c1_33 = arith.constant 1 : index
    %c0_34 = arith.constant 0 : index
    %c128_35 = arith.constant 128 : index
    %29 = vector.load %arg1[%c0_31, %c0_32, %c1_33, %c0_34, %c128_35] : memref<1x9x2x9x256xf32, #tpu.memory_space<vmem>>, vector<1x8x1x8x128xf32>
    %30 = vector.shape_cast %29 : vector<1x8x1x8x128xf32> to vector<8x8x128xf32>
    %31 = vector.shape_cast %30 : vector<8x8x128xf32> to vector<64x128xf32>
    %c4 = arith.constant 4 : index
    %c0_36 = arith.constant 0 : index
    %c0_37 = arith.constant 0 : index
    %32 = vector.load %arg2[%c4, %c0_36, %c0_37] : memref<9x128x128xf32, #tpu.memory_space<vmem>>, vector<1x128x128xf32>
    %33 = vector.shape_cast %32 : vector<1x128x128xf32> to vector<128x128xf32>
    %cst_38 = arith.constant dense<0.000000e+00> : vector<64x128xf32>
    %34 = tpu.matmul %31, %33, %cst_38 {dimension_numbers = #tpu.dot_dimension_numbers<[1], [0], [0], [1], [0, 0, 1, 1], [], []>} : vector<64x128xf32>, vector<128x128xf32>, vector<64x128xf32> -> vector<64x128xf32>
    %35 = arith.addf %28, %34 : vector<64x128xf32>
    %c0_39 = arith.constant 0 : index
    %c0_40 = arith.constant 0 : index
    %c1_41 = arith.constant 1 : index
    %c1_42 = arith.constant 1 : index
    %c0_43 = arith.constant 0 : index
    %36 = vector.load %arg1[%c0_39, %c0_40, %c1_41, %c1_42, %c0_43] : memref<1x9x2x9x256xf32, #tpu.memory_space<vmem>>, vector<1x8x1x8x128xf32>
    %37 = vector.shape_cast %36 : vector<1x8x1x8x128xf32> to vector<8x8x128xf32>
    %38 = vector.shape_cast %37 : vector<8x8x128xf32> to vector<64x128xf32>
    %c5 = arith.constant 5 : index
    %c0_44 = arith.constant 0 : index
    %c0_45 = arith.constant 0 : index
    %39 = vector.load %arg2[%c5, %c0_44, %c0_45] : memref<9x128x128xf32, #tpu.memory_space<vmem>>, vector<1x128x128xf32>
    %40 = vector.shape_cast %39 : vector<1x128x128xf32> to vector<128x128xf32>
    %cst_46 = arith.constant dense<0.000000e+00> : vector<64x128xf32>
    %41 = tpu.matmul %38, %40, %cst_46 {dimension_numbers = #tpu.dot_dimension_numbers<[1], [0], [0], [1], [0, 0, 1, 1], [], []>} : vector<64x128xf32>, vector<128x128xf32>, vector<64x128xf32> -> vector<64x128xf32>
    %42 = arith.addf %35, %41 : vector<64x128xf32>
    %c0_47 = arith.constant 0 : index
    %c1_48 = arith.constant 1 : index
    %c0_49 = arith.constant 0 : index
    %c0_50 = arith.constant 0 : index
    %c0_51 = arith.constant 0 : index
    %43 = vector.load %arg1[%c0_47, %c1_48, %c0_49, %c0_50, %c0_51] : memref<1x9x2x9x256xf32, #tpu.memory_space<vmem>>, vector<1x8x1x8x128xf32>
    %44 = vector.shape_cast %43 : vector<1x8x1x8x128xf32> to vector<8x8x128xf32>
    %45 = vector.shape_cast %44 : vector<8x8x128xf32> to vector<64x128xf32>
    %c6 = arith.constant 6 : index
    %c0_52 = arith.constant 0 : index
    %c0_53 = arith.constant 0 : index
    %46 = vector.load %arg2[%c6, %c0_52, %c0_53] : memref<9x128x128xf32, #tpu.memory_space<vmem>>, vector<1x128x128xf32>
    %47 = vector.shape_cast %46 : vector<1x128x128xf32> to vector<128x128xf32>
    %cst_54 = arith.constant dense<0.000000e+00> : vector<64x128xf32>
    %48 = tpu.matmul %45, %47, %cst_54 {dimension_numbers = #tpu.dot_dimension_numbers<[1], [0], [0], [1], [0, 0, 1, 1], [], []>} : vector<64x128xf32>, vector<128x128xf32>, vector<64x128xf32> -> vector<64x128xf32>
    %49 = arith.addf %42, %48 : vector<64x128xf32>
    %c0_55 = arith.constant 0 : index
    %c1_56 = arith.constant 1 : index
    %c0_57 = arith.constant 0 : index
    %c0_58 = arith.constant 0 : index
    %c128_59 = arith.constant 128 : index
    %50 = vector.load %arg1[%c0_55, %c1_56, %c0_57, %c0_58, %c128_59] : memref<1x9x2x9x256xf32, #tpu.memory_space<vmem>>, vector<1x8x1x8x128xf32>
    %51 = vector.shape_cast %50 : vector<1x8x1x8x128xf32> to vector<8x8x128xf32>
    %52 = vector.shape_cast %51 : vector<8x8x128xf32> to vector<64x128xf32>
    %c7 = arith.constant 7 : index
    %c0_60 = arith.constant 0 : index
    %c0_61 = arith.constant 0 : index
    %53 = vector.load %arg2[%c7, %c0_60, %c0_61] : memref<9x128x128xf32, #tpu.memory_space<vmem>>, vector<1x128x128xf32>
    %54 = vector.shape_cast %53 : vector<1x128x128xf32> to vector<128x128xf32>
    %cst_62 = arith.constant dense<0.000000e+00> : vector<64x128xf32>
    %55 = tpu.matmul %52, %54, %cst_62 {dimension_numbers = #tpu.dot_dimension_numbers<[1], [0], [0], [1], [0, 0, 1, 1], [], []>} : vector<64x128xf32>, vector<128x128xf32>, vector<64x128xf32> -> vector<64x128xf32>
    %56 = arith.addf %49, %55 : vector<64x128xf32>
    %c0_63 = arith.constant 0 : index
    %c1_64 = arith.constant 1 : index
    %c0_65 = arith.constant 0 : index
    %c1_66 = arith.constant 1 : index
    %c0_67 = arith.constant 0 : index
    %57 = vector.load %arg1[%c0_63, %c1_64, %c0_65, %c1_66, %c0_67] : memref<1x9x2x9x256xf32, #tpu.memory_space<vmem>>, vector<1x8x1x8x128xf32>
    %58 = vector.shape_cast %57 : vector<1x8x1x8x128xf32> to vector<8x8x128xf32>
    %59 = vector.shape_cast %58 : vector<8x8x128xf32> to vector<64x128xf32>
    %c8 = arith.constant 8 : index
    %c0_68 = arith.constant 0 : index
    %c0_69 = arith.constant 0 : index
    %60 = vector.load %arg2[%c8, %c0_68, %c0_69] : memref<9x128x128xf32, #tpu.memory_space<vmem>>, vector<1x128x128xf32>
    %61 = vector.shape_cast %60 : vector<1x128x128xf32> to vector<128x128xf32>
    %cst_70 = arith.constant dense<0.000000e+00> : vector<64x128xf32>
    %62 = tpu.matmul %59, %61, %cst_70 {dimension_numbers = #tpu.dot_dimension_numbers<[1], [0], [0], [1], [0, 0, 1, 1], [], []>} : vector<64x128xf32>, vector<128x128xf32>, vector<64x128xf32> -> vector<64x128xf32>
    %63 = arith.addf %56, %62 : vector<64x128xf32>
    %c0_71 = arith.constant 0 : index
    %c0_72 = arith.constant 0 : index
    %64 = vector.load %arg3[%c0_71, %c0_72] : memref<1x128xf32, #tpu.memory_space<vmem>>, vector<1x128xf32>
    %65 = vector.broadcast %64 : vector<1x128xf32> to vector<64x128xf32>
    %66 = arith.addf %63, %65 : vector<64x128xf32>
    %cst_73 = arith.constant 0.000000e+00 : f32
    %67 = vector.broadcast %cst_73 : f32 to vector<64x128xf32>
    %68 = arith.maximumf %66, %67 : vector<64x128xf32>
    %c0_74 = arith.constant 0 : index
    %c0_75 = arith.constant 0 : index
    %c0_76 = arith.constant 0 : index
    %69 = vector.load %arg4[%c0_74, %c0_75, %c0_76] : memref<1x64x128xf32, #tpu.memory_space<vmem>>, vector<1x64x128xf32>
    %70 = vector.shape_cast %69 : vector<1x64x128xf32> to vector<64x128xf32>
    %71 = vector.shape_cast %68 : vector<64x128xf32> to vector<1x64x128xf32>
    tpu.vector_store %arg4[%c0_74, %c0_75, %c0_76], %71 {strides = array<i32>} : memref<1x64x128xf32, #tpu.memory_space<vmem>>, vector<1x64x128xf32>,
    return
  }
  func.func @transform_0(%arg0: i32) -> (i32, i32, i32, i32, i32) {
    %c0_i32 = arith.constant 0 : i32
    %c0_i32_0 = arith.constant 0 : i32
    %c0_i32_1 = arith.constant 0 : i32
    %c0_i32_2 = arith.constant 0 : i32
    %c0_i32_3 = arith.constant 0 : i32
    return %arg0, %c0_i32, %c0_i32_0, %c0_i32_1, %c0_i32_2 : i32, i32, i32, i32, i32
  }
  func.func @transform_1(%arg0: i32) -> (i32, i32, i32) {
    %c0_i32 = arith.constant 0 : i32
    %c0_i32_0 = arith.constant 0 : i32
    %c0_i32_1 = arith.constant 0 : i32
    %c0_i32_2 = arith.constant 0 : i32
    return %c0_i32, %c0_i32_0, %c0_i32_1 : i32, i32, i32
  }
  func.func @transform_2(%arg0: i32) -> (i32, i32) {
    %c0_i32 = arith.constant 0 : i32
    %c0_i32_0 = arith.constant 0 : i32
    %c0_i32_1 = arith.constant 0 : i32
    return %c0_i32, %c0_i32_0 : i32, i32
  }
  func.func @transform_3(%arg0: i32) -> (i32, i32, i32) {
    %c0_i32 = arith.constant 0 : i32
    %c0_i32_0 = arith.constant 0 : i32
    %c0_i32_1 = arith.constant 0 : i32
    return %arg0, %c0_i32, %c0_i32_0 : i32, i32, i32
  }
}

module attributes {stable_mosaic.version = 11 : i64} {
  func.func @_fc_stack_kernel(%arg0: i32, %arg1: memref<2x8192xf32, #tpu.memory_space<vmem>>, %arg2: memref<8192x128xf32, #tpu.memory_space<vmem>>, %arg3: memref<1x128xf32, #tpu.memory_space<vmem>>, %arg4: memref<128x128xf32, #tpu.memory_space<vmem>>, %arg5: memref<1x128xf32, #tpu.memory_space<vmem>>, %arg6: memref<2x128xf32, #tpu.memory_space<vmem>>) attributes {dimension_semantics = [#tpu.dimension_semantics<parallel>], iteration_bounds = array<i64: 1>, scalar_prefetch = 0 : i64, scratch_operands = 0 : i64, tpu.core_type = #tpu.core_type<tc>, window_params = [{transform_indices = @transform_0, window_bounds = array<i64: 2, 8192>}, {pipeline_mode = #tpu.pipeline_mode<synchronous>, transform_indices = @transform_1, window_bounds = array<i64: 8192, 128>}, {pipeline_mode = #tpu.pipeline_mode<synchronous>, transform_indices = @transform_2, window_bounds = array<i64: 1, 128>}, {pipeline_mode = #tpu.pipeline_mode<synchronous>, transform_indices = @transform_3, window_bounds = array<i64: 128, 128>}, {pipeline_mode = #tpu.pipeline_mode<synchronous>, transform_indices = @transform_4, window_bounds = array<i64: 1, 128>}, {transform_indices = @transform_5, window_bounds = array<i64: 2, 128>}]} {
    %c0 = arith.constant 0 : index
    %c0_0 = arith.constant 0 : index
    %0 = vector.load %arg1[%c0, %c0_0] : memref<2x8192xf32, #tpu.memory_space<vmem>>, vector<2x8192xf32>
    %c0_1 = arith.constant 0 : index
    %c0_2 = arith.constant 0 : index
    %1 = vector.load %arg2[%c0_1, %c0_2] : memref<8192x128xf32, #tpu.memory_space<vmem>>, vector<8192x128xf32>
    %c0_3 = arith.constant 0 : index
    %c0_4 = arith.constant 0 : index
    %2 = vector.load %arg3[%c0_3, %c0_4] : memref<1x128xf32, #tpu.memory_space<vmem>>, vector<1x128xf32>
    %cst = arith.constant dense<0.000000e+00> : vector<2x128xf32>
    %3 = tpu.matmul %0, %1, %cst {dimension_numbers = #tpu.dot_dimension_numbers<[1], [0], [0], [1], [0, 0, 1, 1], [], []>} : vector<2x8192xf32>, vector<8192x128xf32>, vector<2x128xf32> -> vector<2x128xf32>
    %4 = vector.broadcast %2 : vector<1x128xf32> to vector<2x128xf32>
    %5 = arith.addf %3, %4 : vector<2x128xf32>
    %cst_5 = arith.constant 0.000000e+00 : f32
    %6 = vector.broadcast %cst_5 : f32 to vector<2x128xf32>
    %7 = arith.maximumf %5, %6 : vector<2x128xf32>
    %c0_6 = arith.constant 0 : index
    %c0_7 = arith.constant 0 : index
    %8 = vector.load %arg4[%c0_6, %c0_7] : memref<128x128xf32, #tpu.memory_space<vmem>>, vector<128x128xf32>
    %c0_8 = arith.constant 0 : index
    %c0_9 = arith.constant 0 : index
    %9 = vector.load %arg5[%c0_8, %c0_9] : memref<1x128xf32, #tpu.memory_space<vmem>>, vector<1x128xf32>
    %cst_10 = arith.constant dense<0.000000e+00> : vector<2x128xf32>
    %10 = tpu.matmul %7, %8, %cst_10 {dimension_numbers = #tpu.dot_dimension_numbers<[1], [0], [0], [1], [0, 0, 1, 1], [], []>} : vector<2x128xf32>, vector<128x128xf32>, vector<2x128xf32> -> vector<2x128xf32>
    %11 = vector.broadcast %9 : vector<1x128xf32> to vector<2x128xf32>
    %12 = arith.addf %10, %11 : vector<2x128xf32>
    %c0_11 = arith.constant 0 : index
    %c0_12 = arith.constant 0 : index
    %13 = vector.load %arg6[%c0_11, %c0_12] : memref<2x128xf32, #tpu.memory_space<vmem>>, vector<2x128xf32>
    tpu.vector_store %arg6[%c0_11, %c0_12], %12 {strides = array<i32>} : memref<2x128xf32, #tpu.memory_space<vmem>>, vector<2x128xf32>,
    return
  }
  func.func @transform_0(%arg0: i32) -> (i32, i32) {
    %c0_i32 = arith.constant 0 : i32
    %c0_i32_0 = arith.constant 0 : i32
    return %arg0, %c0_i32 : i32, i32
  }
  func.func @transform_1(%arg0: i32) -> (i32, i32) {
    %c0_i32 = arith.constant 0 : i32
    %c0_i32_0 = arith.constant 0 : i32
    %c0_i32_1 = arith.constant 0 : i32
    return %c0_i32, %c0_i32_0 : i32, i32
  }
  func.func @transform_2(%arg0: i32) -> (i32, i32) {
    %c0_i32 = arith.constant 0 : i32
    %c0_i32_0 = arith.constant 0 : i32
    %c0_i32_1 = arith.constant 0 : i32
    return %c0_i32, %c0_i32_0 : i32, i32
  }
  func.func @transform_3(%arg0: i32) -> (i32, i32) {
    %c0_i32 = arith.constant 0 : i32
    %c0_i32_0 = arith.constant 0 : i32
    %c0_i32_1 = arith.constant 0 : i32
    return %c0_i32, %c0_i32_0 : i32, i32
  }
  func.func @transform_4(%arg0: i32) -> (i32, i32) {
    %c0_i32 = arith.constant 0 : i32
    %c0_i32_0 = arith.constant 0 : i32
    %c0_i32_1 = arith.constant 0 : i32
    return %c0_i32, %c0_i32_0 : i32, i32
  }
  func.func @transform_5(%arg0: i32) -> (i32, i32) {
    %c0_i32 = arith.constant 0 : i32
    %c0_i32_0 = arith.constant 0 : i32
    return %arg0, %c0_i32 : i32, i32
  }
}

</mosaic_0001>

<llo_original>
// kernel: forward.4
$region0: #{forward.4}
  #allocation0 [shape = 'u32[]', space=smem, size = 0x4, offset = 0x4, fixed_abs, tag = 'smem constant byte address 0x4 - core index']
  #allocation1 [shape = 'u32[144,128]{1,0:T(1,128)}', space=vmem, size = 0x12000, scoped, tag = 'internal scratch']
  %s0 = inlined_call_operand.vmem [shape: f32[2,9,2,9,256], index: 0, kind: input, shape index: {}]
  %s1 = inlined_call_operand.hbm [shape: f32[9,128,128], index: 1, kind: input, shape index: {}]
  %s2 = inlined_call_operand.hbm [shape: f32[1,128], index: 2, kind: input, shape index: {}]
  %s3 = inlined_call_operand.vmem [shape: f32[2,64,128], index: 3, kind: output, shape index: {}]
  %s4 = sld [smem:[#allocation0]]
  $region53: #{forward.4} parent=0
    _
  %s6 = ssub.s32 1, %s4
  %s7 = scalar_select 0, %s6, %s4
  $region1: #{forward.4} parent=0
    #allocation2 [shape = 'u8[589824]{0}', space=vmem, size = 0x90000, scoped, tag = 'input window, operand 1, single buffered']
    #allocation3 [shape = 's32[2]{0}', space=sflag, size = 0x8, scoped, tag = 'scoped memory for forward.4']
    #allocation4 [shape = 'u8[512]{0}', space=vmem, size = 0x400, scoped, tag = 'input window, operand 2, single buffered']
    #allocation5 [shape = 's32[1]{0}', space=sflag, size = 0x4, scoped, tag = 'scoped memory for forward.4']
    %8 = vsyncpa [#allocation3], 0
    %9 = vsyncpa [#allocation5], 0
    loop: start=0, step=1, limit=4
    $region2: #{forward.4} parent=1 // loop_pre_header
      _
    $region3: #{forward.4} parent=1 // loop_header
      %s11 = sphi 0, %s15
      %p12 = scmp.ge.s32.totalorder %s11, 4
      %s21 = sphi 0, %s23
      %s24 = sphi 0, %s21
      %s25 = sphi 0, %s24
      %s41 = sphi 0, %s25
      %s45 = sphi 0, %s45
      %s47 = sphi 0, %s45
      %s48 = sphi 0, %s47
      %s62 = sphi 0, %s48
      %s66 = sphi 0, %s66
      %s68 = sphi 0, %s66
      %s69 = sphi 0, %s68
      %s83 = sphi 0, %s69
      %s89 = sphi 0, %s91
      %s92 = sphi 0, %s89
      %s93 = sphi 0, %s92
      %s109 = sphi 0, %s93
    $region4: #{forward.4} parent=1 // loop_header_branch
      %14 = sbr.rel (%p12) target = $region8
    $region5: #{forward.4} parent=1 // loop_body
      %s16 = ssub.s32 %s11, 1
      %s17 = ssub.s32 %s11, 2
      %s18 = sadd.s32 %s11, 1
      %s19 = ssub.s32 %s11, %s18
      %p20 = scmp.eq.s32.totalorder %s19, 0
      %s22 = sadd.s32 %s21, 1
      %s23 = scalar_select %p20, %s21, %s22
      %p26 = pneg %p20
      %p27 = scmp.eq.s32.totalorder %s11, 1
      %p28 = por %p26, %p27
      %p29 = scmp.ne.s32.totalorder %s21, %s24
      %p30 = scmp.eq.s32.totalorder %s11, 0
      %p31 = por %p29, %p30
      %p32 = scmp.ne.s32.totalorder %s21, %s24
      %p33 = scmp.eq.s32.totalorder %s16, 1
      %p34 = por %p32, %p33
      %p35 = scmp.ne.s32.totalorder %s24, %s25
      %p36 = scmp.eq.s32.totalorder %s16, 0
      %p37 = por %p35, %p36
      %p38 = scmp.ne.s32.totalorder %s24, %s25
      %p39 = scmp.eq.s32.totalorder %s17, 1
      %p40 = por %p38, %p39
      %p42 = scmp.ne.s32.totalorder %s25, %s41
      %p43 = scmp.eq.s32.totalorder %s17, 0
      %p44 = por %p42, %p43
      %s46 = sadd.s32 %s45, 1
      %p49 = scmp.eq.s32.totalorder %s11, 1
      %p50 = scmp.ne.s32.totalorder %s45, %s47
      %p51 = scmp.eq.s32.totalorder %s11, 0
      %p52 = por %p50, %p51
      %p53 = scmp.ne.s32.totalorder %s45, %s47
      %p54 = scmp.eq.s32.totalorder %s16, 1
      %p55 = por %p53, %p54
      %p56 = scmp.ne.s32.totalorder %s47, %s48
      %p57 = scmp.eq.s32.totalorder %s16, 0
      %p58 = por %p56, %p57
      %p59 = scmp.ne.s32.totalorder %s47, %s48
      %p60 = scmp.eq.s32.totalorder %s17, 1
      %p61 = por %p59, %p60
      %p63 = scmp.ne.s32.totalorder %s48, %s62
      %p64 = scmp.eq.s32.totalorder %s17, 0
      %p65 = por %p63, %p64
      %s67 = sadd.s32 %s66, 1
      %p70 = scmp.eq.s32.totalorder %s11, 1
      %p71 = scmp.ne.s32.totalorder %s66, %s68
      %p72 = scmp.eq.s32.totalorder %s11, 0
      %p73 = por %p71, %p72
      %p74 = scmp.ne.s32.totalorder %s66, %s68
      %p75 = scmp.eq.s32.totalorder %s16, 1
      %p76 = por %p74, %p75
      %p77 = scmp.ne.s32.totalorder %s68, %s69
      %p78 = scmp.eq.s32.totalorder %s16, 0
      %p79 = por %p77, %p78
      %p80 = scmp.ne.s32.totalorder %s68, %s69
      %p81 = scmp.eq.s32.totalorder %s17, 1
      %p82 = por %p80, %p81
      %p84 = scmp.ne.s32.totalorder %s69, %s83
      %p85 = scmp.eq.s32.totalorder %s17, 0
      %p86 = por %p84, %p85
      %s87 = ssub.s32 %s11, %s18
      %p88 = scmp.eq.s32.totalorder %s87, 0
      %s90 = sadd.s32 %s89, 1
      %s91 = scalar_select %p88, %s89, %s90
      %p94 = pneg %p88
      %p95 = scmp.eq.s32.totalorder %s11, 1
      %p96 = por %p94, %p95
      %p97 = scmp.ne.s32.totalorder %s89, %s92
      %p98 = scmp.eq.s32.totalorder %s11, 0
      %p99 = por %p97, %p98
      %p100 = scmp.ne.s32.totalorder %s89, %s92
      %p101 = scmp.eq.s32.totalorder %s16, 1
      %p102 = por %p100, %p101
      %p103 = scmp.ne.s32.totalorder %s92, %s93
      %p104 = scmp.eq.s32.totalorder %s16, 0
      %p105 = por %p103, %p104
      %p106 = scmp.ne.s32.totalorder %s92, %s93
      %p107 = scmp.eq.s32.totalorder %s17, 1
      %p108 = por %p106, %p107
      %p110 = scmp.ne.s32.totalorder %s93, %s109
      %p111 = scmp.eq.s32.totalorder %s17, 0
      %p112 = por %p110, %p111
      %p113 = scmp.le.s32.totalorder 1, %s11
      %p114 = scmp.lt.s32.totalorder %s11, 3
      %p115 = pnand %p113, %p114
      %p116 = pneg %p115
      // Predicated region
      $region9: #{forward.4} parent=5 // pred_check
        _
      $region10: #{forward.4} parent=5 // pred_check_branch
        %118 = sbr.rel (%p115) target = $region12
      $region11: #{forward.4} parent=5 // pred_region
        %s119 = ssub.s32 %s11, 1
        // Predicated region
        $region13: #{forward.4} parent=11 // pred_check
          %p120 = pneg %p58
        $region14: #{forward.4} parent=11 // pred_check_branch
          %122 = sbr.rel (%p120) target = $region16
        $region15: #{forward.4} parent=11 // pred_region
          %s124 = ssub.s32 18432, 18432
          %125 = vsyncadd [#allocation3], %s124
          %s126 = sshll.u32 [#allocation2], 4
          %s127 = int_to_ptr.vmem [resolvable:$true] %s126
          %132 = dma.hbm_to_vmem [thread:$0]  %s1, 18432, %s127, [#allocation3], 128, 128, 8
        $region16: #{forward.4} parent=11 // pred_fallthru
          _
        // Predicated region
        $region17: #{forward.4} parent=11 // pred_check
          %p133 = pneg %p79
        $region18: #{forward.4} parent=11 // pred_check_branch
          %135 = sbr.rel (%p133) target = $region20
        $region19: #{forward.4} parent=11 // pred_region
          %s137 = ssub.s32 16, 16
          %138 = vsyncadd [#allocation5], %s137
          %s140 = sshll.u32 [#allocation4], 4
          %s141 = int_to_ptr.vmem [resolvable:$true] %s140
          %143 = dma.hbm_to_vmem [thread:$0]  %s2, 16, %s141, [#allocation5]
        $region20: #{forward.4} parent=11 // pred_fallthru
          _
      $region12: #{forward.4} parent=5 // pred_fallthru
        _
      %p144 = scmp.lt.s32.totalorder %s11, 2
      // Predicated region
      $region21: #{forward.4} parent=5 // pred_check
        %p145 = pneg %p144
      $region22: #{forward.4} parent=5 // pred_check_branch
        %147 = sbr.rel (%p145) target = $region24
      $region23: #{forward.4} parent=5 // pred_region
        // Predicated region
        $region25: #{forward.4} parent=23 // pred_check
          %p148 = pneg %p31
        $region26: #{forward.4} parent=23 // pred_check_branch
          %150 = sbr.rel (%p148) target = $region28
        $region27: #{forward.4} parent=23 // pred_region
          %p151 = scmp.lt.s32.totalorder %s11, 1
          %s152 = scalar_select %p151, %s11, 1
          %s153 = smul.addr %s152, 72
          %s154 = smul.addr %s153, 8
          %s155 = scalar_lea.vmem %s0, %s154
        $region28: #{forward.4} parent=23 // pred_fallthru
          _
      $region24: #{forward.4} parent=5 // pred_fallthru
        _
      %p156 = scmp.le.s32.totalorder 1, %s11
      %p157 = scmp.lt.s32.totalorder %s11, 3
      %p158 = pnand %p156, %p157
      %p159 = pneg %p158
      // Predicated region
      $region29: #{forward.4} parent=5 // pred_check
        _
      $region30: #{forward.4} parent=5 // pred_check_branch
        %161 = sbr.rel (%p158) target = $region32
      $region31: #{forward.4} parent=5 // pred_region
        %s162 = ssub.s32 %s11, 1
        // Predicated region
        $region33: #{forward.4} parent=31 // pred_check
          %p163 = pneg %p58
        $region34: #{forward.4} parent=31 // pred_check_branch
          %165 = sbr.rel (%p163) target = $region36
        $region35: #{forward.4} parent=31 // pred_region
          %166 = dma.done [#allocation3], 18432
        $region36: #{forward.4} parent=31 // pred_fallthru
          _
        // Predicated region
        $region37: #{forward.4} parent=31 // pred_check
          %p167 = pneg %p79
        $region38: #{forward.4} parent=31 // pred_check_branch
          %169 = sbr.rel (%p167) target = $region40
        $region39: #{forward.4} parent=31 // pred_region
          %170 = dma.done [#allocation5], 16
        $region40: #{forward.4} parent=31 // pred_fallthru
          _
        %p171 = scmp.lt.s32.totalorder %s16, 1
        %s172 = scalar_select %p171, %s16, 1
        %s173 = smul.addr %s172, 72
        %s174 = smul.addr %s173, 8
        %s175 = scalar_lea.vmem %s0, %s174
        %p176 = pneg %p37
        %p177 = pneg %p34
        %p178 = pneg %p58
        %p179 = pneg %p55
        %p180 = pneg %p79
        %p181 = pneg %p76
        %p182 = pneg %p105
        %p183 = pneg %p102
        %p184 = scmp.lt.s32.totalorder %s16, 1
        %s185 = scalar_select %p184, %s16, 1
        %s186 = smul.addr %s185, 8
        %s187 = smul.addr %s186, 8
        %s188 = scalar_lea.vmem %s3, %s187
        %p189 = scmp.lt.s32.totalorder %s16, 1
        %s190 = scalar_select %p189, %s16, 1
        %s191 = smul.addr %s190, 72
        %s192 = smul.addr %s191, 8
        %s193 = scalar_lea.vmem %s0, %s192
        %p194 = scmp.lt.s32.totalorder %s16, 1
        %s195 = scalar_select %p194, %s16, 1
        %s196 = smul.addr %s195, 8
        %s197 = smul.addr %s196, 8
        %s198 = scalar_lea.vmem %s3, %s197
        %v199 = vld [vmem:[%s193] sm:$0xff]
        %v200 = vld [vmem:[%s193 + $0x40] sm:$0xff]
        %v201 = vld [vmem:[%s193 + $0x80] sm:$0xff]
        %v202 = vld [vmem:[%s193 + $0xc0] sm:$0xff]
        %v203 = vld [vmem:[%s193 + $0x100] sm:$0xff]
        %v204 = vld [vmem:[%s193 + $0x140] sm:$0xff]
        %v205 = vld [vmem:[%s193 + $0x180] sm:$0xff]
        %v206 = vld [vmem:[%s193 + $0x1c0] sm:$0xff]
        %v207 = vld [vmem:[#allocation2] sm:$0xff]
        %v208 = vld [vmem:[#allocation2 + $0x8] sm:$0xff]
        %v209 = vld [vmem:[#allocation2 + $0x10] sm:$0xff]
        %v210 = vld [vmem:[#allocation2 + $0x18] sm:$0xff]
        %v211 = vld [vmem:[#allocation2 + $0x20] sm:$0xff]
        %v212 = vld [vmem:[#allocation2 + $0x28] sm:$0xff]
        %v213 = vld [vmem:[#allocation2 + $0x30] sm:$0xff]
        %v214 = vld [vmem:[#allocation2 + $0x38] sm:$0xff]
        %v215 = vld [vmem:[#allocation2 + $0x40] sm:$0xff]
        %v216 = vld [vmem:[#allocation2 + $0x48] sm:$0xff]
        %v217 = vld [vmem:[#allocation2 + $0x50] sm:$0xff]
        %v218 = vld [vmem:[#allocation2 + $0x58] sm:$0xff]
        %v219 = vld [vmem:[#allocation2 + $0x60] sm:$0xff]
        %v220 = vld [vmem:[#allocation2 + $0x68] sm:$0xff]
        %v221 = vld [vmem:[#allocation2 + $0x70] sm:$0xff]
        %v222 = vld [vmem:[#allocation2 + $0x78] sm:$0xff]
        %v223 = vld [vmem:[%s193 + $0x8] sm:$0xff]
        %v224 = vld [vmem:[%s193 + $0x48] sm:$0xff]
        %v225 = vld [vmem:[%s193 + $0x88] sm:$0xff]
        %v226 = vld [vmem:[%s193 + $0xc8] sm:$0xff]
        %v227 = vld [vmem:[%s193 + $0x108] sm:$0xff]
        %v228 = vld [vmem:[%s193 + $0x148] sm:$0xff]
        %v229 = vld [vmem:[%s193 + $0x188] sm:$0xff]
        %v230 = vld [vmem:[%s193 + $0x1c8] sm:$0xff]
        %s231 = scalar_lea.vmem [#allocation2], 128
        %v232 = vld [vmem:[%s231] sm:$0xff]
        %v233 = vld [vmem:[%s231 + $0x8] sm:$0xff]
        %v234 = vld [vmem:[%s231 + $0x10] sm:$0xff]
        %v235 = vld [vmem:[%s231 + $0x18] sm:$0xff]
        %v236 = vld [vmem:[%s231 + $0x20] sm:$0xff]
        %v237 = vld [vmem:[%s231 + $0x28] sm:$0xff]
        %v238 = vld [vmem:[%s231 + $0x30] sm:$0xff]
        %v239 = vld [vmem:[%s231 + $0x38] sm:$0xff]
        %v240 = vld [vmem:[%s231 + $0x40] sm:$0xff]
        %v241 = vld [vmem:[%s231 + $0x48] sm:$0xff]
        %v242 = vld [vmem:[%s231 + $0x50] sm:$0xff]
        %v243 = vld [vmem:[%s231 + $0x58] sm:$0xff]
        %v244 = vld [vmem:[%s231 + $0x60] sm:$0xff]
        %v245 = vld [vmem:[%s231 + $0x68] sm:$0xff]
        %v246 = vld [vmem:[%s231 + $0x70] sm:$0xff]
        %v247 = vld [vmem:[%s231 + $0x78] sm:$0xff]
        %248 = vmatprep.subr.mxu0 0.0
        %249 = vmatpush1.msra.mxu0 %v232
        %250 = vmatprep.subr.mxu0 0.0
        %251 = vmatpush1.msra.mxu0 %v233
        %252 = vmatprep.subr.mxu0 0.0
        %253 = vmatpush1.msra.mxu0 %v234
        %254 = vmatprep.subr.mxu0 0.0
        %255 = vmatpush1.msra.mxu0 %v235
        %256 = vmatprep.subr.mxu0 0.0
        %257 = vmatpush1.msra.mxu0 %v236
        %258 = vmatprep.subr.mxu0 0.0
        %259 = vmatpush1.msra.mxu0 %v237
        %260 = vmatprep.subr.mxu0 0.0
        %261 = vmatpush1.msra.mxu0 %v238
        %262 = vmatprep.subr.mxu0 0.0
        %263 = vmatpush1.msra.mxu0 %v239
        %264 = vmatprep.subr.mxu0 0.0
        %265 = vmatpush1.msra.mxu0 %v240
        %266 = vmatprep.subr.mxu0 0.0
        %267 = vmatpush1.msra.mxu0 %v241
        %268 = vmatprep.subr.mxu0 0.0
        %269 = vmatpush1.msra.mxu0 %v242
        %270 = vmatprep.subr.mxu0 0.0
        %271 = vmatpush1.msra.mxu0 %v243
        %272 = vmatprep.subr.mxu0 0.0
        %273 = vmatpush1.msra.mxu0 %v244
        %274 = vmatprep.subr.mxu0 0.0
        %275 = vmatpush1.msra.mxu0 %v245
        %276 = vmatprep.subr.mxu0 0.0
        %277 = vmatpush1.msra.mxu0 %v246
        %278 = vmatprep.subr.mxu0 0.0
        %279 = vmatpush1.msra.mxu0 %v247
        %280 = vmatprep.subr.mxu0 0.0
        %281 = vmatpush1.msra.mxu0 0.0
        %282 = vmatprep.subr.mxu0 0.0
        %283 = vmatpush1.msra.mxu0 0.0
        %284 = vmatprep.subr.mxu0 0.0
        %285 = vmatpush1.msra.mxu0 0.0
        %286 = vmatprep.subr.mxu0 0.0
        %287 = vmatpush1.msra.mxu0 0.0
        %288 = vmatprep.subr.mxu0 0.0
        %289 = vmatpush1.msra.mxu0 0.0
        %290 = vmatprep.subr.mxu0 0.0
        %291 = vmatpush1.msra.mxu0 0.0
        %292 = vmatprep.subr.mxu0 0.0
        %293 = vmatpush1.msra.mxu0 0.0
        %294 = vmatprep.subr.mxu0 0.0
        %295 = vmatpush1.msra.mxu0 0.0
        %296 = vmatprep.subr.mxu0 0.0
        %297 = vmatpush1.msra.mxu0 0.0
        %298 = vmatprep.subr.mxu0 0.0
        %299 = vmatpush1.msra.mxu0 0.0
        %300 = vmatprep.subr.mxu0 0.0
        %301 = vmatpush1.msra.mxu0 0.0
        %302 = vmatprep.subr.mxu0 0.0
        %303 = vmatpush1.msra.mxu0 0.0
        %304 = vmatprep.subr.mxu0 0.0
        %305 = vmatpush1.msra.mxu0 0.0
        %306 = vmatprep.subr.mxu0 0.0
        %307 = vmatpush1.msra.mxu0 0.0
        %308 = vmatprep.subr.mxu0 0.0
        %309 = vmatpush1.msra.mxu0 0.0
        %310 = vmatprep.subr.mxu0 0.0
        %311 = vmatpush1.msra.mxu0 0.0
        %312 = vmatprep.mubr.f32.mxu0 0.0
        %313 = vmatmul.mubr.f32.gmra.mrb[0].mxu0 %v223
        %v314 = vpop.f32.mrb[0].mxu0
        %v315 = vadd.f32 0.0, %v314
        %v316 = vpop.f32.mrb[0].mxu0
        %317 = vmatprep.mubr.f32.mxu0 0.0
        %318 = vmatmul.mubr.f32.gmra.mrb[0].mxu0 %v224
        %v319 = vpop.f32.mrb[0].mxu0
        %v320 = vadd.f32 0.0, %v319
        %v321 = vpop.f32.mrb[0].mxu0
        %322 = vmatprep.mubr.f32.mxu0 0.0
        %323 = vmatmul.mubr.f32.gmra.mrb[0].mxu0 %v225
        %v324 = vpop.f32.mrb[0].mxu0
        %v325 = vadd.f32 0.0, %v324
        %v326 = vpop.f32.mrb[0].mxu0
        %327 = vmatprep.mubr.f32.mxu0 0.0
        %328 = vmatmul.mubr.f32.gmra.mrb[0].mxu0 %v226
        %v329 = vpop.f32.mrb[0].mxu0
        %v330 = vadd.f32 0.0, %v329
        %v331 = vpop.f32.mrb[0].mxu0
        %332 = vmatprep.mubr.f32.mxu0 0.0
        %333 = vmatmul.mubr.f32.gmra.mrb[0].mxu0 %v227
        %v334 = vpop.f32.mrb[0].mxu0
        %v335 = vadd.f32 0.0, %v334
        %v336 = vpop.f32.mrb[0].mxu0
        %337 = vmatprep.mubr.f32.mxu0 0.0
        %338 = vmatmul.mubr.f32.gmra.mrb[0].mxu0 %v228
        %v339 = vpop.f32.mrb[0].mxu0
        %v340 = vadd.f32 0.0, %v339
        %v341 = vpop.f32.mrb[0].mxu0
        %342 = vmatprep.mubr.f32.mxu0 0.0
        %343 = vmatmul.mubr.f32.gmra.mrb[0].mxu0 %v229
        %v344 = vpop.f32.mrb[0].mxu0
        %v345 = vadd.f32 0.0, %v344
        %v346 = vpop.f32.mrb[0].mxu0
        %347 = vmatprep.mubr.f32.mxu0 0.0
        %348 = vmatmul.mubr.f32.gmra.mrb[0].mxu0 %v230
        %v349 = vpop.f32.mrb[0].mxu0
        %v350 = vadd.f32 0.0, %v349
        %v351 = vpop.f32.mrb[0].mxu0
        %352 = vdwg.mxu0
        %353 = vmatprep.subr.mxu0 0.0
        %354 = vmatpush1.msra.mxu0 %v207
        %355 = vmatprep.subr.mxu0 0.0
        %356 = vmatpush1.msra.mxu0 %v208
        %357 = vmatprep.subr.mxu0 0.0
        %358 = vmatpush1.msra.mxu0 %v209
        %359 = vmatprep.subr.mxu0 0.0
        %360 = vmatpush1.msra.mxu0 %v210
        %361 = vmatprep.subr.mxu0 0.0
        %362 = vmatpush1.msra.mxu0 %v211
        %363 = vmatprep.subr.mxu0 0.0
        %364 = vmatpush1.msra.mxu0 %v212
        %365 = vmatprep.subr.mxu0 0.0
        %366 = vmatpush1.msra.mxu0 %v213
        %367 = vmatprep.subr.mxu0 0.0
        %368 = vmatpush1.msra.mxu0 %v214
        %369 = vmatprep.subr.mxu0 0.0
        %370 = vmatpush1.msra.mxu0 %v215
        %371 = vmatprep.subr.mxu0 0.0
        %372 = vmatpush1.msra.mxu0 %v216
        %373 = vmatprep.subr.mxu0 0.0
        %374 = vmatpush1.msra.mxu0 %v217
        %375 = vmatprep.subr.mxu0 0.0
        %376 = vmatpush1.msra.mxu0 %v218
        %377 = vmatprep.subr.mxu0 0.0
        %378 = vmatpush1.msra.mxu0 %v219
        %379 = vmatprep.subr.mxu0 0.0
        %380 = vmatpush1.msra.mxu0 %v220
        %381 = vmatprep.subr.mxu0 0.0
        %382 = vmatpush1.msra.mxu0 %v221
        %383 = vmatprep.subr.mxu0 0.0
        %384 = vmatpush1.msra.mxu0 %v222
        %385 = vmatprep.subr.mxu0 0.0
        %386 = vmatpush1.msra.mxu0 0.0
        %387 = vmatprep.subr.mxu0 0.0
        %388 = vmatpush1.msra.mxu0 0.0
        %389 = vmatprep.subr.mxu0 0.0
        %390 = vmatpush1.msra.mxu0 0.0
        %391 = vmatprep.subr.mxu0 0.0
        %392 = vmatpush1.msra.mxu0 0.0
        %393 = vmatprep.subr.mxu0 0.0
        %394 = vmatpush1.msra.mxu0 0.0
        %395 = vmatprep.subr.mxu0 0.0
        %396 = vmatpush1.msra.mxu0 0.0
        %397 = vmatprep.subr.mxu0 0.0
        %398 = vmatpush1.msra.mxu0 0.0
        %399 = vmatprep.subr.mxu0 0.0
        %400 = vmatpush1.msra.mxu0 0.0
        %401 = vmatprep.subr.mxu0 0.0
        %402 = vmatpush1.msra.mxu0 0.0
        %403 = vmatprep.subr.mxu0 0.0
        %404 = vmatpush1.msra.mxu0 0.0
        %405 = vmatprep.subr.mxu0 0.0
        %406 = vmatpush1.msra.mxu0 0.0
        %407 = vmatprep.subr.mxu0 0.0
        %408 = vmatpush1.msra.mxu0 0.0
        %409 = vmatprep.subr.mxu0 0.0
        %410 = vmatpush1.msra.mxu0 0.0
        %411 = vmatprep.subr.mxu0 0.0
        %412 = vmatpush1.msra.mxu0 0.0
        %413 = vmatprep.subr.mxu0 0.0
        %414 = vmatpush1.msra.mxu0 0.0
        %415 = vmatprep.subr.mxu0 0.0
        %416 = vmatpush1.msra.mxu0 0.0
        %417 = vmatprep.mubr.f32.mxu0 0.0
        %418 = vmatmul.mubr.f32.gmra.mrb[0].mxu0 %v199
        %v419 = vpop.f32.mrb[0].mxu0
        %v420 = vadd.f32 %v315, %v419
        %v421 = vpop.f32.mrb[0].mxu0
        %422 = vmatprep.mubr.f32.mxu0 0.0
        %423 = vmatmul.mubr.f32.gmra.mrb[0].mxu0 %v200
        %v424 = vpop.f32.mrb[0].mxu0
        %v425 = vadd.f32 %v320, %v424
        %v426 = vpop.f32.mrb[0].mxu0
        %427 = vmatprep.mubr.f32.mxu0 0.0
        %428 = vmatmul.mubr.f32.gmra.mrb[0].mxu0 %v201
        %v429 = vpop.f32.mrb[0].mxu0
        %v430 = vadd.f32 %v325, %v429
        %v431 = vpop.f32.mrb[0].mxu0
        %432 = vmatprep.mubr.f32.mxu0 0.0
        %433 = vmatmul.mubr.f32.gmra.mrb[0].mxu0 %v202
        %v434 = vpop.f32.mrb[0].mxu0
        %v435 = vadd.f32 %v330, %v434
        %v436 = vpop.f32.mrb[0].mxu0
        %437 = vmatprep.mubr.f32.mxu0 0.0
        %438 = vmatmul.mubr.f32.gmra.mrb[0].mxu0 %v203
        %v439 = vpop.f32.mrb[0].mxu0
        %v440 = vadd.f32 %v335, %v439
        %v441 = vpop.f32.mrb[0].mxu0
        %442 = vmatprep.mubr.f32.mxu0 0.0
        %443 = vmatmul.mubr.f32.gmra.mrb[0].mxu0 %v204
        %v444 = vpop.f32.mrb[0].mxu0
        %v445 = vadd.f32 %v340, %v444
        %v446 = vpop.f32.mrb[0].mxu0
        %447 = vmatprep.mubr.f32.mxu0 0.0
        %448 = vmatmul.mubr.f32.gmra.mrb[0].mxu0 %v205
        %v449 = vpop.f32.mrb[0].mxu0
        %v450 = vadd.f32 %v345, %v449
        %v451 = vpop.f32.mrb[0].mxu0
        %452 = vmatprep.mubr.f32.mxu0 0.0
        %453 = vmatmul.mubr.f32.gmra.mrb[0].mxu0 %v206
        %v454 = vpop.f32.mrb[0].mxu0
        %v455 = vadd.f32 %v350, %v454
        %v456 = vpop.f32.mrb[0].mxu0
        %457 = vdwg.mxu0
        %v458 = vld [vmem:[%s193] sm:$0xfe]
        %v459 = vld [vmem:[%s193 + $0x10] sm:$0x1]
        %v460 = vld [vmem:[%s193 + $0x40] sm:$0xfe]
        %v461 = vld [vmem:[%s193 + $0x50] sm:$0x1]
        %v462 = vld [vmem:[%s193 + $0x80] sm:$0xfe]
        %v463 = vld [vmem:[%s193 + $0x90] sm:$0x1]
        %v464 = vld [vmem:[%s193 + $0xc0] sm:$0xfe]
        %v465 = vld [vmem:[%s193 + $0xd0] sm:$0x1]
        %v466 = vld [vmem:[%s193 + $0x100] sm:$0xfe]
        %v467 = vld [vmem:[%s193 + $0x110] sm:$0x1]
        %v468 = vld [vmem:[%s193 + $0x140] sm:$0xfe]
        %v469 = vld [vmem:[%s193 + $0x150] sm:$0x1]
        %v470 = vld [vmem:[%s193 + $0x180] sm:$0xfe]
        %v471 = vld [vmem:[%s193 + $0x190] sm:$0x1]
        %v472 = vld [vmem:[%s193 + $0x1c0] sm:$0xfe]
        %v473 = vld [vmem:[%s193 + $0x1d0] sm:$0x1]
        %vm490 = vcmask 1046528
        %v491 = vrot.slane %v458, 1
        %v492 = vrot.slane %v459, 1
        %v493 = vsel %vm490, %v491, %v492
        %v494 = vrot.slane %v460, 1
        %v495 = vrot.slane %v461, 1
        %v496 = vsel %vm490, %v494, %v495
        %v497 = vrot.slane %v462, 1
        %v498 = vrot.slane %v463, 1
        %v499 = vsel %vm490, %v497, %v498
        %v500 = vrot.slane %v464, 1
        %v501 = vrot.slane %v465, 1
        %v502 = vsel %vm490, %v500, %v501
        %v503 = vrot.slane %v466, 1
        %v504 = vrot.slane %v467, 1
        %v505 = vsel %vm490, %v503, %v504
        %v506 = vrot.slane %v468, 1
        %v507 = vrot.slane %v469, 1
        %v508 = vsel %vm490, %v506, %v507
        %v509 = vrot.slane %v470, 1
        %v510 = vrot.slane %v471, 1
        %v511 = vsel %vm490, %v509, %v510
        %v512 = vrot.slane %v472, 1
        %v513 = vrot.slane %v473, 1
        %v514 = vsel %vm490, %v512, %v513
        %s523 = scalar_lea.vmem [#allocation2], 256
        %v524 = vld [vmem:[%s523] sm:$0xff]
        %v525 = vld [vmem:[%s523 + $0x8] sm:$0xff]
        %v526 = vld [vmem:[%s523 + $0x10] sm:$0xff]
        %v527 = vld [vmem:[%s523 + $0x18] sm:$0xff]
        %v528 = vld [vmem:[%s523 + $0x20] sm:$0xff]
        %v529 = vld [vmem:[%s523 + $0x28] sm:$0xff]
        %v530 = vld [vmem:[%s523 + $0x30] sm:$0xff]
        %v531 = vld [vmem:[%s523 + $0x38] sm:$0xff]
        %v532 = vld [vmem:[%s523 + $0x40] sm:$0xff]
        %v533 = vld [vmem:[%s523 + $0x48] sm:$0xff]
        %v534 = vld [vmem:[%s523 + $0x50] sm:$0xff]
        %v535 = vld [vmem:[%s523 + $0x58] sm:$0xff]
        %v536 = vld [vmem:[%s523 + $0x60] sm:$0xff]
        %v537 = vld [vmem:[%s523 + $0x68] sm:$0xff]
        %v538 = vld [vmem:[%s523 + $0x70] sm:$0xff]
        %v539 = vld [vmem:[%s523 + $0x78] sm:$0xff]
        %540 = vmatprep.subr.mxu0 0.0
        %541 = vmatpush1.msra.mxu0 %v524
        %542 = vmatprep.subr.mxu0 0.0
        %543 = vmatpush1.msra.mxu0 %v525
        %544 = vmatprep.subr.mxu0 0.0
        %545 = vmatpush1.msra.mxu0 %v526
        %546 = vmatprep.subr.mxu0 0.0
        %547 = vmatpush1.msra.mxu0 %v527
        %548 = vmatprep.subr.mxu0 0.0
        %549 = vmatpush1.msra.mxu0 %v528
        %550 = vmatprep.subr.mxu0 0.0
        %551 = vmatpush1.msra.mxu0 %v529
        %552 = vmatprep.subr.mxu0 0.0
        %553 = vmatpush1.msra.mxu0 %v530
        %554 = vmatprep.subr.mxu0 0.0
        %555 = vmatpush1.msra.mxu0 %v531
        %556 = vmatprep.subr.mxu0 0.0
        %557 = vmatpush1.msra.mxu0 %v532
        %558 = vmatprep.subr.mxu0 0.0
        %559 = vmatpush1.msra.mxu0 %v533
        %560 = vmatprep.subr.mxu0 0.0
        %561 = vmatpush1.msra.mxu0 %v534
        %562 = vmatprep.subr.mxu0 0.0
        %563 = vmatpush1.msra.mxu0 %v535
        %564 = vmatprep.subr.mxu0 0.0
        %565 = vmatpush1.msra.mxu0 %v536
        %566 = vmatprep.subr.mxu0 0.0
        %567 = vmatpush1.msra.mxu0 %v537
        %568 = vmatprep.subr.mxu0 0.0
        %569 = vmatpush1.msra.mxu0 %v538
        %570 = vmatprep.subr.mxu0 0.0
        %571 = vmatpush1.msra.mxu0 %v539
        %572 = vmatprep.subr.mxu0 0.0
        %573 = vmatpush1.msra.mxu0 0.0
        %574 = vmatprep.subr.mxu0 0.0
        %575 = vmatpush1.msra.mxu0 0.0
        %576 = vmatprep.subr.mxu0 0.0
        %577 = vmatpush1.msra.mxu0 0.0
        %578 = vmatprep.subr.mxu0 0.0
        %579 = vmatpush1.msra.mxu0 0.0
        %580 = vmatprep.subr.mxu0 0.0
        %581 = vmatpush1.msra.mxu0 0.0
        %582 = vmatprep.subr.mxu0 0.0
        %583 = vmatpush1.msra.mxu0 0.0
        %584 = vmatprep.subr.mxu0 0.0
        %585 = vmatpush1.msra.mxu0 0.0
        %586 = vmatprep.subr.mxu0 0.0
        %587 = vmatpush1.msra.mxu0 0.0
        %588 = vmatprep.subr.mxu0 0.0
        %589 = vmatpush1.msra.mxu0 0.0
        %590 = vmatprep.subr.mxu0 0.0
        %591 = vmatpush1.msra.mxu0 0.0
        %592 = vmatprep.subr.mxu0 0.0
        %593 = vmatpush1.msra.mxu0 0.0
        %594 = vmatprep.subr.mxu0 0.0
        %595 = vmatpush1.msra.mxu0 0.0
        %596 = vmatprep.subr.mxu0 0.0
        %597 = vmatpush1.msra.mxu0 0.0
        %598 = vmatprep.subr.mxu0 0.0
        %599 = vmatpush1.msra.mxu0 0.0
        %600 = vmatprep.subr.mxu0 0.0
        %601 = vmatpush1.msra.mxu0 0.0
        %602 = vmatprep.subr.mxu0 0.0
        %603 = vmatpush1.msra.mxu0 0.0
        %604 = vmatprep.mubr.f32.mxu0 0.0
        %605 = vmatmul.mubr.f32.gmra.mrb[0].mxu0 %v493
        %v606 = vpop.f32.mrb[0].mxu0
        %v607 = vadd.f32 0.0, %v606
        %v608 = vpop.f32.mrb[0].mxu0
        %609 = vmatprep.mubr.f32.mxu0 0.0
        %610 = vmatmul.mubr.f32.gmra.mrb[0].mxu0 %v496
        %v611 = vpop.f32.mrb[0].mxu0
        %v612 = vadd.f32 0.0, %v611
        %v613 = vpop.f32.mrb[0].mxu0
        %614 = vmatprep.mubr.f32.mxu0 0.0
        %615 = vmatmul.mubr.f32.gmra.mrb[0].mxu0 %v499
        %v616 = vpop.f32.mrb[0].mxu0
        %v617 = vadd.f32 0.0, %v616
        %v618 = vpop.f32.mrb[0].mxu0
        %619 = vmatprep.mubr.f32.mxu0 0.0
        %620 = vmatmul.mubr.f32.gmra.mrb[0].mxu0 %v502
        %v621 = vpop.f32.mrb[0].mxu0
        %v622 = vadd.f32 0.0, %v621
        %v623 = vpop.f32.mrb[0].mxu0
        %624 = vmatprep.mubr.f32.mxu0 0.0
        %625 = vmatmul.mubr.f32.gmra.mrb[0].mxu0 %v505
        %v626 = vpop.f32.mrb[0].mxu0
        %v627 = vadd.f32 0.0, %v626
        %v628 = vpop.f32.mrb[0].mxu0
        %629 = vmatprep.mubr.f32.mxu0 0.0
        %630 = vmatmul.mubr.f32.gmra.mrb[0].mxu0 %v508
        %v631 = vpop.f32.mrb[0].mxu0
        %v632 = vadd.f32 0.0, %v631
        %v633 = vpop.f32.mrb[0].mxu0
        %634 = vmatprep.mubr.f32.mxu0 0.0
        %635 = vmatmul.mubr.f32.gmra.mrb[0].mxu0 %v511
        %v636 = vpop.f32.mrb[0].mxu0
        %v637 = vadd.f32 0.0, %v636
        %v638 = vpop.f32.mrb[0].mxu0
        %639 = vmatprep.mubr.f32.mxu0 0.0
        %640 = vmatmul.mubr.f32.gmra.mrb[0].mxu0 %v514
        %v641 = vpop.f32.mrb[0].mxu0
        %v642 = vadd.f32 0.0, %v641
        %v643 = vpop.f32.mrb[0].mxu0
        %644 = vdwg.mxu0
        %v645 = vadd.f32 %v420, %v607
        %v646 = vadd.f32 %v425, %v612
        %v647 = vadd.f32 %v430, %v617
        %v648 = vadd.f32 %v435, %v622
        %v649 = vadd.f32 %v440, %v627
        %v650 = vadd.f32 %v445, %v632
        %v651 = vadd.f32 %v450, %v637
        %v652 = vadd.f32 %v455, %v642
        %s653 = scalar_lea.vmem %s193, 32
        %v654 = vld [vmem:[%s653] sm:$0xff]
        %v655 = vld [vmem:[%s653 + $0x40] sm:$0xff]
        %v656 = vld [vmem:[%s653 + $0x80] sm:$0xff]
        %v657 = vld [vmem:[%s653 + $0xc0] sm:$0xff]
        %v658 = vld [vmem:[%s653 + $0x100] sm:$0xff]
        %v659 = vld [vmem:[%s653 + $0x140] sm:$0xff]
        %v660 = vld [vmem:[%s653 + $0x180] sm:$0xff]
        %v661 = vld [vmem:[%s653 + $0x1c0] sm:$0xff]
        %s662 = scalar_lea.vmem [#allocation2], 384
        %v663 = vld [vmem:[%s662] sm:$0xff]
        %v664 = vld [vmem:[%s662 + $0x8] sm:$0xff]
        %v665 = vld [vmem:[%s662 + $0x10] sm:$0xff]
        %v666 = vld [vmem:[%s662 + $0x18] sm:$0xff]
        %v667 = vld [vmem:[%s662 + $0x20] sm:$0xff]
        %v668 = vld [vmem:[%s662 + $0x28] sm:$0xff]
        %v669 = vld [vmem:[%s662 + $0x30] sm:$0xff]
        %v670 = vld [vmem:[%s662 + $0x38] sm:$0xff]
        %v671 = vld [vmem:[%s662 + $0x40] sm:$0xff]
        %v672 = vld [vmem:[%s662 + $0x48] sm:$0xff]
        %v673 = vld [vmem:[%s662 + $0x50] sm:$0xff]
        %v674 = vld [vmem:[%s662 + $0x58] sm:$0xff]
        %v675 = vld [vmem:[%s662 + $0x60] sm:$0xff]
        %v676 = vld [vmem:[%s662 + $0x68] sm:$0xff]
        %v677 = vld [vmem:[%s662 + $0x70] sm:$0xff]
        %v678 = vld [vmem:[%s662 + $0x78] sm:$0xff]
        %679 = vmatprep.subr.mxu0 0.0
        %680 = vmatpush1.msra.mxu0 %v663
        %681 = vmatprep.subr.mxu0 0.0
        %682 = vmatpush1.msra.mxu0 %v664
        %683 = vmatprep.subr.mxu0 0.0
        %684 = vmatpush1.msra.mxu0 %v665
        %685 = vmatprep.subr.mxu0 0.0
        %686 = vmatpush1.msra.mxu0 %v666
        %687 = vmatprep.subr.mxu0 0.0
        %688 = vmatpush1.msra.mxu0 %v667
        %689 = vmatprep.subr.mxu0 0.0
        %690 = vmatpush1.msra.mxu0 %v668
        %691 = vmatprep.subr.mxu0 0.0
        %692 = vmatpush1.msra.mxu0 %v669
        %693 = vmatprep.subr.mxu0 0.0
        %694 = vmatpush1.msra.mxu0 %v670
        %695 = vmatprep.subr.mxu0 0.0
        %696 = vmatpush1.msra.mxu0 %v671
        %697 = vmatprep.subr.mxu0 0.0
        %698 = vmatpush1.msra.mxu0 %v672
        %699 = vmatprep.subr.mxu0 0.0
        %700 = vmatpush1.msra.mxu0 %v673
        %701 = vmatprep.subr.mxu0 0.0
        %702 = vmatpush1.msra.mxu0 %v674
        %703 = vmatprep.subr.mxu0 0.0
        %704 = vmatpush1.msra.mxu0 %v675
        %705 = vmatprep.subr.mxu0 0.0
        %706 = vmatpush1.msra.mxu0 %v676
        %707 = vmatprep.subr.mxu0 0.0
        %708 = vmatpush1.msra.mxu0 %v677
        %709 = vmatprep.subr.mxu0 0.0
        %710 = vmatpush1.msra.mxu0 %v678
        %711 = vmatprep.subr.mxu0 0.0
        %712 = vmatpush1.msra.mxu0 0.0
        %713 = vmatprep.subr.mxu0 0.0
        %714 = vmatpush1.msra.mxu0 0.0
        %715 = vmatprep.subr.mxu0 0.0
        %716 = vmatpush1.msra.mxu0 0.0
        %717 = vmatprep.subr.mxu0 0.0
        %718 = vmatpush1.msra.mxu0 0.0
        %719 = vmatprep.subr.mxu0 0.0
        %720 = vmatpush1.msra.mxu0 0.0
        %721 = vmatprep.subr.mxu0 0.0
        %722 = vmatpush1.msra.mxu0 0.0
        %723 = vmatprep.subr.mxu0 0.0
        %724 = vmatpush1.msra.mxu0 0.0
        %725 = vmatprep.subr.mxu0 0.0
        %726 = vmatpush1.msra.mxu0 0.0
        %727 = vmatprep.subr.mxu0 0.0
        %728 = vmatpush1.msra.mxu0 0.0
        %729 = vmatprep.subr.mxu0 0.0
        %730 = vmatpush1.msra.mxu0 0.0
        %731 = vmatprep.subr.mxu0 0.0
        %732 = vmatpush1.msra.mxu0 0.0
        %733 = vmatprep.subr.mxu0 0.0
        %734 = vmatpush1.msra.mxu0 0.0
        %735 = vmatprep.subr.mxu0 0.0
        %736 = vmatpush1.msra.mxu0 0.0
        %737 = vmatprep.subr.mxu0 0.0
        %738 = vmatpush1.msra.mxu0 0.0
        %739 = vmatprep.subr.mxu0 0.0
        %740 = vmatpush1.msra.mxu0 0.0
        %741 = vmatprep.subr.mxu0 0.0
        %742 = vmatpush1.msra.mxu0 0.0
        %743 = vmatprep.mubr.f32.mxu0 0.0
        %744 = vmatmul.mubr.f32.gmra.mrb[0].mxu0 %v654
        %v745 = vpop.f32.mrb[0].mxu0
        %v746 = vadd.f32 0.0, %v745
        %v747 = vpop.f32.mrb[0].mxu0
        %748 = vmatprep.mubr.f32.mxu0 0.0
        %749 = vmatmul.mubr.f32.gmra.mrb[0].mxu0 %v655
        %v750 = vpop.f32.mrb[0].mxu0
        %v751 = vadd.f32 0.0, %v750
        %v752 = vpop.f32.mrb[0].mxu0
        %753 = vmatprep.mubr.f32.mxu0 0.0
        %754 = vmatmul.mubr.f32.gmra.mrb[0].mxu0 %v656
        %v755 = vpop.f32.mrb[0].mxu0
        %v756 = vadd.f32 0.0, %v755
        %v757 = vpop.f32.mrb[0].mxu0
        %758 = vmatprep.mubr.f32.mxu0 0.0
        %759 = vmatmul.mubr.f32.gmra.mrb[0].mxu0 %v657
        %v760 = vpop.f32.mrb[0].mxu0
        %v761 = vadd.f32 0.0, %v760
        %v762 = vpop.f32.mrb[0].mxu0
        %763 = vmatprep.mubr.f32.mxu0 0.0
        %764 = vmatmul.mubr.f32.gmra.mrb[0].mxu0 %v658
        %v765 = vpop.f32.mrb[0].mxu0
        %v766 = vadd.f32 0.0, %v765
        %v767 = vpop.f32.mrb[0].mxu0
        %768 = vmatprep.mubr.f32.mxu0 0.0
        %769 = vmatmul.mubr.f32.gmra.mrb[0].mxu0 %v659
        %v770 = vpop.f32.mrb[0].mxu0
        %v771 = vadd.f32 0.0, %v770
        %v772 = vpop.f32.mrb[0].mxu0
        %773 = vmatprep.mubr.f32.mxu0 0.0
        %774 = vmatmul.mubr.f32.gmra.mrb[0].mxu0 %v660
        %v775 = vpop.f32.mrb[0].mxu0
        %v776 = vadd.f32 0.0, %v775
        %v777 = vpop.f32.mrb[0].mxu0
        %778 = vmatprep.mubr.f32.mxu0 0.0
        %779 = vmatmul.mubr.f32.gmra.mrb[0].mxu0 %v661
        %v780 = vpop.f32.mrb[0].mxu0
        %v781 = vadd.f32 0.0, %v780
        %v782 = vpop.f32.mrb[0].mxu0
        %783 = vdwg.mxu0
        %v784 = vadd.f32 %v645, %v746
        %v785 = vadd.f32 %v646, %v751
        %v786 = vadd.f32 %v647, %v756
        %v787 = vadd.f32 %v648, %v761
        %v788 = vadd.f32 %v649, %v766
        %v789 = vadd.f32 %v650, %v771
        %v790 = vadd.f32 %v651, %v776
        %v791 = vadd.f32 %v652, %v781
        %v792 = vld [vmem:[%s653 + $0x8] sm:$0xff]
        %v793 = vld [vmem:[%s653 + $0x48] sm:$0xff]
        %v794 = vld [vmem:[%s653 + $0x88] sm:$0xff]
        %v795 = vld [vmem:[%s653 + $0xc8] sm:$0xff]
        %v796 = vld [vmem:[%s653 + $0x108] sm:$0xff]
        %v797 = vld [vmem:[%s653 + $0x148] sm:$0xff]
        %v798 = vld [vmem:[%s653 + $0x188] sm:$0xff]
        %v799 = vld [vmem:[%s653 + $0x1c8] sm:$0xff]
        %s800 = scalar_lea.vmem [#allocation2], 512
        %v801 = vld [vmem:[%s800] sm:$0xff]
        %v802 = vld [vmem:[%s800 + $0x8] sm:$0xff]
        %v803 = vld [vmem:[%s800 + $0x10] sm:$0xff]
        %v804 = vld [vmem:[%s800 + $0x18] sm:$0xff]
        %v805 = vld [vmem:[%s800 + $0x20] sm:$0xff]
        %v806 = vld [vmem:[%s800 + $0x28] sm:$0xff]
        %v807 = vld [vmem:[%s800 + $0x30] sm:$0xff]
        %v808 = vld [vmem:[%s800 + $0x38] sm:$0xff]
        %v809 = vld [vmem:[%s800 + $0x40] sm:$0xff]
        %v810 = vld [vmem:[%s800 + $0x48] sm:$0xff]
        %v811 = vld [vmem:[%s800 + $0x50] sm:$0xff]
        %v812 = vld [vmem:[%s800 + $0x58] sm:$0xff]
        %v813 = vld [vmem:[%s800 + $0x60] sm:$0xff]
        %v814 = vld [vmem:[%s800 + $0x68] sm:$0xff]
        %v815 = vld [vmem:[%s800 + $0x70] sm:$0xff]
        %v816 = vld [vmem:[%s800 + $0x78] sm:$0xff]
        %817 = vmatprep.subr.mxu0 0.0
        %818 = vmatpush1.msra.mxu0 %v801
        %819 = vmatprep.subr.mxu0 0.0
        %820 = vmatpush1.msra.mxu0 %v802
        %821 = vmatprep.subr.mxu0 0.0
        %822 = vmatpush1.msra.mxu0 %v803
        %823 = vmatprep.subr.mxu0 0.0
        %824 = vmatpush1.msra.mxu0 %v804
        %825 = vmatprep.subr.mxu0 0.0
        %826 = vmatpush1.msra.mxu0 %v805
        %827 = vmatprep.subr.mxu0 0.0
        %828 = vmatpush1.msra.mxu0 %v806
        %829 = vmatprep.subr.mxu0 0.0
        %830 = vmatpush1.msra.mxu0 %v807
        %831 = vmatprep.subr.mxu0 0.0
        %832 = vmatpush1.msra.mxu0 %v808
        %833 = vmatprep.subr.mxu0 0.0
        %834 = vmatpush1.msra.mxu0 %v809
        %835 = vmatprep.subr.mxu0 0.0
        %836 = vmatpush1.msra.mxu0 %v810
        %837 = vmatprep.subr.mxu0 0.0
        %838 = vmatpush1.msra.mxu0 %v811
        %839 = vmatprep.subr.mxu0 0.0
        %840 = vmatpush1.msra.mxu0 %v812
        %841 = vmatprep.subr.mxu0 0.0
        %842 = vmatpush1.msra.mxu0 %v813
        %843 = vmatprep.subr.mxu0 0.0
        %844 = vmatpush1.msra.mxu0 %v814
        %845 = vmatprep.subr.mxu0 0.0
        %846 = vmatpush1.msra.mxu0 %v815
        %847 = vmatprep.subr.mxu0 0.0
        %848 = vmatpush1.msra.mxu0 %v816
        %849 = vmatprep.subr.mxu0 0.0
        %850 = vmatpush1.msra.mxu0 0.0
        %851 = vmatprep.subr.mxu0 0.0
        %852 = vmatpush1.msra.mxu0 0.0
        %853 = vmatprep.subr.mxu0 0.0
        %854 = vmatpush1.msra.mxu0 0.0
        %855 = vmatprep.subr.mxu0 0.0
        %856 = vmatpush1.msra.mxu0 0.0
        %857 = vmatprep.subr.mxu0 0.0
        %858 = vmatpush1.msra.mxu0 0.0
        %859 = vmatprep.subr.mxu0 0.0
        %860 = vmatpush1.msra.mxu0 0.0
        %861 = vmatprep.subr.mxu0 0.0
        %862 = vmatpush1.msra.mxu0 0.0
        %863 = vmatprep.subr.mxu0 0.0
        %864 = vmatpush1.msra.mxu0 0.0
        %865 = vmatprep.subr.mxu0 0.0
        %866 = vmatpush1.msra.mxu0 0.0
        %867 = vmatprep.subr.mxu0 0.0
        %868 = vmatpush1.msra.mxu0 0.0
        %869 = vmatprep.subr.mxu0 0.0
        %870 = vmatpush1.msra.mxu0 0.0
        %871 = vmatprep.subr.mxu0 0.0
        %872 = vmatpush1.msra.mxu0 0.0
        %873 = vmatprep.subr.mxu0 0.0
        %874 = vmatpush1.msra.mxu0 0.0
        %875 = vmatprep.subr.mxu0 0.0
        %876 = vmatpush1.msra.mxu0 0.0
        %877 = vmatprep.subr.mxu0 0.0
        %878 = vmatpush1.msra.mxu0 0.0
        %879 = vmatprep.subr.mxu0 0.0
        %880 = vmatpush1.msra.mxu0 0.0
        %881 = vmatprep.mubr.f32.mxu0 0.0
        %882 = vmatmul.mubr.f32.gmra.mrb[0].mxu0 %v792
        %v883 = vpop.f32.mrb[0].mxu0
        %v884 = vadd.f32 0.0, %v883
        %v885 = vpop.f32.mrb[0].mxu0
        %886 = vmatprep.mubr.f32.mxu0 0.0
        %887 = vmatmul.mubr.f32.gmra.mrb[0].mxu0 %v793
        %v888 = vpop.f32.mrb[0].mxu0
        %v889 = vadd.f32 0.0, %v888
        %v890 = vpop.f32.mrb[0].mxu0
        %891 = vmatprep.mubr.f32.mxu0 0.0
        %892 = vmatmul.mubr.f32.gmra.mrb[0].mxu0 %v794
        %v893 = vpop.f32.mrb[0].mxu0
        %v894 = vadd.f32 0.0, %v893
        %v895 = vpop.f32.mrb[0].mxu0
        %896 = vmatprep.mubr.f32.mxu0 0.0
        %897 = vmatmul.mubr.f32.gmra.mrb[0].mxu0 %v795
        %v898 = vpop.f32.mrb[0].mxu0
        %v899 = vadd.f32 0.0, %v898
        %v900 = vpop.f32.mrb[0].mxu0
        %901 = vmatprep.mubr.f32.mxu0 0.0
        %902 = vmatmul.mubr.f32.gmra.mrb[0].mxu0 %v796
        %v903 = vpop.f32.mrb[0].mxu0
        %v904 = vadd.f32 0.0, %v903
        %v905 = vpop.f32.mrb[0].mxu0
        %906 = vmatprep.mubr.f32.mxu0 0.0
        %907 = vmatmul.mubr.f32.gmra.mrb[0].mxu0 %v797
        %v908 = vpop.f32.mrb[0].mxu0
        %v909 = vadd.f32 0.0, %v908
        %v910 = vpop.f32.mrb[0].mxu0
        %911 = vmatprep.mubr.f32.mxu0 0.0
        %912 = vmatmul.mubr.f32.gmra.mrb[0].mxu0 %v798
        %v913 = vpop.f32.mrb[0].mxu0
        %v914 = vadd.f32 0.0, %v913
        %v915 = vpop.f32.mrb[0].mxu0
        %916 = vmatprep.mubr.f32.mxu0 0.0
        %917 = vmatmul.mubr.f32.gmra.mrb[0].mxu0 %v799
        %v918 = vpop.f32.mrb[0].mxu0
        %v919 = vadd.f32 0.0, %v918
        %v920 = vpop.f32.mrb[0].mxu0
        %921 = vdwg.mxu0
        %v922 = vadd.f32 %v784, %v884
        %v923 = vadd.f32 %v785, %v889
        %v924 = vadd.f32 %v786, %v894
        %v925 = vadd.f32 %v787, %v899
        %v926 = vadd.f32 %v788, %v904
        %v927 = vadd.f32 %v789, %v909
        %v928 = vadd.f32 %v790, %v914
        %v929 = vadd.f32 %v791, %v919
        %v930 = vld [vmem:[%s653] sm:$0xfe]
        %v931 = vld [vmem:[%s653 + $0x10] sm:$0x1]
        %v932 = vld [vmem:[%s653 + $0x40] sm:$0xfe]
        %v933 = vld [vmem:[%s653 + $0x50] sm:$0x1]
        %v934 = vld [vmem:[%s653 + $0x80] sm:$0xfe]
        %v935 = vld [vmem:[%s653 + $0x90] sm:$0x1]
        %v936 = vld [vmem:[%s653 + $0xc0] sm:$0xfe]
        %v937 = vld [vmem:[%s653 + $0xd0] sm:$0x1]
        %v938 = vld [vmem:[%s653 + $0x100] sm:$0xfe]
        %v939 = vld [vmem:[%s653 + $0x110] sm:$0x1]
        %v940 = vld [vmem:[%s653 + $0x140] sm:$0xfe]
        %v941 = vld [vmem:[%s653 + $0x150] sm:$0x1]
        %v942 = vld [vmem:[%s653 + $0x180] sm:$0xfe]
        %v943 = vld [vmem:[%s653 + $0x190] sm:$0x1]
        %v944 = vld [vmem:[%s653 + $0x1c0] sm:$0xfe]
        %v945 = vld [vmem:[%s653 + $0x1d0] sm:$0x1]
        %v962 = vrot.slane %v930, 1
        %v963 = vrot.slane %v931, 1
        %v964 = vsel %vm490, %v962, %v963
        %v965 = vrot.slane %v932, 1
        %v966 = vrot.slane %v933, 1
        %v967 = vsel %vm490, %v965, %v966
        %v968 = vrot.slane %v934, 1
        %v969 = vrot.slane %v935, 1
        %v970 = vsel %vm490, %v968, %v969
        %v971 = vrot.slane %v936, 1
        %v972 = vrot.slane %v937, 1
        %v973 = vsel %vm490, %v971, %v972
        %v974 = vrot.slane %v938, 1
        %v975 = vrot.slane %v939, 1
        %v976 = vsel %vm490, %v974, %v975
        %v977 = vrot.slane %v940, 1
        %v978 = vrot.slane %v941, 1
        %v979 = vsel %vm490, %v977, %v978
        %v980 = vrot.slane %v942, 1
        %v981 = vrot.slane %v943, 1
        %v982 = vsel %vm490, %v980, %v981
        %v983 = vrot.slane %v944, 1
        %v984 = vrot.slane %v945, 1
        %v985 = vsel %vm490, %v983, %v984
        %s994 = scalar_lea.vmem [#allocation2], 640
        %v995 = vld [vmem:[%s994] sm:$0xff]
        %v996 = vld [vmem:[%s994 + $0x8] sm:$0xff]
        %v997 = vld [vmem:[%s994 + $0x10] sm:$0xff]
        %v998 = vld [vmem:[%s994 + $0x18] sm:$0xff]
        %v999 = vld [vmem:[%s994 + $0x20] sm:$0xff]
        %v1000 = vld [vmem:[%s994 + $0x28] sm:$0xff]
        %v1001 = vld [vmem:[%s994 + $0x30] sm:$0xff]
        %v1002 = vld [vmem:[%s994 + $0x38] sm:$0xff]
        %v1003 = vld [vmem:[%s994 + $0x40] sm:$0xff]
        %v1004 = vld [vmem:[%s994 + $0x48] sm:$0xff]
        %v1005 = vld [vmem:[%s994 + $0x50] sm:$0xff]
        %v1006 = vld [vmem:[%s994 + $0x58] sm:$0xff]
        %v1007 = vld [vmem:[%s994 + $0x60] sm:$0xff]
        %v1008 = vld [vmem:[%s994 + $0x68] sm:$0xff]
        %v1009 = vld [vmem:[%s994 + $0x70] sm:$0xff]
        %v1010 = vld [vmem:[%s994 + $0x78] sm:$0xff]
        %1011 = vmatprep.subr.mxu0 0.0
        %1012 = vmatpush1.msra.mxu0 %v995
        %1013 = vmatprep.subr.mxu0 0.0
        %1014 = vmatpush1.msra.mxu0 %v996
        %1015 = vmatprep.subr.mxu0 0.0
        %1016 = vmatpush1.msra.mxu0 %v997
        %1017 = vmatprep.subr.mxu0 0.0
        %1018 = vmatpush1.msra.mxu0 %v998
        %1019 = vmatprep.subr.mxu0 0.0
        %1020 = vmatpush1.msra.mxu0 %v999
        %1021 = vmatprep.subr.mxu0 0.0
        %1022 = vmatpush1.msra.mxu0 %v1000
        %1023 = vmatprep.subr.mxu0 0.0
        %1024 = vmatpush1.msra.mxu0 %v1001
        %1025 = vmatprep.subr.mxu0 0.0
        %1026 = vmatpush1.msra.mxu0 %v1002
        %1027 = vmatprep.subr.mxu0 0.0
        %1028 = vmatpush1.msra.mxu0 %v1003
        %1029 = vmatprep.subr.mxu0 0.0
        %1030 = vmatpush1.msra.mxu0 %v1004
        %1031 = vmatprep.subr.mxu0 0.0
        %1032 = vmatpush1.msra.mxu0 %v1005
        %1033 = vmatprep.subr.mxu0 0.0
        %1034 = vmatpush1.msra.mxu0 %v1006
        %1035 = vmatprep.subr.mxu0 0.0
        %1036 = vmatpush1.msra.mxu0 %v1007
        %1037 = vmatprep.subr.mxu0 0.0
        %1038 = vmatpush1.msra.mxu0 %v1008
        %1039 = vmatprep.subr.mxu0 0.0
        %1040 = vmatpush1.msra.mxu0 %v1009
        %1041 = vmatprep.subr.mxu0 0.0
        %1042 = vmatpush1.msra.mxu0 %v1010
        %1043 = vmatprep.subr.mxu0 0.0
        %1044 = vmatpush1.msra.mxu0 0.0
        %1045 = vmatprep.subr.mxu0 0.0
        %1046 = vmatpush1.msra.mxu0 0.0
        %1047 = vmatprep.subr.mxu0 0.0
        %1048 = vmatpush1.msra.mxu0 0.0
        %1049 = vmatprep.subr.mxu0 0.0
        %1050 = vmatpush1.msra.mxu0 0.0
        %1051 = vmatprep.subr.mxu0 0.0
        %1052 = vmatpush1.msra.mxu0 0.0
        %1053 = vmatprep.subr.mxu0 0.0
        %1054 = vmatpush1.msra.mxu0 0.0
        %1055 = vmatprep.subr.mxu0 0.0
        %1056 = vmatpush1.msra.mxu0 0.0
        %1057 = vmatprep.subr.mxu0 0.0
        %1058 = vmatpush1.msra.mxu0 0.0
        %1059 = vmatprep.subr.mxu0 0.0
        %1060 = vmatpush1.msra.mxu0 0.0
        %1061 = vmatprep.subr.mxu0 0.0
        %1062 = vmatpush1.msra.mxu0 0.0
        %1063 = vmatprep.subr.mxu0 0.0
        %1064 = vmatpush1.msra.mxu0 0.0
        %1065 = vmatprep.subr.mxu0 0.0
        %1066 = vmatpush1.msra.mxu0 0.0
        %1067 = vmatprep.subr.mxu0 0.0
        %1068 = vmatpush1.msra.mxu0 0.0
        %1069 = vmatprep.subr.mxu0 0.0
        %1070 = vmatpush1.msra.mxu0 0.0
        %1071 = vmatprep.subr.mxu0 0.0
        %1072 = vmatpush1.msra.mxu0 0.0
        %1073 = vmatprep.subr.mxu0 0.0
        %1074 = vmatpush1.msra.mxu0 0.0
        %1075 = vmatprep.mubr.f32.mxu0 0.0
        %1076 = vmatmul.mubr.f32.gmra.mrb[0].mxu0 %v964
        %v1077 = vpop.f32.mrb[0].mxu0
        %v1078 = vadd.f32 0.0, %v1077
        %v1079 = vpop.f32.mrb[0].mxu0
        %1080 = vmatprep.mubr.f32.mxu0 0.0
        %1081 = vmatmul.mubr.f32.gmra.mrb[0].mxu0 %v967
        %v1082 = vpop.f32.mrb[0].mxu0
        %v1083 = vadd.f32 0.0, %v1082
        %v1084 = vpop.f32.mrb[0].mxu0
        %1085 = vmatprep.mubr.f32.mxu0 0.0
        %1086 = vmatmul.mubr.f32.gmra.mrb[0].mxu0 %v970
        %v1087 = vpop.f32.mrb[0].mxu0
        %v1088 = vadd.f32 0.0, %v1087
        %v1089 = vpop.f32.mrb[0].mxu0
        %1090 = vmatprep.mubr.f32.mxu0 0.0
        %1091 = vmatmul.mubr.f32.gmra.mrb[0].mxu0 %v973
        %v1092 = vpop.f32.mrb[0].mxu0
        %v1093 = vadd.f32 0.0, %v1092
        %v1094 = vpop.f32.mrb[0].mxu0
        %1095 = vmatprep.mubr.f32.mxu0 0.0
        %1096 = vmatmul.mubr.f32.gmra.mrb[0].mxu0 %v976
        %v1097 = vpop.f32.mrb[0].mxu0
        %v1098 = vadd.f32 0.0, %v1097
        %v1099 = vpop.f32.mrb[0].mxu0
        %1100 = vmatprep.mubr.f32.mxu0 0.0
        %1101 = vmatmul.mubr.f32.gmra.mrb[0].mxu0 %v979
        %v1102 = vpop.f32.mrb[0].mxu0
        %v1103 = vadd.f32 0.0, %v1102
        %v1104 = vpop.f32.mrb[0].mxu0
        %1105 = vmatprep.mubr.f32.mxu0 0.0
        %1106 = vmatmul.mubr.f32.gmra.mrb[0].mxu0 %v982
        %v1107 = vpop.f32.mrb[0].mxu0
        %v1108 = vadd.f32 0.0, %v1107
        %v1109 = vpop.f32.mrb[0].mxu0
        %1110 = vmatprep.mubr.f32.mxu0 0.0
        %1111 = vmatmul.mubr.f32.gmra.mrb[0].mxu0 %v985
        %v1112 = vpop.f32.mrb[0].mxu0
        %v1113 = vadd.f32 0.0, %v1112
        %v1114 = vpop.f32.mrb[0].mxu0
        %1115 = vdwg.mxu0
        %v1116 = vadd.f32 %v922, %v1078
        %v1117 = vadd.f32 %v923, %v1083
        %v1118 = vadd.f32 %v924, %v1088
        %v1119 = vadd.f32 %v925, %v1093
        %v1120 = vadd.f32 %v926, %v1098
        %v1121 = vadd.f32 %v927, %v1103
        %v1122 = vadd.f32 %v928, %v1108
        %v1123 = vadd.f32 %v929, %v1113
        %s1124 = scalar_lea.vmem %s193, 64
        %v1125 = vld [vmem:[%s1124] sm:$0xff]
        %v1126 = vld [vmem:[%s1124 + $0x40] sm:$0xff]
        %v1127 = vld [vmem:[%s1124 + $0x80] sm:$0xff]
        %v1128 = vld [vmem:[%s1124 + $0xc0] sm:$0xff]
        %v1129 = vld [vmem:[%s1124 + $0x100] sm:$0xff]
        %v1130 = vld [vmem:[%s1124 + $0x140] sm:$0xff]
        %v1131 = vld [vmem:[%s1124 + $0x180] sm:$0xff]
        %v1132 = vld [vmem:[%s1124 + $0x1c0] sm:$0xff]
        %s1133 = scalar_lea.vmem [#allocation2], 768
        %v1134 = vld [vmem:[%s1133] sm:$0xff]
        %v1135 = vld [vmem:[%s1133 + $0x8] sm:$0xff]
        %v1136 = vld [vmem:[%s1133 + $0x10] sm:$0xff]
        %v1137 = vld [vmem:[%s1133 + $0x18] sm:$0xff]
        %v1138 = vld [vmem:[%s1133 + $0x20] sm:$0xff]
        %v1139 = vld [vmem:[%s1133 + $0x28] sm:$0xff]
        %v1140 = vld [vmem:[%s1133 + $0x30] sm:$0xff]
        %v1141 = vld [vmem:[%s1133 + $0x38] sm:$0xff]
        %v1142 = vld [vmem:[%s1133 + $0x40] sm:$0xff]
        %v1143 = vld [vmem:[%s1133 + $0x48] sm:$0xff]
        %v1144 = vld [vmem:[%s1133 + $0x50] sm:$0xff]
        %v1145 = vld [vmem:[%s1133 + $0x58] sm:$0xff]
        %v1146 = vld [vmem:[%s1133 + $0x60] sm:$0xff]
        %v1147 = vld [vmem:[%s1133 + $0x68] sm:$0xff]
        %v1148 = vld [vmem:[%s1133 + $0x70] sm:$0xff]
        %v1149 = vld [vmem:[%s1133 + $0x78] sm:$0xff]
        %1150 = vmatprep.subr.mxu0 0.0
        %1151 = vmatpush1.msra.mxu0 %v1134
        %1152 = vmatprep.subr.mxu0 0.0
        %1153 = vmatpush1.msra.mxu0 %v1135
        %1154 = vmatprep.subr.mxu0 0.0
        %1155 = vmatpush1.msra.mxu0 %v1136
        %1156 = vmatprep.subr.mxu0 0.0
        %1157 = vmatpush1.msra.mxu0 %v1137
        %1158 = vmatprep.subr.mxu0 0.0
        %1159 = vmatpush1.msra.mxu0 %v1138
        %1160 = vmatprep.subr.mxu0 0.0
        %1161 = vmatpush1.msra.mxu0 %v1139
        %1162 = vmatprep.subr.mxu0 0.0
        %1163 = vmatpush1.msra.mxu0 %v1140
        %1164 = vmatprep.subr.mxu0 0.0
        %1165 = vmatpush1.msra.mxu0 %v1141
        %1166 = vmatprep.subr.mxu0 0.0
        %1167 = vmatpush1.msra.mxu0 %v1142
        %1168 = vmatprep.subr.mxu0 0.0
        %1169 = vmatpush1.msra.mxu0 %v1143
        %1170 = vmatprep.subr.mxu0 0.0
        %1171 = vmatpush1.msra.mxu0 %v1144
        %1172 = vmatprep.subr.mxu0 0.0
        %1173 = vmatpush1.msra.mxu0 %v1145
        %1174 = vmatprep.subr.mxu0 0.0
        %1175 = vmatpush1.msra.mxu0 %v1146
        %1176 = vmatprep.subr.mxu0 0.0
        %1177 = vmatpush1.msra.mxu0 %v1147
        %1178 = vmatprep.subr.mxu0 0.0
        %1179 = vmatpush1.msra.mxu0 %v1148
        %1180 = vmatprep.subr.mxu0 0.0
        %1181 = vmatpush1.msra.mxu0 %v1149
        %1182 = vmatprep.subr.mxu0 0.0
        %1183 = vmatpush1.msra.mxu0 0.0
        %1184 = vmatprep.subr.mxu0 0.0
        %1185 = vmatpush1.msra.mxu0 0.0
        %1186 = vmatprep.subr.mxu0 0.0
        %1187 = vmatpush1.msra.mxu0 0.0
        %1188 = vmatprep.subr.mxu0 0.0
        %1189 = vmatpush1.msra.mxu0 0.0
        %1190 = vmatprep.subr.mxu0 0.0
        %1191 = vmatpush1.msra.mxu0 0.0
        %1192 = vmatprep.subr.mxu0 0.0
        %1193 = vmatpush1.msra.mxu0 0.0
        %1194 = vmatprep.subr.mxu0 0.0
        %1195 = vmatpush1.msra.mxu0 0.0
        %1196 = vmatprep.subr.mxu0 0.0
        %1197 = vmatpush1.msra.mxu0 0.0
        %1198 = vmatprep.subr.mxu0 0.0
        %1199 = vmatpush1.msra.mxu0 0.0
        %1200 = vmatprep.subr.mxu0 0.0
        %1201 = vmatpush1.msra.mxu0 0.0
        %1202 = vmatprep.subr.mxu0 0.0
        %1203 = vmatpush1.msra.mxu0 0.0
        %1204 = vmatprep.subr.mxu0 0.0
        %1205 = vmatpush1.msra.mxu0 0.0
        %1206 = vmatprep.subr.mxu0 0.0
        %1207 = vmatpush1.msra.mxu0 0.0
        %1208 = vmatprep.subr.mxu0 0.0
        %1209 = vmatpush1.msra.mxu0 0.0
        %1210 = vmatprep.subr.mxu0 0.0
        %1211 = vmatpush1.msra.mxu0 0.0
        %1212 = vmatprep.subr.mxu0 0.0
        %1213 = vmatpush1.msra.mxu0 0.0
        %1214 = vmatprep.mubr.f32.mxu0 0.0
        %1215 = vmatmul.mubr.f32.gmra.mrb[0].mxu0 %v1125
        %v1216 = vpop.f32.mrb[0].mxu0
        %v1217 = vadd.f32 0.0, %v1216
        %v1218 = vpop.f32.mrb[0].mxu0
        %1219 = vmatprep.mubr.f32.mxu0 0.0
        %1220 = vmatmul.mubr.f32.gmra.mrb[0].mxu0 %v1126
        %v1221 = vpop.f32.mrb[0].mxu0
        %v1222 = vadd.f32 0.0, %v1221
        %v1223 = vpop.f32.mrb[0].mxu0
        %1224 = vmatprep.mubr.f32.mxu0 0.0
        %1225 = vmatmul.mubr.f32.gmra.mrb[0].mxu0 %v1127
        %v1226 = vpop.f32.mrb[0].mxu0
        %v1227 = vadd.f32 0.0, %v1226
        %v1228 = vpop.f32.mrb[0].mxu0
        %1229 = vmatprep.mubr.f32.mxu0 0.0
        %1230 = vmatmul.mubr.f32.gmra.mrb[0].mxu0 %v1128
        %v1231 = vpop.f32.mrb[0].mxu0
        %v1232 = vadd.f32 0.0, %v1231
        %v1233 = vpop.f32.mrb[0].mxu0
        %1234 = vmatprep.mubr.f32.mxu0 0.0
        %1235 = vmatmul.mubr.f32.gmra.mrb[0].mxu0 %v1129
        %v1236 = vpop.f32.mrb[0].mxu0
        %v1237 = vadd.f32 0.0, %v1236
        %v1238 = vpop.f32.mrb[0].mxu0
        %1239 = vmatprep.mubr.f32.mxu0 0.0
        %1240 = vmatmul.mubr.f32.gmra.mrb[0].mxu0 %v1130
        %v1241 = vpop.f32.mrb[0].mxu0
        %v1242 = vadd.f32 0.0, %v1241
        %v1243 = vpop.f32.mrb[0].mxu0
        %1244 = vmatprep.mubr.f32.mxu0 0.0
        %1245 = vmatmul.mubr.f32.gmra.mrb[0].mxu0 %v1131
        %v1246 = vpop.f32.mrb[0].mxu0
        %v1247 = vadd.f32 0.0, %v1246
        %v1248 = vpop.f32.mrb[0].mxu0
        %1249 = vmatprep.mubr.f32.mxu0 0.0
        %1250 = vmatmul.mubr.f32.gmra.mrb[0].mxu0 %v1132
        %v1251 = vpop.f32.mrb[0].mxu0
        %v1252 = vadd.f32 0.0, %v1251
        %v1253 = vpop.f32.mrb[0].mxu0
        %1254 = vdwg.mxu0
        %v1255 = vadd.f32 %v1116, %v1217
        %v1256 = vadd.f32 %v1117, %v1222
        %v1257 = vadd.f32 %v1118, %v1227
        %v1258 = vadd.f32 %v1119, %v1232
        %v1259 = vadd.f32 %v1120, %v1237
        %v1260 = vadd.f32 %v1121, %v1242
        %v1261 = vadd.f32 %v1122, %v1247
        %v1262 = vadd.f32 %v1123, %v1252
        %v1263 = vld [vmem:[%s1124 + $0x8] sm:$0xff]
        %v1264 = vld [vmem:[%s1124 + $0x48] sm:$0xff]
        %v1265 = vld [vmem:[%s1124 + $0x88] sm:$0xff]
        %v1266 = vld [vmem:[%s1124 + $0xc8] sm:$0xff]
        %v1267 = vld [vmem:[%s1124 + $0x108] sm:$0xff]
        %v1268 = vld [vmem:[%s1124 + $0x148] sm:$0xff]
        %v1269 = vld [vmem:[%s1124 + $0x188] sm:$0xff]
        %v1270 = vld [vmem:[%s1124 + $0x1c8] sm:$0xff]
        %s1271 = scalar_lea.vmem [#allocation2], 896
        %v1272 = vld [vmem:[%s1271] sm:$0xff]
        %v1273 = vld [vmem:[%s1271 + $0x8] sm:$0xff]
        %v1274 = vld [vmem:[%s1271 + $0x10] sm:$0xff]
        %v1275 = vld [vmem:[%s1271 + $0x18] sm:$0xff]
        %v1276 = vld [vmem:[%s1271 + $0x20] sm:$0xff]
        %v1277 = vld [vmem:[%s1271 + $0x28] sm:$0xff]
        %v1278 = vld [vmem:[%s1271 + $0x30] sm:$0xff]
        %v1279 = vld [vmem:[%s1271 + $0x38] sm:$0xff]
        %v1280 = vld [vmem:[%s1271 + $0x40] sm:$0xff]
        %v1281 = vld [vmem:[%s1271 + $0x48] sm:$0xff]
        %v1282 = vld [vmem:[%s1271 + $0x50] sm:$0xff]
        %v1283 = vld [vmem:[%s1271 + $0x58] sm:$0xff]
        %v1284 = vld [vmem:[%s1271 + $0x60] sm:$0xff]
        %v1285 = vld [vmem:[%s1271 + $0x68] sm:$0xff]
        %v1286 = vld [vmem:[%s1271 + $0x70] sm:$0xff]
        %v1287 = vld [vmem:[%s1271 + $0x78] sm:$0xff]
        %1288 = vmatprep.subr.mxu0 0.0
        %1289 = vmatpush1.msra.mxu0 %v1272
        %1290 = vmatprep.subr.mxu0 0.0
        %1291 = vmatpush1.msra.mxu0 %v1273
        %1292 = vmatprep.subr.mxu0 0.0
        %1293 = vmatpush1.msra.mxu0 %v1274
        %1294 = vmatprep.subr.mxu0 0.0
        %1295 = vmatpush1.msra.mxu0 %v1275
        %1296 = vmatprep.subr.mxu0 0.0
        %1297 = vmatpush1.msra.mxu0 %v1276
        %1298 = vmatprep.subr.mxu0 0.0
        %1299 = vmatpush1.msra.mxu0 %v1277
        %1300 = vmatprep.subr.mxu0 0.0
        %1301 = vmatpush1.msra.mxu0 %v1278
        %1302 = vmatprep.subr.mxu0 0.0
        %1303 = vmatpush1.msra.mxu0 %v1279
        %1304 = vmatprep.subr.mxu0 0.0
        %1305 = vmatpush1.msra.mxu0 %v1280
        %1306 = vmatprep.subr.mxu0 0.0
        %1307 = vmatpush1.msra.mxu0 %v1281
        %1308 = vmatprep.subr.mxu0 0.0
        %1309 = vmatpush1.msra.mxu0 %v1282
        %1310 = vmatprep.subr.mxu0 0.0
        %1311 = vmatpush1.msra.mxu0 %v1283
        %1312 = vmatprep.subr.mxu0 0.0
        %1313 = vmatpush1.msra.mxu0 %v1284
        %1314 = vmatprep.subr.mxu0 0.0
        %1315 = vmatpush1.msra.mxu0 %v1285
        %1316 = vmatprep.subr.mxu0 0.0
        %1317 = vmatpush1.msra.mxu0 %v1286
        %1318 = vmatprep.subr.mxu0 0.0
        %1319 = vmatpush1.msra.mxu0 %v1287
        %1320 = vmatprep.subr.mxu0 0.0
        %1321 = vmatpush1.msra.mxu0 0.0
        %1322 = vmatprep.subr.mxu0 0.0
        %1323 = vmatpush1.msra.mxu0 0.0
        %1324 = vmatprep.subr.mxu0 0.0
        %1325 = vmatpush1.msra.mxu0 0.0
        %1326 = vmatprep.subr.mxu0 0.0
        %1327 = vmatpush1.msra.mxu0 0.0
        %1328 = vmatprep.subr.mxu0 0.0
        %1329 = vmatpush1.msra.mxu0 0.0
        %1330 = vmatprep.subr.mxu0 0.0
        %1331 = vmatpush1.msra.mxu0 0.0
        %1332 = vmatprep.subr.mxu0 0.0
        %1333 = vmatpush1.msra.mxu0 0.0
        %1334 = vmatprep.subr.mxu0 0.0
        %1335 = vmatpush1.msra.mxu0 0.0
        %1336 = vmatprep.subr.mxu0 0.0
        %1337 = vmatpush1.msra.mxu0 0.0
        %1338 = vmatprep.subr.mxu0 0.0
        %1339 = vmatpush1.msra.mxu0 0.0
        %1340 = vmatprep.subr.mxu0 0.0
        %1341 = vmatpush1.msra.mxu0 0.0
        %1342 = vmatprep.subr.mxu0 0.0
        %1343 = vmatpush1.msra.mxu0 0.0
        %1344 = vmatprep.subr.mxu0 0.0
        %1345 = vmatpush1.msra.mxu0 0.0
        %1346 = vmatprep.subr.mxu0 0.0
        %1347 = vmatpush1.msra.mxu0 0.0
        %1348 = vmatprep.subr.mxu0 0.0
        %1349 = vmatpush1.msra.mxu0 0.0
        %1350 = vmatprep.subr.mxu0 0.0
        %1351 = vmatpush1.msra.mxu0 0.0
        %1352 = vmatprep.mubr.f32.mxu0 0.0
        %1353 = vmatmul.mubr.f32.gmra.mrb[0].mxu0 %v1263
        %v1354 = vpop.f32.mrb[0].mxu0
        %v1355 = vadd.f32 0.0, %v1354
        %v1356 = vpop.f32.mrb[0].mxu0
        %1357 = vmatprep.mubr.f32.mxu0 0.0
        %1358 = vmatmul.mubr.f32.gmra.mrb[0].mxu0 %v1264
        %v1359 = vpop.f32.mrb[0].mxu0
        %v1360 = vadd.f32 0.0, %v1359
        %v1361 = vpop.f32.mrb[0].mxu0
        %1362 = vmatprep.mubr.f32.mxu0 0.0
        %1363 = vmatmul.mubr.f32.gmra.mrb[0].mxu0 %v1265
        %v1364 = vpop.f32.mrb[0].mxu0
        %v1365 = vadd.f32 0.0, %v1364
        %v1366 = vpop.f32.mrb[0].mxu0
        %1367 = vmatprep.mubr.f32.mxu0 0.0
        %1368 = vmatmul.mubr.f32.gmra.mrb[0].mxu0 %v1266
        %v1369 = vpop.f32.mrb[0].mxu0
        %v1370 = vadd.f32 0.0, %v1369
        %v1371 = vpop.f32.mrb[0].mxu0
        %1372 = vmatprep.mubr.f32.mxu0 0.0
        %1373 = vmatmul.mubr.f32.gmra.mrb[0].mxu0 %v1267
        %v1374 = vpop.f32.mrb[0].mxu0
        %v1375 = vadd.f32 0.0, %v1374
        %v1376 = vpop.f32.mrb[0].mxu0
        %1377 = vmatprep.mubr.f32.mxu0 0.0
        %1378 = vmatmul.mubr.f32.gmra.mrb[0].mxu0 %v1268
        %v1379 = vpop.f32.mrb[0].mxu0
        %v1380 = vadd.f32 0.0, %v1379
        %v1381 = vpop.f32.mrb[0].mxu0
        %1382 = vmatprep.mubr.f32.mxu0 0.0
        %1383 = vmatmul.mubr.f32.gmra.mrb[0].mxu0 %v1269
        %v1384 = vpop.f32.mrb[0].mxu0
        %v1385 = vadd.f32 0.0, %v1384
        %v1386 = vpop.f32.mrb[0].mxu0
        %1387 = vmatprep.mubr.f32.mxu0 0.0
        %1388 = vmatmul.mubr.f32.gmra.mrb[0].mxu0 %v1270
        %v1389 = vpop.f32.mrb[0].mxu0
        %v1390 = vadd.f32 0.0, %v1389
        %v1391 = vpop.f32.mrb[0].mxu0
        %1392 = vdwg.mxu0
        %v1393 = vadd.f32 %v1255, %v1355
        %v1394 = vadd.f32 %v1256, %v1360
        %v1395 = vadd.f32 %v1257, %v1365
        %v1396 = vadd.f32 %v1258, %v1370
        %v1397 = vadd.f32 %v1259, %v1375
        %v1398 = vadd.f32 %v1260, %v1380
        %v1399 = vadd.f32 %v1261, %v1385
        %v1400 = vadd.f32 %v1262, %v1390
        %v1401 = vld [vmem:[%s1124] sm:$0xfe]
        %v1402 = vld [vmem:[%s1124 + $0x10] sm:$0x1]
        %v1403 = vld [vmem:[%s1124 + $0x40] sm:$0xfe]
        %v1404 = vld [vmem:[%s1124 + $0x50] sm:$0x1]
        %v1405 = vld [vmem:[%s1124 + $0x80] sm:$0xfe]
        %v1406 = vld [vmem:[%s1124 + $0x90] sm:$0x1]
        %v1407 = vld [vmem:[%s1124 + $0xc0] sm:$0xfe]
        %v1408 = vld [vmem:[%s1124 + $0xd0] sm:$0x1]
        %v1409 = vld [vmem:[%s1124 + $0x100] sm:$0xfe]
        %v1410 = vld [vmem:[%s1124 + $0x110] sm:$0x1]
        %v1411 = vld [vmem:[%s1124 + $0x140] sm:$0xfe]
        %v1412 = vld [vmem:[%s1124 + $0x150] sm:$0x1]
        %v1413 = vld [vmem:[%s1124 + $0x180] sm:$0xfe]
        %v1414 = vld [vmem:[%s1124 + $0x190] sm:$0x1]
        %v1415 = vld [vmem:[%s1124 + $0x1c0] sm:$0xfe]
        %v1416 = vld [vmem:[%s1124 + $0x1d0] sm:$0x1]
        %v1433 = vrot.slane %v1401, 1
        %v1434 = vrot.slane %v1402, 1
        %v1435 = vsel %vm490, %v1433, %v1434
        %v1436 = vrot.slane %v1403, 1
        %v1437 = vrot.slane %v1404, 1
        %v1438 = vsel %vm490, %v1436, %v1437
        %v1439 = vrot.slane %v1405, 1
        %v1440 = vrot.slane %v1406, 1
        %v1441 = vsel %vm490, %v1439, %v1440
        %v1442 = vrot.slane %v1407, 1
        %v1443 = vrot.slane %v1408, 1
        %v1444 = vsel %vm490, %v1442, %v1443
        %v1445 = vrot.slane %v1409, 1
        %v1446 = vrot.slane %v1410, 1
        %v1447 = vsel %vm490, %v1445, %v1446
        %v1448 = vrot.slane %v1411, 1
        %v1449 = vrot.slane %v1412, 1
        %v1450 = vsel %vm490, %v1448, %v1449
        %v1451 = vrot.slane %v1413, 1
        %v1452 = vrot.slane %v1414, 1
        %v1453 = vsel %vm490, %v1451, %v1452
        %v1454 = vrot.slane %v1415, 1
        %v1455 = vrot.slane %v1416, 1
        %v1456 = vsel %vm490, %v1454, %v1455
        %s1465 = scalar_lea.vmem [#allocation2], 1024
        %v1466 = vld [vmem:[%s1465] sm:$0xff]
        %v1467 = vld [vmem:[%s1465 + $0x8] sm:$0xff]
        %v1468 = vld [vmem:[%s1465 + $0x10] sm:$0xff]
        %v1469 = vld [vmem:[%s1465 + $0x18] sm:$0xff]
        %v1470 = vld [vmem:[%s1465 + $0x20] sm:$0xff]
        %v1471 = vld [vmem:[%s1465 + $0x28] sm:$0xff]
        %v1472 = vld [vmem:[%s1465 + $0x30] sm:$0xff]
        %v1473 = vld [vmem:[%s1465 + $0x38] sm:$0xff]
        %v1474 = vld [vmem:[%s1465 + $0x40] sm:$0xff]
        %v1475 = vld [vmem:[%s1465 + $0x48] sm:$0xff]
        %v1476 = vld [vmem:[%s1465 + $0x50] sm:$0xff]
        %v1477 = vld [vmem:[%s1465 + $0x58] sm:$0xff]
        %v1478 = vld [vmem:[%s1465 + $0x60] sm:$0xff]
        %v1479 = vld [vmem:[%s1465 + $0x68] sm:$0xff]
        %v1480 = vld [vmem:[%s1465 + $0x70] sm:$0xff]
        %v1481 = vld [vmem:[%s1465 + $0x78] sm:$0xff]
        %1482 = vmatprep.subr.mxu0 0.0
        %1483 = vmatpush1.msra.mxu0 %v1466
        %1484 = vmatprep.subr.mxu0 0.0
        %1485 = vmatpush1.msra.mxu0 %v1467
        %1486 = vmatprep.subr.mxu0 0.0
        %1487 = vmatpush1.msra.mxu0 %v1468
        %1488 = vmatprep.subr.mxu0 0.0
        %1489 = vmatpush1.msra.mxu0 %v1469
        %1490 = vmatprep.subr.mxu0 0.0
        %1491 = vmatpush1.msra.mxu0 %v1470
        %1492 = vmatprep.subr.mxu0 0.0
        %1493 = vmatpush1.msra.mxu0 %v1471
        %1494 = vmatprep.subr.mxu0 0.0
        %1495 = vmatpush1.msra.mxu0 %v1472
        %1496 = vmatprep.subr.mxu0 0.0
        %1497 = vmatpush1.msra.mxu0 %v1473
        %1498 = vmatprep.subr.mxu0 0.0
        %1499 = vmatpush1.msra.mxu0 %v1474
        %1500 = vmatprep.subr.mxu0 0.0
        %1501 = vmatpush1.msra.mxu0 %v1475
        %1502 = vmatprep.subr.mxu0 0.0
        %1503 = vmatpush1.msra.mxu0 %v1476
        %1504 = vmatprep.subr.mxu0 0.0
        %1505 = vmatpush1.msra.mxu0 %v1477
        %1506 = vmatprep.subr.mxu0 0.0
        %1507 = vmatpush1.msra.mxu0 %v1478
        %1508 = vmatprep.subr.mxu0 0.0
        %1509 = vmatpush1.msra.mxu0 %v1479
        %1510 = vmatprep.subr.mxu0 0.0
        %1511 = vmatpush1.msra.mxu0 %v1480
        %1512 = vmatprep.subr.mxu0 0.0
        %1513 = vmatpush1.msra.mxu0 %v1481
        %1514 = vmatprep.subr.mxu0 0.0
        %1515 = vmatpush1.msra.mxu0 0.0
        %1516 = vmatprep.subr.mxu0 0.0
        %1517 = vmatpush1.msra.mxu0 0.0
        %1518 = vmatprep.subr.mxu0 0.0
        %1519 = vmatpush1.msra.mxu0 0.0
        %1520 = vmatprep.subr.mxu0 0.0
        %1521 = vmatpush1.msra.mxu0 0.0
        %1522 = vmatprep.subr.mxu0 0.0
        %1523 = vmatpush1.msra.mxu0 0.0
        %1524 = vmatprep.subr.mxu0 0.0
        %1525 = vmatpush1.msra.mxu0 0.0
        %1526 = vmatprep.subr.mxu0 0.0
        %1527 = vmatpush1.msra.mxu0 0.0
        %1528 = vmatprep.subr.mxu0 0.0
        %1529 = vmatpush1.msra.mxu0 0.0
        %1530 = vmatprep.subr.mxu0 0.0
        %1531 = vmatpush1.msra.mxu0 0.0
        %1532 = vmatprep.subr.mxu0 0.0
        %1533 = vmatpush1.msra.mxu0 0.0
        %1534 = vmatprep.subr.mxu0 0.0
        %1535 = vmatpush1.msra.mxu0 0.0
        %1536 = vmatprep.subr.mxu0 0.0
        %1537 = vmatpush1.msra.mxu0 0.0
        %1538 = vmatprep.subr.mxu0 0.0
        %1539 = vmatpush1.msra.mxu0 0.0
        %1540 = vmatprep.subr.mxu0 0.0
        %1541 = vmatpush1.msra.mxu0 0.0
        %1542 = vmatprep.subr.mxu0 0.0
        %1543 = vmatpush1.msra.mxu0 0.0
        %1544 = vmatprep.subr.mxu0 0.0
        %1545 = vmatpush1.msra.mxu0 0.0
        %1546 = vmatprep.mubr.f32.mxu0 0.0
        %1547 = vmatmul.mubr.f32.gmra.mrb[0].mxu0 %v1435
        %v1548 = vpop.f32.mrb[0].mxu0
        %v1549 = vadd.f32 0.0, %v1548
        %v1550 = vpop.f32.mrb[0].mxu0
        %1551 = vmatprep.mubr.f32.mxu0 0.0
        %1552 = vmatmul.mubr.f32.gmra.mrb[0].mxu0 %v1438
        %v1553 = vpop.f32.mrb[0].mxu0
        %v1554 = vadd.f32 0.0, %v1553
        %v1555 = vpop.f32.mrb[0].mxu0
        %1556 = vmatprep.mubr.f32.mxu0 0.0
        %1557 = vmatmul.mubr.f32.gmra.mrb[0].mxu0 %v1441
        %v1558 = vpop.f32.mrb[0].mxu0
        %v1559 = vadd.f32 0.0, %v1558
        %v1560 = vpop.f32.mrb[0].mxu0
        %1561 = vmatprep.mubr.f32.mxu0 0.0
        %1562 = vmatmul.mubr.f32.gmra.mrb[0].mxu0 %v1444
        %v1563 = vpop.f32.mrb[0].mxu0
        %v1564 = vadd.f32 0.0, %v1563
        %v1565 = vpop.f32.mrb[0].mxu0
        %1566 = vmatprep.mubr.f32.mxu0 0.0
        %1567 = vmatmul.mubr.f32.gmra.mrb[0].mxu0 %v1447
        %v1568 = vpop.f32.mrb[0].mxu0
        %v1569 = vadd.f32 0.0, %v1568
        %v1570 = vpop.f32.mrb[0].mxu0
        %1571 = vmatprep.mubr.f32.mxu0 0.0
        %1572 = vmatmul.mubr.f32.gmra.mrb[0].mxu0 %v1450
        %v1573 = vpop.f32.mrb[0].mxu0
        %v1574 = vadd.f32 0.0, %v1573
        %v1575 = vpop.f32.mrb[0].mxu0
        %1576 = vmatprep.mubr.f32.mxu0 0.0
        %1577 = vmatmul.mubr.f32.gmra.mrb[0].mxu0 %v1453
        %v1578 = vpop.f32.mrb[0].mxu0
        %v1579 = vadd.f32 0.0, %v1578
        %v1580 = vpop.f32.mrb[0].mxu0
        %1581 = vmatprep.mubr.f32.mxu0 0.0
        %1582 = vmatmul.mubr.f32.gmra.mrb[0].mxu0 %v1456
        %v1583 = vpop.f32.mrb[0].mxu0
        %v1584 = vadd.f32 0.0, %v1583
        %v1585 = vpop.f32.mrb[0].mxu0
        %1586 = vdwg.mxu0
        %v1587 = vadd.f32 %v1393, %v1549
        %v1588 = vadd.f32 %v1394, %v1554
        %v1589 = vadd.f32 %v1395, %v1559
        %v1590 = vadd.f32 %v1396, %v1564
        %v1591 = vadd.f32 %v1397, %v1569
        %v1592 = vadd.f32 %v1398, %v1574
        %v1593 = vadd.f32 %v1399, %v1579
        %v1594 = vadd.f32 %v1400, %v1584
        %v1595 = vld [vmem:[#allocation4] sm:$0x1]
        %v1597 = vlaneseq
        %v1598 = vshrl.u32 %v1597, 7
        %v1599 = vsub.s32 0, %v1598
        %v1600 = vrot.slane %v1595, %v1599
        %v1602 = vadd.f32 %v1587, %v1600
        %v1603 = vadd.f32 %v1588, %v1600
        %v1604 = vadd.f32 %v1589, %v1600
        %v1605 = vadd.f32 %v1590, %v1600
        %v1606 = vadd.f32 %v1591, %v1600
        %v1607 = vadd.f32 %v1592, %v1600
        %v1608 = vadd.f32 %v1593, %v1600
        %v1609 = vadd.f32 %v1594, %v1600
        %v1610 = vmax.f32 %v1602, 0.0
        %v1611 = vmax.f32 %v1603, 0.0
        %v1612 = vmax.f32 %v1604, 0.0
        %v1613 = vmax.f32 %v1605, 0.0
        %v1614 = vmax.f32 %v1606, 0.0
        %v1615 = vmax.f32 %v1607, 0.0
        %v1616 = vmax.f32 %v1608, 0.0
        %v1617 = vmax.f32 %v1609, 0.0
        %1618 = vst [vmem:[%s198] sm:$0xff] %v1610
        %1619 = vst [vmem:[%s198 + $0x8] sm:$0xff] %v1611
        %1620 = vst [vmem:[%s198 + $0x10] sm:$0xff] %v1612
        %1621 = vst [vmem:[%s198 + $0x18] sm:$0xff] %v1613
        %1622 = vst [vmem:[%s198 + $0x20] sm:$0xff] %v1614
        %1623 = vst [vmem:[%s198 + $0x28] sm:$0xff] %v1615
        %1624 = vst [vmem:[%s198 + $0x30] sm:$0xff] %v1616
        %1625 = vst [vmem:[%s198 + $0x38] sm:$0xff] %v1617
        %p1626 = scmp.lt.s32.totalorder %s16, 1
        %s1627 = scalar_select %p1626, %s16, 1
        %s1628 = smul.addr %s1627, 8
        %s1629 = smul.addr %s1628, 8
        %s1630 = scalar_lea.vmem %s3, %s1629
        // Predicated region
        $region41: #{forward.4} parent=31 // pred_check
          %p1631 = pneg %p102
        $region42: #{forward.4} parent=31 // pred_check_branch
          %1633 = sbr.rel (%p1631) target = $region44
        $region43: #{forward.4} parent=31 // pred_region
          _
        $region44: #{forward.4} parent=31 // pred_fallthru
          _
      $region32: #{forward.4} parent=5 // pred_fallthru
        _
      %p1634 = scmp.le.s32.totalorder 2, %s11
      // Predicated region
      $region45: #{forward.4} parent=5 // pred_check
        %p1635 = pneg %p1634
      $region46: #{forward.4} parent=5 // pred_check_branch
        %1637 = sbr.rel (%p1635) target = $region48
      $region47: #{forward.4} parent=5 // pred_region
        %s1638 = ssub.s32 %s11, 2
        // Predicated region
        $region49: #{forward.4} parent=47 // pred_check
          %p1639 = pneg %p108
        $region50: #{forward.4} parent=47 // pred_check_branch
          %1641 = sbr.rel (%p1639) target = $region52
        $region51: #{forward.4} parent=47 // pred_region
          %p1642 = scmp.lt.s32.totalorder %s17, 1
          %s1643 = scalar_select %p1642, %s17, 1
          %s1644 = smul.addr %s1643, 8
          %s1645 = smul.addr %s1644, 8
          %s1646 = scalar_lea.vmem %s3, %s1645
        $region52: #{forward.4} parent=47 // pred_fallthru
          _
      $region48: #{forward.4} parent=5 // pred_fallthru
        _
    $region6: #{forward.4} parent=1 // loop_footer
      %s15 = sadd.s32 1, %s11
    $region7: #{forward.4} parent=1 // loop_footer_branch
      %10 = sbr.rel target = $region3
    $region8: #{forward.4} parent=1 // loop_exit
      _
    %1647 = vsyncpa [#allocation3], 1
    %s1648 = scalar_lea.sflag [#allocation3], 1
    %1649 = vsyncpa %s1648, 1
    %1650 = vsyncpa [#allocation5], 1

// kernel: forward.3
$region0: #{forward.3}
  #allocation0 [shape = 'u32[]', space=smem, size = 0x4, offset = 0x4, fixed_abs, tag = 'smem constant byte address 0x4 - core index']
  #allocation1 [shape = 'u32[144,128]{1,0:T(1,128)}', space=vmem, size = 0x12000, scoped, tag = 'internal scratch']
  %s0 = inlined_call_operand.vmem [shape: f32[2,18,18,4], index: 0, kind: input, shape index: {}]
  %s1 = inlined_call_operand.hbm [shape: f32[9,4,128], index: 1, kind: input, shape index: {}]
  %s2 = inlined_call_operand.hbm [shape: f32[1,128], index: 2, kind: input, shape index: {}]
  %s3 = inlined_call_operand.vmem [shape: f32[2,256,128], index: 3, kind: output, shape index: {}]
  %s4 = sld [smem:[#allocation0]]
  $region53: #{forward.3} parent=0
    _
  %s6 = ssub.s32 1, %s4
  %s7 = scalar_select 0, %s6, %s4
  $region1: #{forward.3} parent=0
    #allocation2 [shape = 'u8[18432]{0}', space=vmem, size = 0x4800, scoped, tag = 'input window, operand 1, single buffered']
    #allocation3 [shape = 's32[2]{0}', space=sflag, size = 0x8, scoped, tag = 'scoped memory for forward.3']
    #allocation4 [shape = 'u8[512]{0}', space=vmem, size = 0x400, scoped, tag = 'input window, operand 2, single buffered']
    #allocation5 [shape = 's32[1]{0}', space=sflag, size = 0x4, scoped, tag = 'scoped memory for forward.3']
    %8 = vsyncpa [#allocation3], 0
    %9 = vsyncpa [#allocation5], 0
    loop: start=0, step=1, limit=4
    $region2: #{forward.3} parent=1 // loop_pre_header
      _
    $region3: #{forward.3} parent=1 // loop_header
      %s11 = sphi 0, %s15
      %p12 = scmp.ge.s32.totalorder %s11, 4
      %s21 = sphi 0, %s23
      %s24 = sphi 0, %s21
      %s25 = sphi 0, %s24
      %s41 = sphi 0, %s25
      %s45 = sphi 0, %s45
      %s47 = sphi 0, %s45
      %s48 = sphi 0, %s47
      %s62 = sphi 0, %s48
      %s66 = sphi 0, %s66
      %s68 = sphi 0, %s66
      %s69 = sphi 0, %s68
      %s83 = sphi 0, %s69
      %s89 = sphi 0, %s91
      %s92 = sphi 0, %s89
      %s93 = sphi 0, %s92
      %s109 = sphi 0, %s93
    $region4: #{forward.3} parent=1 // loop_header_branch
      %14 = sbr.rel (%p12) target = $region8
    $region5: #{forward.3} parent=1 // loop_body
      %s16 = ssub.s32 %s11, 1
      %s17 = ssub.s32 %s11, 2
      %s18 = sadd.s32 %s11, 1
      %s19 = ssub.s32 %s11, %s18
      %p20 = scmp.eq.s32.totalorder %s19, 0
      %s22 = sadd.s32 %s21, 1
      %s23 = scalar_select %p20, %s21, %s22
      %p26 = pneg %p20
      %p27 = scmp.eq.s32.totalorder %s11, 1
      %p28 = por %p26, %p27
      %p29 = scmp.ne.s32.totalorder %s21, %s24
      %p30 = scmp.eq.s32.totalorder %s11, 0
      %p31 = por %p29, %p30
      %p32 = scmp.ne.s32.totalorder %s21, %s24
      %p33 = scmp.eq.s32.totalorder %s16, 1
      %p34 = por %p32, %p33
      %p35 = scmp.ne.s32.totalorder %s24, %s25
      %p36 = scmp.eq.s32.totalorder %s16, 0
      %p37 = por %p35, %p36
      %p38 = scmp.ne.s32.totalorder %s24, %s25
      %p39 = scmp.eq.s32.totalorder %s17, 1
      %p40 = por %p38, %p39
      %p42 = scmp.ne.s32.totalorder %s25, %s41
      %p43 = scmp.eq.s32.totalorder %s17, 0
      %p44 = por %p42, %p43
      %s46 = sadd.s32 %s45, 1
      %p49 = scmp.eq.s32.totalorder %s11, 1
      %p50 = scmp.ne.s32.totalorder %s45, %s47
      %p51 = scmp.eq.s32.totalorder %s11, 0
      %p52 = por %p50, %p51
      %p53 = scmp.ne.s32.totalorder %s45, %s47
      %p54 = scmp.eq.s32.totalorder %s16, 1
      %p55 = por %p53, %p54
      %p56 = scmp.ne.s32.totalorder %s47, %s48
      %p57 = scmp.eq.s32.totalorder %s16, 0
      %p58 = por %p56, %p57
      %p59 = scmp.ne.s32.totalorder %s47, %s48
      %p60 = scmp.eq.s32.totalorder %s17, 1
      %p61 = por %p59, %p60
      %p63 = scmp.ne.s32.totalorder %s48, %s62
      %p64 = scmp.eq.s32.totalorder %s17, 0
      %p65 = por %p63, %p64
      %s67 = sadd.s32 %s66, 1
      %p70 = scmp.eq.s32.totalorder %s11, 1
      %p71 = scmp.ne.s32.totalorder %s66, %s68
      %p72 = scmp.eq.s32.totalorder %s11, 0
      %p73 = por %p71, %p72
      %p74 = scmp.ne.s32.totalorder %s66, %s68
      %p75 = scmp.eq.s32.totalorder %s16, 1
      %p76 = por %p74, %p75
      %p77 = scmp.ne.s32.totalorder %s68, %s69
      %p78 = scmp.eq.s32.totalorder %s16, 0
      %p79 = por %p77, %p78
      %p80 = scmp.ne.s32.totalorder %s68, %s69
      %p81 = scmp.eq.s32.totalorder %s17, 1
      %p82 = por %p80, %p81
      %p84 = scmp.ne.s32.totalorder %s69, %s83
      %p85 = scmp.eq.s32.totalorder %s17, 0
      %p86 = por %p84, %p85
      %s87 = ssub.s32 %s11, %s18
      %p88 = scmp.eq.s32.totalorder %s87, 0
      %s90 = sadd.s32 %s89, 1
      %s91 = scalar_select %p88, %s89, %s90
      %p94 = pneg %p88
      %p95 = scmp.eq.s32.totalorder %s11, 1
      %p96 = por %p94, %p95
      %p97 = scmp.ne.s32.totalorder %s89, %s92
      %p98 = scmp.eq.s32.totalorder %s11, 0
      %p99 = por %p97, %p98
      %p100 = scmp.ne.s32.totalorder %s89, %s92
      %p101 = scmp.eq.s32.totalorder %s16, 1
      %p102 = por %p100, %p101
      %p103 = scmp.ne.s32.totalorder %s92, %s93
      %p104 = scmp.eq.s32.totalorder %s16, 0
      %p105 = por %p103, %p104
      %p106 = scmp.ne.s32.totalorder %s92, %s93
      %p107 = scmp.eq.s32.totalorder %s17, 1
      %p108 = por %p106, %p107
      %p110 = scmp.ne.s32.totalorder %s93, %s109
      %p111 = scmp.eq.s32.totalorder %s17, 0
      %p112 = por %p110, %p111
      %p113 = scmp.le.s32.totalorder 1, %s11
      %p114 = scmp.lt.s32.totalorder %s11, 3
      %p115 = pnand %p113, %p114
      %p116 = pneg %p115
      // Predicated region
      $region9: #{forward.3} parent=5 // pred_check
        _
      $region10: #{forward.3} parent=5 // pred_check_branch
        %118 = sbr.rel (%p115) target = $region12
      $region11: #{forward.3} parent=5 // pred_region
        %s119 = ssub.s32 %s11, 1
        // Predicated region
        $region13: #{forward.3} parent=11 // pred_check
          %p120 = pneg %p58
        $region14: #{forward.3} parent=11 // pred_check_branch
          %122 = sbr.rel (%p120) target = $region16
        $region15: #{forward.3} parent=11 // pred_region
          %s124 = ssub.s32 576, 576
          %125 = vsyncadd [#allocation3], %s124
          %s126 = sshll.u32 [#allocation2], 4
          %s127 = int_to_ptr.vmem [resolvable:$true] %s126
          %132 = dma.hbm_to_vmem [thread:$0]  %s1, 576, %s127, [#allocation3], 64, 64, 4
        $region16: #{forward.3} parent=11 // pred_fallthru
          _
        // Predicated region
        $region17: #{forward.3} parent=11 // pred_check
          %p133 = pneg %p79
        $region18: #{forward.3} parent=11 // pred_check_branch
          %135 = sbr.rel (%p133) target = $region20
        $region19: #{forward.3} parent=11 // pred_region
          %s137 = ssub.s32 16, 16
          %138 = vsyncadd [#allocation5], %s137
          %s140 = sshll.u32 [#allocation4], 4
          %s141 = int_to_ptr.vmem [resolvable:$true] %s140
          %143 = dma.hbm_to_vmem [thread:$0]  %s2, 16, %s141, [#allocation5]
        $region20: #{forward.3} parent=11 // pred_fallthru
          _
      $region12: #{forward.3} parent=5 // pred_fallthru
        _
      %p144 = scmp.lt.s32.totalorder %s11, 2
      // Predicated region
      $region21: #{forward.3} parent=5 // pred_check
        %p145 = pneg %p144
      $region22: #{forward.3} parent=5 // pred_check_branch
        %147 = sbr.rel (%p145) target = $region24
      $region23: #{forward.3} parent=5 // pred_region
        // Predicated region
        $region25: #{forward.3} parent=23 // pred_check
          %p148 = pneg %p31
        $region26: #{forward.3} parent=23 // pred_check_branch
          %150 = sbr.rel (%p148) target = $region28
        $region27: #{forward.3} parent=23 // pred_region
          %p151 = scmp.lt.s32.totalorder %s11, 1
          %s152 = scalar_select %p151, %s11, 1
          %s153 = smul.addr %s152, 54
          %s154 = smul.addr %s153, 8
          %s155 = scalar_lea.vmem %s0, %s154
        $region28: #{forward.3} parent=23 // pred_fallthru
          _
      $region24: #{forward.3} parent=5 // pred_fallthru
        _
      %p156 = scmp.le.s32.totalorder 1, %s11
      %p157 = scmp.lt.s32.totalorder %s11, 3
      %p158 = pnand %p156, %p157
      %p159 = pneg %p158
      // Predicated region
      $region29: #{forward.3} parent=5 // pred_check
        _
      $region30: #{forward.3} parent=5 // pred_check_branch
        %161 = sbr.rel (%p158) target = $region32
      $region31: #{forward.3} parent=5 // pred_region
        %s162 = ssub.s32 %s11, 1
        // Predicated region
        $region33: #{forward.3} parent=31 // pred_check
          %p163 = pneg %p58
        $region34: #{forward.3} parent=31 // pred_check_branch
          %165 = sbr.rel (%p163) target = $region36
        $region35: #{forward.3} parent=31 // pred_region
          %166 = dma.done [#allocation3], 576
        $region36: #{forward.3} parent=31 // pred_fallthru
          _
        // Predicated region
        $region37: #{forward.3} parent=31 // pred_check
          %p167 = pneg %p79
        $region38: #{forward.3} parent=31 // pred_check_branch
          %169 = sbr.rel (%p167) target = $region40
        $region39: #{forward.3} parent=31 // pred_region
          %170 = dma.done [#allocation5], 16
        $region40: #{forward.3} parent=31 // pred_fallthru
          _
        %p171 = scmp.lt.s32.totalorder %s16, 1
        %s172 = scalar_select %p171, %s16, 1
        %s173 = smul.addr %s172, 54
        %s174 = smul.addr %s173, 8
        %s175 = scalar_lea.vmem %s0, %s174
        %p176 = pneg %p37
        %p177 = pneg %p34
        %p178 = pneg %p58
        %p179 = pneg %p55
        %p180 = pneg %p79
        %p181 = pneg %p76
        %p182 = pneg %p105
        %p183 = pneg %p102
        %p184 = scmp.lt.s32.totalorder %s16, 1
        %s185 = scalar_select %p184, %s16, 1
        %s186 = smul.addr %s185, 32
        %s187 = smul.addr %s186, 8
        %s188 = scalar_lea.vmem %s3, %s187
        %p189 = scmp.lt.s32.totalorder %s16, 1
        %s190 = scalar_select %p189, %s16, 1
        %s191 = smul.addr %s190, 54
        %s192 = smul.addr %s191, 8
        %s193 = scalar_lea.vmem %s0, %s192
        %p194 = scmp.lt.s32.totalorder %s16, 1
        %s195 = scalar_select %p194, %s16, 1
        %s196 = smul.addr %s195, 32
        %s197 = smul.addr %s196, 8
        %s198 = scalar_lea.vmem %s3, %s197
        %v199 = vld [vmem:[%s193] sm:$0xff]
        %v200 = vld [vmem:[%s193 + $0x8] sm:$0xff]
        %v201 = vld [vmem:[%s193 + $0x18] sm:$0xff]
        %v202 = vld [vmem:[%s193 + $0x20] sm:$0xff]
        %v203 = vld [vmem:[%s193 + $0x30] sm:$0xff]
        %v204 = vld [vmem:[%s193 + $0x38] sm:$0xff]
        %v205 = vld [vmem:[%s193 + $0x48] sm:$0xff]
        %v206 = vld [vmem:[%s193 + $0x50] sm:$0xff]
        %v207 = vld [vmem:[%s193 + $0x60] sm:$0xff]
        %v208 = vld [vmem:[%s193 + $0x68] sm:$0xff]
        %v209 = vld [vmem:[%s193 + $0x78] sm:$0xff]
        %v210 = vld [vmem:[%s193 + $0x80] sm:$0xff]
        %v211 = vld [vmem:[%s193 + $0x90] sm:$0xff]
        %v212 = vld [vmem:[%s193 + $0x98] sm:$0xff]
        %v213 = vld [vmem:[%s193 + $0xa8] sm:$0xff]
        %v214 = vld [vmem:[%s193 + $0xb0] sm:$0xff]
        %v215 = vld [vmem:[%s193 + $0xc0] sm:$0xff]
        %v216 = vld [vmem:[%s193 + $0xc8] sm:$0xff]
        %v217 = vld [vmem:[%s193 + $0xd8] sm:$0xff]
        %v218 = vld [vmem:[%s193 + $0xe0] sm:$0xff]
        %v219 = vld [vmem:[%s193 + $0xf0] sm:$0xff]
        %v220 = vld [vmem:[%s193 + $0xf8] sm:$0xff]
        %v221 = vld [vmem:[%s193 + $0x108] sm:$0xff]
        %v222 = vld [vmem:[%s193 + $0x110] sm:$0xff]
        %v223 = vld [vmem:[%s193 + $0x120] sm:$0xff]
        %v224 = vld [vmem:[%s193 + $0x128] sm:$0xff]
        %v225 = vld [vmem:[%s193 + $0x138] sm:$0xff]
        %v226 = vld [vmem:[%s193 + $0x140] sm:$0xff]
        %v227 = vld [vmem:[%s193 + $0x150] sm:$0xff]
        %v228 = vld [vmem:[%s193 + $0x158] sm:$0xff]
        %v229 = vld [vmem:[%s193 + $0x168] sm:$0xff]
        %v230 = vld [vmem:[%s193 + $0x170] sm:$0xff]
        %v231 = vld [vmem:[#allocation2] sm:$0xf]
        %v232 = vld [vmem:[%s193 + $0x1] sm:$0xff]
        %v233 = vld [vmem:[%s193 + $0x9] sm:$0xff]
        %v234 = vld [vmem:[%s193 + $0x19] sm:$0xff]
        %v235 = vld [vmem:[%s193 + $0x21] sm:$0xff]
        %v236 = vld [vmem:[%s193 + $0x31] sm:$0xff]
        %v237 = vld [vmem:[%s193 + $0x39] sm:$0xff]
        %v238 = vld [vmem:[%s193 + $0x49] sm:$0xff]
        %v239 = vld [vmem:[%s193 + $0x51] sm:$0xff]
        %v240 = vld [vmem:[%s193 + $0x61] sm:$0xff]
        %v241 = vld [vmem:[%s193 + $0x69] sm:$0xff]
        %v242 = vld [vmem:[%s193 + $0x79] sm:$0xff]
        %v243 = vld [vmem:[%s193 + $0x81] sm:$0xff]
        %v244 = vld [vmem:[%s193 + $0x91] sm:$0xff]
        %v245 = vld [vmem:[%s193 + $0x99] sm:$0xff]
        %v246 = vld [vmem:[%s193 + $0xa9] sm:$0xff]
        %v247 = vld [vmem:[%s193 + $0xb1] sm:$0xff]
        %v248 = vld [vmem:[%s193 + $0xc1] sm:$0xff]
        %v249 = vld [vmem:[%s193 + $0xc9] sm:$0xff]
        %v250 = vld [vmem:[%s193 + $0xd9] sm:$0xff]
        %v251 = vld [vmem:[%s193 + $0xe1] sm:$0xff]
        %v252 = vld [vmem:[%s193 + $0xf1] sm:$0xff]
        %v253 = vld [vmem:[%s193 + $0xf9] sm:$0xff]
        %v254 = vld [vmem:[%s193 + $0x109] sm:$0xff]
        %v255 = vld [vmem:[%s193 + $0x111] sm:$0xff]
        %v256 = vld [vmem:[%s193 + $0x121] sm:$0xff]
        %v257 = vld [vmem:[%s193 + $0x129] sm:$0xff]
        %v258 = vld [vmem:[%s193 + $0x139] sm:$0xff]
        %v259 = vld [vmem:[%s193 + $0x141] sm:$0xff]
        %v260 = vld [vmem:[%s193 + $0x151] sm:$0xff]
        %v261 = vld [vmem:[%s193 + $0x159] sm:$0xff]
        %v262 = vld [vmem:[%s193 + $0x169] sm:$0xff]
        %v263 = vld [vmem:[%s193 + $0x171] sm:$0xff]
        %s264 = scalar_lea.vmem [#allocation2], 4
        %v265 = vld [vmem:[%s264] sm:$0xf]
        %vm266 = vcmask 31744
        %v268 = vsel %vm266, %v232, 0
        %v271 = vsel %vm266, %v233, 0
        %v274 = vsel %vm266, %v234, 0
        %v277 = vsel %vm266, %v235, 0
        %v280 = vsel %vm266, %v236, 0
        %v283 = vsel %vm266, %v237, 0
        %v286 = vsel %vm266, %v238, 0
        %v289 = vsel %vm266, %v239, 0
        %v292 = vsel %vm266, %v240, 0
        %v295 = vsel %vm266, %v241, 0
        %v298 = vsel %vm266, %v242, 0
        %v301 = vsel %vm266, %v243, 0
        %v304 = vsel %vm266, %v244, 0
        %v307 = vsel %vm266, %v245, 0
        %v310 = vsel %vm266, %v246, 0
        %v313 = vsel %vm266, %v247, 0
        %v316 = vsel %vm266, %v248, 0
        %v319 = vsel %vm266, %v249, 0
        %v322 = vsel %vm266, %v250, 0
        %v325 = vsel %vm266, %v251, 0
        %v328 = vsel %vm266, %v252, 0
        %v331 = vsel %vm266, %v253, 0
        %v334 = vsel %vm266, %v254, 0
        %v337 = vsel %vm266, %v255, 0
        %v340 = vsel %vm266, %v256, 0
        %v343 = vsel %vm266, %v257, 0
        %v346 = vsel %vm266, %v258, 0
        %v349 = vsel %vm266, %v259, 0
        %v352 = vsel %vm266, %v260, 0
        %v355 = vsel %vm266, %v261, 0
        %v358 = vsel %vm266, %v262, 0
        %v361 = vsel %vm266, %v263, 0
        %vm363 = vcmask 1043456
        %v365 = vsel %vm363, %v265, 0
        %367 = vmatprep.subr.mxu0 0.0
        %368 = vmatpush1.msra.mxu0 %v365
        %369 = vmatprep.subr.mxu0 0.0
        %370 = vmatpush1.msra.mxu0 0.0
        %371 = vmatprep.subr.mxu0 0.0
        %372 = vmatpush1.msra.mxu0 0.0
        %373 = vmatprep.subr.mxu0 0.0
        %374 = vmatpush1.msra.mxu0 0.0
        %375 = vmatprep.subr.mxu0 0.0
        %376 = vmatpush1.msra.mxu0 0.0
        %377 = vmatprep.subr.mxu0 0.0
        %378 = vmatpush1.msra.mxu0 0.0
        %379 = vmatprep.subr.mxu0 0.0
        %380 = vmatpush1.msra.mxu0 0.0
        %381 = vmatprep.subr.mxu0 0.0
        %382 = vmatpush1.msra.mxu0 0.0
        %383 = vmatprep.subr.mxu0 0.0
        %384 = vmatpush1.msra.mxu0 0.0
        %385 = vmatprep.subr.mxu0 0.0
        %386 = vmatpush1.msra.mxu0 0.0
        %387 = vmatprep.subr.mxu0 0.0
        %388 = vmatpush1.msra.mxu0 0.0
        %389 = vmatprep.subr.mxu0 0.0
        %390 = vmatpush1.msra.mxu0 0.0
        %391 = vmatprep.subr.mxu0 0.0
        %392 = vmatpush1.msra.mxu0 0.0
        %393 = vmatprep.subr.mxu0 0.0
        %394 = vmatpush1.msra.mxu0 0.0
        %395 = vmatprep.subr.mxu0 0.0
        %396 = vmatpush1.msra.mxu0 0.0
        %397 = vmatprep.subr.mxu0 0.0
        %398 = vmatpush1.msra.mxu0 0.0
        %399 = vmatprep.subr.mxu0 0.0
        %400 = vmatpush1.msra.mxu0 0.0
        %401 = vmatprep.subr.mxu0 0.0
        %402 = vmatpush1.msra.mxu0 0.0
        %403 = vmatprep.subr.mxu0 0.0
        %404 = vmatpush1.msra.mxu0 0.0
        %405 = vmatprep.subr.mxu0 0.0
        %406 = vmatpush1.msra.mxu0 0.0
        %407 = vmatprep.subr.mxu0 0.0
        %408 = vmatpush1.msra.mxu0 0.0
        %409 = vmatprep.subr.mxu0 0.0
        %410 = vmatpush1.msra.mxu0 0.0
        %411 = vmatprep.subr.mxu0 0.0
        %412 = vmatpush1.msra.mxu0 0.0
        %413 = vmatprep.subr.mxu0 0.0
        %414 = vmatpush1.msra.mxu0 0.0
        %415 = vmatprep.subr.mxu0 0.0
        %416 = vmatpush1.msra.mxu0 0.0
        %417 = vmatprep.subr.mxu0 0.0
        %418 = vmatpush1.msra.mxu0 0.0
        %419 = vmatprep.subr.mxu0 0.0
        %420 = vmatpush1.msra.mxu0 0.0
        %421 = vmatprep.subr.mxu0 0.0
        %422 = vmatpush1.msra.mxu0 0.0
        %423 = vmatprep.subr.mxu0 0.0
        %424 = vmatpush1.msra.mxu0 0.0
        %425 = vmatprep.subr.mxu0 0.0
        %426 = vmatpush1.msra.mxu0 0.0
        %427 = vmatprep.subr.mxu0 0.0
        %428 = vmatpush1.msra.mxu0 0.0
        %429 = vmatprep.subr.mxu0 0.0
        %430 = vmatpush1.msra.mxu0 0.0
        %431 = vmatprep.mubr.f32.mxu0 0.0
        %432 = vmatmul.mubr.f32.gmra.mrb[0].mxu0 %v268
        %v433 = vpop.f32.mrb[0].mxu0
        %v434 = vadd.f32 0.0, %v433
        %v435 = vpop.f32.mrb[0].mxu0
        %436 = vmatprep.mubr.f32.mxu0 0.0
        %437 = vmatmul.mubr.f32.gmra.mrb[0].mxu0 %v271
        %v438 = vpop.f32.mrb[0].mxu0
        %v439 = vadd.f32 0.0, %v438
        %v440 = vpop.f32.mrb[0].mxu0
        %441 = vmatprep.mubr.f32.mxu0 0.0
        %442 = vmatmul.mubr.f32.gmra.mrb[0].mxu0 %v274
        %v443 = vpop.f32.mrb[0].mxu0
        %v444 = vadd.f32 0.0, %v443
        %v445 = vpop.f32.mrb[0].mxu0
        %446 = vmatprep.mubr.f32.mxu0 0.0
        %447 = vmatmul.mubr.f32.gmra.mrb[0].mxu0 %v277
        %v448 = vpop.f32.mrb[0].mxu0
        %v449 = vadd.f32 0.0, %v448
        %v450 = vpop.f32.mrb[0].mxu0
        %451 = vmatprep.mubr.f32.mxu0 0.0
        %452 = vmatmul.mubr.f32.gmra.mrb[0].mxu0 %v280
        %v453 = vpop.f32.mrb[0].mxu0
        %v454 = vadd.f32 0.0, %v453
        %v455 = vpop.f32.mrb[0].mxu0
        %456 = vmatprep.mubr.f32.mxu0 0.0
        %457 = vmatmul.mubr.f32.gmra.mrb[0].mxu0 %v283
        %v458 = vpop.f32.mrb[0].mxu0
        %v459 = vadd.f32 0.0, %v458
        %v460 = vpop.f32.mrb[0].mxu0
        %461 = vmatprep.mubr.f32.mxu0 0.0
        %462 = vmatmul.mubr.f32.gmra.mrb[0].mxu0 %v286
        %v463 = vpop.f32.mrb[0].mxu0
        %v464 = vadd.f32 0.0, %v463
        %v465 = vpop.f32.mrb[0].mxu0
        %466 = vmatprep.mubr.f32.mxu0 0.0
        %467 = vmatmul.mubr.f32.gmra.mrb[0].mxu0 %v289
        %v468 = vpop.f32.mrb[0].mxu0
        %v469 = vadd.f32 0.0, %v468
        %v470 = vpop.f32.mrb[0].mxu0
        %471 = vmatprep.mubr.f32.mxu0 0.0
        %472 = vmatmul.mubr.f32.gmra.mrb[0].mxu0 %v292
        %v473 = vpop.f32.mrb[0].mxu0
        %v474 = vadd.f32 0.0, %v473
        %v475 = vpop.f32.mrb[0].mxu0
        %476 = vmatprep.mubr.f32.mxu0 0.0
        %477 = vmatmul.mubr.f32.gmra.mrb[0].mxu0 %v295
        %v478 = vpop.f32.mrb[0].mxu0
        %v479 = vadd.f32 0.0, %v478
        %v480 = vpop.f32.mrb[0].mxu0
        %481 = vmatprep.mubr.f32.mxu0 0.0
        %482 = vmatmul.mubr.f32.gmra.mrb[0].mxu0 %v298
        %v483 = vpop.f32.mrb[0].mxu0
        %v484 = vadd.f32 0.0, %v483
        %v485 = vpop.f32.mrb[0].mxu0
        %486 = vmatprep.mubr.f32.mxu0 0.0
        %487 = vmatmul.mubr.f32.gmra.mrb[0].mxu0 %v301
        %v488 = vpop.f32.mrb[0].mxu0
        %v489 = vadd.f32 0.0, %v488
        %v490 = vpop.f32.mrb[0].mxu0
        %491 = vmatprep.mubr.f32.mxu0 0.0
        %492 = vmatmul.mubr.f32.gmra.mrb[0].mxu0 %v304
        %v493 = vpop.f32.mrb[0].mxu0
        %v494 = vadd.f32 0.0, %v493
        %v495 = vpop.f32.mrb[0].mxu0
        %496 = vmatprep.mubr.f32.mxu0 0.0
        %497 = vmatmul.mubr.f32.gmra.mrb[0].mxu0 %v307
        %v498 = vpop.f32.mrb[0].mxu0
        %v499 = vadd.f32 0.0, %v498
        %v500 = vpop.f32.mrb[0].mxu0
        %501 = vmatprep.mubr.f32.mxu0 0.0
        %502 = vmatmul.mubr.f32.gmra.mrb[0].mxu0 %v310
        %v503 = vpop.f32.mrb[0].mxu0
        %v504 = vadd.f32 0.0, %v503
        %v505 = vpop.f32.mrb[0].mxu0
        %506 = vmatprep.mubr.f32.mxu0 0.0
        %507 = vmatmul.mubr.f32.gmra.mrb[0].mxu0 %v313
        %v508 = vpop.f32.mrb[0].mxu0
        %v509 = vadd.f32 0.0, %v508
        %v510 = vpop.f32.mrb[0].mxu0
        %511 = vmatprep.mubr.f32.mxu0 0.0
        %512 = vmatmul.mubr.f32.gmra.mrb[0].mxu0 %v316
        %v513 = vpop.f32.mrb[0].mxu0
        %v514 = vadd.f32 0.0, %v513
        %v515 = vpop.f32.mrb[0].mxu0
        %516 = vmatprep.mubr.f32.mxu0 0.0
        %517 = vmatmul.mubr.f32.gmra.mrb[0].mxu0 %v319
        %v518 = vpop.f32.mrb[0].mxu0
        %v519 = vadd.f32 0.0, %v518
        %v520 = vpop.f32.mrb[0].mxu0
        %521 = vmatprep.mubr.f32.mxu0 0.0
        %522 = vmatmul.mubr.f32.gmra.mrb[0].mxu0 %v322
        %v523 = vpop.f32.mrb[0].mxu0
        %v524 = vadd.f32 0.0, %v523
        %v525 = vpop.f32.mrb[0].mxu0
        %526 = vmatprep.mubr.f32.mxu0 0.0
        %527 = vmatmul.mubr.f32.gmra.mrb[0].mxu0 %v325
        %v528 = vpop.f32.mrb[0].mxu0
        %v529 = vadd.f32 0.0, %v528
        %v530 = vpop.f32.mrb[0].mxu0
        %531 = vmatprep.mubr.f32.mxu0 0.0
        %532 = vmatmul.mubr.f32.gmra.mrb[0].mxu0 %v328
        %v533 = vpop.f32.mrb[0].mxu0
        %v534 = vadd.f32 0.0, %v533
        %v535 = vpop.f32.mrb[0].mxu0
        %536 = vmatprep.mubr.f32.mxu0 0.0
        %537 = vmatmul.mubr.f32.gmra.mrb[0].mxu0 %v331
        %v538 = vpop.f32.mrb[0].mxu0
        %v539 = vadd.f32 0.0, %v538
        %v540 = vpop.f32.mrb[0].mxu0
        %541 = vmatprep.mubr.f32.mxu0 0.0
        %542 = vmatmul.mubr.f32.gmra.mrb[0].mxu0 %v334
        %v543 = vpop.f32.mrb[0].mxu0
        %v544 = vadd.f32 0.0, %v543
        %v545 = vpop.f32.mrb[0].mxu0
        %546 = vmatprep.mubr.f32.mxu0 0.0
        %547 = vmatmul.mubr.f32.gmra.mrb[0].mxu0 %v337
        %v548 = vpop.f32.mrb[0].mxu0
        %v549 = vadd.f32 0.0, %v548
        %v550 = vpop.f32.mrb[0].mxu0
        %551 = vmatprep.mubr.f32.mxu0 0.0
        %552 = vmatmul.mubr.f32.gmra.mrb[0].mxu0 %v340
        %v553 = vpop.f32.mrb[0].mxu0
        %v554 = vadd.f32 0.0, %v553
        %v555 = vpop.f32.mrb[0].mxu0
        %556 = vmatprep.mubr.f32.mxu0 0.0
        %557 = vmatmul.mubr.f32.gmra.mrb[0].mxu0 %v343
        %v558 = vpop.f32.mrb[0].mxu0
        %v559 = vadd.f32 0.0, %v558
        %v560 = vpop.f32.mrb[0].mxu0
        %561 = vmatprep.mubr.f32.mxu0 0.0
        %562 = vmatmul.mubr.f32.gmra.mrb[0].mxu0 %v346
        %v563 = vpop.f32.mrb[0].mxu0
        %v564 = vadd.f32 0.0, %v563
        %v565 = vpop.f32.mrb[0].mxu0
        %566 = vmatprep.mubr.f32.mxu0 0.0
        %567 = vmatmul.mubr.f32.gmra.mrb[0].mxu0 %v349
        %v568 = vpop.f32.mrb[0].mxu0
        %v569 = vadd.f32 0.0, %v568
        %v570 = vpop.f32.mrb[0].mxu0
        %571 = vmatprep.mubr.f32.mxu0 0.0
        %572 = vmatmul.mubr.f32.gmra.mrb[0].mxu0 %v352
        %v573 = vpop.f32.mrb[0].mxu0
        %v574 = vadd.f32 0.0, %v573
        %v575 = vpop.f32.mrb[0].mxu0
        %576 = vmatprep.mubr.f32.mxu0 0.0
        %577 = vmatmul.mubr.f32.gmra.mrb[0].mxu0 %v355
        %v578 = vpop.f32.mrb[0].mxu0
        %v579 = vadd.f32 0.0, %v578
        %v580 = vpop.f32.mrb[0].mxu0
        %581 = vmatprep.mubr.f32.mxu0 0.0
        %582 = vmatmul.mubr.f32.gmra.mrb[0].mxu0 %v358
        %v583 = vpop.f32.mrb[0].mxu0
        %v584 = vadd.f32 0.0, %v583
        %v585 = vpop.f32.mrb[0].mxu0
        %586 = vmatprep.mubr.f32.mxu0 0.0
        %587 = vmatmul.mubr.f32.gmra.mrb[0].mxu0 %v361
        %v588 = vpop.f32.mrb[0].mxu0
        %v589 = vadd.f32 0.0, %v588
        %v590 = vpop.f32.mrb[0].mxu0
        %591 = vdwg.mxu0
        %v593 = vsel %vm266, %v199, 0
        %v596 = vsel %vm266, %v200, 0
        %v599 = vsel %vm266, %v201, 0
        %v602 = vsel %vm266, %v202, 0
        %v605 = vsel %vm266, %v203, 0
        %v608 = vsel %vm266, %v204, 0
        %v611 = vsel %vm266, %v205, 0
        %v614 = vsel %vm266, %v206, 0
        %v617 = vsel %vm266, %v207, 0
        %v620 = vsel %vm266, %v208, 0
        %v623 = vsel %vm266, %v209, 0
        %v626 = vsel %vm266, %v210, 0
        %v629 = vsel %vm266, %v211, 0
        %v632 = vsel %vm266, %v212, 0
        %v635 = vsel %vm266, %v213, 0
        %v638 = vsel %vm266, %v214, 0
        %v641 = vsel %vm266, %v215, 0
        %v644 = vsel %vm266, %v216, 0
        %v647 = vsel %vm266, %v217, 0
        %v650 = vsel %vm266, %v218, 0
        %v653 = vsel %vm266, %v219, 0
        %v656 = vsel %vm266, %v220, 0
        %v659 = vsel %vm266, %v221, 0
        %v662 = vsel %vm266, %v222, 0
        %v665 = vsel %vm266, %v223, 0
        %v668 = vsel %vm266, %v224, 0
        %v671 = vsel %vm266, %v225, 0
        %v674 = vsel %vm266, %v226, 0
        %v677 = vsel %vm266, %v227, 0
        %v680 = vsel %vm266, %v228, 0
        %v683 = vsel %vm266, %v229, 0
        %v686 = vsel %vm266, %v230, 0
        %v689 = vsel %vm363, %v231, 0
        %691 = vmatprep.subr.mxu0 0.0
        %692 = vmatpush1.msra.mxu0 %v689
        %693 = vmatprep.subr.mxu0 0.0
        %694 = vmatpush1.msra.mxu0 0.0
        %695 = vmatprep.subr.mxu0 0.0
        %696 = vmatpush1.msra.mxu0 0.0
        %697 = vmatprep.subr.mxu0 0.0
        %698 = vmatpush1.msra.mxu0 0.0
        %699 = vmatprep.subr.mxu0 0.0
        %700 = vmatpush1.msra.mxu0 0.0
        %701 = vmatprep.subr.mxu0 0.0
        %702 = vmatpush1.msra.mxu0 0.0
        %703 = vmatprep.subr.mxu0 0.0
        %704 = vmatpush1.msra.mxu0 0.0
        %705 = vmatprep.subr.mxu0 0.0
        %706 = vmatpush1.msra.mxu0 0.0
        %707 = vmatprep.subr.mxu0 0.0
        %708 = vmatpush1.msra.mxu0 0.0
        %709 = vmatprep.subr.mxu0 0.0
        %710 = vmatpush1.msra.mxu0 0.0
        %711 = vmatprep.subr.mxu0 0.0
        %712 = vmatpush1.msra.mxu0 0.0
        %713 = vmatprep.subr.mxu0 0.0
        %714 = vmatpush1.msra.mxu0 0.0
        %715 = vmatprep.subr.mxu0 0.0
        %716 = vmatpush1.msra.mxu0 0.0
        %717 = vmatprep.subr.mxu0 0.0
        %718 = vmatpush1.msra.mxu0 0.0
        %719 = vmatprep.subr.mxu0 0.0
        %720 = vmatpush1.msra.mxu0 0.0
        %721 = vmatprep.subr.mxu0 0.0
        %722 = vmatpush1.msra.mxu0 0.0
        %723 = vmatprep.subr.mxu0 0.0
        %724 = vmatpush1.msra.mxu0 0.0
        %725 = vmatprep.subr.mxu0 0.0
        %726 = vmatpush1.msra.mxu0 0.0
        %727 = vmatprep.subr.mxu0 0.0
        %728 = vmatpush1.msra.mxu0 0.0
        %729 = vmatprep.subr.mxu0 0.0
        %730 = vmatpush1.msra.mxu0 0.0
        %731 = vmatprep.subr.mxu0 0.0
        %732 = vmatpush1.msra.mxu0 0.0
        %733 = vmatprep.subr.mxu0 0.0
        %734 = vmatpush1.msra.mxu0 0.0
        %735 = vmatprep.subr.mxu0 0.0
        %736 = vmatpush1.msra.mxu0 0.0
        %737 = vmatprep.subr.mxu0 0.0
        %738 = vmatpush1.msra.mxu0 0.0
        %739 = vmatprep.subr.mxu0 0.0
        %740 = vmatpush1.msra.mxu0 0.0
        %741 = vmatprep.subr.mxu0 0.0
        %742 = vmatpush1.msra.mxu0 0.0
        %743 = vmatprep.subr.mxu0 0.0
        %744 = vmatpush1.msra.mxu0 0.0
        %745 = vmatprep.subr.mxu0 0.0
        %746 = vmatpush1.msra.mxu0 0.0
        %747 = vmatprep.subr.mxu0 0.0
        %748 = vmatpush1.msra.mxu0 0.0
        %749 = vmatprep.subr.mxu0 0.0
        %750 = vmatpush1.msra.mxu0 0.0
        %751 = vmatprep.subr.mxu0 0.0
        %752 = vmatpush1.msra.mxu0 0.0
        %753 = vmatprep.subr.mxu0 0.0
        %754 = vmatpush1.msra.mxu0 0.0
        %755 = vmatprep.mubr.f32.mxu0 0.0
        %756 = vmatmul.mubr.f32.gmra.mrb[0].mxu0 %v593
        %v757 = vpop.f32.mrb[0].mxu0
        %v758 = vadd.f32 %v434, %v757
        %v759 = vpop.f32.mrb[0].mxu0
        %760 = vmatprep.mubr.f32.mxu0 0.0
        %761 = vmatmul.mubr.f32.gmra.mrb[0].mxu0 %v596
        %v762 = vpop.f32.mrb[0].mxu0
        %v763 = vadd.f32 %v439, %v762
        %v764 = vpop.f32.mrb[0].mxu0
        %765 = vmatprep.mubr.f32.mxu0 0.0
        %766 = vmatmul.mubr.f32.gmra.mrb[0].mxu0 %v599
        %v767 = vpop.f32.mrb[0].mxu0
        %v768 = vadd.f32 %v444, %v767
        %v769 = vpop.f32.mrb[0].mxu0
        %770 = vmatprep.mubr.f32.mxu0 0.0
        %771 = vmatmul.mubr.f32.gmra.mrb[0].mxu0 %v602
        %v772 = vpop.f32.mrb[0].mxu0
        %v773 = vadd.f32 %v449, %v772
        %v774 = vpop.f32.mrb[0].mxu0
        %775 = vmatprep.mubr.f32.mxu0 0.0
        %776 = vmatmul.mubr.f32.gmra.mrb[0].mxu0 %v605
        %v777 = vpop.f32.mrb[0].mxu0
        %v778 = vadd.f32 %v454, %v777
        %v779 = vpop.f32.mrb[0].mxu0
        %780 = vmatprep.mubr.f32.mxu0 0.0
        %781 = vmatmul.mubr.f32.gmra.mrb[0].mxu0 %v608
        %v782 = vpop.f32.mrb[0].mxu0
        %v783 = vadd.f32 %v459, %v782
        %v784 = vpop.f32.mrb[0].mxu0
        %785 = vmatprep.mubr.f32.mxu0 0.0
        %786 = vmatmul.mubr.f32.gmra.mrb[0].mxu0 %v611
        %v787 = vpop.f32.mrb[0].mxu0
        %v788 = vadd.f32 %v464, %v787
        %v789 = vpop.f32.mrb[0].mxu0
        %790 = vmatprep.mubr.f32.mxu0 0.0
        %791 = vmatmul.mubr.f32.gmra.mrb[0].mxu0 %v614
        %v792 = vpop.f32.mrb[0].mxu0
        %v793 = vadd.f32 %v469, %v792
        %v794 = vpop.f32.mrb[0].mxu0
        %795 = vmatprep.mubr.f32.mxu0 0.0
        %796 = vmatmul.mubr.f32.gmra.mrb[0].mxu0 %v617
        %v797 = vpop.f32.mrb[0].mxu0
        %v798 = vadd.f32 %v474, %v797
        %v799 = vpop.f32.mrb[0].mxu0
        %800 = vmatprep.mubr.f32.mxu0 0.0
        %801 = vmatmul.mubr.f32.gmra.mrb[0].mxu0 %v620
        %v802 = vpop.f32.mrb[0].mxu0
        %v803 = vadd.f32 %v479, %v802
        %v804 = vpop.f32.mrb[0].mxu0
        %805 = vmatprep.mubr.f32.mxu0 0.0
        %806 = vmatmul.mubr.f32.gmra.mrb[0].mxu0 %v623
        %v807 = vpop.f32.mrb[0].mxu0
        %v808 = vadd.f32 %v484, %v807
        %v809 = vpop.f32.mrb[0].mxu0
        %810 = vmatprep.mubr.f32.mxu0 0.0
        %811 = vmatmul.mubr.f32.gmra.mrb[0].mxu0 %v626
        %v812 = vpop.f32.mrb[0].mxu0
        %v813 = vadd.f32 %v489, %v812
        %v814 = vpop.f32.mrb[0].mxu0
        %815 = vmatprep.mubr.f32.mxu0 0.0
        %816 = vmatmul.mubr.f32.gmra.mrb[0].mxu0 %v629
        %v817 = vpop.f32.mrb[0].mxu0
        %v818 = vadd.f32 %v494, %v817
        %v819 = vpop.f32.mrb[0].mxu0
        %820 = vmatprep.mubr.f32.mxu0 0.0
        %821 = vmatmul.mubr.f32.gmra.mrb[0].mxu0 %v632
        %v822 = vpop.f32.mrb[0].mxu0
        %v823 = vadd.f32 %v499, %v822
        %v824 = vpop.f32.mrb[0].mxu0
        %825 = vmatprep.mubr.f32.mxu0 0.0
        %826 = vmatmul.mubr.f32.gmra.mrb[0].mxu0 %v635
        %v827 = vpop.f32.mrb[0].mxu0
        %v828 = vadd.f32 %v504, %v827
        %v829 = vpop.f32.mrb[0].mxu0
        %830 = vmatprep.mubr.f32.mxu0 0.0
        %831 = vmatmul.mubr.f32.gmra.mrb[0].mxu0 %v638
        %v832 = vpop.f32.mrb[0].mxu0
        %v833 = vadd.f32 %v509, %v832
        %v834 = vpop.f32.mrb[0].mxu0
        %835 = vmatprep.mubr.f32.mxu0 0.0
        %836 = vmatmul.mubr.f32.gmra.mrb[0].mxu0 %v641
        %v837 = vpop.f32.mrb[0].mxu0
        %v838 = vadd.f32 %v514, %v837
        %v839 = vpop.f32.mrb[0].mxu0
        %840 = vmatprep.mubr.f32.mxu0 0.0
        %841 = vmatmul.mubr.f32.gmra.mrb[0].mxu0 %v644
        %v842 = vpop.f32.mrb[0].mxu0
        %v843 = vadd.f32 %v519, %v842
        %v844 = vpop.f32.mrb[0].mxu0
        %845 = vmatprep.mubr.f32.mxu0 0.0
        %846 = vmatmul.mubr.f32.gmra.mrb[0].mxu0 %v647
        %v847 = vpop.f32.mrb[0].mxu0
        %v848 = vadd.f32 %v524, %v847
        %v849 = vpop.f32.mrb[0].mxu0
        %850 = vmatprep.mubr.f32.mxu0 0.0
        %851 = vmatmul.mubr.f32.gmra.mrb[0].mxu0 %v650
        %v852 = vpop.f32.mrb[0].mxu0
        %v853 = vadd.f32 %v529, %v852
        %v854 = vpop.f32.mrb[0].mxu0
        %855 = vmatprep.mubr.f32.mxu0 0.0
        %856 = vmatmul.mubr.f32.gmra.mrb[0].mxu0 %v653
        %v857 = vpop.f32.mrb[0].mxu0
        %v858 = vadd.f32 %v534, %v857
        %v859 = vpop.f32.mrb[0].mxu0
        %860 = vmatprep.mubr.f32.mxu0 0.0
        %861 = vmatmul.mubr.f32.gmra.mrb[0].mxu0 %v656
        %v862 = vpop.f32.mrb[0].mxu0
        %v863 = vadd.f32 %v539, %v862
        %v864 = vpop.f32.mrb[0].mxu0
        %865 = vmatprep.mubr.f32.mxu0 0.0
        %866 = vmatmul.mubr.f32.gmra.mrb[0].mxu0 %v659
        %v867 = vpop.f32.mrb[0].mxu0
        %v868 = vadd.f32 %v544, %v867
        %v869 = vpop.f32.mrb[0].mxu0
        %870 = vmatprep.mubr.f32.mxu0 0.0
        %871 = vmatmul.mubr.f32.gmra.mrb[0].mxu0 %v662
        %v872 = vpop.f32.mrb[0].mxu0
        %v873 = vadd.f32 %v549, %v872
        %v874 = vpop.f32.mrb[0].mxu0
        %875 = vmatprep.mubr.f32.mxu0 0.0
        %876 = vmatmul.mubr.f32.gmra.mrb[0].mxu0 %v665
        %v877 = vpop.f32.mrb[0].mxu0
        %v878 = vadd.f32 %v554, %v877
        %v879 = vpop.f32.mrb[0].mxu0
        %880 = vmatprep.mubr.f32.mxu0 0.0
        %881 = vmatmul.mubr.f32.gmra.mrb[0].mxu0 %v668
        %v882 = vpop.f32.mrb[0].mxu0
        %v883 = vadd.f32 %v559, %v882
        %v884 = vpop.f32.mrb[0].mxu0
        %885 = vmatprep.mubr.f32.mxu0 0.0
        %886 = vmatmul.mubr.f32.gmra.mrb[0].mxu0 %v671
        %v887 = vpop.f32.mrb[0].mxu0
        %v888 = vadd.f32 %v564, %v887
        %v889 = vpop.f32.mrb[0].mxu0
        %890 = vmatprep.mubr.f32.mxu0 0.0
        %891 = vmatmul.mubr.f32.gmra.mrb[0].mxu0 %v674
        %v892 = vpop.f32.mrb[0].mxu0
        %v893 = vadd.f32 %v569, %v892
        %v894 = vpop.f32.mrb[0].mxu0
        %895 = vmatprep.mubr.f32.mxu0 0.0
        %896 = vmatmul.mubr.f32.gmra.mrb[0].mxu0 %v677
        %v897 = vpop.f32.mrb[0].mxu0
        %v898 = vadd.f32 %v574, %v897
        %v899 = vpop.f32.mrb[0].mxu0
        %900 = vmatprep.mubr.f32.mxu0 0.0
        %901 = vmatmul.mubr.f32.gmra.mrb[0].mxu0 %v680
        %v902 = vpop.f32.mrb[0].mxu0
        %v903 = vadd.f32 %v579, %v902
        %v904 = vpop.f32.mrb[0].mxu0
        %905 = vmatprep.mubr.f32.mxu0 0.0
        %906 = vmatmul.mubr.f32.gmra.mrb[0].mxu0 %v683
        %v907 = vpop.f32.mrb[0].mxu0
        %v908 = vadd.f32 %v584, %v907
        %v909 = vpop.f32.mrb[0].mxu0
        %910 = vmatprep.mubr.f32.mxu0 0.0
        %911 = vmatmul.mubr.f32.gmra.mrb[0].mxu0 %v686
        %v912 = vpop.f32.mrb[0].mxu0
        %v913 = vadd.f32 %v589, %v912
        %v914 = vpop.f32.mrb[0].mxu0
        %915 = vdwg.mxu0
        %v916 = vld [vmem:[%s193 + $0x2] sm:$0xff]
        %v917 = vld [vmem:[%s193 + $0xa] sm:$0xff]
        %v918 = vld [vmem:[%s193 + $0x1a] sm:$0xff]
        %v919 = vld [vmem:[%s193 + $0x22] sm:$0xff]
        %v920 = vld [vmem:[%s193 + $0x32] sm:$0xff]
        %v921 = vld [vmem:[%s193 + $0x3a] sm:$0xff]
        %v922 = vld [vmem:[%s193 + $0x4a] sm:$0xff]
        %v923 = vld [vmem:[%s193 + $0x52] sm:$0xff]
        %v924 = vld [vmem:[%s193 + $0x62] sm:$0xff]
        %v925 = vld [vmem:[%s193 + $0x6a] sm:$0xff]
        %v926 = vld [vmem:[%s193 + $0x7a] sm:$0xff]
        %v927 = vld [vmem:[%s193 + $0x82] sm:$0xff]
        %v928 = vld [vmem:[%s193 + $0x92] sm:$0xff]
        %v929 = vld [vmem:[%s193 + $0x9a] sm:$0xff]
        %v930 = vld [vmem:[%s193 + $0xaa] sm:$0xff]
        %v931 = vld [vmem:[%s193 + $0xb2] sm:$0xff]
        %v932 = vld [vmem:[%s193 + $0xc2] sm:$0xff]
        %v933 = vld [vmem:[%s193 + $0xca] sm:$0xff]
        %v934 = vld [vmem:[%s193 + $0xda] sm:$0xff]
        %v935 = vld [vmem:[%s193 + $0xe2] sm:$0xff]
        %v936 = vld [vmem:[%s193 + $0xf2] sm:$0xff]
        %v937 = vld [vmem:[%s193 + $0xfa] sm:$0xff]
        %v938 = vld [vmem:[%s193 + $0x10a] sm:$0xff]
        %v939 = vld [vmem:[%s193 + $0x112] sm:$0xff]
        %v940 = vld [vmem:[%s193 + $0x122] sm:$0xff]
        %v941 = vld [vmem:[%s193 + $0x12a] sm:$0xff]
        %v942 = vld [vmem:[%s193 + $0x13a] sm:$0xff]
        %v943 = vld [vmem:[%s193 + $0x142] sm:$0xff]
        %v944 = vld [vmem:[%s193 + $0x152] sm:$0xff]
        %v945 = vld [vmem:[%s193 + $0x15a] sm:$0xff]
        %v946 = vld [vmem:[%s193 + $0x16a] sm:$0xff]
        %v947 = vld [vmem:[%s193 + $0x172] sm:$0xff]
        %s948 = scalar_lea.vmem [#allocation2], 8
        %v949 = vld [vmem:[%s948] sm:$0xf]
        %v951 = vsel %vm266, %v916, 0
        %v954 = vsel %vm266, %v917, 0
        %v957 = vsel %vm266, %v918, 0
        %v960 = vsel %vm266, %v919, 0
        %v963 = vsel %vm266, %v920, 0
        %v966 = vsel %vm266, %v921, 0
        %v969 = vsel %vm266, %v922, 0
        %v972 = vsel %vm266, %v923, 0
        %v975 = vsel %vm266, %v924, 0
        %v978 = vsel %vm266, %v925, 0
        %v981 = vsel %vm266, %v926, 0
        %v984 = vsel %vm266, %v927, 0
        %v987 = vsel %vm266, %v928, 0
        %v990 = vsel %vm266, %v929, 0
        %v993 = vsel %vm266, %v930, 0
        %v996 = vsel %vm266, %v931, 0
        %v999 = vsel %vm266, %v932, 0
        %v1002 = vsel %vm266, %v933, 0
        %v1005 = vsel %vm266, %v934, 0
        %v1008 = vsel %vm266, %v935, 0
        %v1011 = vsel %vm266, %v936, 0
        %v1014 = vsel %vm266, %v937, 0
        %v1017 = vsel %vm266, %v938, 0
        %v1020 = vsel %vm266, %v939, 0
        %v1023 = vsel %vm266, %v940, 0
        %v1026 = vsel %vm266, %v941, 0
        %v1029 = vsel %vm266, %v942, 0
        %v1032 = vsel %vm266, %v943, 0
        %v1035 = vsel %vm266, %v944, 0
        %v1038 = vsel %vm266, %v945, 0
        %v1041 = vsel %vm266, %v946, 0
        %v1044 = vsel %vm266, %v947, 0
        %v1047 = vsel %vm363, %v949, 0
        %1049 = vmatprep.subr.mxu0 0.0
        %1050 = vmatpush1.msra.mxu0 %v1047
        %1051 = vmatprep.subr.mxu0 0.0
        %1052 = vmatpush1.msra.mxu0 0.0
        %1053 = vmatprep.subr.mxu0 0.0
        %1054 = vmatpush1.msra.mxu0 0.0
        %1055 = vmatprep.subr.mxu0 0.0
        %1056 = vmatpush1.msra.mxu0 0.0
        %1057 = vmatprep.subr.mxu0 0.0
        %1058 = vmatpush1.msra.mxu0 0.0
        %1059 = vmatprep.subr.mxu0 0.0
        %1060 = vmatpush1.msra.mxu0 0.0
        %1061 = vmatprep.subr.mxu0 0.0
        %1062 = vmatpush1.msra.mxu0 0.0
        %1063 = vmatprep.subr.mxu0 0.0
        %1064 = vmatpush1.msra.mxu0 0.0
        %1065 = vmatprep.subr.mxu0 0.0
        %1066 = vmatpush1.msra.mxu0 0.0
        %1067 = vmatprep.subr.mxu0 0.0
        %1068 = vmatpush1.msra.mxu0 0.0
        %1069 = vmatprep.subr.mxu0 0.0
        %1070 = vmatpush1.msra.mxu0 0.0
        %1071 = vmatprep.subr.mxu0 0.0
        %1072 = vmatpush1.msra.mxu0 0.0
        %1073 = vmatprep.subr.mxu0 0.0
        %1074 = vmatpush1.msra.mxu0 0.0
        %1075 = vmatprep.subr.mxu0 0.0
        %1076 = vmatpush1.msra.mxu0 0.0
        %1077 = vmatprep.subr.mxu0 0.0
        %1078 = vmatpush1.msra.mxu0 0.0
        %1079 = vmatprep.subr.mxu0 0.0
        %1080 = vmatpush1.msra.mxu0 0.0
        %1081 = vmatprep.subr.mxu0 0.0
        %1082 = vmatpush1.msra.mxu0 0.0
        %1083 = vmatprep.subr.mxu0 0.0
        %1084 = vmatpush1.msra.mxu0 0.0
        %1085 = vmatprep.subr.mxu0 0.0
        %1086 = vmatpush1.msra.mxu0 0.0
        %1087 = vmatprep.subr.mxu0 0.0
        %1088 = vmatpush1.msra.mxu0 0.0
        %1089 = vmatprep.subr.mxu0 0.0
        %1090 = vmatpush1.msra.mxu0 0.0
        %1091 = vmatprep.subr.mxu0 0.0
        %1092 = vmatpush1.msra.mxu0 0.0
        %1093 = vmatprep.subr.mxu0 0.0
        %1094 = vmatpush1.msra.mxu0 0.0
        %1095 = vmatprep.subr.mxu0 0.0
        %1096 = vmatpush1.msra.mxu0 0.0
        %1097 = vmatprep.subr.mxu0 0.0
        %1098 = vmatpush1.msra.mxu0 0.0
        %1099 = vmatprep.subr.mxu0 0.0
        %1100 = vmatpush1.msra.mxu0 0.0
        %1101 = vmatprep.subr.mxu0 0.0
        %1102 = vmatpush1.msra.mxu0 0.0
        %1103 = vmatprep.subr.mxu0 0.0
        %1104 = vmatpush1.msra.mxu0 0.0
        %1105 = vmatprep.subr.mxu0 0.0
        %1106 = vmatpush1.msra.mxu0 0.0
        %1107 = vmatprep.subr.mxu0 0.0
        %1108 = vmatpush1.msra.mxu0 0.0
        %1109 = vmatprep.subr.mxu0 0.0
        %1110 = vmatpush1.msra.mxu0 0.0
        %1111 = vmatprep.subr.mxu0 0.0
        %1112 = vmatpush1.msra.mxu0 0.0
        %1113 = vmatprep.mubr.f32.mxu0 0.0
        %1114 = vmatmul.mubr.f32.gmra.mrb[0].mxu0 %v951
        %v1115 = vpop.f32.mrb[0].mxu0
        %v1116 = vadd.f32 0.0, %v1115
        %v1117 = vpop.f32.mrb[0].mxu0
        %1118 = vmatprep.mubr.f32.mxu0 0.0
        %1119 = vmatmul.mubr.f32.gmra.mrb[0].mxu0 %v954
        %v1120 = vpop.f32.mrb[0].mxu0
        %v1121 = vadd.f32 0.0, %v1120
        %v1122 = vpop.f32.mrb[0].mxu0
        %1123 = vmatprep.mubr.f32.mxu0 0.0
        %1124 = vmatmul.mubr.f32.gmra.mrb[0].mxu0 %v957
        %v1125 = vpop.f32.mrb[0].mxu0
        %v1126 = vadd.f32 0.0, %v1125
        %v1127 = vpop.f32.mrb[0].mxu0
        %1128 = vmatprep.mubr.f32.mxu0 0.0
        %1129 = vmatmul.mubr.f32.gmra.mrb[0].mxu0 %v960
        %v1130 = vpop.f32.mrb[0].mxu0
        %v1131 = vadd.f32 0.0, %v1130
        %v1132 = vpop.f32.mrb[0].mxu0
        %1133 = vmatprep.mubr.f32.mxu0 0.0
        %1134 = vmatmul.mubr.f32.gmra.mrb[0].mxu0 %v963
        %v1135 = vpop.f32.mrb[0].mxu0
        %v1136 = vadd.f32 0.0, %v1135
        %v1137 = vpop.f32.mrb[0].mxu0
        %1138 = vmatprep.mubr.f32.mxu0 0.0
        %1139 = vmatmul.mubr.f32.gmra.mrb[0].mxu0 %v966
        %v1140 = vpop.f32.mrb[0].mxu0
        %v1141 = vadd.f32 0.0, %v1140
        %v1142 = vpop.f32.mrb[0].mxu0
        %1143 = vmatprep.mubr.f32.mxu0 0.0
        %1144 = vmatmul.mubr.f32.gmra.mrb[0].mxu0 %v969
        %v1145 = vpop.f32.mrb[0].mxu0
        %v1146 = vadd.f32 0.0, %v1145
        %v1147 = vpop.f32.mrb[0].mxu0
        %1148 = vmatprep.mubr.f32.mxu0 0.0
        %1149 = vmatmul.mubr.f32.gmra.mrb[0].mxu0 %v972
        %v1150 = vpop.f32.mrb[0].mxu0
        %v1151 = vadd.f32 0.0, %v1150
        %v1152 = vpop.f32.mrb[0].mxu0
        %1153 = vmatprep.mubr.f32.mxu0 0.0
        %1154 = vmatmul.mubr.f32.gmra.mrb[0].mxu0 %v975
        %v1155 = vpop.f32.mrb[0].mxu0
        %v1156 = vadd.f32 0.0, %v1155
        %v1157 = vpop.f32.mrb[0].mxu0
        %1158 = vmatprep.mubr.f32.mxu0 0.0
        %1159 = vmatmul.mubr.f32.gmra.mrb[0].mxu0 %v978
        %v1160 = vpop.f32.mrb[0].mxu0
        %v1161 = vadd.f32 0.0, %v1160
        %v1162 = vpop.f32.mrb[0].mxu0
        %1163 = vmatprep.mubr.f32.mxu0 0.0
        %1164 = vmatmul.mubr.f32.gmra.mrb[0].mxu0 %v981
        %v1165 = vpop.f32.mrb[0].mxu0
        %v1166 = vadd.f32 0.0, %v1165
        %v1167 = vpop.f32.mrb[0].mxu0
        %1168 = vmatprep.mubr.f32.mxu0 0.0
        %1169 = vmatmul.mubr.f32.gmra.mrb[0].mxu0 %v984
        %v1170 = vpop.f32.mrb[0].mxu0
        %v1171 = vadd.f32 0.0, %v1170
        %v1172 = vpop.f32.mrb[0].mxu0
        %1173 = vmatprep.mubr.f32.mxu0 0.0
        %1174 = vmatmul.mubr.f32.gmra.mrb[0].mxu0 %v987
        %v1175 = vpop.f32.mrb[0].mxu0
        %v1176 = vadd.f32 0.0, %v1175
        %v1177 = vpop.f32.mrb[0].mxu0
        %1178 = vmatprep.mubr.f32.mxu0 0.0
        %1179 = vmatmul.mubr.f32.gmra.mrb[0].mxu0 %v990
        %v1180 = vpop.f32.mrb[0].mxu0
        %v1181 = vadd.f32 0.0, %v1180
        %v1182 = vpop.f32.mrb[0].mxu0
        %1183 = vmatprep.mubr.f32.mxu0 0.0
        %1184 = vmatmul.mubr.f32.gmra.mrb[0].mxu0 %v993
        %v1185 = vpop.f32.mrb[0].mxu0
        %v1186 = vadd.f32 0.0, %v1185
        %v1187 = vpop.f32.mrb[0].mxu0
        %1188 = vmatprep.mubr.f32.mxu0 0.0
        %1189 = vmatmul.mubr.f32.gmra.mrb[0].mxu0 %v996
        %v1190 = vpop.f32.mrb[0].mxu0
        %v1191 = vadd.f32 0.0, %v1190
        %v1192 = vpop.f32.mrb[0].mxu0
        %1193 = vmatprep.mubr.f32.mxu0 0.0
        %1194 = vmatmul.mubr.f32.gmra.mrb[0].mxu0 %v999
        %v1195 = vpop.f32.mrb[0].mxu0
        %v1196 = vadd.f32 0.0, %v1195
        %v1197 = vpop.f32.mrb[0].mxu0
        %1198 = vmatprep.mubr.f32.mxu0 0.0
        %1199 = vmatmul.mubr.f32.gmra.mrb[0].mxu0 %v1002
        %v1200 = vpop.f32.mrb[0].mxu0
        %v1201 = vadd.f32 0.0, %v1200
        %v1202 = vpop.f32.mrb[0].mxu0
        %1203 = vmatprep.mubr.f32.mxu0 0.0
        %1204 = vmatmul.mubr.f32.gmra.mrb[0].mxu0 %v1005
        %v1205 = vpop.f32.mrb[0].mxu0
        %v1206 = vadd.f32 0.0, %v1205
        %v1207 = vpop.f32.mrb[0].mxu0
        %1208 = vmatprep.mubr.f32.mxu0 0.0
        %1209 = vmatmul.mubr.f32.gmra.mrb[0].mxu0 %v1008
        %v1210 = vpop.f32.mrb[0].mxu0
        %v1211 = vadd.f32 0.0, %v1210
        %v1212 = vpop.f32.mrb[0].mxu0
        %1213 = vmatprep.mubr.f32.mxu0 0.0
        %1214 = vmatmul.mubr.f32.gmra.mrb[0].mxu0 %v1011
        %v1215 = vpop.f32.mrb[0].mxu0
        %v1216 = vadd.f32 0.0, %v1215
        %v1217 = vpop.f32.mrb[0].mxu0
        %1218 = vmatprep.mubr.f32.mxu0 0.0
        %1219 = vmatmul.mubr.f32.gmra.mrb[0].mxu0 %v1014
        %v1220 = vpop.f32.mrb[0].mxu0
        %v1221 = vadd.f32 0.0, %v1220
        %v1222 = vpop.f32.mrb[0].mxu0
        %1223 = vmatprep.mubr.f32.mxu0 0.0
        %1224 = vmatmul.mubr.f32.gmra.mrb[0].mxu0 %v1017
        %v1225 = vpop.f32.mrb[0].mxu0
        %v1226 = vadd.f32 0.0, %v1225
        %v1227 = vpop.f32.mrb[0].mxu0
        %1228 = vmatprep.mubr.f32.mxu0 0.0
        %1229 = vmatmul.mubr.f32.gmra.mrb[0].mxu0 %v1020
        %v1230 = vpop.f32.mrb[0].mxu0
        %v1231 = vadd.f32 0.0, %v1230
        %v1232 = vpop.f32.mrb[0].mxu0
        %1233 = vmatprep.mubr.f32.mxu0 0.0
        %1234 = vmatmul.mubr.f32.gmra.mrb[0].mxu0 %v1023
        %v1235 = vpop.f32.mrb[0].mxu0
        %v1236 = vadd.f32 0.0, %v1235
        %v1237 = vpop.f32.mrb[0].mxu0
        %1238 = vmatprep.mubr.f32.mxu0 0.0
        %1239 = vmatmul.mubr.f32.gmra.mrb[0].mxu0 %v1026
        %v1240 = vpop.f32.mrb[0].mxu0
        %v1241 = vadd.f32 0.0, %v1240
        %v1242 = vpop.f32.mrb[0].mxu0
        %1243 = vmatprep.mubr.f32.mxu0 0.0
        %1244 = vmatmul.mubr.f32.gmra.mrb[0].mxu0 %v1029
        %v1245 = vpop.f32.mrb[0].mxu0
        %v1246 = vadd.f32 0.0, %v1245
        %v1247 = vpop.f32.mrb[0].mxu0
        %1248 = vmatprep.mubr.f32.mxu0 0.0
        %1249 = vmatmul.mubr.f32.gmra.mrb[0].mxu0 %v1032
        %v1250 = vpop.f32.mrb[0].mxu0
        %v1251 = vadd.f32 0.0, %v1250
        %v1252 = vpop.f32.mrb[0].mxu0
        %1253 = vmatprep.mubr.f32.mxu0 0.0
        %1254 = vmatmul.mubr.f32.gmra.mrb[0].mxu0 %v1035
        %v1255 = vpop.f32.mrb[0].mxu0
        %v1256 = vadd.f32 0.0, %v1255
        %v1257 = vpop.f32.mrb[0].mxu0
        %1258 = vmatprep.mubr.f32.mxu0 0.0
        %1259 = vmatmul.mubr.f32.gmra.mrb[0].mxu0 %v1038
        %v1260 = vpop.f32.mrb[0].mxu0
        %v1261 = vadd.f32 0.0, %v1260
        %v1262 = vpop.f32.mrb[0].mxu0
        %1263 = vmatprep.mubr.f32.mxu0 0.0
        %1264 = vmatmul.mubr.f32.gmra.mrb[0].mxu0 %v1041
        %v1265 = vpop.f32.mrb[0].mxu0
        %v1266 = vadd.f32 0.0, %v1265
        %v1267 = vpop.f32.mrb[0].mxu0
        %1268 = vmatprep.mubr.f32.mxu0 0.0
        %1269 = vmatmul.mubr.f32.gmra.mrb[0].mxu0 %v1044
        %v1270 = vpop.f32.mrb[0].mxu0
        %v1271 = vadd.f32 0.0, %v1270
        %v1272 = vpop.f32.mrb[0].mxu0
        %1273 = vdwg.mxu0
        %v1274 = vadd.f32 %v758, %v1116
        %v1275 = vadd.f32 %v763, %v1121
        %v1276 = vadd.f32 %v768, %v1126
        %v1277 = vadd.f32 %v773, %v1131
        %v1278 = vadd.f32 %v778, %v1136
        %v1279 = vadd.f32 %v783, %v1141
        %v1280 = vadd.f32 %v788, %v1146
        %v1281 = vadd.f32 %v793, %v1151
        %v1282 = vadd.f32 %v798, %v1156
        %v1283 = vadd.f32 %v803, %v1161
        %v1284 = vadd.f32 %v808, %v1166
        %v1285 = vadd.f32 %v813, %v1171
        %v1286 = vadd.f32 %v818, %v1176
        %v1287 = vadd.f32 %v823, %v1181
        %v1288 = vadd.f32 %v828, %v1186
        %v1289 = vadd.f32 %v833, %v1191
        %v1290 = vadd.f32 %v838, %v1196
        %v1291 = vadd.f32 %v843, %v1201
        %v1292 = vadd.f32 %v848, %v1206
        %v1293 = vadd.f32 %v853, %v1211
        %v1294 = vadd.f32 %v858, %v1216
        %v1295 = vadd.f32 %v863, %v1221
        %v1296 = vadd.f32 %v868, %v1226
        %v1297 = vadd.f32 %v873, %v1231
        %v1298 = vadd.f32 %v878, %v1236
        %v1299 = vadd.f32 %v883, %v1241
        %v1300 = vadd.f32 %v888, %v1246
        %v1301 = vadd.f32 %v893, %v1251
        %v1302 = vadd.f32 %v898, %v1256
        %v1303 = vadd.f32 %v903, %v1261
        %v1304 = vadd.f32 %v908, %v1266
        %v1305 = vadd.f32 %v913, %v1271
        %s1306 = scalar_lea.vmem %s193, 24
        %v1307 = vld [vmem:[%s1306] sm:$0xff]
        %v1308 = vld [vmem:[%s1306 + $0x8] sm:$0xff]
        %v1309 = vld [vmem:[%s1306 + $0x18] sm:$0xff]
        %v1310 = vld [vmem:[%s1306 + $0x20] sm:$0xff]
        %v1311 = vld [vmem:[%s1306 + $0x30] sm:$0xff]
        %v1312 = vld [vmem:[%s1306 + $0x38] sm:$0xff]
        %v1313 = vld [vmem:[%s1306 + $0x48] sm:$0xff]
        %v1314 = vld [vmem:[%s1306 + $0x50] sm:$0xff]
        %v1315 = vld [vmem:[%s1306 + $0x60] sm:$0xff]
        %v1316 = vld [vmem:[%s1306 + $0x68] sm:$0xff]
        %v1317 = vld [vmem:[%s1306 + $0x78] sm:$0xff]
        %v1318 = vld [vmem:[%s1306 + $0x80] sm:$0xff]
        %v1319 = vld [vmem:[%s1306 + $0x90] sm:$0xff]
        %v1320 = vld [vmem:[%s1306 + $0x98] sm:$0xff]
        %v1321 = vld [vmem:[%s1306 + $0xa8] sm:$0xff]
        %v1322 = vld [vmem:[%s1306 + $0xb0] sm:$0xff]
        %v1323 = vld [vmem:[%s1306 + $0xc0] sm:$0xff]
        %v1324 = vld [vmem:[%s1306 + $0xc8] sm:$0xff]
        %v1325 = vld [vmem:[%s1306 + $0xd8] sm:$0xff]
        %v1326 = vld [vmem:[%s1306 + $0xe0] sm:$0xff]
        %v1327 = vld [vmem:[%s1306 + $0xf0] sm:$0xff]
        %v1328 = vld [vmem:[%s1306 + $0xf8] sm:$0xff]
        %v1329 = vld [vmem:[%s1306 + $0x108] sm:$0xff]
        %v1330 = vld [vmem:[%s1306 + $0x110] sm:$0xff]
        %v1331 = vld [vmem:[%s1306 + $0x120] sm:$0xff]
        %v1332 = vld [vmem:[%s1306 + $0x128] sm:$0xff]
        %v1333 = vld [vmem:[%s1306 + $0x138] sm:$0xff]
        %v1334 = vld [vmem:[%s1306 + $0x140] sm:$0xff]
        %v1335 = vld [vmem:[%s1306 + $0x150] sm:$0xff]
        %v1336 = vld [vmem:[%s1306 + $0x158] sm:$0xff]
        %v1337 = vld [vmem:[%s1306 + $0x168] sm:$0xff]
        %v1338 = vld [vmem:[%s1306 + $0x170] sm:$0xff]
        %s1339 = scalar_lea.vmem [#allocation2], 12
        %v1340 = vld [vmem:[%s1339] sm:$0xf]
        %v1342 = vsel %vm266, %v1307, 0
        %v1345 = vsel %vm266, %v1308, 0
        %v1348 = vsel %vm266, %v1309, 0
        %v1351 = vsel %vm266, %v1310, 0
        %v1354 = vsel %vm266, %v1311, 0
        %v1357 = vsel %vm266, %v1312, 0
        %v1360 = vsel %vm266, %v1313, 0
        %v1363 = vsel %vm266, %v1314, 0
        %v1366 = vsel %vm266, %v1315, 0
        %v1369 = vsel %vm266, %v1316, 0
        %v1372 = vsel %vm266, %v1317, 0
        %v1375 = vsel %vm266, %v1318, 0
        %v1378 = vsel %vm266, %v1319, 0
        %v1381 = vsel %vm266, %v1320, 0
        %v1384 = vsel %vm266, %v1321, 0
        %v1387 = vsel %vm266, %v1322, 0
        %v1390 = vsel %vm266, %v1323, 0
        %v1393 = vsel %vm266, %v1324, 0
        %v1396 = vsel %vm266, %v1325, 0
        %v1399 = vsel %vm266, %v1326, 0
        %v1402 = vsel %vm266, %v1327, 0
        %v1405 = vsel %vm266, %v1328, 0
        %v1408 = vsel %vm266, %v1329, 0
        %v1411 = vsel %vm266, %v1330, 0
        %v1414 = vsel %vm266, %v1331, 0
        %v1417 = vsel %vm266, %v1332, 0
        %v1420 = vsel %vm266, %v1333, 0
        %v1423 = vsel %vm266, %v1334, 0
        %v1426 = vsel %vm266, %v1335, 0
        %v1429 = vsel %vm266, %v1336, 0
        %v1432 = vsel %vm266, %v1337, 0
        %v1435 = vsel %vm266, %v1338, 0
        %v1438 = vsel %vm363, %v1340, 0
        %1440 = vmatprep.subr.mxu0 0.0
        %1441 = vmatpush1.msra.mxu0 %v1438
        %1442 = vmatprep.subr.mxu0 0.0
        %1443 = vmatpush1.msra.mxu0 0.0
        %1444 = vmatprep.subr.mxu0 0.0
        %1445 = vmatpush1.msra.mxu0 0.0
        %1446 = vmatprep.subr.mxu0 0.0
        %1447 = vmatpush1.msra.mxu0 0.0
        %1448 = vmatprep.subr.mxu0 0.0
        %1449 = vmatpush1.msra.mxu0 0.0
        %1450 = vmatprep.subr.mxu0 0.0
        %1451 = vmatpush1.msra.mxu0 0.0
        %1452 = vmatprep.subr.mxu0 0.0
        %1453 = vmatpush1.msra.mxu0 0.0
        %1454 = vmatprep.subr.mxu0 0.0
        %1455 = vmatpush1.msra.mxu0 0.0
        %1456 = vmatprep.subr.mxu0 0.0
        %1457 = vmatpush1.msra.mxu0 0.0
        %1458 = vmatprep.subr.mxu0 0.0
        %1459 = vmatpush1.msra.mxu0 0.0
        %1460 = vmatprep.subr.mxu0 0.0
        %1461 = vmatpush1.msra.mxu0 0.0
        %1462 = vmatprep.subr.mxu0 0.0
        %1463 = vmatpush1.msra.mxu0 0.0
        %1464 = vmatprep.subr.mxu0 0.0
        %1465 = vmatpush1.msra.mxu0 0.0
        %1466 = vmatprep.subr.mxu0 0.0
        %1467 = vmatpush1.msra.mxu0 0.0
        %1468 = vmatprep.subr.mxu0 0.0
        %1469 = vmatpush1.msra.mxu0 0.0
        %1470 = vmatprep.subr.mxu0 0.0
        %1471 = vmatpush1.msra.mxu0 0.0
        %1472 = vmatprep.subr.mxu0 0.0
        %1473 = vmatpush1.msra.mxu0 0.0
        %1474 = vmatprep.subr.mxu0 0.0
        %1475 = vmatpush1.msra.mxu0 0.0
        %1476 = vmatprep.subr.mxu0 0.0
        %1477 = vmatpush1.msra.mxu0 0.0
        %1478 = vmatprep.subr.mxu0 0.0
        %1479 = vmatpush1.msra.mxu0 0.0
        %1480 = vmatprep.subr.mxu0 0.0
        %1481 = vmatpush1.msra.mxu0 0.0
        %1482 = vmatprep.subr.mxu0 0.0
        %1483 = vmatpush1.msra.mxu0 0.0
        %1484 = vmatprep.subr.mxu0 0.0
        %1485 = vmatpush1.msra.mxu0 0.0
        %1486 = vmatprep.subr.mxu0 0.0
        %1487 = vmatpush1.msra.mxu0 0.0
        %1488 = vmatprep.subr.mxu0 0.0
        %1489 = vmatpush1.msra.mxu0 0.0
        %1490 = vmatprep.subr.mxu0 0.0
        %1491 = vmatpush1.msra.mxu0 0.0
        %1492 = vmatprep.subr.mxu0 0.0
        %1493 = vmatpush1.msra.mxu0 0.0
        %1494 = vmatprep.subr.mxu0 0.0
        %1495 = vmatpush1.msra.mxu0 0.0
        %1496 = vmatprep.subr.mxu0 0.0
        %1497 = vmatpush1.msra.mxu0 0.0
        %1498 = vmatprep.subr.mxu0 0.0
        %1499 = vmatpush1.msra.mxu0 0.0
        %1500 = vmatprep.subr.mxu0 0.0
        %1501 = vmatpush1.msra.mxu0 0.0
        %1502 = vmatprep.subr.mxu0 0.0
        %1503 = vmatpush1.msra.mxu0 0.0
        %1504 = vmatprep.mubr.f32.mxu0 0.0
        %1505 = vmatmul.mubr.f32.gmra.mrb[0].mxu0 %v1342
        %v1506 = vpop.f32.mrb[0].mxu0
        %v1507 = vadd.f32 0.0, %v1506
        %v1508 = vpop.f32.mrb[0].mxu0
        %1509 = vmatprep.mubr.f32.mxu0 0.0
        %1510 = vmatmul.mubr.f32.gmra.mrb[0].mxu0 %v1345
        %v1511 = vpop.f32.mrb[0].mxu0
        %v1512 = vadd.f32 0.0, %v1511
        %v1513 = vpop.f32.mrb[0].mxu0
        %1514 = vmatprep.mubr.f32.mxu0 0.0
        %1515 = vmatmul.mubr.f32.gmra.mrb[0].mxu0 %v1348
        %v1516 = vpop.f32.mrb[0].mxu0
        %v1517 = vadd.f32 0.0, %v1516
        %v1518 = vpop.f32.mrb[0].mxu0
        %1519 = vmatprep.mubr.f32.mxu0 0.0
        %1520 = vmatmul.mubr.f32.gmra.mrb[0].mxu0 %v1351
        %v1521 = vpop.f32.mrb[0].mxu0
        %v1522 = vadd.f32 0.0, %v1521
        %v1523 = vpop.f32.mrb[0].mxu0
        %1524 = vmatprep.mubr.f32.mxu0 0.0
        %1525 = vmatmul.mubr.f32.gmra.mrb[0].mxu0 %v1354
        %v1526 = vpop.f32.mrb[0].mxu0
        %v1527 = vadd.f32 0.0, %v1526
        %v1528 = vpop.f32.mrb[0].mxu0
        %1529 = vmatprep.mubr.f32.mxu0 0.0
        %1530 = vmatmul.mubr.f32.gmra.mrb[0].mxu0 %v1357
        %v1531 = vpop.f32.mrb[0].mxu0
        %v1532 = vadd.f32 0.0, %v1531
        %v1533 = vpop.f32.mrb[0].mxu0
        %1534 = vmatprep.mubr.f32.mxu0 0.0
        %1535 = vmatmul.mubr.f32.gmra.mrb[0].mxu0 %v1360
        %v1536 = vpop.f32.mrb[0].mxu0
        %v1537 = vadd.f32 0.0, %v1536
        %v1538 = vpop.f32.mrb[0].mxu0
        %1539 = vmatprep.mubr.f32.mxu0 0.0
        %1540 = vmatmul.mubr.f32.gmra.mrb[0].mxu0 %v1363
        %v1541 = vpop.f32.mrb[0].mxu0
        %v1542 = vadd.f32 0.0, %v1541
        %v1543 = vpop.f32.mrb[0].mxu0
        %1544 = vmatprep.mubr.f32.mxu0 0.0
        %1545 = vmatmul.mubr.f32.gmra.mrb[0].mxu0 %v1366
        %v1546 = vpop.f32.mrb[0].mxu0
        %v1547 = vadd.f32 0.0, %v1546
        %v1548 = vpop.f32.mrb[0].mxu0
        %1549 = vmatprep.mubr.f32.mxu0 0.0
        %1550 = vmatmul.mubr.f32.gmra.mrb[0].mxu0 %v1369
        %v1551 = vpop.f32.mrb[0].mxu0
        %v1552 = vadd.f32 0.0, %v1551
        %v1553 = vpop.f32.mrb[0].mxu0
        %1554 = vmatprep.mubr.f32.mxu0 0.0
        %1555 = vmatmul.mubr.f32.gmra.mrb[0].mxu0 %v1372
        %v1556 = vpop.f32.mrb[0].mxu0
        %v1557 = vadd.f32 0.0, %v1556
        %v1558 = vpop.f32.mrb[0].mxu0
        %1559 = vmatprep.mubr.f32.mxu0 0.0
        %1560 = vmatmul.mubr.f32.gmra.mrb[0].mxu0 %v1375
        %v1561 = vpop.f32.mrb[0].mxu0
        %v1562 = vadd.f32 0.0, %v1561
        %v1563 = vpop.f32.mrb[0].mxu0
        %1564 = vmatprep.mubr.f32.mxu0 0.0
        %1565 = vmatmul.mubr.f32.gmra.mrb[0].mxu0 %v1378
        %v1566 = vpop.f32.mrb[0].mxu0
        %v1567 = vadd.f32 0.0, %v1566
        %v1568 = vpop.f32.mrb[0].mxu0
        %1569 = vmatprep.mubr.f32.mxu0 0.0
        %1570 = vmatmul.mubr.f32.gmra.mrb[0].mxu0 %v1381
        %v1571 = vpop.f32.mrb[0].mxu0
        %v1572 = vadd.f32 0.0, %v1571
        %v1573 = vpop.f32.mrb[0].mxu0
        %1574 = vmatprep.mubr.f32.mxu0 0.0
        %1575 = vmatmul.mubr.f32.gmra.mrb[0].mxu0 %v1384
        %v1576 = vpop.f32.mrb[0].mxu0
        %v1577 = vadd.f32 0.0, %v1576
        %v1578 = vpop.f32.mrb[0].mxu0
        %1579 = vmatprep.mubr.f32.mxu0 0.0
        %1580 = vmatmul.mubr.f32.gmra.mrb[0].mxu0 %v1387
        %v1581 = vpop.f32.mrb[0].mxu0
        %v1582 = vadd.f32 0.0, %v1581
        %v1583 = vpop.f32.mrb[0].mxu0
        %1584 = vmatprep.mubr.f32.mxu0 0.0
        %1585 = vmatmul.mubr.f32.gmra.mrb[0].mxu0 %v1390
        %v1586 = vpop.f32.mrb[0].mxu0
        %v1587 = vadd.f32 0.0, %v1586
        %v1588 = vpop.f32.mrb[0].mxu0
        %1589 = vmatprep.mubr.f32.mxu0 0.0
        %1590 = vmatmul.mubr.f32.gmra.mrb[0].mxu0 %v1393
        %v1591 = vpop.f32.mrb[0].mxu0
        %v1592 = vadd.f32 0.0, %v1591
        %v1593 = vpop.f32.mrb[0].mxu0
        %1594 = vmatprep.mubr.f32.mxu0 0.0
        %1595 = vmatmul.mubr.f32.gmra.mrb[0].mxu0 %v1396
        %v1596 = vpop.f32.mrb[0].mxu0
        %v1597 = vadd.f32 0.0, %v1596
        %v1598 = vpop.f32.mrb[0].mxu0
        %1599 = vmatprep.mubr.f32.mxu0 0.0
        %1600 = vmatmul.mubr.f32.gmra.mrb[0].mxu0 %v1399
        %v1601 = vpop.f32.mrb[0].mxu0
        %v1602 = vadd.f32 0.0, %v1601
        %v1603 = vpop.f32.mrb[0].mxu0
        %1604 = vmatprep.mubr.f32.mxu0 0.0
        %1605 = vmatmul.mubr.f32.gmra.mrb[0].mxu0 %v1402
        %v1606 = vpop.f32.mrb[0].mxu0
        %v1607 = vadd.f32 0.0, %v1606
        %v1608 = vpop.f32.mrb[0].mxu0
        %1609 = vmatprep.mubr.f32.mxu0 0.0
        %1610 = vmatmul.mubr.f32.gmra.mrb[0].mxu0 %v1405
        %v1611 = vpop.f32.mrb[0].mxu0
        %v1612 = vadd.f32 0.0, %v1611
        %v1613 = vpop.f32.mrb[0].mxu0
        %1614 = vmatprep.mubr.f32.mxu0 0.0
        %1615 = vmatmul.mubr.f32.gmra.mrb[0].mxu0 %v1408
        %v1616 = vpop.f32.mrb[0].mxu0
        %v1617 = vadd.f32 0.0, %v1616
        %v1618 = vpop.f32.mrb[0].mxu0
        %1619 = vmatprep.mubr.f32.mxu0 0.0
        %1620 = vmatmul.mubr.f32.gmra.mrb[0].mxu0 %v1411
        %v1621 = vpop.f32.mrb[0].mxu0
        %v1622 = vadd.f32 0.0, %v1621
        %v1623 = vpop.f32.mrb[0].mxu0
        %1624 = vmatprep.mubr.f32.mxu0 0.0
        %1625 = vmatmul.mubr.f32.gmra.mrb[0].mxu0 %v1414
        %v1626 = vpop.f32.mrb[0].mxu0
        %v1627 = vadd.f32 0.0, %v1626
        %v1628 = vpop.f32.mrb[0].mxu0
        %1629 = vmatprep.mubr.f32.mxu0 0.0
        %1630 = vmatmul.mubr.f32.gmra.mrb[0].mxu0 %v1417
        %v1631 = vpop.f32.mrb[0].mxu0
        %v1632 = vadd.f32 0.0, %v1631
        %v1633 = vpop.f32.mrb[0].mxu0
        %1634 = vmatprep.mubr.f32.mxu0 0.0
        %1635 = vmatmul.mubr.f32.gmra.mrb[0].mxu0 %v1420
        %v1636 = vpop.f32.mrb[0].mxu0
        %v1637 = vadd.f32 0.0, %v1636
        %v1638 = vpop.f32.mrb[0].mxu0
        %1639 = vmatprep.mubr.f32.mxu0 0.0
        %1640 = vmatmul.mubr.f32.gmra.mrb[0].mxu0 %v1423
        %v1641 = vpop.f32.mrb[0].mxu0
        %v1642 = vadd.f32 0.0, %v1641
        %v1643 = vpop.f32.mrb[0].mxu0
        %1644 = vmatprep.mubr.f32.mxu0 0.0
        %1645 = vmatmul.mubr.f32.gmra.mrb[0].mxu0 %v1426
        %v1646 = vpop.f32.mrb[0].mxu0
        %v1647 = vadd.f32 0.0, %v1646
        %v1648 = vpop.f32.mrb[0].mxu0
        %1649 = vmatprep.mubr.f32.mxu0 0.0
        %1650 = vmatmul.mubr.f32.gmra.mrb[0].mxu0 %v1429
        %v1651 = vpop.f32.mrb[0].mxu0
        %v1652 = vadd.f32 0.0, %v1651
        %v1653 = vpop.f32.mrb[0].mxu0
        %1654 = vmatprep.mubr.f32.mxu0 0.0
        %1655 = vmatmul.mubr.f32.gmra.mrb[0].mxu0 %v1432
        %v1656 = vpop.f32.mrb[0].mxu0
        %v1657 = vadd.f32 0.0, %v1656
        %v1658 = vpop.f32.mrb[0].mxu0
        %1659 = vmatprep.mubr.f32.mxu0 0.0
        %1660 = vmatmul.mubr.f32.gmra.mrb[0].mxu0 %v1435
        %v1661 = vpop.f32.mrb[0].mxu0
        %v1662 = vadd.f32 0.0, %v1661
        %v1663 = vpop.f32.mrb[0].mxu0
        %1664 = vdwg.mxu0
        %v1665 = vadd.f32 %v1274, %v1507
        %v1666 = vadd.f32 %v1275, %v1512
        %v1667 = vadd.f32 %v1276, %v1517
        %v1668 = vadd.f32 %v1277, %v1522
        %v1669 = vadd.f32 %v1278, %v1527
        %v1670 = vadd.f32 %v1279, %v1532
        %v1671 = vadd.f32 %v1280, %v1537
        %v1672 = vadd.f32 %v1281, %v1542
        %v1673 = vadd.f32 %v1282, %v1547
        %v1674 = vadd.f32 %v1283, %v1552
        %v1675 = vadd.f32 %v1284, %v1557
        %v1676 = vadd.f32 %v1285, %v1562
        %v1677 = vadd.f32 %v1286, %v1567
        %v1678 = vadd.f32 %v1287, %v1572
        %v1679 = vadd.f32 %v1288, %v1577
        %v1680 = vadd.f32 %v1289, %v1582
        %v1681 = vadd.f32 %v1290, %v1587
        %v1682 = vadd.f32 %v1291, %v1592
        %v1683 = vadd.f32 %v1292, %v1597
        %v1684 = vadd.f32 %v1293, %v1602
        %v1685 = vadd.f32 %v1294, %v1607
        %v1686 = vadd.f32 %v1295, %v1612
        %v1687 = vadd.f32 %v1296, %v1617
        %v1688 = vadd.f32 %v1297, %v1622
        %v1689 = vadd.f32 %v1298, %v1627
        %v1690 = vadd.f32 %v1299, %v1632
        %v1691 = vadd.f32 %v1300, %v1637
        %v1692 = vadd.f32 %v1301, %v1642
        %v1693 = vadd.f32 %v1302, %v1647
        %v1694 = vadd.f32 %v1303, %v1652
        %v1695 = vadd.f32 %v1304, %v1657
        %v1696 = vadd.f32 %v1305, %v1662
        %v1697 = vld [vmem:[%s1306 + $0x1] sm:$0xff]
        %v1698 = vld [vmem:[%s1306 + $0x9] sm:$0xff]
        %v1699 = vld [vmem:[%s1306 + $0x19] sm:$0xff]
        %v1700 = vld [vmem:[%s1306 + $0x21] sm:$0xff]
        %v1701 = vld [vmem:[%s1306 + $0x31] sm:$0xff]
        %v1702 = vld [vmem:[%s1306 + $0x39] sm:$0xff]
        %v1703 = vld [vmem:[%s1306 + $0x49] sm:$0xff]
        %v1704 = vld [vmem:[%s1306 + $0x51] sm:$0xff]
        %v1705 = vld [vmem:[%s1306 + $0x61] sm:$0xff]
        %v1706 = vld [vmem:[%s1306 + $0x69] sm:$0xff]
        %v1707 = vld [vmem:[%s1306 + $0x79] sm:$0xff]
        %v1708 = vld [vmem:[%s1306 + $0x81] sm:$0xff]
        %v1709 = vld [vmem:[%s1306 + $0x91] sm:$0xff]
        %v1710 = vld [vmem:[%s1306 + $0x99] sm:$0xff]
        %v1711 = vld [vmem:[%s1306 + $0xa9] sm:$0xff]
        %v1712 = vld [vmem:[%s1306 + $0xb1] sm:$0xff]
        %v1713 = vld [vmem:[%s1306 + $0xc1] sm:$0xff]
        %v1714 = vld [vmem:[%s1306 + $0xc9] sm:$0xff]
        %v1715 = vld [vmem:[%s1306 + $0xd9] sm:$0xff]
        %v1716 = vld [vmem:[%s1306 + $0xe1] sm:$0xff]
        %v1717 = vld [vmem:[%s1306 + $0xf1] sm:$0xff]
        %v1718 = vld [vmem:[%s1306 + $0xf9] sm:$0xff]
        %v1719 = vld [vmem:[%s1306 + $0x109] sm:$0xff]
        %v1720 = vld [vmem:[%s1306 + $0x111] sm:$0xff]
        %v1721 = vld [vmem:[%s1306 + $0x121] sm:$0xff]
        %v1722 = vld [vmem:[%s1306 + $0x129] sm:$0xff]
        %v1723 = vld [vmem:[%s1306 + $0x139] sm:$0xff]
        %v1724 = vld [vmem:[%s1306 + $0x141] sm:$0xff]
        %v1725 = vld [vmem:[%s1306 + $0x151] sm:$0xff]
        %v1726 = vld [vmem:[%s1306 + $0x159] sm:$0xff]
        %v1727 = vld [vmem:[%s1306 + $0x169] sm:$0xff]
        %v1728 = vld [vmem:[%s1306 + $0x171] sm:$0xff]
        %s1729 = scalar_lea.vmem [#allocation2], 16
        %v1730 = vld [vmem:[%s1729] sm:$0xf]
        %v1732 = vsel %vm266, %v1697, 0
        %v1735 = vsel %vm266, %v1698, 0
        %v1738 = vsel %vm266, %v1699, 0
        %v1741 = vsel %vm266, %v1700, 0
        %v1744 = vsel %vm266, %v1701, 0
        %v1747 = vsel %vm266, %v1702, 0
        %v1750 = vsel %vm266, %v1703, 0
        %v1753 = vsel %vm266, %v1704, 0
        %v1756 = vsel %vm266, %v1705, 0
        %v1759 = vsel %vm266, %v1706, 0
        %v1762 = vsel %vm266, %v1707, 0
        %v1765 = vsel %vm266, %v1708, 0
        %v1768 = vsel %vm266, %v1709, 0
        %v1771 = vsel %vm266, %v1710, 0
        %v1774 = vsel %vm266, %v1711, 0
        %v1777 = vsel %vm266, %v1712, 0
        %v1780 = vsel %vm266, %v1713, 0
        %v1783 = vsel %vm266, %v1714, 0
        %v1786 = vsel %vm266, %v1715, 0
        %v1789 = vsel %vm266, %v1716, 0
        %v1792 = vsel %vm266, %v1717, 0
        %v1795 = vsel %vm266, %v1718, 0
        %v1798 = vsel %vm266, %v1719, 0
        %v1801 = vsel %vm266, %v1720, 0
        %v1804 = vsel %vm266, %v1721, 0
        %v1807 = vsel %vm266, %v1722, 0
        %v1810 = vsel %vm266, %v1723, 0
        %v1813 = vsel %vm266, %v1724, 0
        %v1816 = vsel %vm266, %v1725, 0
        %v1819 = vsel %vm266, %v1726, 0
        %v1822 = vsel %vm266, %v1727, 0
        %v1825 = vsel %vm266, %v1728, 0
        %v1828 = vsel %vm363, %v1730, 0
        %1830 = vmatprep.subr.mxu0 0.0
        %1831 = vmatpush1.msra.mxu0 %v1828
        %1832 = vmatprep.subr.mxu0 0.0
        %1833 = vmatpush1.msra.mxu0 0.0
        %1834 = vmatprep.subr.mxu0 0.0
        %1835 = vmatpush1.msra.mxu0 0.0
        %1836 = vmatprep.subr.mxu0 0.0
        %1837 = vmatpush1.msra.mxu0 0.0
        %1838 = vmatprep.subr.mxu0 0.0
        %1839 = vmatpush1.msra.mxu0 0.0
        %1840 = vmatprep.subr.mxu0 0.0
        %1841 = vmatpush1.msra.mxu0 0.0
        %1842 = vmatprep.subr.mxu0 0.0
        %1843 = vmatpush1.msra.mxu0 0.0
        %1844 = vmatprep.subr.mxu0 0.0
        %1845 = vmatpush1.msra.mxu0 0.0
        %1846 = vmatprep.subr.mxu0 0.0
        %1847 = vmatpush1.msra.mxu0 0.0
        %1848 = vmatprep.subr.mxu0 0.0
        %1849 = vmatpush1.msra.mxu0 0.0
        %1850 = vmatprep.subr.mxu0 0.0
        %1851 = vmatpush1.msra.mxu0 0.0
        %1852 = vmatprep.subr.mxu0 0.0
        %1853 = vmatpush1.msra.mxu0 0.0
        %1854 = vmatprep.subr.mxu0 0.0
        %1855 = vmatpush1.msra.mxu0 0.0
        %1856 = vmatprep.subr.mxu0 0.0
        %1857 = vmatpush1.msra.mxu0 0.0
        %1858 = vmatprep.subr.mxu0 0.0
        %1859 = vmatpush1.msra.mxu0 0.0
        %1860 = vmatprep.subr.mxu0 0.0
        %1861 = vmatpush1.msra.mxu0 0.0
        %1862 = vmatprep.subr.mxu0 0.0
        %1863 = vmatpush1.msra.mxu0 0.0
        %1864 = vmatprep.subr.mxu0 0.0
        %1865 = vmatpush1.msra.mxu0 0.0
        %1866 = vmatprep.subr.mxu0 0.0
        %1867 = vmatpush1.msra.mxu0 0.0
        %1868 = vmatprep.subr.mxu0 0.0
        %1869 = vmatpush1.msra.mxu0 0.0
        %1870 = vmatprep.subr.mxu0 0.0
        %1871 = vmatpush1.msra.mxu0 0.0
        %1872 = vmatprep.subr.mxu0 0.0
        %1873 = vmatpush1.msra.mxu0 0.0
        %1874 = vmatprep.subr.mxu0 0.0
        %1875 = vmatpush1.msra.mxu0 0.0
        %1876 = vmatprep.subr.mxu0 0.0
        %1877 = vmatpush1.msra.mxu0 0.0
        %1878 = vmatprep.subr.mxu0 0.0
        %1879 = vmatpush1.msra.mxu0 0.0
        %1880 = vmatprep.subr.mxu0 0.0
        %1881 = vmatpush1.msra.mxu0 0.0
        %1882 = vmatprep.subr.mxu0 0.0
        %1883 = vmatpush1.msra.mxu0 0.0
        %1884 = vmatprep.subr.mxu0 0.0
        %1885 = vmatpush1.msra.mxu0 0.0
        %1886 = vmatprep.subr.mxu0 0.0
        %1887 = vmatpush1.msra.mxu0 0.0
        %1888 = vmatprep.subr.mxu0 0.0
        %1889 = vmatpush1.msra.mxu0 0.0
        %1890 = vmatprep.subr.mxu0 0.0
        %1891 = vmatpush1.msra.mxu0 0.0
        %1892 = vmatprep.subr.mxu0 0.0
        %1893 = vmatpush1.msra.mxu0 0.0
        %1894 = vmatprep.mubr.f32.mxu0 0.0
        %1895 = vmatmul.mubr.f32.gmra.mrb[0].mxu0 %v1732
        %v1896 = vpop.f32.mrb[0].mxu0
        %v1897 = vadd.f32 0.0, %v1896
        %v1898 = vpop.f32.mrb[0].mxu0
        %1899 = vmatprep.mubr.f32.mxu0 0.0
        %1900 = vmatmul.mubr.f32.gmra.mrb[0].mxu0 %v1735
        %v1901 = vpop.f32.mrb[0].mxu0
        %v1902 = vadd.f32 0.0, %v1901
        %v1903 = vpop.f32.mrb[0].mxu0
        %1904 = vmatprep.mubr.f32.mxu0 0.0
        %1905 = vmatmul.mubr.f32.gmra.mrb[0].mxu0 %v1738
        %v1906 = vpop.f32.mrb[0].mxu0
        %v1907 = vadd.f32 0.0, %v1906
        %v1908 = vpop.f32.mrb[0].mxu0
        %1909 = vmatprep.mubr.f32.mxu0 0.0
        %1910 = vmatmul.mubr.f32.gmra.mrb[0].mxu0 %v1741
        %v1911 = vpop.f32.mrb[0].mxu0
        %v1912 = vadd.f32 0.0, %v1911
        %v1913 = vpop.f32.mrb[0].mxu0
        %1914 = vmatprep.mubr.f32.mxu0 0.0
        %1915 = vmatmul.mubr.f32.gmra.mrb[0].mxu0 %v1744
        %v1916 = vpop.f32.mrb[0].mxu0
        %v1917 = vadd.f32 0.0, %v1916
        %v1918 = vpop.f32.mrb[0].mxu0
        %1919 = vmatprep.mubr.f32.mxu0 0.0
        %1920 = vmatmul.mubr.f32.gmra.mrb[0].mxu0 %v1747
        %v1921 = vpop.f32.mrb[0].mxu0
        %v1922 = vadd.f32 0.0, %v1921
        %v1923 = vpop.f32.mrb[0].mxu0
        %1924 = vmatprep.mubr.f32.mxu0 0.0
        %1925 = vmatmul.mubr.f32.gmra.mrb[0].mxu0 %v1750
        %v1926 = vpop.f32.mrb[0].mxu0
        %v1927 = vadd.f32 0.0, %v1926
        %v1928 = vpop.f32.mrb[0].mxu0
        %1929 = vmatprep.mubr.f32.mxu0 0.0
        %1930 = vmatmul.mubr.f32.gmra.mrb[0].mxu0 %v1753
        %v1931 = vpop.f32.mrb[0].mxu0
        %v1932 = vadd.f32 0.0, %v1931
        %v1933 = vpop.f32.mrb[0].mxu0
        %1934 = vmatprep.mubr.f32.mxu0 0.0
        %1935 = vmatmul.mubr.f32.gmra.mrb[0].mxu0 %v1756
        %v1936 = vpop.f32.mrb[0].mxu0
        %v1937 = vadd.f32 0.0, %v1936
        %v1938 = vpop.f32.mrb[0].mxu0
        %1939 = vmatprep.mubr.f32.mxu0 0.0
        %1940 = vmatmul.mubr.f32.gmra.mrb[0].mxu0 %v1759
        %v1941 = vpop.f32.mrb[0].mxu0
        %v1942 = vadd.f32 0.0, %v1941
        %v1943 = vpop.f32.mrb[0].mxu0
        %1944 = vmatprep.mubr.f32.mxu0 0.0
        %1945 = vmatmul.mubr.f32.gmra.mrb[0].mxu0 %v1762
        %v1946 = vpop.f32.mrb[0].mxu0
        %v1947 = vadd.f32 0.0, %v1946
        %v1948 = vpop.f32.mrb[0].mxu0
        %1949 = vmatprep.mubr.f32.mxu0 0.0
        %1950 = vmatmul.mubr.f32.gmra.mrb[0].mxu0 %v1765
        %v1951 = vpop.f32.mrb[0].mxu0
        %v1952 = vadd.f32 0.0, %v1951
        %v1953 = vpop.f32.mrb[0].mxu0
        %1954 = vmatprep.mubr.f32.mxu0 0.0
        %1955 = vmatmul.mubr.f32.gmra.mrb[0].mxu0 %v1768
        %v1956 = vpop.f32.mrb[0].mxu0
        %v1957 = vadd.f32 0.0, %v1956
        %v1958 = vpop.f32.mrb[0].mxu0
        %1959 = vmatprep.mubr.f32.mxu0 0.0
        %1960 = vmatmul.mubr.f32.gmra.mrb[0].mxu0 %v1771
        %v1961 = vpop.f32.mrb[0].mxu0
        %v1962 = vadd.f32 0.0, %v1961
        %v1963 = vpop.f32.mrb[0].mxu0
        %1964 = vmatprep.mubr.f32.mxu0 0.0
        %1965 = vmatmul.mubr.f32.gmra.mrb[0].mxu0 %v1774
        %v1966 = vpop.f32.mrb[0].mxu0
        %v1967 = vadd.f32 0.0, %v1966
        %v1968 = vpop.f32.mrb[0].mxu0
        %1969 = vmatprep.mubr.f32.mxu0 0.0
        %1970 = vmatmul.mubr.f32.gmra.mrb[0].mxu0 %v1777
        %v1971 = vpop.f32.mrb[0].mxu0
        %v1972 = vadd.f32 0.0, %v1971
        %v1973 = vpop.f32.mrb[0].mxu0
        %1974 = vmatprep.mubr.f32.mxu0 0.0
        %1975 = vmatmul.mubr.f32.gmra.mrb[0].mxu0 %v1780
        %v1976 = vpop.f32.mrb[0].mxu0
        %v1977 = vadd.f32 0.0, %v1976
        %v1978 = vpop.f32.mrb[0].mxu0
        %1979 = vmatprep.mubr.f32.mxu0 0.0
        %1980 = vmatmul.mubr.f32.gmra.mrb[0].mxu0 %v1783
        %v1981 = vpop.f32.mrb[0].mxu0
        %v1982 = vadd.f32 0.0, %v1981
        %v1983 = vpop.f32.mrb[0].mxu0
        %1984 = vmatprep.mubr.f32.mxu0 0.0
        %1985 = vmatmul.mubr.f32.gmra.mrb[0].mxu0 %v1786
        %v1986 = vpop.f32.mrb[0].mxu0
        %v1987 = vadd.f32 0.0, %v1986
        %v1988 = vpop.f32.mrb[0].mxu0
        %1989 = vmatprep.mubr.f32.mxu0 0.0
        %1990 = vmatmul.mubr.f32.gmra.mrb[0].mxu0 %v1789
        %v1991 = vpop.f32.mrb[0].mxu0
        %v1992 = vadd.f32 0.0, %v1991
        %v1993 = vpop.f32.mrb[0].mxu0
        %1994 = vmatprep.mubr.f32.mxu0 0.0
        %1995 = vmatmul.mubr.f32.gmra.mrb[0].mxu0 %v1792
        %v1996 = vpop.f32.mrb[0].mxu0
        %v1997 = vadd.f32 0.0, %v1996
        %v1998 = vpop.f32.mrb[0].mxu0
        %1999 = vmatprep.mubr.f32.mxu0 0.0
        %2000 = vmatmul.mubr.f32.gmra.mrb[0].mxu0 %v1795
        %v2001 = vpop.f32.mrb[0].mxu0
        %v2002 = vadd.f32 0.0, %v2001
        %v2003 = vpop.f32.mrb[0].mxu0
        %2004 = vmatprep.mubr.f32.mxu0 0.0
        %2005 = vmatmul.mubr.f32.gmra.mrb[0].mxu0 %v1798
        %v2006 = vpop.f32.mrb[0].mxu0
        %v2007 = vadd.f32 0.0, %v2006
        %v2008 = vpop.f32.mrb[0].mxu0
        %2009 = vmatprep.mubr.f32.mxu0 0.0
        %2010 = vmatmul.mubr.f32.gmra.mrb[0].mxu0 %v1801
        %v2011 = vpop.f32.mrb[0].mxu0
        %v2012 = vadd.f32 0.0, %v2011
        %v2013 = vpop.f32.mrb[0].mxu0
        %2014 = vmatprep.mubr.f32.mxu0 0.0
        %2015 = vmatmul.mubr.f32.gmra.mrb[0].mxu0 %v1804
        %v2016 = vpop.f32.mrb[0].mxu0
        %v2017 = vadd.f32 0.0, %v2016
        %v2018 = vpop.f32.mrb[0].mxu0
        %2019 = vmatprep.mubr.f32.mxu0 0.0
        %2020 = vmatmul.mubr.f32.gmra.mrb[0].mxu0 %v1807
        %v2021 = vpop.f32.mrb[0].mxu0
        %v2022 = vadd.f32 0.0, %v2021
        %v2023 = vpop.f32.mrb[0].mxu0
        %2024 = vmatprep.mubr.f32.mxu0 0.0
        %2025 = vmatmul.mubr.f32.gmra.mrb[0].mxu0 %v1810
        %v2026 = vpop.f32.mrb[0].mxu0
        %v2027 = vadd.f32 0.0, %v2026
        %v2028 = vpop.f32.mrb[0].mxu0
        %2029 = vmatprep.mubr.f32.mxu0 0.0
        %2030 = vmatmul.mubr.f32.gmra.mrb[0].mxu0 %v1813
        %v2031 = vpop.f32.mrb[0].mxu0
        %v2032 = vadd.f32 0.0, %v2031
        %v2033 = vpop.f32.mrb[0].mxu0
        %2034 = vmatprep.mubr.f32.mxu0 0.0
        %2035 = vmatmul.mubr.f32.gmra.mrb[0].mxu0 %v1816
        %v2036 = vpop.f32.mrb[0].mxu0
        %v2037 = vadd.f32 0.0, %v2036
        %v2038 = vpop.f32.mrb[0].mxu0
        %2039 = vmatprep.mubr.f32.mxu0 0.0
        %2040 = vmatmul.mubr.f32.gmra.mrb[0].mxu0 %v1819
        %v2041 = vpop.f32.mrb[0].mxu0
        %v2042 = vadd.f32 0.0, %v2041
        %v2043 = vpop.f32.mrb[0].mxu0
        %2044 = vmatprep.mubr.f32.mxu0 0.0
        %2045 = vmatmul.mubr.f32.gmra.mrb[0].mxu0 %v1822
        %v2046 = vpop.f32.mrb[0].mxu0
        %v2047 = vadd.f32 0.0, %v2046
        %v2048 = vpop.f32.mrb[0].mxu0
        %2049 = vmatprep.mubr.f32.mxu0 0.0
        %2050 = vmatmul.mubr.f32.gmra.mrb[0].mxu0 %v1825
        %v2051 = vpop.f32.mrb[0].mxu0
        %v2052 = vadd.f32 0.0, %v2051
        %v2053 = vpop.f32.mrb[0].mxu0
        %2054 = vdwg.mxu0
        %v2055 = vadd.f32 %v1665, %v1897
        %v2056 = vadd.f32 %v1666, %v1902
        %v2057 = vadd.f32 %v1667, %v1907
        %v2058 = vadd.f32 %v1668, %v1912
        %v2059 = vadd.f32 %v1669, %v1917
        %v2060 = vadd.f32 %v1670, %v1922
        %v2061 = vadd.f32 %v1671, %v1927
        %v2062 = vadd.f32 %v1672, %v1932
        %v2063 = vadd.f32 %v1673, %v1937
        %v2064 = vadd.f32 %v1674, %v1942
        %v2065 = vadd.f32 %v1675, %v1947
        %v2066 = vadd.f32 %v1676, %v1952
        %v2067 = vadd.f32 %v1677, %v1957
        %v2068 = vadd.f32 %v1678, %v1962
        %v2069 = vadd.f32 %v1679, %v1967
        %v2070 = vadd.f32 %v1680, %v1972
        %v2071 = vadd.f32 %v1681, %v1977
        %v2072 = vadd.f32 %v1682, %v1982
        %v2073 = vadd.f32 %v1683, %v1987
        %v2074 = vadd.f32 %v1684, %v1992
        %v2075 = vadd.f32 %v1685, %v1997
        %v2076 = vadd.f32 %v1686, %v2002
        %v2077 = vadd.f32 %v1687, %v2007
        %v2078 = vadd.f32 %v1688, %v2012
        %v2079 = vadd.f32 %v1689, %v2017
        %v2080 = vadd.f32 %v1690, %v2022
        %v2081 = vadd.f32 %v1691, %v2027
        %v2082 = vadd.f32 %v1692, %v2032
        %v2083 = vadd.f32 %v1693, %v2037
        %v2084 = vadd.f32 %v1694, %v2042
        %v2085 = vadd.f32 %v1695, %v2047
        %v2086 = vadd.f32 %v1696, %v2052
        %v2087 = vld [vmem:[%s1306 + $0x2] sm:$0xff]
        %v2088 = vld [vmem:[%s1306 + $0xa] sm:$0xff]
        %v2089 = vld [vmem:[%s1306 + $0x1a] sm:$0xff]
        %v2090 = vld [vmem:[%s1306 + $0x22] sm:$0xff]
        %v2091 = vld [vmem:[%s1306 + $0x32] sm:$0xff]
        %v2092 = vld [vmem:[%s1306 + $0x3a] sm:$0xff]
        %v2093 = vld [vmem:[%s1306 + $0x4a] sm:$0xff]
        %v2094 = vld [vmem:[%s1306 + $0x52] sm:$0xff]
        %v2095 = vld [vmem:[%s1306 + $0x62] sm:$0xff]
        %v2096 = vld [vmem:[%s1306 + $0x6a] sm:$0xff]
        %v2097 = vld [vmem:[%s1306 + $0x7a] sm:$0xff]
        %v2098 = vld [vmem:[%s1306 + $0x82] sm:$0xff]
        %v2099 = vld [vmem:[%s1306 + $0x92] sm:$0xff]
        %v2100 = vld [vmem:[%s1306 + $0x9a] sm:$0xff]
        %v2101 = vld [vmem:[%s1306 + $0xaa] sm:$0xff]
        %v2102 = vld [vmem:[%s1306 + $0xb2] sm:$0xff]
        %v2103 = vld [vmem:[%s1306 + $0xc2] sm:$0xff]
        %v2104 = vld [vmem:[%s1306 + $0xca] sm:$0xff]
        %v2105 = vld [vmem:[%s1306 + $0xda] sm:$0xff]
        %v2106 = vld [vmem:[%s1306 + $0xe2] sm:$0xff]
        %v2107 = vld [vmem:[%s1306 + $0xf2] sm:$0xff]
        %v2108 = vld [vmem:[%s1306 + $0xfa] sm:$0xff]
        %v2109 = vld [vmem:[%s1306 + $0x10a] sm:$0xff]
        %v2110 = vld [vmem:[%s1306 + $0x112] sm:$0xff]
        %v2111 = vld [vmem:[%s1306 + $0x122] sm:$0xff]
        %v2112 = vld [vmem:[%s1306 + $0x12a] sm:$0xff]
        %v2113 = vld [vmem:[%s1306 + $0x13a] sm:$0xff]
        %v2114 = vld [vmem:[%s1306 + $0x142] sm:$0xff]
        %v2115 = vld [vmem:[%s1306 + $0x152] sm:$0xff]
        %v2116 = vld [vmem:[%s1306 + $0x15a] sm:$0xff]
        %v2117 = vld [vmem:[%s1306 + $0x16a] sm:$0xff]
        %v2118 = vld [vmem:[%s1306 + $0x172] sm:$0xff]
        %s2119 = scalar_lea.vmem [#allocation2], 20
        %v2120 = vld [vmem:[%s2119] sm:$0xf]
        %v2122 = vsel %vm266, %v2087, 0
        %v2125 = vsel %vm266, %v2088, 0
        %v2128 = vsel %vm266, %v2089, 0
        %v2131 = vsel %vm266, %v2090, 0
        %v2134 = vsel %vm266, %v2091, 0
        %v2137 = vsel %vm266, %v2092, 0
        %v2140 = vsel %vm266, %v2093, 0
        %v2143 = vsel %vm266, %v2094, 0
        %v2146 = vsel %vm266, %v2095, 0
        %v2149 = vsel %vm266, %v2096, 0
        %v2152 = vsel %vm266, %v2097, 0
        %v2155 = vsel %vm266, %v2098, 0
        %v2158 = vsel %vm266, %v2099, 0
        %v2161 = vsel %vm266, %v2100, 0
        %v2164 = vsel %vm266, %v2101, 0
        %v2167 = vsel %vm266, %v2102, 0
        %v2170 = vsel %vm266, %v2103, 0
        %v2173 = vsel %vm266, %v2104, 0
        %v2176 = vsel %vm266, %v2105, 0
        %v2179 = vsel %vm266, %v2106, 0
        %v2182 = vsel %vm266, %v2107, 0
        %v2185 = vsel %vm266, %v2108, 0
        %v2188 = vsel %vm266, %v2109, 0
        %v2191 = vsel %vm266, %v2110, 0
        %v2194 = vsel %vm266, %v2111, 0
        %v2197 = vsel %vm266, %v2112, 0
        %v2200 = vsel %vm266, %v2113, 0
        %v2203 = vsel %vm266, %v2114, 0
        %v2206 = vsel %vm266, %v2115, 0
        %v2209 = vsel %vm266, %v2116, 0
        %v2212 = vsel %vm266, %v2117, 0
        %v2215 = vsel %vm266, %v2118, 0
        %v2218 = vsel %vm363, %v2120, 0
        %2220 = vmatprep.subr.mxu0 0.0
        %2221 = vmatpush1.msra.mxu0 %v2218
        %2222 = vmatprep.subr.mxu0 0.0
        %2223 = vmatpush1.msra.mxu0 0.0
        %2224 = vmatprep.subr.mxu0 0.0
        %2225 = vmatpush1.msra.mxu0 0.0
        %2226 = vmatprep.subr.mxu0 0.0
        %2227 = vmatpush1.msra.mxu0 0.0
        %2228 = vmatprep.subr.mxu0 0.0
        %2229 = vmatpush1.msra.mxu0 0.0
        %2230 = vmatprep.subr.mxu0 0.0
        %2231 = vmatpush1.msra.mxu0 0.0
        %2232 = vmatprep.subr.mxu0 0.0
        %2233 = vmatpush1.msra.mxu0 0.0
        %2234 = vmatprep.subr.mxu0 0.0
        %2235 = vmatpush1.msra.mxu0 0.0
        %2236 = vmatprep.subr.mxu0 0.0
        %2237 = vmatpush1.msra.mxu0 0.0
        %2238 = vmatprep.subr.mxu0 0.0
        %2239 = vmatpush1.msra.mxu0 0.0
        %2240 = vmatprep.subr.mxu0 0.0
        %2241 = vmatpush1.msra.mxu0 0.0
        %2242 = vmatprep.subr.mxu0 0.0
        %2243 = vmatpush1.msra.mxu0 0.0
        %2244 = vmatprep.subr.mxu0 0.0
        %2245 = vmatpush1.msra.mxu0 0.0
        %2246 = vmatprep.subr.mxu0 0.0
        %2247 = vmatpush1.msra.mxu0 0.0
        %2248 = vmatprep.subr.mxu0 0.0
        %2249 = vmatpush1.msra.mxu0 0.0
        %2250 = vmatprep.subr.mxu0 0.0
        %2251 = vmatpush1.msra.mxu0 0.0
        %2252 = vmatprep.subr.mxu0 0.0
        %2253 = vmatpush1.msra.mxu0 0.0
        %2254 = vmatprep.subr.mxu0 0.0
        %2255 = vmatpush1.msra.mxu0 0.0
        %2256 = vmatprep.subr.mxu0 0.0
        %2257 = vmatpush1.msra.mxu0 0.0
        %2258 = vmatprep.subr.mxu0 0.0
        %2259 = vmatpush1.msra.mxu0 0.0
        %2260 = vmatprep.subr.mxu0 0.0
        %2261 = vmatpush1.msra.mxu0 0.0
        %2262 = vmatprep.subr.mxu0 0.0
        %2263 = vmatpush1.msra.mxu0 0.0
        %2264 = vmatprep.subr.mxu0 0.0
        %2265 = vmatpush1.msra.mxu0 0.0
        %2266 = vmatprep.subr.mxu0 0.0
        %2267 = vmatpush1.msra.mxu0 0.0
        %2268 = vmatprep.subr.mxu0 0.0
        %2269 = vmatpush1.msra.mxu0 0.0
        %2270 = vmatprep.subr.mxu0 0.0
        %2271 = vmatpush1.msra.mxu0 0.0
        %2272 = vmatprep.subr.mxu0 0.0
        %2273 = vmatpush1.msra.mxu0 0.0
        %2274 = vmatprep.subr.mxu0 0.0
        %2275 = vmatpush1.msra.mxu0 0.0
        %2276 = vmatprep.subr.mxu0 0.0
        %2277 = vmatpush1.msra.mxu0 0.0
        %2278 = vmatprep.subr.mxu0 0.0
        %2279 = vmatpush1.msra.mxu0 0.0
        %2280 = vmatprep.subr.mxu0 0.0
        %2281 = vmatpush1.msra.mxu0 0.0
        %2282 = vmatprep.subr.mxu0 0.0
        %2283 = vmatpush1.msra.mxu0 0.0
        %2284 = vmatprep.mubr.f32.mxu0 0.0
        %2285 = vmatmul.mubr.f32.gmra.mrb[0].mxu0 %v2122
        %v2286 = vpop.f32.mrb[0].mxu0
        %v2287 = vadd.f32 0.0, %v2286
        %v2288 = vpop.f32.mrb[0].mxu0
        %2289 = vmatprep.mubr.f32.mxu0 0.0
        %2290 = vmatmul.mubr.f32.gmra.mrb[0].mxu0 %v2125
        %v2291 = vpop.f32.mrb[0].mxu0
        %v2292 = vadd.f32 0.0, %v2291
        %v2293 = vpop.f32.mrb[0].mxu0
        %2294 = vmatprep.mubr.f32.mxu0 0.0
        %2295 = vmatmul.mubr.f32.gmra.mrb[0].mxu0 %v2128
        %v2296 = vpop.f32.mrb[0].mxu0
        %v2297 = vadd.f32 0.0, %v2296
        %v2298 = vpop.f32.mrb[0].mxu0
        %2299 = vmatprep.mubr.f32.mxu0 0.0
        %2300 = vmatmul.mubr.f32.gmra.mrb[0].mxu0 %v2131
        %v2301 = vpop.f32.mrb[0].mxu0
        %v2302 = vadd.f32 0.0, %v2301
        %v2303 = vpop.f32.mrb[0].mxu0
        %2304 = vmatprep.mubr.f32.mxu0 0.0
        %2305 = vmatmul.mubr.f32.gmra.mrb[0].mxu0 %v2134
        %v2306 = vpop.f32.mrb[0].mxu0
        %v2307 = vadd.f32 0.0, %v2306
        %v2308 = vpop.f32.mrb[0].mxu0
        %2309 = vmatprep.mubr.f32.mxu0 0.0
        %2310 = vmatmul.mubr.f32.gmra.mrb[0].mxu0 %v2137
        %v2311 = vpop.f32.mrb[0].mxu0
        %v2312 = vadd.f32 0.0, %v2311
        %v2313 = vpop.f32.mrb[0].mxu0
        %2314 = vmatprep.mubr.f32.mxu0 0.0
        %2315 = vmatmul.mubr.f32.gmra.mrb[0].mxu0 %v2140
        %v2316 = vpop.f32.mrb[0].mxu0
        %v2317 = vadd.f32 0.0, %v2316
        %v2318 = vpop.f32.mrb[0].mxu0
        %2319 = vmatprep.mubr.f32.mxu0 0.0
        %2320 = vmatmul.mubr.f32.gmra.mrb[0].mxu0 %v2143
        %v2321 = vpop.f32.mrb[0].mxu0
        %v2322 = vadd.f32 0.0, %v2321
        %v2323 = vpop.f32.mrb[0].mxu0
        %2324 = vmatprep.mubr.f32.mxu0 0.0
        %2325 = vmatmul.mubr.f32.gmra.mrb[0].mxu0 %v2146
        %v2326 = vpop.f32.mrb[0].mxu0
        %v2327 = vadd.f32 0.0, %v2326
        %v2328 = vpop.f32.mrb[0].mxu0
        %2329 = vmatprep.mubr.f32.mxu0 0.0
        %2330 = vmatmul.mubr.f32.gmra.mrb[0].mxu0 %v2149
        %v2331 = vpop.f32.mrb[0].mxu0
        %v2332 = vadd.f32 0.0, %v2331
        %v2333 = vpop.f32.mrb[0].mxu0
        %2334 = vmatprep.mubr.f32.mxu0 0.0
        %2335 = vmatmul.mubr.f32.gmra.mrb[0].mxu0 %v2152
        %v2336 = vpop.f32.mrb[0].mxu0
        %v2337 = vadd.f32 0.0, %v2336
        %v2338 = vpop.f32.mrb[0].mxu0
        %2339 = vmatprep.mubr.f32.mxu0 0.0
        %2340 = vmatmul.mubr.f32.gmra.mrb[0].mxu0 %v2155
        %v2341 = vpop.f32.mrb[0].mxu0
        %v2342 = vadd.f32 0.0, %v2341
        %v2343 = vpop.f32.mrb[0].mxu0
        %2344 = vmatprep.mubr.f32.mxu0 0.0
        %2345 = vmatmul.mubr.f32.gmra.mrb[0].mxu0 %v2158
        %v2346 = vpop.f32.mrb[0].mxu0
        %v2347 = vadd.f32 0.0, %v2346
        %v2348 = vpop.f32.mrb[0].mxu0
        %2349 = vmatprep.mubr.f32.mxu0 0.0
        %2350 = vmatmul.mubr.f32.gmra.mrb[0].mxu0 %v2161
        %v2351 = vpop.f32.mrb[0].mxu0
        %v2352 = vadd.f32 0.0, %v2351
        %v2353 = vpop.f32.mrb[0].mxu0
        %2354 = vmatprep.mubr.f32.mxu0 0.0
        %2355 = vmatmul.mubr.f32.gmra.mrb[0].mxu0 %v2164
        %v2356 = vpop.f32.mrb[0].mxu0
        %v2357 = vadd.f32 0.0, %v2356
        %v2358 = vpop.f32.mrb[0].mxu0
        %2359 = vmatprep.mubr.f32.mxu0 0.0
        %2360 = vmatmul.mubr.f32.gmra.mrb[0].mxu0 %v2167
        %v2361 = vpop.f32.mrb[0].mxu0
        %v2362 = vadd.f32 0.0, %v2361
        %v2363 = vpop.f32.mrb[0].mxu0
        %2364 = vmatprep.mubr.f32.mxu0 0.0
        %2365 = vmatmul.mubr.f32.gmra.mrb[0].mxu0 %v2170
        %v2366 = vpop.f32.mrb[0].mxu0
        %v2367 = vadd.f32 0.0, %v2366
        %v2368 = vpop.f32.mrb[0].mxu0
        %2369 = vmatprep.mubr.f32.mxu0 0.0
        %2370 = vmatmul.mubr.f32.gmra.mrb[0].mxu0 %v2173
        %v2371 = vpop.f32.mrb[0].mxu0
        %v2372 = vadd.f32 0.0, %v2371
        %v2373 = vpop.f32.mrb[0].mxu0
        %2374 = vmatprep.mubr.f32.mxu0 0.0
        %2375 = vmatmul.mubr.f32.gmra.mrb[0].mxu0 %v2176
        %v2376 = vpop.f32.mrb[0].mxu0
        %v2377 = vadd.f32 0.0, %v2376
        %v2378 = vpop.f32.mrb[0].mxu0
        %2379 = vmatprep.mubr.f32.mxu0 0.0
        %2380 = vmatmul.mubr.f32.gmra.mrb[0].mxu0 %v2179
        %v2381 = vpop.f32.mrb[0].mxu0
        %v2382 = vadd.f32 0.0, %v2381
        %v2383 = vpop.f32.mrb[0].mxu0
        %2384 = vmatprep.mubr.f32.mxu0 0.0
        %2385 = vmatmul.mubr.f32.gmra.mrb[0].mxu0 %v2182
        %v2386 = vpop.f32.mrb[0].mxu0
        %v2387 = vadd.f32 0.0, %v2386
        %v2388 = vpop.f32.mrb[0].mxu0
        %2389 = vmatprep.mubr.f32.mxu0 0.0
        %2390 = vmatmul.mubr.f32.gmra.mrb[0].mxu0 %v2185
        %v2391 = vpop.f32.mrb[0].mxu0
        %v2392 = vadd.f32 0.0, %v2391
        %v2393 = vpop.f32.mrb[0].mxu0
        %2394 = vmatprep.mubr.f32.mxu0 0.0
        %2395 = vmatmul.mubr.f32.gmra.mrb[0].mxu0 %v2188
        %v2396 = vpop.f32.mrb[0].mxu0
        %v2397 = vadd.f32 0.0, %v2396
        %v2398 = vpop.f32.mrb[0].mxu0
        %2399 = vmatprep.mubr.f32.mxu0 0.0
        %2400 = vmatmul.mubr.f32.gmra.mrb[0].mxu0 %v2191
        %v2401 = vpop.f32.mrb[0].mxu0
        %v2402 = vadd.f32 0.0, %v2401
        %v2403 = vpop.f32.mrb[0].mxu0
        %2404 = vmatprep.mubr.f32.mxu0 0.0
        %2405 = vmatmul.mubr.f32.gmra.mrb[0].mxu0 %v2194
        %v2406 = vpop.f32.mrb[0].mxu0
        %v2407 = vadd.f32 0.0, %v2406
        %v2408 = vpop.f32.mrb[0].mxu0
        %2409 = vmatprep.mubr.f32.mxu0 0.0
        %2410 = vmatmul.mubr.f32.gmra.mrb[0].mxu0 %v2197
        %v2411 = vpop.f32.mrb[0].mxu0
        %v2412 = vadd.f32 0.0, %v2411
        %v2413 = vpop.f32.mrb[0].mxu0
        %2414 = vmatprep.mubr.f32.mxu0 0.0
        %2415 = vmatmul.mubr.f32.gmra.mrb[0].mxu0 %v2200
        %v2416 = vpop.f32.mrb[0].mxu0
        %v2417 = vadd.f32 0.0, %v2416
        %v2418 = vpop.f32.mrb[0].mxu0
        %2419 = vmatprep.mubr.f32.mxu0 0.0
        %2420 = vmatmul.mubr.f32.gmra.mrb[0].mxu0 %v2203
        %v2421 = vpop.f32.mrb[0].mxu0
        %v2422 = vadd.f32 0.0, %v2421
        %v2423 = vpop.f32.mrb[0].mxu0
        %2424 = vmatprep.mubr.f32.mxu0 0.0
        %2425 = vmatmul.mubr.f32.gmra.mrb[0].mxu0 %v2206
        %v2426 = vpop.f32.mrb[0].mxu0
        %v2427 = vadd.f32 0.0, %v2426
        %v2428 = vpop.f32.mrb[0].mxu0
        %2429 = vmatprep.mubr.f32.mxu0 0.0
        %2430 = vmatmul.mubr.f32.gmra.mrb[0].mxu0 %v2209
        %v2431 = vpop.f32.mrb[0].mxu0
        %v2432 = vadd.f32 0.0, %v2431
        %v2433 = vpop.f32.mrb[0].mxu0
        %2434 = vmatprep.mubr.f32.mxu0 0.0
        %2435 = vmatmul.mubr.f32.gmra.mrb[0].mxu0 %v2212
        %v2436 = vpop.f32.mrb[0].mxu0
        %v2437 = vadd.f32 0.0, %v2436
        %v2438 = vpop.f32.mrb[0].mxu0
        %2439 = vmatprep.mubr.f32.mxu0 0.0
        %2440 = vmatmul.mubr.f32.gmra.mrb[0].mxu0 %v2215
        %v2441 = vpop.f32.mrb[0].mxu0
        %v2442 = vadd.f32 0.0, %v2441
        %v2443 = vpop.f32.mrb[0].mxu0
        %2444 = vdwg.mxu0
        %v2445 = vadd.f32 %v2055, %v2287
        %v2446 = vadd.f32 %v2056, %v2292
        %v2447 = vadd.f32 %v2057, %v2297
        %v2448 = vadd.f32 %v2058, %v2302
        %v2449 = vadd.f32 %v2059, %v2307
        %v2450 = vadd.f32 %v2060, %v2312
        %v2451 = vadd.f32 %v2061, %v2317
        %v2452 = vadd.f32 %v2062, %v2322
        %v2453 = vadd.f32 %v2063, %v2327
        %v2454 = vadd.f32 %v2064, %v2332
        %v2455 = vadd.f32 %v2065, %v2337
        %v2456 = vadd.f32 %v2066, %v2342
        %v2457 = vadd.f32 %v2067, %v2347
        %v2458 = vadd.f32 %v2068, %v2352
        %v2459 = vadd.f32 %v2069, %v2357
        %v2460 = vadd.f32 %v2070, %v2362
        %v2461 = vadd.f32 %v2071, %v2367
        %v2462 = vadd.f32 %v2072, %v2372
        %v2463 = vadd.f32 %v2073, %v2377
        %v2464 = vadd.f32 %v2074, %v2382
        %v2465 = vadd.f32 %v2075, %v2387
        %v2466 = vadd.f32 %v2076, %v2392
        %v2467 = vadd.f32 %v2077, %v2397
        %v2468 = vadd.f32 %v2078, %v2402
        %v2469 = vadd.f32 %v2079, %v2407
        %v2470 = vadd.f32 %v2080, %v2412
        %v2471 = vadd.f32 %v2081, %v2417
        %v2472 = vadd.f32 %v2082, %v2422
        %v2473 = vadd.f32 %v2083, %v2427
        %v2474 = vadd.f32 %v2084, %v2432
        %v2475 = vadd.f32 %v2085, %v2437
        %v2476 = vadd.f32 %v2086, %v2442
        %s2477 = scalar_lea.vmem %s193, 48
        %v2478 = vld [vmem:[%s2477] sm:$0xff]
        %v2479 = vld [vmem:[%s2477 + $0x8] sm:$0xff]
        %v2480 = vld [vmem:[%s2477 + $0x18] sm:$0xff]
        %v2481 = vld [vmem:[%s2477 + $0x20] sm:$0xff]
        %v2482 = vld [vmem:[%s2477 + $0x30] sm:$0xff]
        %v2483 = vld [vmem:[%s2477 + $0x38] sm:$0xff]
        %v2484 = vld [vmem:[%s2477 + $0x48] sm:$0xff]
        %v2485 = vld [vmem:[%s2477 + $0x50] sm:$0xff]
        %v2486 = vld [vmem:[%s2477 + $0x60] sm:$0xff]
        %v2487 = vld [vmem:[%s2477 + $0x68] sm:$0xff]
        %v2488 = vld [vmem:[%s2477 + $0x78] sm:$0xff]
        %v2489 = vld [vmem:[%s2477 + $0x80] sm:$0xff]
        %v2490 = vld [vmem:[%s2477 + $0x90] sm:$0xff]
        %v2491 = vld [vmem:[%s2477 + $0x98] sm:$0xff]
        %v2492 = vld [vmem:[%s2477 + $0xa8] sm:$0xff]
        %v2493 = vld [vmem:[%s2477 + $0xb0] sm:$0xff]
        %v2494 = vld [vmem:[%s2477 + $0xc0] sm:$0xff]
        %v2495 = vld [vmem:[%s2477 + $0xc8] sm:$0xff]
        %v2496 = vld [vmem:[%s2477 + $0xd8] sm:$0xff]
        %v2497 = vld [vmem:[%s2477 + $0xe0] sm:$0xff]
        %v2498 = vld [vmem:[%s2477 + $0xf0] sm:$0xff]
        %v2499 = vld [vmem:[%s2477 + $0xf8] sm:$0xff]
        %v2500 = vld [vmem:[%s2477 + $0x108] sm:$0xff]
        %v2501 = vld [vmem:[%s2477 + $0x110] sm:$0xff]
        %v2502 = vld [vmem:[%s2477 + $0x120] sm:$0xff]
        %v2503 = vld [vmem:[%s2477 + $0x128] sm:$0xff]
        %v2504 = vld [vmem:[%s2477 + $0x138] sm:$0xff]
        %v2505 = vld [vmem:[%s2477 + $0x140] sm:$0xff]
        %v2506 = vld [vmem:[%s2477 + $0x150] sm:$0xff]
        %v2507 = vld [vmem:[%s2477 + $0x158] sm:$0xff]
        %v2508 = vld [vmem:[%s2477 + $0x168] sm:$0xff]
        %v2509 = vld [vmem:[%s2477 + $0x170] sm:$0xff]
        %s2510 = scalar_lea.vmem [#allocation2], 24
        %v2511 = vld [vmem:[%s2510] sm:$0xf]
        %v2513 = vsel %vm266, %v2478, 0
        %v2516 = vsel %vm266, %v2479, 0
        %v2519 = vsel %vm266, %v2480, 0
        %v2522 = vsel %vm266, %v2481, 0
        %v2525 = vsel %vm266, %v2482, 0
        %v2528 = vsel %vm266, %v2483, 0
        %v2531 = vsel %vm266, %v2484, 0
        %v2534 = vsel %vm266, %v2485, 0
        %v2537 = vsel %vm266, %v2486, 0
        %v2540 = vsel %vm266, %v2487, 0
        %v2543 = vsel %vm266, %v2488, 0
        %v2546 = vsel %vm266, %v2489, 0
        %v2549 = vsel %vm266, %v2490, 0
        %v2552 = vsel %vm266, %v2491, 0
        %v2555 = vsel %vm266, %v2492, 0
        %v2558 = vsel %vm266, %v2493, 0
        %v2561 = vsel %vm266, %v2494, 0
        %v2564 = vsel %vm266, %v2495, 0
        %v2567 = vsel %vm266, %v2496, 0
        %v2570 = vsel %vm266, %v2497, 0
        %v2573 = vsel %vm266, %v2498, 0
        %v2576 = vsel %vm266, %v2499, 0
        %v2579 = vsel %vm266, %v2500, 0
        %v2582 = vsel %vm266, %v2501, 0
        %v2585 = vsel %vm266, %v2502, 0
        %v2588 = vsel %vm266, %v2503, 0
        %v2591 = vsel %vm266, %v2504, 0
        %v2594 = vsel %vm266, %v2505, 0
        %v2597 = vsel %vm266, %v2506, 0
        %v2600 = vsel %vm266, %v2507, 0
        %v2603 = vsel %vm266, %v2508, 0
        %v2606 = vsel %vm266, %v2509, 0
        %v2609 = vsel %vm363, %v2511, 0
        %2611 = vmatprep.subr.mxu0 0.0
        %2612 = vmatpush1.msra.mxu0 %v2609
        %2613 = vmatprep.subr.mxu0 0.0
        %2614 = vmatpush1.msra.mxu0 0.0
        %2615 = vmatprep.subr.mxu0 0.0
        %2616 = vmatpush1.msra.mxu0 0.0
        %2617 = vmatprep.subr.mxu0 0.0
        %2618 = vmatpush1.msra.mxu0 0.0
        %2619 = vmatprep.subr.mxu0 0.0
        %2620 = vmatpush1.msra.mxu0 0.0
        %2621 = vmatprep.subr.mxu0 0.0
        %2622 = vmatpush1.msra.mxu0 0.0
        %2623 = vmatprep.subr.mxu0 0.0
        %2624 = vmatpush1.msra.mxu0 0.0
        %2625 = vmatprep.subr.mxu0 0.0
        %2626 = vmatpush1.msra.mxu0 0.0
        %2627 = vmatprep.subr.mxu0 0.0
        %2628 = vmatpush1.msra.mxu0 0.0
        %2629 = vmatprep.subr.mxu0 0.0
        %2630 = vmatpush1.msra.mxu0 0.0
        %2631 = vmatprep.subr.mxu0 0.0
        %2632 = vmatpush1.msra.mxu0 0.0
        %2633 = vmatprep.subr.mxu0 0.0
        %2634 = vmatpush1.msra.mxu0 0.0
        %2635 = vmatprep.subr.mxu0 0.0
        %2636 = vmatpush1.msra.mxu0 0.0
        %2637 = vmatprep.subr.mxu0 0.0
        %2638 = vmatpush1.msra.mxu0 0.0
        %2639 = vmatprep.subr.mxu0 0.0
        %2640 = vmatpush1.msra.mxu0 0.0
        %2641 = vmatprep.subr.mxu0 0.0
        %2642 = vmatpush1.msra.mxu0 0.0
        %2643 = vmatprep.subr.mxu0 0.0
        %2644 = vmatpush1.msra.mxu0 0.0
        %2645 = vmatprep.subr.mxu0 0.0
        %2646 = vmatpush1.msra.mxu0 0.0
        %2647 = vmatprep.subr.mxu0 0.0
        %2648 = vmatpush1.msra.mxu0 0.0
        %2649 = vmatprep.subr.mxu0 0.0
        %2650 = vmatpush1.msra.mxu0 0.0
        %2651 = vmatprep.subr.mxu0 0.0
        %2652 = vmatpush1.msra.mxu0 0.0
        %2653 = vmatprep.subr.mxu0 0.0
        %2654 = vmatpush1.msra.mxu0 0.0
        %2655 = vmatprep.subr.mxu0 0.0
        %2656 = vmatpush1.msra.mxu0 0.0
        %2657 = vmatprep.subr.mxu0 0.0
        %2658 = vmatpush1.msra.mxu0 0.0
        %2659 = vmatprep.subr.mxu0 0.0
        %2660 = vmatpush1.msra.mxu0 0.0
        %2661 = vmatprep.subr.mxu0 0.0
        %2662 = vmatpush1.msra.mxu0 0.0
        %2663 = vmatprep.subr.mxu0 0.0
        %2664 = vmatpush1.msra.mxu0 0.0
        %2665 = vmatprep.subr.mxu0 0.0
        %2666 = vmatpush1.msra.mxu0 0.0
        %2667 = vmatprep.subr.mxu0 0.0
        %2668 = vmatpush1.msra.mxu0 0.0
        %2669 = vmatprep.subr.mxu0 0.0
        %2670 = vmatpush1.msra.mxu0 0.0
        %2671 = vmatprep.subr.mxu0 0.0
        %2672 = vmatpush1.msra.mxu0 0.0
        %2673 = vmatprep.subr.mxu0 0.0
        %2674 = vmatpush1.msra.mxu0 0.0
        %2675 = vmatprep.mubr.f32.mxu0 0.0
        %2676 = vmatmul.mubr.f32.gmra.mrb[0].mxu0 %v2513
        %v2677 = vpop.f32.mrb[0].mxu0
        %v2678 = vadd.f32 0.0, %v2677
        %v2679 = vpop.f32.mrb[0].mxu0
        %2680 = vmatprep.mubr.f32.mxu0 0.0
        %2681 = vmatmul.mubr.f32.gmra.mrb[0].mxu0 %v2516
        %v2682 = vpop.f32.mrb[0].mxu0
        %v2683 = vadd.f32 0.0, %v2682
        %v2684 = vpop.f32.mrb[0].mxu0
        %2685 = vmatprep.mubr.f32.mxu0 0.0
        %2686 = vmatmul.mubr.f32.gmra.mrb[0].mxu0 %v2519
        %v2687 = vpop.f32.mrb[0].mxu0
        %v2688 = vadd.f32 0.0, %v2687
        %v2689 = vpop.f32.mrb[0].mxu0
        %2690 = vmatprep.mubr.f32.mxu0 0.0
        %2691 = vmatmul.mubr.f32.gmra.mrb[0].mxu0 %v2522
        %v2692 = vpop.f32.mrb[0].mxu0
        %v2693 = vadd.f32 0.0, %v2692
        %v2694 = vpop.f32.mrb[0].mxu0
        %2695 = vmatprep.mubr.f32.mxu0 0.0
        %2696 = vmatmul.mubr.f32.gmra.mrb[0].mxu0 %v2525
        %v2697 = vpop.f32.mrb[0].mxu0
        %v2698 = vadd.f32 0.0, %v2697
        %v2699 = vpop.f32.mrb[0].mxu0
        %2700 = vmatprep.mubr.f32.mxu0 0.0
        %2701 = vmatmul.mubr.f32.gmra.mrb[0].mxu0 %v2528
        %v2702 = vpop.f32.mrb[0].mxu0
        %v2703 = vadd.f32 0.0, %v2702
        %v2704 = vpop.f32.mrb[0].mxu0
        %2705 = vmatprep.mubr.f32.mxu0 0.0
        %2706 = vmatmul.mubr.f32.gmra.mrb[0].mxu0 %v2531
        %v2707 = vpop.f32.mrb[0].mxu0
        %v2708 = vadd.f32 0.0, %v2707
        %v2709 = vpop.f32.mrb[0].mxu0
        %2710 = vmatprep.mubr.f32.mxu0 0.0
        %2711 = vmatmul.mubr.f32.gmra.mrb[0].mxu0 %v2534
        %v2712 = vpop.f32.mrb[0].mxu0
        %v2713 = vadd.f32 0.0, %v2712
        %v2714 = vpop.f32.mrb[0].mxu0
        %2715 = vmatprep.mubr.f32.mxu0 0.0
        %2716 = vmatmul.mubr.f32.gmra.mrb[0].mxu0 %v2537
        %v2717 = vpop.f32.mrb[0].mxu0
        %v2718 = vadd.f32 0.0, %v2717
        %v2719 = vpop.f32.mrb[0].mxu0
        %2720 = vmatprep.mubr.f32.mxu0 0.0
        %2721 = vmatmul.mubr.f32.gmra.mrb[0].mxu0 %v2540
        %v2722 = vpop.f32.mrb[0].mxu0
        %v2723 = vadd.f32 0.0, %v2722
        %v2724 = vpop.f32.mrb[0].mxu0
        %2725 = vmatprep.mubr.f32.mxu0 0.0
        %2726 = vmatmul.mubr.f32.gmra.mrb[0].mxu0 %v2543
        %v2727 = vpop.f32.mrb[0].mxu0
        %v2728 = vadd.f32 0.0, %v2727
        %v2729 = vpop.f32.mrb[0].mxu0
        %2730 = vmatprep.mubr.f32.mxu0 0.0
        %2731 = vmatmul.mubr.f32.gmra.mrb[0].mxu0 %v2546
        %v2732 = vpop.f32.mrb[0].mxu0
        %v2733 = vadd.f32 0.0, %v2732
        %v2734 = vpop.f32.mrb[0].mxu0
        %2735 = vmatprep.mubr.f32.mxu0 0.0
        %2736 = vmatmul.mubr.f32.gmra.mrb[0].mxu0 %v2549
        %v2737 = vpop.f32.mrb[0].mxu0
        %v2738 = vadd.f32 0.0, %v2737
        %v2739 = vpop.f32.mrb[0].mxu0
        %2740 = vmatprep.mubr.f32.mxu0 0.0
        %2741 = vmatmul.mubr.f32.gmra.mrb[0].mxu0 %v2552
        %v2742 = vpop.f32.mrb[0].mxu0
        %v2743 = vadd.f32 0.0, %v2742
        %v2744 = vpop.f32.mrb[0].mxu0
        %2745 = vmatprep.mubr.f32.mxu0 0.0
        %2746 = vmatmul.mubr.f32.gmra.mrb[0].mxu0 %v2555
        %v2747 = vpop.f32.mrb[0].mxu0
        %v2748 = vadd.f32 0.0, %v2747
        %v2749 = vpop.f32.mrb[0].mxu0
        %2750 = vmatprep.mubr.f32.mxu0 0.0
        %2751 = vmatmul.mubr.f32.gmra.mrb[0].mxu0 %v2558
        %v2752 = vpop.f32.mrb[0].mxu0
        %v2753 = vadd.f32 0.0, %v2752
        %v2754 = vpop.f32.mrb[0].mxu0
        %2755 = vmatprep.mubr.f32.mxu0 0.0
        %2756 = vmatmul.mubr.f32.gmra.mrb[0].mxu0 %v2561
        %v2757 = vpop.f32.mrb[0].mxu0
        %v2758 = vadd.f32 0.0, %v2757
        %v2759 = vpop.f32.mrb[0].mxu0
        %2760 = vmatprep.mubr.f32.mxu0 0.0
        %2761 = vmatmul.mubr.f32.gmra.mrb[0].mxu0 %v2564
        %v2762 = vpop.f32.mrb[0].mxu0
        %v2763 = vadd.f32 0.0, %v2762
        %v2764 = vpop.f32.mrb[0].mxu0
        %2765 = vmatprep.mubr.f32.mxu0 0.0
        %2766 = vmatmul.mubr.f32.gmra.mrb[0].mxu0 %v2567
        %v2767 = vpop.f32.mrb[0].mxu0
        %v2768 = vadd.f32 0.0, %v2767
        %v2769 = vpop.f32.mrb[0].mxu0
        %2770 = vmatprep.mubr.f32.mxu0 0.0
        %2771 = vmatmul.mubr.f32.gmra.mrb[0].mxu0 %v2570
        %v2772 = vpop.f32.mrb[0].mxu0
        %v2773 = vadd.f32 0.0, %v2772
        %v2774 = vpop.f32.mrb[0].mxu0
        %2775 = vmatprep.mubr.f32.mxu0 0.0
        %2776 = vmatmul.mubr.f32.gmra.mrb[0].mxu0 %v2573
        %v2777 = vpop.f32.mrb[0].mxu0
        %v2778 = vadd.f32 0.0, %v2777
        %v2779 = vpop.f32.mrb[0].mxu0
        %2780 = vmatprep.mubr.f32.mxu0 0.0
        %2781 = vmatmul.mubr.f32.gmra.mrb[0].mxu0 %v2576
        %v2782 = vpop.f32.mrb[0].mxu0
        %v2783 = vadd.f32 0.0, %v2782
        %v2784 = vpop.f32.mrb[0].mxu0
        %2785 = vmatprep.mubr.f32.mxu0 0.0
        %2786 = vmatmul.mubr.f32.gmra.mrb[0].mxu0 %v2579
        %v2787 = vpop.f32.mrb[0].mxu0
        %v2788 = vadd.f32 0.0, %v2787
        %v2789 = vpop.f32.mrb[0].mxu0
        %2790 = vmatprep.mubr.f32.mxu0 0.0
        %2791 = vmatmul.mubr.f32.gmra.mrb[0].mxu0 %v2582
        %v2792 = vpop.f32.mrb[0].mxu0
        %v2793 = vadd.f32 0.0, %v2792
        %v2794 = vpop.f32.mrb[0].mxu0
        %2795 = vmatprep.mubr.f32.mxu0 0.0
        %2796 = vmatmul.mubr.f32.gmra.mrb[0].mxu0 %v2585
        %v2797 = vpop.f32.mrb[0].mxu0
        %v2798 = vadd.f32 0.0, %v2797
        %v2799 = vpop.f32.mrb[0].mxu0
        %2800 = vmatprep.mubr.f32.mxu0 0.0
        %2801 = vmatmul.mubr.f32.gmra.mrb[0].mxu0 %v2588
        %v2802 = vpop.f32.mrb[0].mxu0
        %v2803 = vadd.f32 0.0, %v2802
        %v2804 = vpop.f32.mrb[0].mxu0
        %2805 = vmatprep.mubr.f32.mxu0 0.0
        %2806 = vmatmul.mubr.f32.gmra.mrb[0].mxu0 %v2591
        %v2807 = vpop.f32.mrb[0].mxu0
        %v2808 = vadd.f32 0.0, %v2807
        %v2809 = vpop.f32.mrb[0].mxu0
        %2810 = vmatprep.mubr.f32.mxu0 0.0
        %2811 = vmatmul.mubr.f32.gmra.mrb[0].mxu0 %v2594
        %v2812 = vpop.f32.mrb[0].mxu0
        %v2813 = vadd.f32 0.0, %v2812
        %v2814 = vpop.f32.mrb[0].mxu0
        %2815 = vmatprep.mubr.f32.mxu0 0.0
        %2816 = vmatmul.mubr.f32.gmra.mrb[0].mxu0 %v2597
        %v2817 = vpop.f32.mrb[0].mxu0
        %v2818 = vadd.f32 0.0, %v2817
        %v2819 = vpop.f32.mrb[0].mxu0
        %2820 = vmatprep.mubr.f32.mxu0 0.0
        %2821 = vmatmul.mubr.f32.gmra.mrb[0].mxu0 %v2600
        %v2822 = vpop.f32.mrb[0].mxu0
        %v2823 = vadd.f32 0.0, %v2822
        %v2824 = vpop.f32.mrb[0].mxu0
        %2825 = vmatprep.mubr.f32.mxu0 0.0
        %2826 = vmatmul.mubr.f32.gmra.mrb[0].mxu0 %v2603
        %v2827 = vpop.f32.mrb[0].mxu0
        %v2828 = vadd.f32 0.0, %v2827
        %v2829 = vpop.f32.mrb[0].mxu0
        %2830 = vmatprep.mubr.f32.mxu0 0.0
        %2831 = vmatmul.mubr.f32.gmra.mrb[0].mxu0 %v2606
        %v2832 = vpop.f32.mrb[0].mxu0
        %v2833 = vadd.f32 0.0, %v2832
        %v2834 = vpop.f32.mrb[0].mxu0
        %2835 = vdwg.mxu0
        %v2836 = vadd.f32 %v2445, %v2678
        %v2837 = vadd.f32 %v2446, %v2683
        %v2838 = vadd.f32 %v2447, %v2688
        %v2839 = vadd.f32 %v2448, %v2693
        %v2840 = vadd.f32 %v2449, %v2698
        %v2841 = vadd.f32 %v2450, %v2703
        %v2842 = vadd.f32 %v2451, %v2708
        %v2843 = vadd.f32 %v2452, %v2713
        %v2844 = vadd.f32 %v2453, %v2718
        %v2845 = vadd.f32 %v2454, %v2723
        %v2846 = vadd.f32 %v2455, %v2728
        %v2847 = vadd.f32 %v2456, %v2733
        %v2848 = vadd.f32 %v2457, %v2738
        %v2849 = vadd.f32 %v2458, %v2743
        %v2850 = vadd.f32 %v2459, %v2748
        %v2851 = vadd.f32 %v2460, %v2753
        %v2852 = vadd.f32 %v2461, %v2758
        %v2853 = vadd.f32 %v2462, %v2763
        %v2854 = vadd.f32 %v2463, %v2768
        %v2855 = vadd.f32 %v2464, %v2773
        %v2856 = vadd.f32 %v2465, %v2778
        %v2857 = vadd.f32 %v2466, %v2783
        %v2858 = vadd.f32 %v2467, %v2788
        %v2859 = vadd.f32 %v2468, %v2793
        %v2860 = vadd.f32 %v2469, %v2798
        %v2861 = vadd.f32 %v2470, %v2803
        %v2862 = vadd.f32 %v2471, %v2808
        %v2863 = vadd.f32 %v2472, %v2813
        %v2864 = vadd.f32 %v2473, %v2818
        %v2865 = vadd.f32 %v2474, %v2823
        %v2866 = vadd.f32 %v2475, %v2828
        %v2867 = vadd.f32 %v2476, %v2833
        %v2868 = vld [vmem:[%s2477 + $0x1] sm:$0xff]
        %v2869 = vld [vmem:[%s2477 + $0x9] sm:$0xff]
        %v2870 = vld [vmem:[%s2477 + $0x19] sm:$0xff]
        %v2871 = vld [vmem:[%s2477 + $0x21] sm:$0xff]
        %v2872 = vld [vmem:[%s2477 + $0x31] sm:$0xff]
        %v2873 = vld [vmem:[%s2477 + $0x39] sm:$0xff]
        %v2874 = vld [vmem:[%s2477 + $0x49] sm:$0xff]
        %v2875 = vld [vmem:[%s2477 + $0x51] sm:$0xff]
        %v2876 = vld [vmem:[%s2477 + $0x61] sm:$0xff]
        %v2877 = vld [vmem:[%s2477 + $0x69] sm:$0xff]
        %v2878 = vld [vmem:[%s2477 + $0x79] sm:$0xff]
        %v2879 = vld [vmem:[%s2477 + $0x81] sm:$0xff]
        %v2880 = vld [vmem:[%s2477 + $0x91] sm:$0xff]
        %v2881 = vld [vmem:[%s2477 + $0x99] sm:$0xff]
        %v2882 = vld [vmem:[%s2477 + $0xa9] sm:$0xff]
        %v2883 = vld [vmem:[%s2477 + $0xb1] sm:$0xff]
        %v2884 = vld [vmem:[%s2477 + $0xc1] sm:$0xff]
        %v2885 = vld [vmem:[%s2477 + $0xc9] sm:$0xff]
        %v2886 = vld [vmem:[%s2477 + $0xd9] sm:$0xff]
        %v2887 = vld [vmem:[%s2477 + $0xe1] sm:$0xff]
        %v2888 = vld [vmem:[%s2477 + $0xf1] sm:$0xff]
        %v2889 = vld [vmem:[%s2477 + $0xf9] sm:$0xff]
        %v2890 = vld [vmem:[%s2477 + $0x109] sm:$0xff]
        %v2891 = vld [vmem:[%s2477 + $0x111] sm:$0xff]
        %v2892 = vld [vmem:[%s2477 + $0x121] sm:$0xff]
        %v2893 = vld [vmem:[%s2477 + $0x129] sm:$0xff]
        %v2894 = vld [vmem:[%s2477 + $0x139] sm:$0xff]
        %v2895 = vld [vmem:[%s2477 + $0x141] sm:$0xff]
        %v2896 = vld [vmem:[%s2477 + $0x151] sm:$0xff]
        %v2897 = vld [vmem:[%s2477 + $0x159] sm:$0xff]
        %v2898 = vld [vmem:[%s2477 + $0x169] sm:$0xff]
        %v2899 = vld [vmem:[%s2477 + $0x171] sm:$0xff]
        %s2900 = scalar_lea.vmem [#allocation2], 28
        %v2901 = vld [vmem:[%s2900] sm:$0xf]
        %v2903 = vsel %vm266, %v2868, 0
        %v2906 = vsel %vm266, %v2869, 0
        %v2909 = vsel %vm266, %v2870, 0
        %v2912 = vsel %vm266, %v2871, 0
        %v2915 = vsel %vm266, %v2872, 0
        %v2918 = vsel %vm266, %v2873, 0
        %v2921 = vsel %vm266, %v2874, 0
        %v2924 = vsel %vm266, %v2875, 0
        %v2927 = vsel %vm266, %v2876, 0
        %v2930 = vsel %vm266, %v2877, 0
        %v2933 = vsel %vm266, %v2878, 0
        %v2936 = vsel %vm266, %v2879, 0
        %v2939 = vsel %vm266, %v2880, 0
        %v2942 = vsel %vm266, %v2881, 0
        %v2945 = vsel %vm266, %v2882, 0
        %v2948 = vsel %vm266, %v2883, 0
        %v2951 = vsel %vm266, %v2884, 0
        %v2954 = vsel %vm266, %v2885, 0
        %v2957 = vsel %vm266, %v2886, 0
        %v2960 = vsel %vm266, %v2887, 0
        %v2963 = vsel %vm266, %v2888, 0
        %v2966 = vsel %vm266, %v2889, 0
        %v2969 = vsel %vm266, %v2890, 0
        %v2972 = vsel %vm266, %v2891, 0
        %v2975 = vsel %vm266, %v2892, 0
        %v2978 = vsel %vm266, %v2893, 0
        %v2981 = vsel %vm266, %v2894, 0
        %v2984 = vsel %vm266, %v2895, 0
        %v2987 = vsel %vm266, %v2896, 0
        %v2990 = vsel %vm266, %v2897, 0
        %v2993 = vsel %vm266, %v2898, 0
        %v2996 = vsel %vm266, %v2899, 0
        %v2999 = vsel %vm363, %v2901, 0
        %3001 = vmatprep.subr.mxu0 0.0
        %3002 = vmatpush1.msra.mxu0 %v2999
        %3003 = vmatprep.subr.mxu0 0.0
        %3004 = vmatpush1.msra.mxu0 0.0
        %3005 = vmatprep.subr.mxu0 0.0
        %3006 = vmatpush1.msra.mxu0 0.0
        %3007 = vmatprep.subr.mxu0 0.0
        %3008 = vmatpush1.msra.mxu0 0.0
        %3009 = vmatprep.subr.mxu0 0.0
        %3010 = vmatpush1.msra.mxu0 0.0
        %3011 = vmatprep.subr.mxu0 0.0
        %3012 = vmatpush1.msra.mxu0 0.0
        %3013 = vmatprep.subr.mxu0 0.0
        %3014 = vmatpush1.msra.mxu0 0.0
        %3015 = vmatprep.subr.mxu0 0.0
        %3016 = vmatpush1.msra.mxu0 0.0
        %3017 = vmatprep.subr.mxu0 0.0
        %3018 = vmatpush1.msra.mxu0 0.0
        %3019 = vmatprep.subr.mxu0 0.0
        %3020 = vmatpush1.msra.mxu0 0.0
        %3021 = vmatprep.subr.mxu0 0.0
        %3022 = vmatpush1.msra.mxu0 0.0
        %3023 = vmatprep.subr.mxu0 0.0
        %3024 = vmatpush1.msra.mxu0 0.0
        %3025 = vmatprep.subr.mxu0 0.0
        %3026 = vmatpush1.msra.mxu0 0.0
        %3027 = vmatprep.subr.mxu0 0.0
        %3028 = vmatpush1.msra.mxu0 0.0
        %3029 = vmatprep.subr.mxu0 0.0
        %3030 = vmatpush1.msra.mxu0 0.0
        %3031 = vmatprep.subr.mxu0 0.0
        %3032 = vmatpush1.msra.mxu0 0.0
        %3033 = vmatprep.subr.mxu0 0.0
        %3034 = vmatpush1.msra.mxu0 0.0
        %3035 = vmatprep.subr.mxu0 0.0
        %3036 = vmatpush1.msra.mxu0 0.0
        %3037 = vmatprep.subr.mxu0 0.0
        %3038 = vmatpush1.msra.mxu0 0.0
        %3039 = vmatprep.subr.mxu0 0.0
        %3040 = vmatpush1.msra.mxu0 0.0
        %3041 = vmatprep.subr.mxu0 0.0
        %3042 = vmatpush1.msra.mxu0 0.0
        %3043 = vmatprep.subr.mxu0 0.0
        %3044 = vmatpush1.msra.mxu0 0.0
        %3045 = vmatprep.subr.mxu0 0.0
        %3046 = vmatpush1.msra.mxu0 0.0
        %3047 = vmatprep.subr.mxu0 0.0
        %3048 = vmatpush1.msra.mxu0 0.0
        %3049 = vmatprep.subr.mxu0 0.0
        %3050 = vmatpush1.msra.mxu0 0.0
        %3051 = vmatprep.subr.mxu0 0.0
        %3052 = vmatpush1.msra.mxu0 0.0
        %3053 = vmatprep.subr.mxu0 0.0
        %3054 = vmatpush1.msra.mxu0 0.0
        %3055 = vmatprep.subr.mxu0 0.0
        %3056 = vmatpush1.msra.mxu0 0.0
        %3057 = vmatprep.subr.mxu0 0.0
        %3058 = vmatpush1.msra.mxu0 0.0
        %3059 = vmatprep.subr.mxu0 0.0
        %3060 = vmatpush1.msra.mxu0 0.0
        %3061 = vmatprep.subr.mxu0 0.0
        %3062 = vmatpush1.msra.mxu0 0.0
        %3063 = vmatprep.subr.mxu0 0.0
        %3064 = vmatpush1.msra.mxu0 0.0
        %3065 = vmatprep.mubr.f32.mxu0 0.0
        %3066 = vmatmul.mubr.f32.gmra.mrb[0].mxu0 %v2903
        %v3067 = vpop.f32.mrb[0].mxu0
        %v3068 = vadd.f32 0.0, %v3067
        %v3069 = vpop.f32.mrb[0].mxu0
        %3070 = vmatprep.mubr.f32.mxu0 0.0
        %3071 = vmatmul.mubr.f32.gmra.mrb[0].mxu0 %v2906
        %v3072 = vpop.f32.mrb[0].mxu0
        %v3073 = vadd.f32 0.0, %v3072
        %v3074 = vpop.f32.mrb[0].mxu0
        %3075 = vmatprep.mubr.f32.mxu0 0.0
        %3076 = vmatmul.mubr.f32.gmra.mrb[0].mxu0 %v2909
        %v3077 = vpop.f32.mrb[0].mxu0
        %v3078 = vadd.f32 0.0, %v3077
        %v3079 = vpop.f32.mrb[0].mxu0
        %3080 = vmatprep.mubr.f32.mxu0 0.0
        %3081 = vmatmul.mubr.f32.gmra.mrb[0].mxu0 %v2912
        %v3082 = vpop.f32.mrb[0].mxu0
        %v3083 = vadd.f32 0.0, %v3082
        %v3084 = vpop.f32.mrb[0].mxu0
        %3085 = vmatprep.mubr.f32.mxu0 0.0
        %3086 = vmatmul.mubr.f32.gmra.mrb[0].mxu0 %v2915
        %v3087 = vpop.f32.mrb[0].mxu0
        %v3088 = vadd.f32 0.0, %v3087
        %v3089 = vpop.f32.mrb[0].mxu0
        %3090 = vmatprep.mubr.f32.mxu0 0.0
        %3091 = vmatmul.mubr.f32.gmra.mrb[0].mxu0 %v2918
        %v3092 = vpop.f32.mrb[0].mxu0
        %v3093 = vadd.f32 0.0, %v3092
        %v3094 = vpop.f32.mrb[0].mxu0
        %3095 = vmatprep.mubr.f32.mxu0 0.0
        %3096 = vmatmul.mubr.f32.gmra.mrb[0].mxu0 %v2921
        %v3097 = vpop.f32.mrb[0].mxu0
        %v3098 = vadd.f32 0.0, %v3097
        %v3099 = vpop.f32.mrb[0].mxu0
        %3100 = vmatprep.mubr.f32.mxu0 0.0
        %3101 = vmatmul.mubr.f32.gmra.mrb[0].mxu0 %v2924
        %v3102 = vpop.f32.mrb[0].mxu0
        %v3103 = vadd.f32 0.0, %v3102
        %v3104 = vpop.f32.mrb[0].mxu0
        %3105 = vmatprep.mubr.f32.mxu0 0.0
        %3106 = vmatmul.mubr.f32.gmra.mrb[0].mxu0 %v2927
        %v3107 = vpop.f32.mrb[0].mxu0
        %v3108 = vadd.f32 0.0, %v3107
        %v3109 = vpop.f32.mrb[0].mxu0
        %3110 = vmatprep.mubr.f32.mxu0 0.0
        %3111 = vmatmul.mubr.f32.gmra.mrb[0].mxu0 %v2930
        %v3112 = vpop.f32.mrb[0].mxu0
        %v3113 = vadd.f32 0.0, %v3112
        %v3114 = vpop.f32.mrb[0].mxu0
        %3115 = vmatprep.mubr.f32.mxu0 0.0
        %3116 = vmatmul.mubr.f32.gmra.mrb[0].mxu0 %v2933
        %v3117 = vpop.f32.mrb[0].mxu0
        %v3118 = vadd.f32 0.0, %v3117
        %v3119 = vpop.f32.mrb[0].mxu0
        %3120 = vmatprep.mubr.f32.mxu0 0.0
        %3121 = vmatmul.mubr.f32.gmra.mrb[0].mxu0 %v2936
        %v3122 = vpop.f32.mrb[0].mxu0
        %v3123 = vadd.f32 0.0, %v3122
        %v3124 = vpop.f32.mrb[0].mxu0
        %3125 = vmatprep.mubr.f32.mxu0 0.0
        %3126 = vmatmul.mubr.f32.gmra.mrb[0].mxu0 %v2939
        %v3127 = vpop.f32.mrb[0].mxu0
        %v3128 = vadd.f32 0.0, %v3127
        %v3129 = vpop.f32.mrb[0].mxu0
        %3130 = vmatprep.mubr.f32.mxu0 0.0
        %3131 = vmatmul.mubr.f32.gmra.mrb[0].mxu0 %v2942
        %v3132 = vpop.f32.mrb[0].mxu0
        %v3133 = vadd.f32 0.0, %v3132
        %v3134 = vpop.f32.mrb[0].mxu0
        %3135 = vmatprep.mubr.f32.mxu0 0.0
        %3136 = vmatmul.mubr.f32.gmra.mrb[0].mxu0 %v2945
        %v3137 = vpop.f32.mrb[0].mxu0
        %v3138 = vadd.f32 0.0, %v3137
        %v3139 = vpop.f32.mrb[0].mxu0
        %3140 = vmatprep.mubr.f32.mxu0 0.0
        %3141 = vmatmul.mubr.f32.gmra.mrb[0].mxu0 %v2948
        %v3142 = vpop.f32.mrb[0].mxu0
        %v3143 = vadd.f32 0.0, %v3142
        %v3144 = vpop.f32.mrb[0].mxu0
        %3145 = vmatprep.mubr.f32.mxu0 0.0
        %3146 = vmatmul.mubr.f32.gmra.mrb[0].mxu0 %v2951
        %v3147 = vpop.f32.mrb[0].mxu0
        %v3148 = vadd.f32 0.0, %v3147
        %v3149 = vpop.f32.mrb[0].mxu0
        %3150 = vmatprep.mubr.f32.mxu0 0.0
        %3151 = vmatmul.mubr.f32.gmra.mrb[0].mxu0 %v2954
        %v3152 = vpop.f32.mrb[0].mxu0
        %v3153 = vadd.f32 0.0, %v3152
        %v3154 = vpop.f32.mrb[0].mxu0
        %3155 = vmatprep.mubr.f32.mxu0 0.0
        %3156 = vmatmul.mubr.f32.gmra.mrb[0].mxu0 %v2957
        %v3157 = vpop.f32.mrb[0].mxu0
        %v3158 = vadd.f32 0.0, %v3157
        %v3159 = vpop.f32.mrb[0].mxu0
        %3160 = vmatprep.mubr.f32.mxu0 0.0
        %3161 = vmatmul.mubr.f32.gmra.mrb[0].mxu0 %v2960
        %v3162 = vpop.f32.mrb[0].mxu0
        %v3163 = vadd.f32 0.0, %v3162
        %v3164 = vpop.f32.mrb[0].mxu0
        %3165 = vmatprep.mubr.f32.mxu0 0.0
        %3166 = vmatmul.mubr.f32.gmra.mrb[0].mxu0 %v2963
        %v3167 = vpop.f32.mrb[0].mxu0
        %v3168 = vadd.f32 0.0, %v3167
        %v3169 = vpop.f32.mrb[0].mxu0
        %3170 = vmatprep.mubr.f32.mxu0 0.0
        %3171 = vmatmul.mubr.f32.gmra.mrb[0].mxu0 %v2966
        %v3172 = vpop.f32.mrb[0].mxu0
        %v3173 = vadd.f32 0.0, %v3172
        %v3174 = vpop.f32.mrb[0].mxu0
        %3175 = vmatprep.mubr.f32.mxu0 0.0
        %3176 = vmatmul.mubr.f32.gmra.mrb[0].mxu0 %v2969
        %v3177 = vpop.f32.mrb[0].mxu0
        %v3178 = vadd.f32 0.0, %v3177
        %v3179 = vpop.f32.mrb[0].mxu0
        %3180 = vmatprep.mubr.f32.mxu0 0.0
        %3181 = vmatmul.mubr.f32.gmra.mrb[0].mxu0 %v2972
        %v3182 = vpop.f32.mrb[0].mxu0
        %v3183 = vadd.f32 0.0, %v3182
        %v3184 = vpop.f32.mrb[0].mxu0
        %3185 = vmatprep.mubr.f32.mxu0 0.0
        %3186 = vmatmul.mubr.f32.gmra.mrb[0].mxu0 %v2975
        %v3187 = vpop.f32.mrb[0].mxu0
        %v3188 = vadd.f32 0.0, %v3187
        %v3189 = vpop.f32.mrb[0].mxu0
        %3190 = vmatprep.mubr.f32.mxu0 0.0
        %3191 = vmatmul.mubr.f32.gmra.mrb[0].mxu0 %v2978
        %v3192 = vpop.f32.mrb[0].mxu0
        %v3193 = vadd.f32 0.0, %v3192
        %v3194 = vpop.f32.mrb[0].mxu0
        %3195 = vmatprep.mubr.f32.mxu0 0.0
        %3196 = vmatmul.mubr.f32.gmra.mrb[0].mxu0 %v2981
        %v3197 = vpop.f32.mrb[0].mxu0
        %v3198 = vadd.f32 0.0, %v3197
        %v3199 = vpop.f32.mrb[0].mxu0
        %3200 = vmatprep.mubr.f32.mxu0 0.0
        %3201 = vmatmul.mubr.f32.gmra.mrb[0].mxu0 %v2984
        %v3202 = vpop.f32.mrb[0].mxu0
        %v3203 = vadd.f32 0.0, %v3202
        %v3204 = vpop.f32.mrb[0].mxu0
        %3205 = vmatprep.mubr.f32.mxu0 0.0
        %3206 = vmatmul.mubr.f32.gmra.mrb[0].mxu0 %v2987
        %v3207 = vpop.f32.mrb[0].mxu0
        %v3208 = vadd.f32 0.0, %v3207
        %v3209 = vpop.f32.mrb[0].mxu0
        %3210 = vmatprep.mubr.f32.mxu0 0.0
        %3211 = vmatmul.mubr.f32.gmra.mrb[0].mxu0 %v2990
        %v3212 = vpop.f32.mrb[0].mxu0
        %v3213 = vadd.f32 0.0, %v3212
        %v3214 = vpop.f32.mrb[0].mxu0
        %3215 = vmatprep.mubr.f32.mxu0 0.0
        %3216 = vmatmul.mubr.f32.gmra.mrb[0].mxu0 %v2993
        %v3217 = vpop.f32.mrb[0].mxu0
        %v3218 = vadd.f32 0.0, %v3217
        %v3219 = vpop.f32.mrb[0].mxu0
        %3220 = vmatprep.mubr.f32.mxu0 0.0
        %3221 = vmatmul.mubr.f32.gmra.mrb[0].mxu0 %v2996
        %v3222 = vpop.f32.mrb[0].mxu0
        %v3223 = vadd.f32 0.0, %v3222
        %v3224 = vpop.f32.mrb[0].mxu0
        %3225 = vdwg.mxu0
        %v3226 = vadd.f32 %v2836, %v3068
        %v3227 = vadd.f32 %v2837, %v3073
        %v3228 = vadd.f32 %v2838, %v3078
        %v3229 = vadd.f32 %v2839, %v3083
        %v3230 = vadd.f32 %v2840, %v3088
        %v3231 = vadd.f32 %v2841, %v3093
        %v3232 = vadd.f32 %v2842, %v3098
        %v3233 = vadd.f32 %v2843, %v3103
        %v3234 = vadd.f32 %v2844, %v3108
        %v3235 = vadd.f32 %v2845, %v3113
        %v3236 = vadd.f32 %v2846, %v3118
        %v3237 = vadd.f32 %v2847, %v3123
        %v3238 = vadd.f32 %v2848, %v3128
        %v3239 = vadd.f32 %v2849, %v3133
        %v3240 = vadd.f32 %v2850, %v3138
        %v3241 = vadd.f32 %v2851, %v3143
        %v3242 = vadd.f32 %v2852, %v3148
        %v3243 = vadd.f32 %v2853, %v3153
        %v3244 = vadd.f32 %v2854, %v3158
        %v3245 = vadd.f32 %v2855, %v3163
        %v3246 = vadd.f32 %v2856, %v3168
        %v3247 = vadd.f32 %v2857, %v3173
        %v3248 = vadd.f32 %v2858, %v3178
        %v3249 = vadd.f32 %v2859, %v3183
        %v3250 = vadd.f32 %v2860, %v3188
        %v3251 = vadd.f32 %v2861, %v3193
        %v3252 = vadd.f32 %v2862, %v3198
        %v3253 = vadd.f32 %v2863, %v3203
        %v3254 = vadd.f32 %v2864, %v3208
        %v3255 = vadd.f32 %v2865, %v3213
        %v3256 = vadd.f32 %v2866, %v3218
        %v3257 = vadd.f32 %v2867, %v3223
        %v3258 = vld [vmem:[%s2477 + $0x2] sm:$0xff]
        %v3259 = vld [vmem:[%s2477 + $0xa] sm:$0xff]
        %v3260 = vld [vmem:[%s2477 + $0x1a] sm:$0xff]
        %v3261 = vld [vmem:[%s2477 + $0x22] sm:$0xff]
        %v3262 = vld [vmem:[%s2477 + $0x32] sm:$0xff]
        %v3263 = vld [vmem:[%s2477 + $0x3a] sm:$0xff]
        %v3264 = vld [vmem:[%s2477 + $0x4a] sm:$0xff]
        %v3265 = vld [vmem:[%s2477 + $0x52] sm:$0xff]
        %v3266 = vld [vmem:[%s2477 + $0x62] sm:$0xff]
        %v3267 = vld [vmem:[%s2477 + $0x6a] sm:$0xff]
        %v3268 = vld [vmem:[%s2477 + $0x7a] sm:$0xff]
        %v3269 = vld [vmem:[%s2477 + $0x82] sm:$0xff]
        %v3270 = vld [vmem:[%s2477 + $0x92] sm:$0xff]
        %v3271 = vld [vmem:[%s2477 + $0x9a] sm:$0xff]
        %v3272 = vld [vmem:[%s2477 + $0xaa] sm:$0xff]
        %v3273 = vld [vmem:[%s2477 + $0xb2] sm:$0xff]
        %v3274 = vld [vmem:[%s2477 + $0xc2] sm:$0xff]
        %v3275 = vld [vmem:[%s2477 + $0xca] sm:$0xff]
        %v3276 = vld [vmem:[%s2477 + $0xda] sm:$0xff]
        %v3277 = vld [vmem:[%s2477 + $0xe2] sm:$0xff]
        %v3278 = vld [vmem:[%s2477 + $0xf2] sm:$0xff]
        %v3279 = vld [vmem:[%s2477 + $0xfa] sm:$0xff]
        %v3280 = vld [vmem:[%s2477 + $0x10a] sm:$0xff]
        %v3281 = vld [vmem:[%s2477 + $0x112] sm:$0xff]
        %v3282 = vld [vmem:[%s2477 + $0x122] sm:$0xff]
        %v3283 = vld [vmem:[%s2477 + $0x12a] sm:$0xff]
        %v3284 = vld [vmem:[%s2477 + $0x13a] sm:$0xff]
        %v3285 = vld [vmem:[%s2477 + $0x142] sm:$0xff]
        %v3286 = vld [vmem:[%s2477 + $0x152] sm:$0xff]
        %v3287 = vld [vmem:[%s2477 + $0x15a] sm:$0xff]
        %v3288 = vld [vmem:[%s2477 + $0x16a] sm:$0xff]
        %v3289 = vld [vmem:[%s2477 + $0x172] sm:$0xff]
        %s3290 = scalar_lea.vmem [#allocation2], 32
        %v3291 = vld [vmem:[%s3290] sm:$0xf]
        %v3293 = vsel %vm266, %v3258, 0
        %v3296 = vsel %vm266, %v3259, 0
        %v3299 = vsel %vm266, %v3260, 0
        %v3302 = vsel %vm266, %v3261, 0
        %v3305 = vsel %vm266, %v3262, 0
        %v3308 = vsel %vm266, %v3263, 0
        %v3311 = vsel %vm266, %v3264, 0
        %v3314 = vsel %vm266, %v3265, 0
        %v3317 = vsel %vm266, %v3266, 0
        %v3320 = vsel %vm266, %v3267, 0
        %v3323 = vsel %vm266, %v3268, 0
        %v3326 = vsel %vm266, %v3269, 0
        %v3329 = vsel %vm266, %v3270, 0
        %v3332 = vsel %vm266, %v3271, 0
        %v3335 = vsel %vm266, %v3272, 0
        %v3338 = vsel %vm266, %v3273, 0
        %v3341 = vsel %vm266, %v3274, 0
        %v3344 = vsel %vm266, %v3275, 0
        %v3347 = vsel %vm266, %v3276, 0
        %v3350 = vsel %vm266, %v3277, 0
        %v3353 = vsel %vm266, %v3278, 0
        %v3356 = vsel %vm266, %v3279, 0
        %v3359 = vsel %vm266, %v3280, 0
        %v3362 = vsel %vm266, %v3281, 0
        %v3365 = vsel %vm266, %v3282, 0
        %v3368 = vsel %vm266, %v3283, 0
        %v3371 = vsel %vm266, %v3284, 0
        %v3374 = vsel %vm266, %v3285, 0
        %v3377 = vsel %vm266, %v3286, 0
        %v3380 = vsel %vm266, %v3287, 0
        %v3383 = vsel %vm266, %v3288, 0
        %v3386 = vsel %vm266, %v3289, 0
        %v3389 = vsel %vm363, %v3291, 0
        %3391 = vmatprep.subr.mxu0 0.0
        %3392 = vmatpush1.msra.mxu0 %v3389
        %3393 = vmatprep.subr.mxu0 0.0
        %3394 = vmatpush1.msra.mxu0 0.0
        %3395 = vmatprep.subr.mxu0 0.0
        %3396 = vmatpush1.msra.mxu0 0.0
        %3397 = vmatprep.subr.mxu0 0.0
        %3398 = vmatpush1.msra.mxu0 0.0
        %3399 = vmatprep.subr.mxu0 0.0
        %3400 = vmatpush1.msra.mxu0 0.0
        %3401 = vmatprep.subr.mxu0 0.0
        %3402 = vmatpush1.msra.mxu0 0.0
        %3403 = vmatprep.subr.mxu0 0.0
        %3404 = vmatpush1.msra.mxu0 0.0
        %3405 = vmatprep.subr.mxu0 0.0
        %3406 = vmatpush1.msra.mxu0 0.0
        %3407 = vmatprep.subr.mxu0 0.0
        %3408 = vmatpush1.msra.mxu0 0.0
        %3409 = vmatprep.subr.mxu0 0.0
        %3410 = vmatpush1.msra.mxu0 0.0
        %3411 = vmatprep.subr.mxu0 0.0
        %3412 = vmatpush1.msra.mxu0 0.0
        %3413 = vmatprep.subr.mxu0 0.0
        %3414 = vmatpush1.msra.mxu0 0.0
        %3415 = vmatprep.subr.mxu0 0.0
        %3416 = vmatpush1.msra.mxu0 0.0
        %3417 = vmatprep.subr.mxu0 0.0
        %3418 = vmatpush1.msra.mxu0 0.0
        %3419 = vmatprep.subr.mxu0 0.0
        %3420 = vmatpush1.msra.mxu0 0.0
        %3421 = vmatprep.subr.mxu0 0.0
        %3422 = vmatpush1.msra.mxu0 0.0
        %3423 = vmatprep.subr.mxu0 0.0
        %3424 = vmatpush1.msra.mxu0 0.0
        %3425 = vmatprep.subr.mxu0 0.0
        %3426 = vmatpush1.msra.mxu0 0.0
        %3427 = vmatprep.subr.mxu0 0.0
        %3428 = vmatpush1.msra.mxu0 0.0
        %3429 = vmatprep.subr.mxu0 0.0
        %3430 = vmatpush1.msra.mxu0 0.0
        %3431 = vmatprep.subr.mxu0 0.0
        %3432 = vmatpush1.msra.mxu0 0.0
        %3433 = vmatprep.subr.mxu0 0.0
        %3434 = vmatpush1.msra.mxu0 0.0
        %3435 = vmatprep.subr.mxu0 0.0
        %3436 = vmatpush1.msra.mxu0 0.0
        %3437 = vmatprep.subr.mxu0 0.0
        %3438 = vmatpush1.msra.mxu0 0.0
        %3439 = vmatprep.subr.mxu0 0.0
        %3440 = vmatpush1.msra.mxu0 0.0
        %3441 = vmatprep.subr.mxu0 0.0
        %3442 = vmatpush1.msra.mxu0 0.0
        %3443 = vmatprep.subr.mxu0 0.0
        %3444 = vmatpush1.msra.mxu0 0.0
        %3445 = vmatprep.subr.mxu0 0.0
        %3446 = vmatpush1.msra.mxu0 0.0
        %3447 = vmatprep.subr.mxu0 0.0
        %3448 = vmatpush1.msra.mxu0 0.0
        %3449 = vmatprep.subr.mxu0 0.0
        %3450 = vmatpush1.msra.mxu0 0.0
        %3451 = vmatprep.subr.mxu0 0.0
        %3452 = vmatpush1.msra.mxu0 0.0
        %3453 = vmatprep.subr.mxu0 0.0
        %3454 = vmatpush1.msra.mxu0 0.0
        %3455 = vmatprep.mubr.f32.mxu0 0.0
        %3456 = vmatmul.mubr.f32.gmra.mrb[0].mxu0 %v3293
        %v3457 = vpop.f32.mrb[0].mxu0
        %v3458 = vadd.f32 0.0, %v3457
        %v3459 = vpop.f32.mrb[0].mxu0
        %3460 = vmatprep.mubr.f32.mxu0 0.0
        %3461 = vmatmul.mubr.f32.gmra.mrb[0].mxu0 %v3296
        %v3462 = vpop.f32.mrb[0].mxu0
        %v3463 = vadd.f32 0.0, %v3462
        %v3464 = vpop.f32.mrb[0].mxu0
        %3465 = vmatprep.mubr.f32.mxu0 0.0
        %3466 = vmatmul.mubr.f32.gmra.mrb[0].mxu0 %v3299
        %v3467 = vpop.f32.mrb[0].mxu0
        %v3468 = vadd.f32 0.0, %v3467
        %v3469 = vpop.f32.mrb[0].mxu0
        %3470 = vmatprep.mubr.f32.mxu0 0.0
        %3471 = vmatmul.mubr.f32.gmra.mrb[0].mxu0 %v3302
        %v3472 = vpop.f32.mrb[0].mxu0
        %v3473 = vadd.f32 0.0, %v3472
        %v3474 = vpop.f32.mrb[0].mxu0
        %3475 = vmatprep.mubr.f32.mxu0 0.0
        %3476 = vmatmul.mubr.f32.gmra.mrb[0].mxu0 %v3305
        %v3477 = vpop.f32.mrb[0].mxu0
        %v3478 = vadd.f32 0.0, %v3477
        %v3479 = vpop.f32.mrb[0].mxu0
        %3480 = vmatprep.mubr.f32.mxu0 0.0
        %3481 = vmatmul.mubr.f32.gmra.mrb[0].mxu0 %v3308
        %v3482 = vpop.f32.mrb[0].mxu0
        %v3483 = vadd.f32 0.0, %v3482
        %v3484 = vpop.f32.mrb[0].mxu0
        %3485 = vmatprep.mubr.f32.mxu0 0.0
        %3486 = vmatmul.mubr.f32.gmra.mrb[0].mxu0 %v3311
        %v3487 = vpop.f32.mrb[0].mxu0
        %v3488 = vadd.f32 0.0, %v3487
        %v3489 = vpop.f32.mrb[0].mxu0
        %3490 = vmatprep.mubr.f32.mxu0 0.0
        %3491 = vmatmul.mubr.f32.gmra.mrb[0].mxu0 %v3314
        %v3492 = vpop.f32.mrb[0].mxu0
        %v3493 = vadd.f32 0.0, %v3492
        %v3494 = vpop.f32.mrb[0].mxu0
        %3495 = vmatprep.mubr.f32.mxu0 0.0
        %3496 = vmatmul.mubr.f32.gmra.mrb[0].mxu0 %v3317
        %v3497 = vpop.f32.mrb[0].mxu0
        %v3498 = vadd.f32 0.0, %v3497
        %v3499 = vpop.f32.mrb[0].mxu0
        %3500 = vmatprep.mubr.f32.mxu0 0.0
        %3501 = vmatmul.mubr.f32.gmra.mrb[0].mxu0 %v3320
        %v3502 = vpop.f32.mrb[0].mxu0
        %v3503 = vadd.f32 0.0, %v3502
        %v3504 = vpop.f32.mrb[0].mxu0
        %3505 = vmatprep.mubr.f32.mxu0 0.0
        %3506 = vmatmul.mubr.f32.gmra.mrb[0].mxu0 %v3323
        %v3507 = vpop.f32.mrb[0].mxu0
        %v3508 = vadd.f32 0.0, %v3507
        %v3509 = vpop.f32.mrb[0].mxu0
        %3510 = vmatprep.mubr.f32.mxu0 0.0
        %3511 = vmatmul.mubr.f32.gmra.mrb[0].mxu0 %v3326
        %v3512 = vpop.f32.mrb[0].mxu0
        %v3513 = vadd.f32 0.0, %v3512
        %v3514 = vpop.f32.mrb[0].mxu0
        %3515 = vmatprep.mubr.f32.mxu0 0.0
        %3516 = vmatmul.mubr.f32.gmra.mrb[0].mxu0 %v3329
        %v3517 = vpop.f32.mrb[0].mxu0
        %v3518 = vadd.f32 0.0, %v3517
        %v3519 = vpop.f32.mrb[0].mxu0
        %3520 = vmatprep.mubr.f32.mxu0 0.0
        %3521 = vmatmul.mubr.f32.gmra.mrb[0].mxu0 %v3332
        %v3522 = vpop.f32.mrb[0].mxu0
        %v3523 = vadd.f32 0.0, %v3522
        %v3524 = vpop.f32.mrb[0].mxu0
        %3525 = vmatprep.mubr.f32.mxu0 0.0
        %3526 = vmatmul.mubr.f32.gmra.mrb[0].mxu0 %v3335
        %v3527 = vpop.f32.mrb[0].mxu0
        %v3528 = vadd.f32 0.0, %v3527
        %v3529 = vpop.f32.mrb[0].mxu0
        %3530 = vmatprep.mubr.f32.mxu0 0.0
        %3531 = vmatmul.mubr.f32.gmra.mrb[0].mxu0 %v3338
        %v3532 = vpop.f32.mrb[0].mxu0
        %v3533 = vadd.f32 0.0, %v3532
        %v3534 = vpop.f32.mrb[0].mxu0
        %3535 = vmatprep.mubr.f32.mxu0 0.0
        %3536 = vmatmul.mubr.f32.gmra.mrb[0].mxu0 %v3341
        %v3537 = vpop.f32.mrb[0].mxu0
        %v3538 = vadd.f32 0.0, %v3537
        %v3539 = vpop.f32.mrb[0].mxu0
        %3540 = vmatprep.mubr.f32.mxu0 0.0
        %3541 = vmatmul.mubr.f32.gmra.mrb[0].mxu0 %v3344
        %v3542 = vpop.f32.mrb[0].mxu0
        %v3543 = vadd.f32 0.0, %v3542
        %v3544 = vpop.f32.mrb[0].mxu0
        %3545 = vmatprep.mubr.f32.mxu0 0.0
        %3546 = vmatmul.mubr.f32.gmra.mrb[0].mxu0 %v3347
        %v3547 = vpop.f32.mrb[0].mxu0
        %v3548 = vadd.f32 0.0, %v3547
        %v3549 = vpop.f32.mrb[0].mxu0
        %3550 = vmatprep.mubr.f32.mxu0 0.0
        %3551 = vmatmul.mubr.f32.gmra.mrb[0].mxu0 %v3350
        %v3552 = vpop.f32.mrb[0].mxu0
        %v3553 = vadd.f32 0.0, %v3552
        %v3554 = vpop.f32.mrb[0].mxu0
        %3555 = vmatprep.mubr.f32.mxu0 0.0
        %3556 = vmatmul.mubr.f32.gmra.mrb[0].mxu0 %v3353
        %v3557 = vpop.f32.mrb[0].mxu0
        %v3558 = vadd.f32 0.0, %v3557
        %v3559 = vpop.f32.mrb[0].mxu0
        %3560 = vmatprep.mubr.f32.mxu0 0.0
        %3561 = vmatmul.mubr.f32.gmra.mrb[0].mxu0 %v3356
        %v3562 = vpop.f32.mrb[0].mxu0
        %v3563 = vadd.f32 0.0, %v3562
        %v3564 = vpop.f32.mrb[0].mxu0
        %3565 = vmatprep.mubr.f32.mxu0 0.0
        %3566 = vmatmul.mubr.f32.gmra.mrb[0].mxu0 %v3359
        %v3567 = vpop.f32.mrb[0].mxu0
        %v3568 = vadd.f32 0.0, %v3567
        %v3569 = vpop.f32.mrb[0].mxu0
        %3570 = vmatprep.mubr.f32.mxu0 0.0
        %3571 = vmatmul.mubr.f32.gmra.mrb[0].mxu0 %v3362
        %v3572 = vpop.f32.mrb[0].mxu0
        %v3573 = vadd.f32 0.0, %v3572
        %v3574 = vpop.f32.mrb[0].mxu0
        %3575 = vmatprep.mubr.f32.mxu0 0.0
        %3576 = vmatmul.mubr.f32.gmra.mrb[0].mxu0 %v3365
        %v3577 = vpop.f32.mrb[0].mxu0
        %v3578 = vadd.f32 0.0, %v3577
        %v3579 = vpop.f32.mrb[0].mxu0
        %3580 = vmatprep.mubr.f32.mxu0 0.0
        %3581 = vmatmul.mubr.f32.gmra.mrb[0].mxu0 %v3368
        %v3582 = vpop.f32.mrb[0].mxu0
        %v3583 = vadd.f32 0.0, %v3582
        %v3584 = vpop.f32.mrb[0].mxu0
        %3585 = vmatprep.mubr.f32.mxu0 0.0
        %3586 = vmatmul.mubr.f32.gmra.mrb[0].mxu0 %v3371
        %v3587 = vpop.f32.mrb[0].mxu0
        %v3588 = vadd.f32 0.0, %v3587
        %v3589 = vpop.f32.mrb[0].mxu0
        %3590 = vmatprep.mubr.f32.mxu0 0.0
        %3591 = vmatmul.mubr.f32.gmra.mrb[0].mxu0 %v3374
        %v3592 = vpop.f32.mrb[0].mxu0
        %v3593 = vadd.f32 0.0, %v3592
        %v3594 = vpop.f32.mrb[0].mxu0
        %3595 = vmatprep.mubr.f32.mxu0 0.0
        %3596 = vmatmul.mubr.f32.gmra.mrb[0].mxu0 %v3377
        %v3597 = vpop.f32.mrb[0].mxu0
        %v3598 = vadd.f32 0.0, %v3597
        %v3599 = vpop.f32.mrb[0].mxu0
        %3600 = vmatprep.mubr.f32.mxu0 0.0
        %3601 = vmatmul.mubr.f32.gmra.mrb[0].mxu0 %v3380
        %v3602 = vpop.f32.mrb[0].mxu0
        %v3603 = vadd.f32 0.0, %v3602
        %v3604 = vpop.f32.mrb[0].mxu0
        %3605 = vmatprep.mubr.f32.mxu0 0.0
        %3606 = vmatmul.mubr.f32.gmra.mrb[0].mxu0 %v3383
        %v3607 = vpop.f32.mrb[0].mxu0
        %v3608 = vadd.f32 0.0, %v3607
        %v3609 = vpop.f32.mrb[0].mxu0
        %3610 = vmatprep.mubr.f32.mxu0 0.0
        %3611 = vmatmul.mubr.f32.gmra.mrb[0].mxu0 %v3386
        %v3612 = vpop.f32.mrb[0].mxu0
        %v3613 = vadd.f32 0.0, %v3612
        %v3614 = vpop.f32.mrb[0].mxu0
        %3615 = vdwg.mxu0
        %v3616 = vadd.f32 %v3226, %v3458
        %v3617 = vadd.f32 %v3227, %v3463
        %v3618 = vadd.f32 %v3228, %v3468
        %v3619 = vadd.f32 %v3229, %v3473
        %v3620 = vadd.f32 %v3230, %v3478
        %v3621 = vadd.f32 %v3231, %v3483
        %v3622 = vadd.f32 %v3232, %v3488
        %v3623 = vadd.f32 %v3233, %v3493
        %v3624 = vadd.f32 %v3234, %v3498
        %v3625 = vadd.f32 %v3235, %v3503
        %v3626 = vadd.f32 %v3236, %v3508
        %v3627 = vadd.f32 %v3237, %v3513
        %v3628 = vadd.f32 %v3238, %v3518
        %v3629 = vadd.f32 %v3239, %v3523
        %v3630 = vadd.f32 %v3240, %v3528
        %v3631 = vadd.f32 %v3241, %v3533
        %v3632 = vadd.f32 %v3242, %v3538
        %v3633 = vadd.f32 %v3243, %v3543
        %v3634 = vadd.f32 %v3244, %v3548
        %v3635 = vadd.f32 %v3245, %v3553
        %v3636 = vadd.f32 %v3246, %v3558
        %v3637 = vadd.f32 %v3247, %v3563
        %v3638 = vadd.f32 %v3248, %v3568
        %v3639 = vadd.f32 %v3249, %v3573
        %v3640 = vadd.f32 %v3250, %v3578
        %v3641 = vadd.f32 %v3251, %v3583
        %v3642 = vadd.f32 %v3252, %v3588
        %v3643 = vadd.f32 %v3253, %v3593
        %v3644 = vadd.f32 %v3254, %v3598
        %v3645 = vadd.f32 %v3255, %v3603
        %v3646 = vadd.f32 %v3256, %v3608
        %v3647 = vadd.f32 %v3257, %v3613
        %v3648 = vld [vmem:[#allocation4] sm:$0x1]
        %v3650 = vlaneseq
        %v3651 = vshrl.u32 %v3650, 7
        %v3652 = vsub.s32 0, %v3651
        %v3653 = vrot.slane %v3648, %v3652
        %v3655 = vadd.f32 %v3616, %v3653
        %v3656 = vadd.f32 %v3617, %v3653
        %v3657 = vadd.f32 %v3618, %v3653
        %v3658 = vadd.f32 %v3619, %v3653
        %v3659 = vadd.f32 %v3620, %v3653
        %v3660 = vadd.f32 %v3621, %v3653
        %v3661 = vadd.f32 %v3622, %v3653
        %v3662 = vadd.f32 %v3623, %v3653
        %v3663 = vadd.f32 %v3624, %v3653
        %v3664 = vadd.f32 %v3625, %v3653
        %v3665 = vadd.f32 %v3626, %v3653
        %v3666 = vadd.f32 %v3627, %v3653
        %v3667 = vadd.f32 %v3628, %v3653
        %v3668 = vadd.f32 %v3629, %v3653
        %v3669 = vadd.f32 %v3630, %v3653
        %v3670 = vadd.f32 %v3631, %v3653
        %v3671 = vadd.f32 %v3632, %v3653
        %v3672 = vadd.f32 %v3633, %v3653
        %v3673 = vadd.f32 %v3634, %v3653
        %v3674 = vadd.f32 %v3635, %v3653
        %v3675 = vadd.f32 %v3636, %v3653
        %v3676 = vadd.f32 %v3637, %v3653
        %v3677 = vadd.f32 %v3638, %v3653
        %v3678 = vadd.f32 %v3639, %v3653
        %v3679 = vadd.f32 %v3640, %v3653
        %v3680 = vadd.f32 %v3641, %v3653
        %v3681 = vadd.f32 %v3642, %v3653
        %v3682 = vadd.f32 %v3643, %v3653
        %v3683 = vadd.f32 %v3644, %v3653
        %v3684 = vadd.f32 %v3645, %v3653
        %v3685 = vadd.f32 %v3646, %v3653
        %v3686 = vadd.f32 %v3647, %v3653
        %v3687 = vmax.f32 %v3655, 0.0
        %v3688 = vmax.f32 %v3656, 0.0
        %v3689 = vmax.f32 %v3657, 0.0
        %v3690 = vmax.f32 %v3658, 0.0
        %v3691 = vmax.f32 %v3659, 0.0
        %v3692 = vmax.f32 %v3660, 0.0
        %v3693 = vmax.f32 %v3661, 0.0
        %v3694 = vmax.f32 %v3662, 0.0
        %v3695 = vmax.f32 %v3663, 0.0
        %v3696 = vmax.f32 %v3664, 0.0
        %v3697 = vmax.f32 %v3665, 0.0
        %v3698 = vmax.f32 %v3666, 0.0
        %v3699 = vmax.f32 %v3667, 0.0
        %v3700 = vmax.f32 %v3668, 0.0
        %v3701 = vmax.f32 %v3669, 0.0
        %v3702 = vmax.f32 %v3670, 0.0
        %v3703 = vmax.f32 %v3671, 0.0
        %v3704 = vmax.f32 %v3672, 0.0
        %v3705 = vmax.f32 %v3673, 0.0
        %v3706 = vmax.f32 %v3674, 0.0
        %v3707 = vmax.f32 %v3675, 0.0
        %v3708 = vmax.f32 %v3676, 0.0
        %v3709 = vmax.f32 %v3677, 0.0
        %v3710 = vmax.f32 %v3678, 0.0
        %v3711 = vmax.f32 %v3679, 0.0
        %v3712 = vmax.f32 %v3680, 0.0
        %v3713 = vmax.f32 %v3681, 0.0
        %v3714 = vmax.f32 %v3682, 0.0
        %v3715 = vmax.f32 %v3683, 0.0
        %v3716 = vmax.f32 %v3684, 0.0
        %v3717 = vmax.f32 %v3685, 0.0
        %v3718 = vmax.f32 %v3686, 0.0
        %3719 = vst [vmem:[%s198] sm:$0xff] %v3687
        %3720 = vst [vmem:[%s198 + $0x8] sm:$0xff] %v3688
        %3721 = vst [vmem:[%s198 + $0x10] sm:$0xff] %v3689
        %3722 = vst [vmem:[%s198 + $0x18] sm:$0xff] %v3690
        %3723 = vst [vmem:[%s198 + $0x20] sm:$0xff] %v3691
        %3724 = vst [vmem:[%s198 + $0x28] sm:$0xff] %v3692
        %3725 = vst [vmem:[%s198 + $0x30] sm:$0xff] %v3693
        %3726 = vst [vmem:[%s198 + $0x38] sm:$0xff] %v3694
        %3727 = vst [vmem:[%s198 + $0x40] sm:$0xff] %v3695
        %3728 = vst [vmem:[%s198 + $0x48] sm:$0xff] %v3696
        %3729 = vst [vmem:[%s198 + $0x50] sm:$0xff] %v3697
        %3730 = vst [vmem:[%s198 + $0x58] sm:$0xff] %v3698
        %3731 = vst [vmem:[%s198 + $0x60] sm:$0xff] %v3699
        %3732 = vst [vmem:[%s198 + $0x68] sm:$0xff] %v3700
        %3733 = vst [vmem:[%s198 + $0x70] sm:$0xff] %v3701
        %3734 = vst [vmem:[%s198 + $0x78] sm:$0xff] %v3702
        %3735 = vst [vmem:[%s198 + $0x80] sm:$0xff] %v3703
        %3736 = vst [vmem:[%s198 + $0x88] sm:$0xff] %v3704
        %3737 = vst [vmem:[%s198 + $0x90] sm:$0xff] %v3705
        %3738 = vst [vmem:[%s198 + $0x98] sm:$0xff] %v3706
        %3739 = vst [vmem:[%s198 + $0xa0] sm:$0xff] %v3707
        %3740 = vst [vmem:[%s198 + $0xa8] sm:$0xff] %v3708
        %3741 = vst [vmem:[%s198 + $0xb0] sm:$0xff] %v3709
        %3742 = vst [vmem:[%s198 + $0xb8] sm:$0xff] %v3710
        %3743 = vst [vmem:[%s198 + $0xc0] sm:$0xff] %v3711
        %3744 = vst [vmem:[%s198 + $0xc8] sm:$0xff] %v3712
        %3745 = vst [vmem:[%s198 + $0xd0] sm:$0xff] %v3713
        %3746 = vst [vmem:[%s198 + $0xd8] sm:$0xff] %v3714
        %3747 = vst [vmem:[%s198 + $0xe0] sm:$0xff] %v3715
        %3748 = vst [vmem:[%s198 + $0xe8] sm:$0xff] %v3716
        %3749 = vst [vmem:[%s198 + $0xf0] sm:$0xff] %v3717
        %3750 = vst [vmem:[%s198 + $0xf8] sm:$0xff] %v3718
        %p3751 = scmp.lt.s32.totalorder %s16, 1
        %s3752 = scalar_select %p3751, %s16, 1
        %s3753 = smul.addr %s3752, 32
        %s3754 = smul.addr %s3753, 8
        %s3755 = scalar_lea.vmem %s3, %s3754
        // Predicated region
        $region41: #{forward.3} parent=31 // pred_check
          %p3756 = pneg %p102
        $region42: #{forward.3} parent=31 // pred_check_branch
          %3758 = sbr.rel (%p3756) target = $region44
        $region43: #{forward.3} parent=31 // pred_region
          _
        $region44: #{forward.3} parent=31 // pred_fallthru
          _
      $region32: #{forward.3} parent=5 // pred_fallthru
        _
      %p3759 = scmp.le.s32.totalorder 2, %s11
      // Predicated region
      $region45: #{forward.3} parent=5 // pred_check
        %p3760 = pneg %p3759
      $region46: #{forward.3} parent=5 // pred_check_branch
        %3762 = sbr.rel (%p3760) target = $region48
      $region47: #{forward.3} parent=5 // pred_region
        %s3763 = ssub.s32 %s11, 2
        // Predicated region
        $region49: #{forward.3} parent=47 // pred_check
          %p3764 = pneg %p108
        $region50: #{forward.3} parent=47 // pred_check_branch
          %3766 = sbr.rel (%p3764) target = $region52
        $region51: #{forward.3} parent=47 // pred_region
          %p3767 = scmp.lt.s32.totalorder %s17, 1
          %s3768 = scalar_select %p3767, %s17, 1
          %s3769 = smul.addr %s3768, 32
          %s3770 = smul.addr %s3769, 8
          %s3771 = scalar_lea.vmem %s3, %s3770
        $region52: #{forward.3} parent=47 // pred_fallthru
          _
      $region48: #{forward.3} parent=5 // pred_fallthru
        _
    $region6: #{forward.3} parent=1 // loop_footer
      %s15 = sadd.s32 1, %s11
    $region7: #{forward.3} parent=1 // loop_footer_branch
      %10 = sbr.rel target = $region3
    $region8: #{forward.3} parent=1 // loop_exit
      _
    %3772 = vsyncpa [#allocation3], 1
    %s3773 = scalar_lea.sflag [#allocation3], 1
    %3774 = vsyncpa %s3773, 1
    %3775 = vsyncpa [#allocation5], 1

// kernel: forward.5
$region0: #{forward.5}
  #allocation0 [shape = 'u32[]', space=smem, size = 0x4, offset = 0x4, fixed_abs, tag = 'smem constant byte address 0x4 - core index']
  #allocation1 [shape = 'u32[144,128]{1,0:T(1,128)}', space=vmem, size = 0x12000, scoped, tag = 'internal scratch']
  %s0 = inlined_call_operand.vmem [shape: f32[2,8192], index: 0, kind: input, shape index: {}]
  %s1 = inlined_call_operand.vmem [shape: f32[8192,128], index: 1, kind: input, shape index: {}]
  %s2 = inlined_call_operand.vmem [shape: f32[1,128], index: 2, kind: input, shape index: {}]
  %s3 = inlined_call_operand.vmem [shape: f32[128,128], index: 3, kind: input, shape index: {}]
  %s4 = inlined_call_operand.vmem [shape: f32[1,128], index: 4, kind: input, shape index: {}]
  %s5 = inlined_call_operand.hbm [shape: f32[2,128], index: 5, kind: output, shape index: {}]
  %s6 = sld [smem:[#allocation0]]
  $region30: #{forward.5} parent=0
    _
  %s8 = ssub.s32 1, %s6
  %s9 = scalar_select 0, %s8, %s6
  $region1: #{forward.5} parent=0
    #allocation2 [shape = 'u8[1024]{0}', space=vmem, size = 0x400, scoped, tag = 'output window, operand 0, single buffered']
    #allocation3 [shape = 's32[1]{0}', space=sflag, size = 0x4, scoped, tag = 'scoped memory for forward.5']
    %10 = vsyncpa [#allocation3], 0
    // Predicated region
    $region2: #{forward.5} parent=1 // pred_check
      _
    $region3: #{forward.5} parent=1 // pred_check_branch
      %12 = sbr.rel (0) target = $region5
    $region4: #{forward.5} parent=1 // pred_region
      _
    $region5: #{forward.5} parent=1 // pred_fallthru
      _
    // Predicated region
    $region6: #{forward.5} parent=1 // pred_check
      _
    $region7: #{forward.5} parent=1 // pred_check_branch
      %14 = sbr.rel (0) target = $region9
    $region8: #{forward.5} parent=1 // pred_region
      _
    $region9: #{forward.5} parent=1 // pred_fallthru
      _
    // Predicated region
    $region10: #{forward.5} parent=1 // pred_check
      _
    $region11: #{forward.5} parent=1 // pred_check_branch
      %16 = sbr.rel (0) target = $region13
    $region12: #{forward.5} parent=1 // pred_region
      _
    $region13: #{forward.5} parent=1 // pred_fallthru
      _
    // Predicated region
    $region14: #{forward.5} parent=1 // pred_check
      _
    $region15: #{forward.5} parent=1 // pred_check_branch
      %18 = sbr.rel (0) target = $region17
    $region16: #{forward.5} parent=1 // pred_region
      _
    $region17: #{forward.5} parent=1 // pred_fallthru
      _
    // Predicated region
    $region18: #{forward.5} parent=1 // pred_check
      _
    $region19: #{forward.5} parent=1 // pred_check_branch
      %20 = sbr.rel (0) target = $region21
    $region20: #{forward.5} parent=1 // pred_region
      _
    $region21: #{forward.5} parent=1 // pred_fallthru
      _
    %v21 = vld [vmem:[%s0] sm:$0xff]
    %v22 = vld [vmem:[%s0 + $0x8] sm:$0xff]
    %v23 = vld [vmem:[%s0 + $0x10] sm:$0xff]
    %v24 = vld [vmem:[%s0 + $0x18] sm:$0xff]
    %v25 = vld [vmem:[%s0 + $0x20] sm:$0xff]
    %v26 = vld [vmem:[%s0 + $0x28] sm:$0xff]
    %v27 = vld [vmem:[%s0 + $0x30] sm:$0xff]
    %v28 = vld [vmem:[%s0 + $0x38] sm:$0xff]
    %v29 = vld [vmem:[%s0 + $0x40] sm:$0xff]
    %v30 = vld [vmem:[%s0 + $0x48] sm:$0xff]
    %v31 = vld [vmem:[%s0 + $0x50] sm:$0xff]
    %v32 = vld [vmem:[%s0 + $0x58] sm:$0xff]
    %v33 = vld [vmem:[%s0 + $0x60] sm:$0xff]
    %v34 = vld [vmem:[%s0 + $0x68] sm:$0xff]
    %v35 = vld [vmem:[%s0 + $0x70] sm:$0xff]
    %v36 = vld [vmem:[%s0 + $0x78] sm:$0xff]
    %v37 = vld [vmem:[%s1] sm:$0xff]
    %v38 = vld [vmem:[%s1 + $0x8] sm:$0xff]
    %v39 = vld [vmem:[%s1 + $0x10] sm:$0xff]
    %v40 = vld [vmem:[%s1 + $0x18] sm:$0xff]
    %v41 = vld [vmem:[%s1 + $0x20] sm:$0xff]
    %v42 = vld [vmem:[%s1 + $0x28] sm:$0xff]
    %v43 = vld [vmem:[%s1 + $0x30] sm:$0xff]
    %v44 = vld [vmem:[%s1 + $0x38] sm:$0xff]
    %v45 = vld [vmem:[%s1 + $0x40] sm:$0xff]
    %v46 = vld [vmem:[%s1 + $0x48] sm:$0xff]
    %v47 = vld [vmem:[%s1 + $0x50] sm:$0xff]
    %v48 = vld [vmem:[%s1 + $0x58] sm:$0xff]
    %v49 = vld [vmem:[%s1 + $0x60] sm:$0xff]
    %v50 = vld [vmem:[%s1 + $0x68] sm:$0xff]
    %v51 = vld [vmem:[%s1 + $0x70] sm:$0xff]
    %v52 = vld [vmem:[%s1 + $0x78] sm:$0xff]
    %v53 = vld [vmem:[%s1 + $0x80] sm:$0xff]
    %v54 = vld [vmem:[%s1 + $0x88] sm:$0xff]
    %v55 = vld [vmem:[%s1 + $0x90] sm:$0xff]
    %v56 = vld [vmem:[%s1 + $0x98] sm:$0xff]
    %v57 = vld [vmem:[%s1 + $0xa0] sm:$0xff]
    %v58 = vld [vmem:[%s1 + $0xa8] sm:$0xff]
    %v59 = vld [vmem:[%s1 + $0xb0] sm:$0xff]
    %v60 = vld [vmem:[%s1 + $0xb8] sm:$0xff]
    %v61 = vld [vmem:[%s1 + $0xc0] sm:$0xff]
    %v62 = vld [vmem:[%s1 + $0xc8] sm:$0xff]
    %v63 = vld [vmem:[%s1 + $0xd0] sm:$0xff]
    %v64 = vld [vmem:[%s1 + $0xd8] sm:$0xff]
    %v65 = vld [vmem:[%s1 + $0xe0] sm:$0xff]
    %v66 = vld [vmem:[%s1 + $0xe8] sm:$0xff]
    %v67 = vld [vmem:[%s1 + $0xf0] sm:$0xff]
    %v68 = vld [vmem:[%s1 + $0xf8] sm:$0xff]
    %v69 = vld [vmem:[%s1 + $0x100] sm:$0xff]
    %v70 = vld [vmem:[%s1 + $0x108] sm:$0xff]
    %v71 = vld [vmem:[%s1 + $0x110] sm:$0xff]
    %v72 = vld [vmem:[%s1 + $0x118] sm:$0xff]
    %v73 = vld [vmem:[%s1 + $0x120] sm:$0xff]
    %v74 = vld [vmem:[%s1 + $0x128] sm:$0xff]
    %v75 = vld [vmem:[%s1 + $0x130] sm:$0xff]
    %v76 = vld [vmem:[%s1 + $0x138] sm:$0xff]
    %v77 = vld [vmem:[%s1 + $0x140] sm:$0xff]
    %v78 = vld [vmem:[%s1 + $0x148] sm:$0xff]
    %v79 = vld [vmem:[%s1 + $0x150] sm:$0xff]
    %v80 = vld [vmem:[%s1 + $0x158] sm:$0xff]
    %v81 = vld [vmem:[%s1 + $0x160] sm:$0xff]
    %v82 = vld [vmem:[%s1 + $0x168] sm:$0xff]
    %v83 = vld [vmem:[%s1 + $0x170] sm:$0xff]
    %v84 = vld [vmem:[%s1 + $0x178] sm:$0xff]
    %v85 = vld [vmem:[%s1 + $0x180] sm:$0xff]
    %v86 = vld [vmem:[%s1 + $0x188] sm:$0xff]
    %v87 = vld [vmem:[%s1 + $0x190] sm:$0xff]
    %v88 = vld [vmem:[%s1 + $0x198] sm:$0xff]
    %v89 = vld [vmem:[%s1 + $0x1a0] sm:$0xff]
    %v90 = vld [vmem:[%s1 + $0x1a8] sm:$0xff]
    %v91 = vld [vmem:[%s1 + $0x1b0] sm:$0xff]
    %v92 = vld [vmem:[%s1 + $0x1b8] sm:$0xff]
    %v93 = vld [vmem:[%s1 + $0x1c0] sm:$0xff]
    %v94 = vld [vmem:[%s1 + $0x1c8] sm:$0xff]
    %v95 = vld [vmem:[%s1 + $0x1d0] sm:$0xff]
    %v96 = vld [vmem:[%s1 + $0x1d8] sm:$0xff]
    %v97 = vld [vmem:[%s1 + $0x1e0] sm:$0xff]
    %v98 = vld [vmem:[%s1 + $0x1e8] sm:$0xff]
    %v99 = vld [vmem:[%s1 + $0x1f0] sm:$0xff]
    %v100 = vld [vmem:[%s1 + $0x1f8] sm:$0xff]
    %v101 = vld [vmem:[%s1 + $0x200] sm:$0xff]
    %v102 = vld [vmem:[%s1 + $0x208] sm:$0xff]
    %v103 = vld [vmem:[%s1 + $0x210] sm:$0xff]
    %v104 = vld [vmem:[%s1 + $0x218] sm:$0xff]
    %v105 = vld [vmem:[%s1 + $0x220] sm:$0xff]
    %v106 = vld [vmem:[%s1 + $0x228] sm:$0xff]
    %v107 = vld [vmem:[%s1 + $0x230] sm:$0xff]
    %v108 = vld [vmem:[%s1 + $0x238] sm:$0xff]
    %v109 = vld [vmem:[%s1 + $0x240] sm:$0xff]
    %v110 = vld [vmem:[%s1 + $0x248] sm:$0xff]
    %v111 = vld [vmem:[%s1 + $0x250] sm:$0xff]
    %v112 = vld [vmem:[%s1 + $0x258] sm:$0xff]
    %v113 = vld [vmem:[%s1 + $0x260] sm:$0xff]
    %v114 = vld [vmem:[%s1 + $0x268] sm:$0xff]
    %v115 = vld [vmem:[%s1 + $0x270] sm:$0xff]
    %v116 = vld [vmem:[%s1 + $0x278] sm:$0xff]
    %v117 = vld [vmem:[%s1 + $0x280] sm:$0xff]
    %v118 = vld [vmem:[%s1 + $0x288] sm:$0xff]
    %v119 = vld [vmem:[%s1 + $0x290] sm:$0xff]
    %v120 = vld [vmem:[%s1 + $0x298] sm:$0xff]
    %v121 = vld [vmem:[%s1 + $0x2a0] sm:$0xff]
    %v122 = vld [vmem:[%s1 + $0x2a8] sm:$0xff]
    %v123 = vld [vmem:[%s1 + $0x2b0] sm:$0xff]
    %v124 = vld [vmem:[%s1 + $0x2b8] sm:$0xff]
    %v125 = vld [vmem:[%s1 + $0x2c0] sm:$0xff]
    %v126 = vld [vmem:[%s1 + $0x2c8] sm:$0xff]
    %v127 = vld [vmem:[%s1 + $0x2d0] sm:$0xff]
    %v128 = vld [vmem:[%s1 + $0x2d8] sm:$0xff]
    %v129 = vld [vmem:[%s1 + $0x2e0] sm:$0xff]
    %v130 = vld [vmem:[%s1 + $0x2e8] sm:$0xff]
    %v131 = vld [vmem:[%s1 + $0x2f0] sm:$0xff]
    %v132 = vld [vmem:[%s1 + $0x2f8] sm:$0xff]
    %v133 = vld [vmem:[%s1 + $0x300] sm:$0xff]
    %v134 = vld [vmem:[%s1 + $0x308] sm:$0xff]
    %v135 = vld [vmem:[%s1 + $0x310] sm:$0xff]
    %v136 = vld [vmem:[%s1 + $0x318] sm:$0xff]
    %v137 = vld [vmem:[%s1 + $0x320] sm:$0xff]
    %v138 = vld [vmem:[%s1 + $0x328] sm:$0xff]
    %v139 = vld [vmem:[%s1 + $0x330] sm:$0xff]
    %v140 = vld [vmem:[%s1 + $0x338] sm:$0xff]
    %v141 = vld [vmem:[%s1 + $0x340] sm:$0xff]
    %v142 = vld [vmem:[%s1 + $0x348] sm:$0xff]
    %v143 = vld [vmem:[%s1 + $0x350] sm:$0xff]
    %v144 = vld [vmem:[%s1 + $0x358] sm:$0xff]
    %v145 = vld [vmem:[%s1 + $0x360] sm:$0xff]
    %v146 = vld [vmem:[%s1 + $0x368] sm:$0xff]
    %v147 = vld [vmem:[%s1 + $0x370] sm:$0xff]
    %v148 = vld [vmem:[%s1 + $0x378] sm:$0xff]
    %v149 = vld [vmem:[%s1 + $0x380] sm:$0xff]
    %v150 = vld [vmem:[%s1 + $0x388] sm:$0xff]
    %v151 = vld [vmem:[%s1 + $0x390] sm:$0xff]
    %v152 = vld [vmem:[%s1 + $0x398] sm:$0xff]
    %v153 = vld [vmem:[%s1 + $0x3a0] sm:$0xff]
    %v154 = vld [vmem:[%s1 + $0x3a8] sm:$0xff]
    %v155 = vld [vmem:[%s1 + $0x3b0] sm:$0xff]
    %v156 = vld [vmem:[%s1 + $0x3b8] sm:$0xff]
    %v157 = vld [vmem:[%s1 + $0x3c0] sm:$0xff]
    %v158 = vld [vmem:[%s1 + $0x3c8] sm:$0xff]
    %v159 = vld [vmem:[%s1 + $0x3d0] sm:$0xff]
    %v160 = vld [vmem:[%s1 + $0x3d8] sm:$0xff]
    %v161 = vld [vmem:[%s1 + $0x3e0] sm:$0xff]
    %v162 = vld [vmem:[%s1 + $0x3e8] sm:$0xff]
    %v163 = vld [vmem:[%s1 + $0x3f0] sm:$0xff]
    %v164 = vld [vmem:[%s1 + $0x3f8] sm:$0xff]
    %v165 = vld [vmem:[%s1 + $0x400] sm:$0xff]
    %v166 = vld [vmem:[%s1 + $0x408] sm:$0xff]
    %v167 = vld [vmem:[%s1 + $0x410] sm:$0xff]
    %v168 = vld [vmem:[%s1 + $0x418] sm:$0xff]
    %v169 = vld [vmem:[%s1 + $0x420] sm:$0xff]
    %v170 = vld [vmem:[%s1 + $0x428] sm:$0xff]
    %v171 = vld [vmem:[%s1 + $0x430] sm:$0xff]
    %v172 = vld [vmem:[%s1 + $0x438] sm:$0xff]
    %v173 = vld [vmem:[%s1 + $0x440] sm:$0xff]
    %v174 = vld [vmem:[%s1 + $0x448] sm:$0xff]
    %v175 = vld [vmem:[%s1 + $0x450] sm:$0xff]
    %v176 = vld [vmem:[%s1 + $0x458] sm:$0xff]
    %v177 = vld [vmem:[%s1 + $0x460] sm:$0xff]
    %v178 = vld [vmem:[%s1 + $0x468] sm:$0xff]
    %v179 = vld [vmem:[%s1 + $0x470] sm:$0xff]
    %v180 = vld [vmem:[%s1 + $0x478] sm:$0xff]
    %v181 = vld [vmem:[%s1 + $0x480] sm:$0xff]
    %v182 = vld [vmem:[%s1 + $0x488] sm:$0xff]
    %v183 = vld [vmem:[%s1 + $0x490] sm:$0xff]
    %v184 = vld [vmem:[%s1 + $0x498] sm:$0xff]
    %v185 = vld [vmem:[%s1 + $0x4a0] sm:$0xff]
    %v186 = vld [vmem:[%s1 + $0x4a8] sm:$0xff]
    %v187 = vld [vmem:[%s1 + $0x4b0] sm:$0xff]
    %v188 = vld [vmem:[%s1 + $0x4b8] sm:$0xff]
    %v189 = vld [vmem:[%s1 + $0x4c0] sm:$0xff]
    %v190 = vld [vmem:[%s1 + $0x4c8] sm:$0xff]
    %v191 = vld [vmem:[%s1 + $0x4d0] sm:$0xff]
    %v192 = vld [vmem:[%s1 + $0x4d8] sm:$0xff]
    %v193 = vld [vmem:[%s1 + $0x4e0] sm:$0xff]
    %v194 = vld [vmem:[%s1 + $0x4e8] sm:$0xff]
    %v195 = vld [vmem:[%s1 + $0x4f0] sm:$0xff]
    %v196 = vld [vmem:[%s1 + $0x4f8] sm:$0xff]
    %v197 = vld [vmem:[%s1 + $0x500] sm:$0xff]
    %v198 = vld [vmem:[%s1 + $0x508] sm:$0xff]
    %v199 = vld [vmem:[%s1 + $0x510] sm:$0xff]
    %v200 = vld [vmem:[%s1 + $0x518] sm:$0xff]
    %v201 = vld [vmem:[%s1 + $0x520] sm:$0xff]
    %v202 = vld [vmem:[%s1 + $0x528] sm:$0xff]
    %v203 = vld [vmem:[%s1 + $0x530] sm:$0xff]
    %v204 = vld [vmem:[%s1 + $0x538] sm:$0xff]
    %v205 = vld [vmem:[%s1 + $0x540] sm:$0xff]
    %v206 = vld [vmem:[%s1 + $0x548] sm:$0xff]
    %v207 = vld [vmem:[%s1 + $0x550] sm:$0xff]
    %v208 = vld [vmem:[%s1 + $0x558] sm:$0xff]
    %v209 = vld [vmem:[%s1 + $0x560] sm:$0xff]
    %v210 = vld [vmem:[%s1 + $0x568] sm:$0xff]
    %v211 = vld [vmem:[%s1 + $0x570] sm:$0xff]
    %v212 = vld [vmem:[%s1 + $0x578] sm:$0xff]
    %v213 = vld [vmem:[%s1 + $0x580] sm:$0xff]
    %v214 = vld [vmem:[%s1 + $0x588] sm:$0xff]
    %v215 = vld [vmem:[%s1 + $0x590] sm:$0xff]
    %v216 = vld [vmem:[%s1 + $0x598] sm:$0xff]
    %v217 = vld [vmem:[%s1 + $0x5a0] sm:$0xff]
    %v218 = vld [vmem:[%s1 + $0x5a8] sm:$0xff]
    %v219 = vld [vmem:[%s1 + $0x5b0] sm:$0xff]
    %v220 = vld [vmem:[%s1 + $0x5b8] sm:$0xff]
    %v221 = vld [vmem:[%s1 + $0x5c0] sm:$0xff]
    %v222 = vld [vmem:[%s1 + $0x5c8] sm:$0xff]
    %v223 = vld [vmem:[%s1 + $0x5d0] sm:$0xff]
    %v224 = vld [vmem:[%s1 + $0x5d8] sm:$0xff]
    %v225 = vld [vmem:[%s1 + $0x5e0] sm:$0xff]
    %v226 = vld [vmem:[%s1 + $0x5e8] sm:$0xff]
    %v227 = vld [vmem:[%s1 + $0x5f0] sm:$0xff]
    %v228 = vld [vmem:[%s1 + $0x5f8] sm:$0xff]
    %v229 = vld [vmem:[%s1 + $0x600] sm:$0xff]
    %v230 = vld [vmem:[%s1 + $0x608] sm:$0xff]
    %v231 = vld [vmem:[%s1 + $0x610] sm:$0xff]
    %v232 = vld [vmem:[%s1 + $0x618] sm:$0xff]
    %v233 = vld [vmem:[%s1 + $0x620] sm:$0xff]
    %v234 = vld [vmem:[%s1 + $0x628] sm:$0xff]
    %v235 = vld [vmem:[%s1 + $0x630] sm:$0xff]
    %v236 = vld [vmem:[%s1 + $0x638] sm:$0xff]
    %v237 = vld [vmem:[%s1 + $0x640] sm:$0xff]
    %v238 = vld [vmem:[%s1 + $0x648] sm:$0xff]
    %v239 = vld [vmem:[%s1 + $0x650] sm:$0xff]
    %v240 = vld [vmem:[%s1 + $0x658] sm:$0xff]
    %v241 = vld [vmem:[%s1 + $0x660] sm:$0xff]
    %v242 = vld [vmem:[%s1 + $0x668] sm:$0xff]
    %v243 = vld [vmem:[%s1 + $0x670] sm:$0xff]
    %v244 = vld [vmem:[%s1 + $0x678] sm:$0xff]
    %v245 = vld [vmem:[%s1 + $0x680] sm:$0xff]
    %v246 = vld [vmem:[%s1 + $0x688] sm:$0xff]
    %v247 = vld [vmem:[%s1 + $0x690] sm:$0xff]
    %v248 = vld [vmem:[%s1 + $0x698] sm:$0xff]
    %v249 = vld [vmem:[%s1 + $0x6a0] sm:$0xff]
    %v250 = vld [vmem:[%s1 + $0x6a8] sm:$0xff]
    %v251 = vld [vmem:[%s1 + $0x6b0] sm:$0xff]
    %v252 = vld [vmem:[%s1 + $0x6b8] sm:$0xff]
    %v253 = vld [vmem:[%s1 + $0x6c0] sm:$0xff]
    %v254 = vld [vmem:[%s1 + $0x6c8] sm:$0xff]
    %v255 = vld [vmem:[%s1 + $0x6d0] sm:$0xff]
    %v256 = vld [vmem:[%s1 + $0x6d8] sm:$0xff]
    %v257 = vld [vmem:[%s1 + $0x6e0] sm:$0xff]
    %v258 = vld [vmem:[%s1 + $0x6e8] sm:$0xff]
    %v259 = vld [vmem:[%s1 + $0x6f0] sm:$0xff]
    %v260 = vld [vmem:[%s1 + $0x6f8] sm:$0xff]
    %v261 = vld [vmem:[%s1 + $0x700] sm:$0xff]
    %v262 = vld [vmem:[%s1 + $0x708] sm:$0xff]
    %v263 = vld [vmem:[%s1 + $0x710] sm:$0xff]
    %v264 = vld [vmem:[%s1 + $0x718] sm:$0xff]
    %v265 = vld [vmem:[%s1 + $0x720] sm:$0xff]
    %v266 = vld [vmem:[%s1 + $0x728] sm:$0xff]
    %v267 = vld [vmem:[%s1 + $0x730] sm:$0xff]
    %v268 = vld [vmem:[%s1 + $0x738] sm:$0xff]
    %v269 = vld [vmem:[%s1 + $0x740] sm:$0xff]
    %v270 = vld [vmem:[%s1 + $0x748] sm:$0xff]
    %v271 = vld [vmem:[%s1 + $0x750] sm:$0xff]
    %v272 = vld [vmem:[%s1 + $0x758] sm:$0xff]
    %v273 = vld [vmem:[%s1 + $0x760] sm:$0xff]
    %v274 = vld [vmem:[%s1 + $0x768] sm:$0xff]
    %v275 = vld [vmem:[%s1 + $0x770] sm:$0xff]
    %v276 = vld [vmem:[%s1 + $0x778] sm:$0xff]
    %v277 = vld [vmem:[%s1 + $0x780] sm:$0xff]
    %v278 = vld [vmem:[%s1 + $0x788] sm:$0xff]
    %v279 = vld [vmem:[%s1 + $0x790] sm:$0xff]
    %v280 = vld [vmem:[%s1 + $0x798] sm:$0xff]
    %v281 = vld [vmem:[%s1 + $0x7a0] sm:$0xff]
    %v282 = vld [vmem:[%s1 + $0x7a8] sm:$0xff]
    %v283 = vld [vmem:[%s1 + $0x7b0] sm:$0xff]
    %v284 = vld [vmem:[%s1 + $0x7b8] sm:$0xff]
    %v285 = vld [vmem:[%s1 + $0x7c0] sm:$0xff]
    %v286 = vld [vmem:[%s1 + $0x7c8] sm:$0xff]
    %v287 = vld [vmem:[%s1 + $0x7d0] sm:$0xff]
    %v288 = vld [vmem:[%s1 + $0x7d8] sm:$0xff]
    %v289 = vld [vmem:[%s1 + $0x7e0] sm:$0xff]
    %v290 = vld [vmem:[%s1 + $0x7e8] sm:$0xff]
    %v291 = vld [vmem:[%s1 + $0x7f0] sm:$0xff]
    %v292 = vld [vmem:[%s1 + $0x7f8] sm:$0xff]
    %v293 = vld [vmem:[%s1 + $0x800] sm:$0xff]
    %v294 = vld [vmem:[%s1 + $0x808] sm:$0xff]
    %v295 = vld [vmem:[%s1 + $0x810] sm:$0xff]
    %v296 = vld [vmem:[%s1 + $0x818] sm:$0xff]
    %v297 = vld [vmem:[%s1 + $0x820] sm:$0xff]
    %v298 = vld [vmem:[%s1 + $0x828] sm:$0xff]
    %v299 = vld [vmem:[%s1 + $0x830] sm:$0xff]
    %v300 = vld [vmem:[%s1 + $0x838] sm:$0xff]
    %v301 = vld [vmem:[%s1 + $0x840] sm:$0xff]
    %v302 = vld [vmem:[%s1 + $0x848] sm:$0xff]
    %v303 = vld [vmem:[%s1 + $0x850] sm:$0xff]
    %v304 = vld [vmem:[%s1 + $0x858] sm:$0xff]
    %v305 = vld [vmem:[%s1 + $0x860] sm:$0xff]
    %v306 = vld [vmem:[%s1 + $0x868] sm:$0xff]
    %v307 = vld [vmem:[%s1 + $0x870] sm:$0xff]
    %v308 = vld [vmem:[%s1 + $0x878] sm:$0xff]
    %v309 = vld [vmem:[%s1 + $0x880] sm:$0xff]
    %v310 = vld [vmem:[%s1 + $0x888] sm:$0xff]
    %v311 = vld [vmem:[%s1 + $0x890] sm:$0xff]
    %v312 = vld [vmem:[%s1 + $0x898] sm:$0xff]
    %v313 = vld [vmem:[%s1 + $0x8a0] sm:$0xff]
    %v314 = vld [vmem:[%s1 + $0x8a8] sm:$0xff]
    %v315 = vld [vmem:[%s1 + $0x8b0] sm:$0xff]
    %v316 = vld [vmem:[%s1 + $0x8b8] sm:$0xff]
    %v317 = vld [vmem:[%s1 + $0x8c0] sm:$0xff]
    %v318 = vld [vmem:[%s1 + $0x8c8] sm:$0xff]
    %v319 = vld [vmem:[%s1 + $0x8d0] sm:$0xff]
    %v320 = vld [vmem:[%s1 + $0x8d8] sm:$0xff]
    %v321 = vld [vmem:[%s1 + $0x8e0] sm:$0xff]
    %v322 = vld [vmem:[%s1 + $0x8e8] sm:$0xff]
    %v323 = vld [vmem:[%s1 + $0x8f0] sm:$0xff]
    %v324 = vld [vmem:[%s1 + $0x8f8] sm:$0xff]
    %v325 = vld [vmem:[%s1 + $0x900] sm:$0xff]
    %v326 = vld [vmem:[%s1 + $0x908] sm:$0xff]
    %v327 = vld [vmem:[%s1 + $0x910] sm:$0xff]
    %v328 = vld [vmem:[%s1 + $0x918] sm:$0xff]
    %v329 = vld [vmem:[%s1 + $0x920] sm:$0xff]
    %v330 = vld [vmem:[%s1 + $0x928] sm:$0xff]
    %v331 = vld [vmem:[%s1 + $0x930] sm:$0xff]
    %v332 = vld [vmem:[%s1 + $0x938] sm:$0xff]
    %v333 = vld [vmem:[%s1 + $0x940] sm:$0xff]
    %v334 = vld [vmem:[%s1 + $0x948] sm:$0xff]
    %v335 = vld [vmem:[%s1 + $0x950] sm:$0xff]
    %v336 = vld [vmem:[%s1 + $0x958] sm:$0xff]
    %v337 = vld [vmem:[%s1 + $0x960] sm:$0xff]
    %v338 = vld [vmem:[%s1 + $0x968] sm:$0xff]
    %v339 = vld [vmem:[%s1 + $0x970] sm:$0xff]
    %v340 = vld [vmem:[%s1 + $0x978] sm:$0xff]
    %v341 = vld [vmem:[%s1 + $0x980] sm:$0xff]
    %v342 = vld [vmem:[%s1 + $0x988] sm:$0xff]
    %v343 = vld [vmem:[%s1 + $0x990] sm:$0xff]
    %v344 = vld [vmem:[%s1 + $0x998] sm:$0xff]
    %v345 = vld [vmem:[%s1 + $0x9a0] sm:$0xff]
    %v346 = vld [vmem:[%s1 + $0x9a8] sm:$0xff]
    %v347 = vld [vmem:[%s1 + $0x9b0] sm:$0xff]
    %v348 = vld [vmem:[%s1 + $0x9b8] sm:$0xff]
    %v349 = vld [vmem:[%s1 + $0x9c0] sm:$0xff]
    %v350 = vld [vmem:[%s1 + $0x9c8] sm:$0xff]
    %v351 = vld [vmem:[%s1 + $0x9d0] sm:$0xff]
    %v352 = vld [vmem:[%s1 + $0x9d8] sm:$0xff]
    %v353 = vld [vmem:[%s1 + $0x9e0] sm:$0xff]
    %v354 = vld [vmem:[%s1 + $0x9e8] sm:$0xff]
    %v355 = vld [vmem:[%s1 + $0x9f0] sm:$0xff]
    %v356 = vld [vmem:[%s1 + $0x9f8] sm:$0xff]
    %v357 = vld [vmem:[%s1 + $0xa00] sm:$0xff]
    %v358 = vld [vmem:[%s1 + $0xa08] sm:$0xff]
    %v359 = vld [vmem:[%s1 + $0xa10] sm:$0xff]
    %v360 = vld [vmem:[%s1 + $0xa18] sm:$0xff]
    %v361 = vld [vmem:[%s1 + $0xa20] sm:$0xff]
    %v362 = vld [vmem:[%s1 + $0xa28] sm:$0xff]
    %v363 = vld [vmem:[%s1 + $0xa30] sm:$0xff]
    %v364 = vld [vmem:[%s1 + $0xa38] sm:$0xff]
    %v365 = vld [vmem:[%s1 + $0xa40] sm:$0xff]
    %v366 = vld [vmem:[%s1 + $0xa48] sm:$0xff]
    %v367 = vld [vmem:[%s1 + $0xa50] sm:$0xff]
    %v368 = vld [vmem:[%s1 + $0xa58] sm:$0xff]
    %v369 = vld [vmem:[%s1 + $0xa60] sm:$0xff]
    %v370 = vld [vmem:[%s1 + $0xa68] sm:$0xff]
    %v371 = vld [vmem:[%s1 + $0xa70] sm:$0xff]
    %v372 = vld [vmem:[%s1 + $0xa78] sm:$0xff]
    %v373 = vld [vmem:[%s1 + $0xa80] sm:$0xff]
    %v374 = vld [vmem:[%s1 + $0xa88] sm:$0xff]
    %v375 = vld [vmem:[%s1 + $0xa90] sm:$0xff]
    %v376 = vld [vmem:[%s1 + $0xa98] sm:$0xff]
    %v377 = vld [vmem:[%s1 + $0xaa0] sm:$0xff]
    %v378 = vld [vmem:[%s1 + $0xaa8] sm:$0xff]
    %v379 = vld [vmem:[%s1 + $0xab0] sm:$0xff]
    %v380 = vld [vmem:[%s1 + $0xab8] sm:$0xff]
    %v381 = vld [vmem:[%s1 + $0xac0] sm:$0xff]
    %v382 = vld [vmem:[%s1 + $0xac8] sm:$0xff]
    %v383 = vld [vmem:[%s1 + $0xad0] sm:$0xff]
    %v384 = vld [vmem:[%s1 + $0xad8] sm:$0xff]
    %v385 = vld [vmem:[%s1 + $0xae0] sm:$0xff]
    %v386 = vld [vmem:[%s1 + $0xae8] sm:$0xff]
    %v387 = vld [vmem:[%s1 + $0xaf0] sm:$0xff]
    %v388 = vld [vmem:[%s1 + $0xaf8] sm:$0xff]
    %v389 = vld [vmem:[%s1 + $0xb00] sm:$0xff]
    %v390 = vld [vmem:[%s1 + $0xb08] sm:$0xff]
    %v391 = vld [vmem:[%s1 + $0xb10] sm:$0xff]
    %v392 = vld [vmem:[%s1 + $0xb18] sm:$0xff]
    %v393 = vld [vmem:[%s1 + $0xb20] sm:$0xff]
    %v394 = vld [vmem:[%s1 + $0xb28] sm:$0xff]
    %v395 = vld [vmem:[%s1 + $0xb30] sm:$0xff]
    %v396 = vld [vmem:[%s1 + $0xb38] sm:$0xff]
    %v397 = vld [vmem:[%s1 + $0xb40] sm:$0xff]
    %v398 = vld [vmem:[%s1 + $0xb48] sm:$0xff]
    %v399 = vld [vmem:[%s1 + $0xb50] sm:$0xff]
    %v400 = vld [vmem:[%s1 + $0xb58] sm:$0xff]
    %v401 = vld [vmem:[%s1 + $0xb60] sm:$0xff]
    %v402 = vld [vmem:[%s1 + $0xb68] sm:$0xff]
    %v403 = vld [vmem:[%s1 + $0xb70] sm:$0xff]
    %v404 = vld [vmem:[%s1 + $0xb78] sm:$0xff]
    %v405 = vld [vmem:[%s1 + $0xb80] sm:$0xff]
    %v406 = vld [vmem:[%s1 + $0xb88] sm:$0xff]
    %v407 = vld [vmem:[%s1 + $0xb90] sm:$0xff]
    %v408 = vld [vmem:[%s1 + $0xb98] sm:$0xff]
    %v409 = vld [vmem:[%s1 + $0xba0] sm:$0xff]
    %v410 = vld [vmem:[%s1 + $0xba8] sm:$0xff]
    %v411 = vld [vmem:[%s1 + $0xbb0] sm:$0xff]
    %v412 = vld [vmem:[%s1 + $0xbb8] sm:$0xff]
    %v413 = vld [vmem:[%s1 + $0xbc0] sm:$0xff]
    %v414 = vld [vmem:[%s1 + $0xbc8] sm:$0xff]
    %v415 = vld [vmem:[%s1 + $0xbd0] sm:$0xff]
    %v416 = vld [vmem:[%s1 + $0xbd8] sm:$0xff]
    %v417 = vld [vmem:[%s1 + $0xbe0] sm:$0xff]
    %v418 = vld [vmem:[%s1 + $0xbe8] sm:$0xff]
    %v419 = vld [vmem:[%s1 + $0xbf0] sm:$0xff]
    %v420 = vld [vmem:[%s1 + $0xbf8] sm:$0xff]
    %v421 = vld [vmem:[%s1 + $0xc00] sm:$0xff]
    %v422 = vld [vmem:[%s1 + $0xc08] sm:$0xff]
    %v423 = vld [vmem:[%s1 + $0xc10] sm:$0xff]
    %v424 = vld [vmem:[%s1 + $0xc18] sm:$0xff]
    %v425 = vld [vmem:[%s1 + $0xc20] sm:$0xff]
    %v426 = vld [vmem:[%s1 + $0xc28] sm:$0xff]
    %v427 = vld [vmem:[%s1 + $0xc30] sm:$0xff]
    %v428 = vld [vmem:[%s1 + $0xc38] sm:$0xff]
    %v429 = vld [vmem:[%s1 + $0xc40] sm:$0xff]
    %v430 = vld [vmem:[%s1 + $0xc48] sm:$0xff]
    %v431 = vld [vmem:[%s1 + $0xc50] sm:$0xff]
    %v432 = vld [vmem:[%s1 + $0xc58] sm:$0xff]
    %v433 = vld [vmem:[%s1 + $0xc60] sm:$0xff]
    %v434 = vld [vmem:[%s1 + $0xc68] sm:$0xff]
    %v435 = vld [vmem:[%s1 + $0xc70] sm:$0xff]
    %v436 = vld [vmem:[%s1 + $0xc78] sm:$0xff]
    %v437 = vld [vmem:[%s1 + $0xc80] sm:$0xff]
    %v438 = vld [vmem:[%s1 + $0xc88] sm:$0xff]
    %v439 = vld [vmem:[%s1 + $0xc90] sm:$0xff]
    %v440 = vld [vmem:[%s1 + $0xc98] sm:$0xff]
    %v441 = vld [vmem:[%s1 + $0xca0] sm:$0xff]
    %v442 = vld [vmem:[%s1 + $0xca8] sm:$0xff]
    %v443 = vld [vmem:[%s1 + $0xcb0] sm:$0xff]
    %v444 = vld [vmem:[%s1 + $0xcb8] sm:$0xff]
    %v445 = vld [vmem:[%s1 + $0xcc0] sm:$0xff]
    %v446 = vld [vmem:[%s1 + $0xcc8] sm:$0xff]
    %v447 = vld [vmem:[%s1 + $0xcd0] sm:$0xff]
    %v448 = vld [vmem:[%s1 + $0xcd8] sm:$0xff]
    %v449 = vld [vmem:[%s1 + $0xce0] sm:$0xff]
    %v450 = vld [vmem:[%s1 + $0xce8] sm:$0xff]
    %v451 = vld [vmem:[%s1 + $0xcf0] sm:$0xff]
    %v452 = vld [vmem:[%s1 + $0xcf8] sm:$0xff]
    %v453 = vld [vmem:[%s1 + $0xd00] sm:$0xff]
    %v454 = vld [vmem:[%s1 + $0xd08] sm:$0xff]
    %v455 = vld [vmem:[%s1 + $0xd10] sm:$0xff]
    %v456 = vld [vmem:[%s1 + $0xd18] sm:$0xff]
    %v457 = vld [vmem:[%s1 + $0xd20] sm:$0xff]
    %v458 = vld [vmem:[%s1 + $0xd28] sm:$0xff]
    %v459 = vld [vmem:[%s1 + $0xd30] sm:$0xff]
    %v460 = vld [vmem:[%s1 + $0xd38] sm:$0xff]
    %v461 = vld [vmem:[%s1 + $0xd40] sm:$0xff]
    %v462 = vld [vmem:[%s1 + $0xd48] sm:$0xff]
    %v463 = vld [vmem:[%s1 + $0xd50] sm:$0xff]
    %v464 = vld [vmem:[%s1 + $0xd58] sm:$0xff]
    %v465 = vld [vmem:[%s1 + $0xd60] sm:$0xff]
    %v466 = vld [vmem:[%s1 + $0xd68] sm:$0xff]
    %v467 = vld [vmem:[%s1 + $0xd70] sm:$0xff]
    %v468 = vld [vmem:[%s1 + $0xd78] sm:$0xff]
    %v469 = vld [vmem:[%s1 + $0xd80] sm:$0xff]
    %v470 = vld [vmem:[%s1 + $0xd88] sm:$0xff]
    %v471 = vld [vmem:[%s1 + $0xd90] sm:$0xff]
    %v472 = vld [vmem:[%s1 + $0xd98] sm:$0xff]
    %v473 = vld [vmem:[%s1 + $0xda0] sm:$0xff]
    %v474 = vld [vmem:[%s1 + $0xda8] sm:$0xff]
    %v475 = vld [vmem:[%s1 + $0xdb0] sm:$0xff]
    %v476 = vld [vmem:[%s1 + $0xdb8] sm:$0xff]
    %v477 = vld [vmem:[%s1 + $0xdc0] sm:$0xff]
    %v478 = vld [vmem:[%s1 + $0xdc8] sm:$0xff]
    %v479 = vld [vmem:[%s1 + $0xdd0] sm:$0xff]
    %v480 = vld [vmem:[%s1 + $0xdd8] sm:$0xff]
    %v481 = vld [vmem:[%s1 + $0xde0] sm:$0xff]
    %v482 = vld [vmem:[%s1 + $0xde8] sm:$0xff]
    %v483 = vld [vmem:[%s1 + $0xdf0] sm:$0xff]
    %v484 = vld [vmem:[%s1 + $0xdf8] sm:$0xff]
    %v485 = vld [vmem:[%s1 + $0xe00] sm:$0xff]
    %v486 = vld [vmem:[%s1 + $0xe08] sm:$0xff]
    %v487 = vld [vmem:[%s1 + $0xe10] sm:$0xff]
    %v488 = vld [vmem:[%s1 + $0xe18] sm:$0xff]
    %v489 = vld [vmem:[%s1 + $0xe20] sm:$0xff]
    %v490 = vld [vmem:[%s1 + $0xe28] sm:$0xff]
    %v491 = vld [vmem:[%s1 + $0xe30] sm:$0xff]
    %v492 = vld [vmem:[%s1 + $0xe38] sm:$0xff]
    %v493 = vld [vmem:[%s1 + $0xe40] sm:$0xff]
    %v494 = vld [vmem:[%s1 + $0xe48] sm:$0xff]
    %v495 = vld [vmem:[%s1 + $0xe50] sm:$0xff]
    %v496 = vld [vmem:[%s1 + $0xe58] sm:$0xff]
    %v497 = vld [vmem:[%s1 + $0xe60] sm:$0xff]
    %v498 = vld [vmem:[%s1 + $0xe68] sm:$0xff]
    %v499 = vld [vmem:[%s1 + $0xe70] sm:$0xff]
    %v500 = vld [vmem:[%s1 + $0xe78] sm:$0xff]
    %v501 = vld [vmem:[%s1 + $0xe80] sm:$0xff]
    %v502 = vld [vmem:[%s1 + $0xe88] sm:$0xff]
    %v503 = vld [vmem:[%s1 + $0xe90] sm:$0xff]
    %v504 = vld [vmem:[%s1 + $0xe98] sm:$0xff]
    %v505 = vld [vmem:[%s1 + $0xea0] sm:$0xff]
    %v506 = vld [vmem:[%s1 + $0xea8] sm:$0xff]
    %v507 = vld [vmem:[%s1 + $0xeb0] sm:$0xff]
    %v508 = vld [vmem:[%s1 + $0xeb8] sm:$0xff]
    %v509 = vld [vmem:[%s1 + $0xec0] sm:$0xff]
    %v510 = vld [vmem:[%s1 + $0xec8] sm:$0xff]
    %v511 = vld [vmem:[%s1 + $0xed0] sm:$0xff]
    %v512 = vld [vmem:[%s1 + $0xed8] sm:$0xff]
    %v513 = vld [vmem:[%s1 + $0xee0] sm:$0xff]
    %v514 = vld [vmem:[%s1 + $0xee8] sm:$0xff]
    %v515 = vld [vmem:[%s1 + $0xef0] sm:$0xff]
    %v516 = vld [vmem:[%s1 + $0xef8] sm:$0xff]
    %v517 = vld [vmem:[%s1 + $0xf00] sm:$0xff]
    %v518 = vld [vmem:[%s1 + $0xf08] sm:$0xff]
    %v519 = vld [vmem:[%s1 + $0xf10] sm:$0xff]
    %v520 = vld [vmem:[%s1 + $0xf18] sm:$0xff]
    %v521 = vld [vmem:[%s1 + $0xf20] sm:$0xff]
    %v522 = vld [vmem:[%s1 + $0xf28] sm:$0xff]
    %v523 = vld [vmem:[%s1 + $0xf30] sm:$0xff]
    %v524 = vld [vmem:[%s1 + $0xf38] sm:$0xff]
    %v525 = vld [vmem:[%s1 + $0xf40] sm:$0xff]
    %v526 = vld [vmem:[%s1 + $0xf48] sm:$0xff]
    %v527 = vld [vmem:[%s1 + $0xf50] sm:$0xff]
    %v528 = vld [vmem:[%s1 + $0xf58] sm:$0xff]
    %v529 = vld [vmem:[%s1 + $0xf60] sm:$0xff]
    %v530 = vld [vmem:[%s1 + $0xf68] sm:$0xff]
    %v531 = vld [vmem:[%s1 + $0xf70] sm:$0xff]
    %v532 = vld [vmem:[%s1 + $0xf78] sm:$0xff]
    %v533 = vld [vmem:[%s1 + $0xf80] sm:$0xff]
    %v534 = vld [vmem:[%s1 + $0xf88] sm:$0xff]
    %v535 = vld [vmem:[%s1 + $0xf90] sm:$0xff]
    %v536 = vld [vmem:[%s1 + $0xf98] sm:$0xff]
    %v537 = vld [vmem:[%s1 + $0xfa0] sm:$0xff]
    %v538 = vld [vmem:[%s1 + $0xfa8] sm:$0xff]
    %v539 = vld [vmem:[%s1 + $0xfb0] sm:$0xff]
    %v540 = vld [vmem:[%s1 + $0xfb8] sm:$0xff]
    %v541 = vld [vmem:[%s1 + $0xfc0] sm:$0xff]
    %v542 = vld [vmem:[%s1 + $0xfc8] sm:$0xff]
    %v543 = vld [vmem:[%s1 + $0xfd0] sm:$0xff]
    %v544 = vld [vmem:[%s1 + $0xfd8] sm:$0xff]
    %v545 = vld [vmem:[%s1 + $0xfe0] sm:$0xff]
    %v546 = vld [vmem:[%s1 + $0xfe8] sm:$0xff]
    %v547 = vld [vmem:[%s1 + $0xff0] sm:$0xff]
    %v548 = vld [vmem:[%s1 + $0xff8] sm:$0xff]
    %v549 = vld [vmem:[%s1 + $0x1000] sm:$0xff]
    %v550 = vld [vmem:[%s1 + $0x1008] sm:$0xff]
    %v551 = vld [vmem:[%s1 + $0x1010] sm:$0xff]
    %v552 = vld [vmem:[%s1 + $0x1018] sm:$0xff]
    %v553 = vld [vmem:[%s1 + $0x1020] sm:$0xff]
    %v554 = vld [vmem:[%s1 + $0x1028] sm:$0xff]
    %v555 = vld [vmem:[%s1 + $0x1030] sm:$0xff]
    %v556 = vld [vmem:[%s1 + $0x1038] sm:$0xff]
    %v557 = vld [vmem:[%s1 + $0x1040] sm:$0xff]
    %v558 = vld [vmem:[%s1 + $0x1048] sm:$0xff]
    %v559 = vld [vmem:[%s1 + $0x1050] sm:$0xff]
    %v560 = vld [vmem:[%s1 + $0x1058] sm:$0xff]
    %v561 = vld [vmem:[%s1 + $0x1060] sm:$0xff]
    %v562 = vld [vmem:[%s1 + $0x1068] sm:$0xff]
    %v563 = vld [vmem:[%s1 + $0x1070] sm:$0xff]
    %v564 = vld [vmem:[%s1 + $0x1078] sm:$0xff]
    %v565 = vld [vmem:[%s1 + $0x1080] sm:$0xff]
    %v566 = vld [vmem:[%s1 + $0x1088] sm:$0xff]
    %v567 = vld [vmem:[%s1 + $0x1090] sm:$0xff]
    %v568 = vld [vmem:[%s1 + $0x1098] sm:$0xff]
    %v569 = vld [vmem:[%s1 + $0x10a0] sm:$0xff]
    %v570 = vld [vmem:[%s1 + $0x10a8] sm:$0xff]
    %v571 = vld [vmem:[%s1 + $0x10b0] sm:$0xff]
    %v572 = vld [vmem:[%s1 + $0x10b8] sm:$0xff]
    %v573 = vld [vmem:[%s1 + $0x10c0] sm:$0xff]
    %v574 = vld [vmem:[%s1 + $0x10c8] sm:$0xff]
    %v575 = vld [vmem:[%s1 + $0x10d0] sm:$0xff]
    %v576 = vld [vmem:[%s1 + $0x10d8] sm:$0xff]
    %v577 = vld [vmem:[%s1 + $0x10e0] sm:$0xff]
    %v578 = vld [vmem:[%s1 + $0x10e8] sm:$0xff]
    %v579 = vld [vmem:[%s1 + $0x10f0] sm:$0xff]
    %v580 = vld [vmem:[%s1 + $0x10f8] sm:$0xff]
    %v581 = vld [vmem:[%s1 + $0x1100] sm:$0xff]
    %v582 = vld [vmem:[%s1 + $0x1108] sm:$0xff]
    %v583 = vld [vmem:[%s1 + $0x1110] sm:$0xff]
    %v584 = vld [vmem:[%s1 + $0x1118] sm:$0xff]
    %v585 = vld [vmem:[%s1 + $0x1120] sm:$0xff]
    %v586 = vld [vmem:[%s1 + $0x1128] sm:$0xff]
    %v587 = vld [vmem:[%s1 + $0x1130] sm:$0xff]
    %v588 = vld [vmem:[%s1 + $0x1138] sm:$0xff]
    %v589 = vld [vmem:[%s1 + $0x1140] sm:$0xff]
    %v590 = vld [vmem:[%s1 + $0x1148] sm:$0xff]
    %v591 = vld [vmem:[%s1 + $0x1150] sm:$0xff]
    %v592 = vld [vmem:[%s1 + $0x1158] sm:$0xff]
    %v593 = vld [vmem:[%s1 + $0x1160] sm:$0xff]
    %v594 = vld [vmem:[%s1 + $0x1168] sm:$0xff]
    %v595 = vld [vmem:[%s1 + $0x1170] sm:$0xff]
    %v596 = vld [vmem:[%s1 + $0x1178] sm:$0xff]
    %v597 = vld [vmem:[%s1 + $0x1180] sm:$0xff]
    %v598 = vld [vmem:[%s1 + $0x1188] sm:$0xff]
    %v599 = vld [vmem:[%s1 + $0x1190] sm:$0xff]
    %v600 = vld [vmem:[%s1 + $0x1198] sm:$0xff]
    %v601 = vld [vmem:[%s1 + $0x11a0] sm:$0xff]
    %v602 = vld [vmem:[%s1 + $0x11a8] sm:$0xff]
    %v603 = vld [vmem:[%s1 + $0x11b0] sm:$0xff]
    %v604 = vld [vmem:[%s1 + $0x11b8] sm:$0xff]
    %v605 = vld [vmem:[%s1 + $0x11c0] sm:$0xff]
    %v606 = vld [vmem:[%s1 + $0x11c8] sm:$0xff]
    %v607 = vld [vmem:[%s1 + $0x11d0] sm:$0xff]
    %v608 = vld [vmem:[%s1 + $0x11d8] sm:$0xff]
    %v609 = vld [vmem:[%s1 + $0x11e0] sm:$0xff]
    %v610 = vld [vmem:[%s1 + $0x11e8] sm:$0xff]
    %v611 = vld [vmem:[%s1 + $0x11f0] sm:$0xff]
    %v612 = vld [vmem:[%s1 + $0x11f8] sm:$0xff]
    %v613 = vld [vmem:[%s1 + $0x1200] sm:$0xff]
    %v614 = vld [vmem:[%s1 + $0x1208] sm:$0xff]
    %v615 = vld [vmem:[%s1 + $0x1210] sm:$0xff]
    %v616 = vld [vmem:[%s1 + $0x1218] sm:$0xff]
    %v617 = vld [vmem:[%s1 + $0x1220] sm:$0xff]
    %v618 = vld [vmem:[%s1 + $0x1228] sm:$0xff]
    %v619 = vld [vmem:[%s1 + $0x1230] sm:$0xff]
    %v620 = vld [vmem:[%s1 + $0x1238] sm:$0xff]
    %v621 = vld [vmem:[%s1 + $0x1240] sm:$0xff]
    %v622 = vld [vmem:[%s1 + $0x1248] sm:$0xff]
    %v623 = vld [vmem:[%s1 + $0x1250] sm:$0xff]
    %v624 = vld [vmem:[%s1 + $0x1258] sm:$0xff]
    %v625 = vld [vmem:[%s1 + $0x1260] sm:$0xff]
    %v626 = vld [vmem:[%s1 + $0x1268] sm:$0xff]
    %v627 = vld [vmem:[%s1 + $0x1270] sm:$0xff]
    %v628 = vld [vmem:[%s1 + $0x1278] sm:$0xff]
    %v629 = vld [vmem:[%s1 + $0x1280] sm:$0xff]
    %v630 = vld [vmem:[%s1 + $0x1288] sm:$0xff]
    %v631 = vld [vmem:[%s1 + $0x1290] sm:$0xff]
    %v632 = vld [vmem:[%s1 + $0x1298] sm:$0xff]
    %v633 = vld [vmem:[%s1 + $0x12a0] sm:$0xff]
    %v634 = vld [vmem:[%s1 + $0x12a8] sm:$0xff]
    %v635 = vld [vmem:[%s1 + $0x12b0] sm:$0xff]
    %v636 = vld [vmem:[%s1 + $0x12b8] sm:$0xff]
    %v637 = vld [vmem:[%s1 + $0x12c0] sm:$0xff]
    %v638 = vld [vmem:[%s1 + $0x12c8] sm:$0xff]
    %v639 = vld [vmem:[%s1 + $0x12d0] sm:$0xff]
    %v640 = vld [vmem:[%s1 + $0x12d8] sm:$0xff]
    %v641 = vld [vmem:[%s1 + $0x12e0] sm:$0xff]
    %v642 = vld [vmem:[%s1 + $0x12e8] sm:$0xff]
    %v643 = vld [vmem:[%s1 + $0x12f0] sm:$0xff]
    %v644 = vld [vmem:[%s1 + $0x12f8] sm:$0xff]
    %v645 = vld [vmem:[%s1 + $0x1300] sm:$0xff]
    %v646 = vld [vmem:[%s1 + $0x1308] sm:$0xff]
    %v647 = vld [vmem:[%s1 + $0x1310] sm:$0xff]
    %v648 = vld [vmem:[%s1 + $0x1318] sm:$0xff]
    %v649 = vld [vmem:[%s1 + $0x1320] sm:$0xff]
    %v650 = vld [vmem:[%s1 + $0x1328] sm:$0xff]
    %v651 = vld [vmem:[%s1 + $0x1330] sm:$0xff]
    %v652 = vld [vmem:[%s1 + $0x1338] sm:$0xff]
    %v653 = vld [vmem:[%s1 + $0x1340] sm:$0xff]
    %v654 = vld [vmem:[%s1 + $0x1348] sm:$0xff]
    %v655 = vld [vmem:[%s1 + $0x1350] sm:$0xff]
    %v656 = vld [vmem:[%s1 + $0x1358] sm:$0xff]
    %v657 = vld [vmem:[%s1 + $0x1360] sm:$0xff]
    %v658 = vld [vmem:[%s1 + $0x1368] sm:$0xff]
    %v659 = vld [vmem:[%s1 + $0x1370] sm:$0xff]
    %v660 = vld [vmem:[%s1 + $0x1378] sm:$0xff]
    %v661 = vld [vmem:[%s1 + $0x1380] sm:$0xff]
    %v662 = vld [vmem:[%s1 + $0x1388] sm:$0xff]
    %v663 = vld [vmem:[%s1 + $0x1390] sm:$0xff]
    %v664 = vld [vmem:[%s1 + $0x1398] sm:$0xff]
    %v665 = vld [vmem:[%s1 + $0x13a0] sm:$0xff]
    %v666 = vld [vmem:[%s1 + $0x13a8] sm:$0xff]
    %v667 = vld [vmem:[%s1 + $0x13b0] sm:$0xff]
    %v668 = vld [vmem:[%s1 + $0x13b8] sm:$0xff]
    %v669 = vld [vmem:[%s1 + $0x13c0] sm:$0xff]
    %v670 = vld [vmem:[%s1 + $0x13c8] sm:$0xff]
    %v671 = vld [vmem:[%s1 + $0x13d0] sm:$0xff]
    %v672 = vld [vmem:[%s1 + $0x13d8] sm:$0xff]
    %v673 = vld [vmem:[%s1 + $0x13e0] sm:$0xff]
    %v674 = vld [vmem:[%s1 + $0x13e8] sm:$0xff]
    %v675 = vld [vmem:[%s1 + $0x13f0] sm:$0xff]
    %v676 = vld [vmem:[%s1 + $0x13f8] sm:$0xff]
    %v677 = vld [vmem:[%s1 + $0x1400] sm:$0xff]
    %v678 = vld [vmem:[%s1 + $0x1408] sm:$0xff]
    %v679 = vld [vmem:[%s1 + $0x1410] sm:$0xff]
    %v680 = vld [vmem:[%s1 + $0x1418] sm:$0xff]
    %v681 = vld [vmem:[%s1 + $0x1420] sm:$0xff]
    %v682 = vld [vmem:[%s1 + $0x1428] sm:$0xff]
    %v683 = vld [vmem:[%s1 + $0x1430] sm:$0xff]
    %v684 = vld [vmem:[%s1 + $0x1438] sm:$0xff]
    %v685 = vld [vmem:[%s1 + $0x1440] sm:$0xff]
    %v686 = vld [vmem:[%s1 + $0x1448] sm:$0xff]
    %v687 = vld [vmem:[%s1 + $0x1450] sm:$0xff]
    %v688 = vld [vmem:[%s1 + $0x1458] sm:$0xff]
    %v689 = vld [vmem:[%s1 + $0x1460] sm:$0xff]
    %v690 = vld [vmem:[%s1 + $0x1468] sm:$0xff]
    %v691 = vld [vmem:[%s1 + $0x1470] sm:$0xff]
    %v692 = vld [vmem:[%s1 + $0x1478] sm:$0xff]
    %v693 = vld [vmem:[%s1 + $0x1480] sm:$0xff]
    %v694 = vld [vmem:[%s1 + $0x1488] sm:$0xff]
    %v695 = vld [vmem:[%s1 + $0x1490] sm:$0xff]
    %v696 = vld [vmem:[%s1 + $0x1498] sm:$0xff]
    %v697 = vld [vmem:[%s1 + $0x14a0] sm:$0xff]
    %v698 = vld [vmem:[%s1 + $0x14a8] sm:$0xff]
    %v699 = vld [vmem:[%s1 + $0x14b0] sm:$0xff]
    %v700 = vld [vmem:[%s1 + $0x14b8] sm:$0xff]
    %v701 = vld [vmem:[%s1 + $0x14c0] sm:$0xff]
    %v702 = vld [vmem:[%s1 + $0x14c8] sm:$0xff]
    %v703 = vld [vmem:[%s1 + $0x14d0] sm:$0xff]
    %v704 = vld [vmem:[%s1 + $0x14d8] sm:$0xff]
    %v705 = vld [vmem:[%s1 + $0x14e0] sm:$0xff]
    %v706 = vld [vmem:[%s1 + $0x14e8] sm:$0xff]
    %v707 = vld [vmem:[%s1 + $0x14f0] sm:$0xff]
    %v708 = vld [vmem:[%s1 + $0x14f8] sm:$0xff]
    %v709 = vld [vmem:[%s1 + $0x1500] sm:$0xff]
    %v710 = vld [vmem:[%s1 + $0x1508] sm:$0xff]
    %v711 = vld [vmem:[%s1 + $0x1510] sm:$0xff]
    %v712 = vld [vmem:[%s1 + $0x1518] sm:$0xff]
    %v713 = vld [vmem:[%s1 + $0x1520] sm:$0xff]
    %v714 = vld [vmem:[%s1 + $0x1528] sm:$0xff]
    %v715 = vld [vmem:[%s1 + $0x1530] sm:$0xff]
    %v716 = vld [vmem:[%s1 + $0x1538] sm:$0xff]
    %v717 = vld [vmem:[%s1 + $0x1540] sm:$0xff]
    %v718 = vld [vmem:[%s1 + $0x1548] sm:$0xff]
    %v719 = vld [vmem:[%s1 + $0x1550] sm:$0xff]
    %v720 = vld [vmem:[%s1 + $0x1558] sm:$0xff]
    %v721 = vld [vmem:[%s1 + $0x1560] sm:$0xff]
    %v722 = vld [vmem:[%s1 + $0x1568] sm:$0xff]
    %v723 = vld [vmem:[%s1 + $0x1570] sm:$0xff]
    %v724 = vld [vmem:[%s1 + $0x1578] sm:$0xff]
    %v725 = vld [vmem:[%s1 + $0x1580] sm:$0xff]
    %v726 = vld [vmem:[%s1 + $0x1588] sm:$0xff]
    %v727 = vld [vmem:[%s1 + $0x1590] sm:$0xff]
    %v728 = vld [vmem:[%s1 + $0x1598] sm:$0xff]
    %v729 = vld [vmem:[%s1 + $0x15a0] sm:$0xff]
    %v730 = vld [vmem:[%s1 + $0x15a8] sm:$0xff]
    %v731 = vld [vmem:[%s1 + $0x15b0] sm:$0xff]
    %v732 = vld [vmem:[%s1 + $0x15b8] sm:$0xff]
    %v733 = vld [vmem:[%s1 + $0x15c0] sm:$0xff]
    %v734 = vld [vmem:[%s1 + $0x15c8] sm:$0xff]
    %v735 = vld [vmem:[%s1 + $0x15d0] sm:$0xff]
    %v736 = vld [vmem:[%s1 + $0x15d8] sm:$0xff]
    %v737 = vld [vmem:[%s1 + $0x15e0] sm:$0xff]
    %v738 = vld [vmem:[%s1 + $0x15e8] sm:$0xff]
    %v739 = vld [vmem:[%s1 + $0x15f0] sm:$0xff]
    %v740 = vld [vmem:[%s1 + $0x15f8] sm:$0xff]
    %v741 = vld [vmem:[%s1 + $0x1600] sm:$0xff]
    %v742 = vld [vmem:[%s1 + $0x1608] sm:$0xff]
    %v743 = vld [vmem:[%s1 + $0x1610] sm:$0xff]
    %v744 = vld [vmem:[%s1 + $0x1618] sm:$0xff]
    %v745 = vld [vmem:[%s1 + $0x1620] sm:$0xff]
    %v746 = vld [vmem:[%s1 + $0x1628] sm:$0xff]
    %v747 = vld [vmem:[%s1 + $0x1630] sm:$0xff]
    %v748 = vld [vmem:[%s1 + $0x1638] sm:$0xff]
    %v749 = vld [vmem:[%s1 + $0x1640] sm:$0xff]
    %v750 = vld [vmem:[%s1 + $0x1648] sm:$0xff]
    %v751 = vld [vmem:[%s1 + $0x1650] sm:$0xff]
    %v752 = vld [vmem:[%s1 + $0x1658] sm:$0xff]
    %v753 = vld [vmem:[%s1 + $0x1660] sm:$0xff]
    %v754 = vld [vmem:[%s1 + $0x1668] sm:$0xff]
    %v755 = vld [vmem:[%s1 + $0x1670] sm:$0xff]
    %v756 = vld [vmem:[%s1 + $0x1678] sm:$0xff]
    %v757 = vld [vmem:[%s1 + $0x1680] sm:$0xff]
    %v758 = vld [vmem:[%s1 + $0x1688] sm:$0xff]
    %v759 = vld [vmem:[%s1 + $0x1690] sm:$0xff]
    %v760 = vld [vmem:[%s1 + $0x1698] sm:$0xff]
    %v761 = vld [vmem:[%s1 + $0x16a0] sm:$0xff]
    %v762 = vld [vmem:[%s1 + $0x16a8] sm:$0xff]
    %v763 = vld [vmem:[%s1 + $0x16b0] sm:$0xff]
    %v764 = vld [vmem:[%s1 + $0x16b8] sm:$0xff]
    %v765 = vld [vmem:[%s1 + $0x16c0] sm:$0xff]
    %v766 = vld [vmem:[%s1 + $0x16c8] sm:$0xff]
    %v767 = vld [vmem:[%s1 + $0x16d0] sm:$0xff]
    %v768 = vld [vmem:[%s1 + $0x16d8] sm:$0xff]
    %v769 = vld [vmem:[%s1 + $0x16e0] sm:$0xff]
    %v770 = vld [vmem:[%s1 + $0x16e8] sm:$0xff]
    %v771 = vld [vmem:[%s1 + $0x16f0] sm:$0xff]
    %v772 = vld [vmem:[%s1 + $0x16f8] sm:$0xff]
    %v773 = vld [vmem:[%s1 + $0x1700] sm:$0xff]
    %v774 = vld [vmem:[%s1 + $0x1708] sm:$0xff]
    %v775 = vld [vmem:[%s1 + $0x1710] sm:$0xff]
    %v776 = vld [vmem:[%s1 + $0x1718] sm:$0xff]
    %v777 = vld [vmem:[%s1 + $0x1720] sm:$0xff]
    %v778 = vld [vmem:[%s1 + $0x1728] sm:$0xff]
    %v779 = vld [vmem:[%s1 + $0x1730] sm:$0xff]
    %v780 = vld [vmem:[%s1 + $0x1738] sm:$0xff]
    %v781 = vld [vmem:[%s1 + $0x1740] sm:$0xff]
    %v782 = vld [vmem:[%s1 + $0x1748] sm:$0xff]
    %v783 = vld [vmem:[%s1 + $0x1750] sm:$0xff]
    %v784 = vld [vmem:[%s1 + $0x1758] sm:$0xff]
    %v785 = vld [vmem:[%s1 + $0x1760] sm:$0xff]
    %v786 = vld [vmem:[%s1 + $0x1768] sm:$0xff]
    %v787 = vld [vmem:[%s1 + $0x1770] sm:$0xff]
    %v788 = vld [vmem:[%s1 + $0x1778] sm:$0xff]
    %v789 = vld [vmem:[%s1 + $0x1780] sm:$0xff]
    %v790 = vld [vmem:[%s1 + $0x1788] sm:$0xff]
    %v791 = vld [vmem:[%s1 + $0x1790] sm:$0xff]
    %v792 = vld [vmem:[%s1 + $0x1798] sm:$0xff]
    %v793 = vld [vmem:[%s1 + $0x17a0] sm:$0xff]
    %v794 = vld [vmem:[%s1 + $0x17a8] sm:$0xff]
    %v795 = vld [vmem:[%s1 + $0x17b0] sm:$0xff]
    %v796 = vld [vmem:[%s1 + $0x17b8] sm:$0xff]
    %v797 = vld [vmem:[%s1 + $0x17c0] sm:$0xff]
    %v798 = vld [vmem:[%s1 + $0x17c8] sm:$0xff]
    %v799 = vld [vmem:[%s1 + $0x17d0] sm:$0xff]
    %v800 = vld [vmem:[%s1 + $0x17d8] sm:$0xff]
    %v801 = vld [vmem:[%s1 + $0x17e0] sm:$0xff]
    %v802 = vld [vmem:[%s1 + $0x17e8] sm:$0xff]
    %v803 = vld [vmem:[%s1 + $0x17f0] sm:$0xff]
    %v804 = vld [vmem:[%s1 + $0x17f8] sm:$0xff]
    %v805 = vld [vmem:[%s1 + $0x1800] sm:$0xff]
    %v806 = vld [vmem:[%s1 + $0x1808] sm:$0xff]
    %v807 = vld [vmem:[%s1 + $0x1810] sm:$0xff]
    %v808 = vld [vmem:[%s1 + $0x1818] sm:$0xff]
    %v809 = vld [vmem:[%s1 + $0x1820] sm:$0xff]
    %v810 = vld [vmem:[%s1 + $0x1828] sm:$0xff]
    %v811 = vld [vmem:[%s1 + $0x1830] sm:$0xff]
    %v812 = vld [vmem:[%s1 + $0x1838] sm:$0xff]
    %v813 = vld [vmem:[%s1 + $0x1840] sm:$0xff]
    %v814 = vld [vmem:[%s1 + $0x1848] sm:$0xff]
    %v815 = vld [vmem:[%s1 + $0x1850] sm:$0xff]
    %v816 = vld [vmem:[%s1 + $0x1858] sm:$0xff]
    %v817 = vld [vmem:[%s1 + $0x1860] sm:$0xff]
    %v818 = vld [vmem:[%s1 + $0x1868] sm:$0xff]
    %v819 = vld [vmem:[%s1 + $0x1870] sm:$0xff]
    %v820 = vld [vmem:[%s1 + $0x1878] sm:$0xff]
    %v821 = vld [vmem:[%s1 + $0x1880] sm:$0xff]
    %v822 = vld [vmem:[%s1 + $0x1888] sm:$0xff]
    %v823 = vld [vmem:[%s1 + $0x1890] sm:$0xff]
    %v824 = vld [vmem:[%s1 + $0x1898] sm:$0xff]
    %v825 = vld [vmem:[%s1 + $0x18a0] sm:$0xff]
    %v826 = vld [vmem:[%s1 + $0x18a8] sm:$0xff]
    %v827 = vld [vmem:[%s1 + $0x18b0] sm:$0xff]
    %v828 = vld [vmem:[%s1 + $0x18b8] sm:$0xff]
    %v829 = vld [vmem:[%s1 + $0x18c0] sm:$0xff]
    %v830 = vld [vmem:[%s1 + $0x18c8] sm:$0xff]
    %v831 = vld [vmem:[%s1 + $0x18d0] sm:$0xff]
    %v832 = vld [vmem:[%s1 + $0x18d8] sm:$0xff]
    %v833 = vld [vmem:[%s1 + $0x18e0] sm:$0xff]
    %v834 = vld [vmem:[%s1 + $0x18e8] sm:$0xff]
    %v835 = vld [vmem:[%s1 + $0x18f0] sm:$0xff]
    %v836 = vld [vmem:[%s1 + $0x18f8] sm:$0xff]
    %v837 = vld [vmem:[%s1 + $0x1900] sm:$0xff]
    %v838 = vld [vmem:[%s1 + $0x1908] sm:$0xff]
    %v839 = vld [vmem:[%s1 + $0x1910] sm:$0xff]
    %v840 = vld [vmem:[%s1 + $0x1918] sm:$0xff]
    %v841 = vld [vmem:[%s1 + $0x1920] sm:$0xff]
    %v842 = vld [vmem:[%s1 + $0x1928] sm:$0xff]
    %v843 = vld [vmem:[%s1 + $0x1930] sm:$0xff]
    %v844 = vld [vmem:[%s1 + $0x1938] sm:$0xff]
    %v845 = vld [vmem:[%s1 + $0x1940] sm:$0xff]
    %v846 = vld [vmem:[%s1 + $0x1948] sm:$0xff]
    %v847 = vld [vmem:[%s1 + $0x1950] sm:$0xff]
    %v848 = vld [vmem:[%s1 + $0x1958] sm:$0xff]
    %v849 = vld [vmem:[%s1 + $0x1960] sm:$0xff]
    %v850 = vld [vmem:[%s1 + $0x1968] sm:$0xff]
    %v851 = vld [vmem:[%s1 + $0x1970] sm:$0xff]
    %v852 = vld [vmem:[%s1 + $0x1978] sm:$0xff]
    %v853 = vld [vmem:[%s1 + $0x1980] sm:$0xff]
    %v854 = vld [vmem:[%s1 + $0x1988] sm:$0xff]
    %v855 = vld [vmem:[%s1 + $0x1990] sm:$0xff]
    %v856 = vld [vmem:[%s1 + $0x1998] sm:$0xff]
    %v857 = vld [vmem:[%s1 + $0x19a0] sm:$0xff]
    %v858 = vld [vmem:[%s1 + $0x19a8] sm:$0xff]
    %v859 = vld [vmem:[%s1 + $0x19b0] sm:$0xff]
    %v860 = vld [vmem:[%s1 + $0x19b8] sm:$0xff]
    %v861 = vld [vmem:[%s1 + $0x19c0] sm:$0xff]
    %v862 = vld [vmem:[%s1 + $0x19c8] sm:$0xff]
    %v863 = vld [vmem:[%s1 + $0x19d0] sm:$0xff]
    %v864 = vld [vmem:[%s1 + $0x19d8] sm:$0xff]
    %v865 = vld [vmem:[%s1 + $0x19e0] sm:$0xff]
    %v866 = vld [vmem:[%s1 + $0x19e8] sm:$0xff]
    %v867 = vld [vmem:[%s1 + $0x19f0] sm:$0xff]
    %v868 = vld [vmem:[%s1 + $0x19f8] sm:$0xff]
    %v869 = vld [vmem:[%s1 + $0x1a00] sm:$0xff]
    %v870 = vld [vmem:[%s1 + $0x1a08] sm:$0xff]
    %v871 = vld [vmem:[%s1 + $0x1a10] sm:$0xff]
    %v872 = vld [vmem:[%s1 + $0x1a18] sm:$0xff]
    %v873 = vld [vmem:[%s1 + $0x1a20] sm:$0xff]
    %v874 = vld [vmem:[%s1 + $0x1a28] sm:$0xff]
    %v875 = vld [vmem:[%s1 + $0x1a30] sm:$0xff]
    %v876 = vld [vmem:[%s1 + $0x1a38] sm:$0xff]
    %v877 = vld [vmem:[%s1 + $0x1a40] sm:$0xff]
    %v878 = vld [vmem:[%s1 + $0x1a48] sm:$0xff]
    %v879 = vld [vmem:[%s1 + $0x1a50] sm:$0xff]
    %v880 = vld [vmem:[%s1 + $0x1a58] sm:$0xff]
    %v881 = vld [vmem:[%s1 + $0x1a60] sm:$0xff]
    %v882 = vld [vmem:[%s1 + $0x1a68] sm:$0xff]
    %v883 = vld [vmem:[%s1 + $0x1a70] sm:$0xff]
    %v884 = vld [vmem:[%s1 + $0x1a78] sm:$0xff]
    %v885 = vld [vmem:[%s1 + $0x1a80] sm:$0xff]
    %v886 = vld [vmem:[%s1 + $0x1a88] sm:$0xff]
    %v887 = vld [vmem:[%s1 + $0x1a90] sm:$0xff]
    %v888 = vld [vmem:[%s1 + $0x1a98] sm:$0xff]
    %v889 = vld [vmem:[%s1 + $0x1aa0] sm:$0xff]
    %v890 = vld [vmem:[%s1 + $0x1aa8] sm:$0xff]
    %v891 = vld [vmem:[%s1 + $0x1ab0] sm:$0xff]
    %v892 = vld [vmem:[%s1 + $0x1ab8] sm:$0xff]
    %v893 = vld [vmem:[%s1 + $0x1ac0] sm:$0xff]
    %v894 = vld [vmem:[%s1 + $0x1ac8] sm:$0xff]
    %v895 = vld [vmem:[%s1 + $0x1ad0] sm:$0xff]
    %v896 = vld [vmem:[%s1 + $0x1ad8] sm:$0xff]
    %v897 = vld [vmem:[%s1 + $0x1ae0] sm:$0xff]
    %v898 = vld [vmem:[%s1 + $0x1ae8] sm:$0xff]
    %v899 = vld [vmem:[%s1 + $0x1af0] sm:$0xff]
    %v900 = vld [vmem:[%s1 + $0x1af8] sm:$0xff]
    %v901 = vld [vmem:[%s1 + $0x1b00] sm:$0xff]
    %v902 = vld [vmem:[%s1 + $0x1b08] sm:$0xff]
    %v903 = vld [vmem:[%s1 + $0x1b10] sm:$0xff]
    %v904 = vld [vmem:[%s1 + $0x1b18] sm:$0xff]
    %v905 = vld [vmem:[%s1 + $0x1b20] sm:$0xff]
    %v906 = vld [vmem:[%s1 + $0x1b28] sm:$0xff]
    %v907 = vld [vmem:[%s1 + $0x1b30] sm:$0xff]
    %v908 = vld [vmem:[%s1 + $0x1b38] sm:$0xff]
    %v909 = vld [vmem:[%s1 + $0x1b40] sm:$0xff]
    %v910 = vld [vmem:[%s1 + $0x1b48] sm:$0xff]
    %v911 = vld [vmem:[%s1 + $0x1b50] sm:$0xff]
    %v912 = vld [vmem:[%s1 + $0x1b58] sm:$0xff]
    %v913 = vld [vmem:[%s1 + $0x1b60] sm:$0xff]
    %v914 = vld [vmem:[%s1 + $0x1b68] sm:$0xff]
    %v915 = vld [vmem:[%s1 + $0x1b70] sm:$0xff]
    %v916 = vld [vmem:[%s1 + $0x1b78] sm:$0xff]
    %v917 = vld [vmem:[%s1 + $0x1b80] sm:$0xff]
    %v918 = vld [vmem:[%s1 + $0x1b88] sm:$0xff]
    %v919 = vld [vmem:[%s1 + $0x1b90] sm:$0xff]
    %v920 = vld [vmem:[%s1 + $0x1b98] sm:$0xff]
    %v921 = vld [vmem:[%s1 + $0x1ba0] sm:$0xff]
    %v922 = vld [vmem:[%s1 + $0x1ba8] sm:$0xff]
    %v923 = vld [vmem:[%s1 + $0x1bb0] sm:$0xff]
    %v924 = vld [vmem:[%s1 + $0x1bb8] sm:$0xff]
    %v925 = vld [vmem:[%s1 + $0x1bc0] sm:$0xff]
    %v926 = vld [vmem:[%s1 + $0x1bc8] sm:$0xff]
    %v927 = vld [vmem:[%s1 + $0x1bd0] sm:$0xff]
    %v928 = vld [vmem:[%s1 + $0x1bd8] sm:$0xff]
    %v929 = vld [vmem:[%s1 + $0x1be0] sm:$0xff]
    %v930 = vld [vmem:[%s1 + $0x1be8] sm:$0xff]
    %v931 = vld [vmem:[%s1 + $0x1bf0] sm:$0xff]
    %v932 = vld [vmem:[%s1 + $0x1bf8] sm:$0xff]
    %v933 = vld [vmem:[%s1 + $0x1c00] sm:$0xff]
    %v934 = vld [vmem:[%s1 + $0x1c08] sm:$0xff]
    %v935 = vld [vmem:[%s1 + $0x1c10] sm:$0xff]
    %v936 = vld [vmem:[%s1 + $0x1c18] sm:$0xff]
    %v937 = vld [vmem:[%s1 + $0x1c20] sm:$0xff]
    %v938 = vld [vmem:[%s1 + $0x1c28] sm:$0xff]
    %v939 = vld [vmem:[%s1 + $0x1c30] sm:$0xff]
    %v940 = vld [vmem:[%s1 + $0x1c38] sm:$0xff]
    %v941 = vld [vmem:[%s1 + $0x1c40] sm:$0xff]
    %v942 = vld [vmem:[%s1 + $0x1c48] sm:$0xff]
    %v943 = vld [vmem:[%s1 + $0x1c50] sm:$0xff]
    %v944 = vld [vmem:[%s1 + $0x1c58] sm:$0xff]
    %v945 = vld [vmem:[%s1 + $0x1c60] sm:$0xff]
    %v946 = vld [vmem:[%s1 + $0x1c68] sm:$0xff]
    %v947 = vld [vmem:[%s1 + $0x1c70] sm:$0xff]
    %v948 = vld [vmem:[%s1 + $0x1c78] sm:$0xff]
    %v949 = vld [vmem:[%s1 + $0x1c80] sm:$0xff]
    %v950 = vld [vmem:[%s1 + $0x1c88] sm:$0xff]
    %v951 = vld [vmem:[%s1 + $0x1c90] sm:$0xff]
    %v952 = vld [vmem:[%s1 + $0x1c98] sm:$0xff]
    %v953 = vld [vmem:[%s1 + $0x1ca0] sm:$0xff]
    %v954 = vld [vmem:[%s1 + $0x1ca8] sm:$0xff]
    %v955 = vld [vmem:[%s1 + $0x1cb0] sm:$0xff]
    %v956 = vld [vmem:[%s1 + $0x1cb8] sm:$0xff]
    %v957 = vld [vmem:[%s1 + $0x1cc0] sm:$0xff]
    %v958 = vld [vmem:[%s1 + $0x1cc8] sm:$0xff]
    %v959 = vld [vmem:[%s1 + $0x1cd0] sm:$0xff]
    %v960 = vld [vmem:[%s1 + $0x1cd8] sm:$0xff]
    %v961 = vld [vmem:[%s1 + $0x1ce0] sm:$0xff]
    %v962 = vld [vmem:[%s1 + $0x1ce8] sm:$0xff]
    %v963 = vld [vmem:[%s1 + $0x1cf0] sm:$0xff]
    %v964 = vld [vmem:[%s1 + $0x1cf8] sm:$0xff]
    %v965 = vld [vmem:[%s1 + $0x1d00] sm:$0xff]
    %v966 = vld [vmem:[%s1 + $0x1d08] sm:$0xff]
    %v967 = vld [vmem:[%s1 + $0x1d10] sm:$0xff]
    %v968 = vld [vmem:[%s1 + $0x1d18] sm:$0xff]
    %v969 = vld [vmem:[%s1 + $0x1d20] sm:$0xff]
    %v970 = vld [vmem:[%s1 + $0x1d28] sm:$0xff]
    %v971 = vld [vmem:[%s1 + $0x1d30] sm:$0xff]
    %v972 = vld [vmem:[%s1 + $0x1d38] sm:$0xff]
    %v973 = vld [vmem:[%s1 + $0x1d40] sm:$0xff]
    %v974 = vld [vmem:[%s1 + $0x1d48] sm:$0xff]
    %v975 = vld [vmem:[%s1 + $0x1d50] sm:$0xff]
    %v976 = vld [vmem:[%s1 + $0x1d58] sm:$0xff]
    %v977 = vld [vmem:[%s1 + $0x1d60] sm:$0xff]
    %v978 = vld [vmem:[%s1 + $0x1d68] sm:$0xff]
    %v979 = vld [vmem:[%s1 + $0x1d70] sm:$0xff]
    %v980 = vld [vmem:[%s1 + $0x1d78] sm:$0xff]
    %v981 = vld [vmem:[%s1 + $0x1d80] sm:$0xff]
    %v982 = vld [vmem:[%s1 + $0x1d88] sm:$0xff]
    %v983 = vld [vmem:[%s1 + $0x1d90] sm:$0xff]
    %v984 = vld [vmem:[%s1 + $0x1d98] sm:$0xff]
    %v985 = vld [vmem:[%s1 + $0x1da0] sm:$0xff]
    %v986 = vld [vmem:[%s1 + $0x1da8] sm:$0xff]
    %v987 = vld [vmem:[%s1 + $0x1db0] sm:$0xff]
    %v988 = vld [vmem:[%s1 + $0x1db8] sm:$0xff]
    %v989 = vld [vmem:[%s1 + $0x1dc0] sm:$0xff]
    %v990 = vld [vmem:[%s1 + $0x1dc8] sm:$0xff]
    %v991 = vld [vmem:[%s1 + $0x1dd0] sm:$0xff]
    %v992 = vld [vmem:[%s1 + $0x1dd8] sm:$0xff]
    %v993 = vld [vmem:[%s1 + $0x1de0] sm:$0xff]
    %v994 = vld [vmem:[%s1 + $0x1de8] sm:$0xff]
    %v995 = vld [vmem:[%s1 + $0x1df0] sm:$0xff]
    %v996 = vld [vmem:[%s1 + $0x1df8] sm:$0xff]
    %v997 = vld [vmem:[%s1 + $0x1e00] sm:$0xff]
    %v998 = vld [vmem:[%s1 + $0x1e08] sm:$0xff]
    %v999 = vld [vmem:[%s1 + $0x1e10] sm:$0xff]
    %v1000 = vld [vmem:[%s1 + $0x1e18] sm:$0xff]
    %v1001 = vld [vmem:[%s1 + $0x1e20] sm:$0xff]
    %v1002 = vld [vmem:[%s1 + $0x1e28] sm:$0xff]
    %v1003 = vld [vmem:[%s1 + $0x1e30] sm:$0xff]
    %v1004 = vld [vmem:[%s1 + $0x1e38] sm:$0xff]
    %v1005 = vld [vmem:[%s1 + $0x1e40] sm:$0xff]
    %v1006 = vld [vmem:[%s1 + $0x1e48] sm:$0xff]
    %v1007 = vld [vmem:[%s1 + $0x1e50] sm:$0xff]
    %v1008 = vld [vmem:[%s1 + $0x1e58] sm:$0xff]
    %v1009 = vld [vmem:[%s1 + $0x1e60] sm:$0xff]
    %v1010 = vld [vmem:[%s1 + $0x1e68] sm:$0xff]
    %v1011 = vld [vmem:[%s1 + $0x1e70] sm:$0xff]
    %v1012 = vld [vmem:[%s1 + $0x1e78] sm:$0xff]
    %v1013 = vld [vmem:[%s1 + $0x1e80] sm:$0xff]
    %v1014 = vld [vmem:[%s1 + $0x1e88] sm:$0xff]
    %v1015 = vld [vmem:[%s1 + $0x1e90] sm:$0xff]
    %v1016 = vld [vmem:[%s1 + $0x1e98] sm:$0xff]
    %v1017 = vld [vmem:[%s1 + $0x1ea0] sm:$0xff]
    %v1018 = vld [vmem:[%s1 + $0x1ea8] sm:$0xff]
    %v1019 = vld [vmem:[%s1 + $0x1eb0] sm:$0xff]
    %v1020 = vld [vmem:[%s1 + $0x1eb8] sm:$0xff]
    %v1021 = vld [vmem:[%s1 + $0x1ec0] sm:$0xff]
    %v1022 = vld [vmem:[%s1 + $0x1ec8] sm:$0xff]
    %v1023 = vld [vmem:[%s1 + $0x1ed0] sm:$0xff]
    %v1024 = vld [vmem:[%s1 + $0x1ed8] sm:$0xff]
    %v1025 = vld [vmem:[%s1 + $0x1ee0] sm:$0xff]
    %v1026 = vld [vmem:[%s1 + $0x1ee8] sm:$0xff]
    %v1027 = vld [vmem:[%s1 + $0x1ef0] sm:$0xff]
    %v1028 = vld [vmem:[%s1 + $0x1ef8] sm:$0xff]
    %v1029 = vld [vmem:[%s1 + $0x1f00] sm:$0xff]
    %v1030 = vld [vmem:[%s1 + $0x1f08] sm:$0xff]
    %v1031 = vld [vmem:[%s1 + $0x1f10] sm:$0xff]
    %v1032 = vld [vmem:[%s1 + $0x1f18] sm:$0xff]
    %v1033 = vld [vmem:[%s1 + $0x1f20] sm:$0xff]
    %v1034 = vld [vmem:[%s1 + $0x1f28] sm:$0xff]
    %v1035 = vld [vmem:[%s1 + $0x1f30] sm:$0xff]
    %v1036 = vld [vmem:[%s1 + $0x1f38] sm:$0xff]
    %v1037 = vld [vmem:[%s1 + $0x1f40] sm:$0xff]
    %v1038 = vld [vmem:[%s1 + $0x1f48] sm:$0xff]
    %v1039 = vld [vmem:[%s1 + $0x1f50] sm:$0xff]
    %v1040 = vld [vmem:[%s1 + $0x1f58] sm:$0xff]
    %v1041 = vld [vmem:[%s1 + $0x1f60] sm:$0xff]
    %v1042 = vld [vmem:[%s1 + $0x1f68] sm:$0xff]
    %v1043 = vld [vmem:[%s1 + $0x1f70] sm:$0xff]
    %v1044 = vld [vmem:[%s1 + $0x1f78] sm:$0xff]
    %v1045 = vld [vmem:[%s1 + $0x1f80] sm:$0xff]
    %v1046 = vld [vmem:[%s1 + $0x1f88] sm:$0xff]
    %v1047 = vld [vmem:[%s1 + $0x1f90] sm:$0xff]
    %v1048 = vld [vmem:[%s1 + $0x1f98] sm:$0xff]
    %v1049 = vld [vmem:[%s1 + $0x1fa0] sm:$0xff]
    %v1050 = vld [vmem:[%s1 + $0x1fa8] sm:$0xff]
    %v1051 = vld [vmem:[%s1 + $0x1fb0] sm:$0xff]
    %v1052 = vld [vmem:[%s1 + $0x1fb8] sm:$0xff]
    %v1053 = vld [vmem:[%s1 + $0x1fc0] sm:$0xff]
    %v1054 = vld [vmem:[%s1 + $0x1fc8] sm:$0xff]
    %v1055 = vld [vmem:[%s1 + $0x1fd0] sm:$0xff]
    %v1056 = vld [vmem:[%s1 + $0x1fd8] sm:$0xff]
    %v1057 = vld [vmem:[%s1 + $0x1fe0] sm:$0xff]
    %v1058 = vld [vmem:[%s1 + $0x1fe8] sm:$0xff]
    %v1059 = vld [vmem:[%s1 + $0x1ff0] sm:$0xff]
    %v1060 = vld [vmem:[%s1 + $0x1ff8] sm:$0xff]
    %v1061 = vld [vmem:[%s2] sm:$0x1]
    %v1063 = vlaneseq
    %v1064 = vshrl.u32 %v1063, 7
    %v1065 = vsub.s32 0, %v1064
    %v1066 = vrot.slane %v1061, %v1065
    %v1084 = vcombine.high %v21, %v21
    %v1086 = vunpack.c.l.s4 1983009808
    %v1087 = vunpack.c.0.s8 %v1086
    %v1088 = vlaneseq
    %v1089 = vshrl.u32 %v1088, 7
    %v1090 = vsub.s32 %v1087, %v1089
    %v1091 = vrot.slane %v21, %v1090
    %v1093 = vunpack.c.l.s4 1983009808
    %v1094 = vunpack.c.0.s8 %v1093
    %v1095 = vlaneseq
    %v1096 = vshrl.u32 %v1095, 7
    %v1097 = vsub.s32 %v1094, %v1096
    %v1098 = vrot.slane %v1084, %v1097
    %v1099 = vcombine.high %v1091, %v1091
    %v1100 = vcombine.high %v1098, %v1098
    %v1101 = vcombine.high %v22, %v22
    %v1103 = vunpack.c.l.s4 1983009808
    %v1104 = vunpack.c.0.s8 %v1103
    %v1105 = vlaneseq
    %v1106 = vshrl.u32 %v1105, 7
    %v1107 = vsub.s32 %v1104, %v1106
    %v1108 = vrot.slane %v22, %v1107
    %v1110 = vunpack.c.l.s4 1983009808
    %v1111 = vunpack.c.0.s8 %v1110
    %v1112 = vlaneseq
    %v1113 = vshrl.u32 %v1112, 7
    %v1114 = vsub.s32 %v1111, %v1113
    %v1115 = vrot.slane %v1101, %v1114
    %v1116 = vcombine.high %v1108, %v1108
    %v1117 = vcombine.high %v1115, %v1115
    %v1118 = vcombine.high %v23, %v23
    %v1120 = vunpack.c.l.s4 1983009808
    %v1121 = vunpack.c.0.s8 %v1120
    %v1122 = vlaneseq
    %v1123 = vshrl.u32 %v1122, 7
    %v1124 = vsub.s32 %v1121, %v1123
    %v1125 = vrot.slane %v23, %v1124
    %v1127 = vunpack.c.l.s4 1983009808
    %v1128 = vunpack.c.0.s8 %v1127
    %v1129 = vlaneseq
    %v1130 = vshrl.u32 %v1129, 7
    %v1131 = vsub.s32 %v1128, %v1130
    %v1132 = vrot.slane %v1118, %v1131
    %v1133 = vcombine.high %v1125, %v1125
    %v1134 = vcombine.high %v1132, %v1132
    %v1135 = vcombine.high %v24, %v24
    %v1137 = vunpack.c.l.s4 1983009808
    %v1138 = vunpack.c.0.s8 %v1137
    %v1139 = vlaneseq
    %v1140 = vshrl.u32 %v1139, 7
    %v1141 = vsub.s32 %v1138, %v1140
    %v1142 = vrot.slane %v24, %v1141
    %v1144 = vunpack.c.l.s4 1983009808
    %v1145 = vunpack.c.0.s8 %v1144
    %v1146 = vlaneseq
    %v1147 = vshrl.u32 %v1146, 7
    %v1148 = vsub.s32 %v1145, %v1147
    %v1149 = vrot.slane %v1135, %v1148
    %v1150 = vcombine.high %v1142, %v1142
    %v1151 = vcombine.high %v1149, %v1149
    %v1152 = vcombine.high %v25, %v25
    %v1154 = vunpack.c.l.s4 1983009808
    %v1155 = vunpack.c.0.s8 %v1154
    %v1156 = vlaneseq
    %v1157 = vshrl.u32 %v1156, 7
    %v1158 = vsub.s32 %v1155, %v1157
    %v1159 = vrot.slane %v25, %v1158
    %v1161 = vunpack.c.l.s4 1983009808
    %v1162 = vunpack.c.0.s8 %v1161
    %v1163 = vlaneseq
    %v1164 = vshrl.u32 %v1163, 7
    %v1165 = vsub.s32 %v1162, %v1164
    %v1166 = vrot.slane %v1152, %v1165
    %v1167 = vcombine.high %v1159, %v1159
    %v1168 = vcombine.high %v1166, %v1166
    %v1169 = vcombine.high %v26, %v26
    %v1171 = vunpack.c.l.s4 1983009808
    %v1172 = vunpack.c.0.s8 %v1171
    %v1173 = vlaneseq
    %v1174 = vshrl.u32 %v1173, 7
    %v1175 = vsub.s32 %v1172, %v1174
    %v1176 = vrot.slane %v26, %v1175
    %v1178 = vunpack.c.l.s4 1983009808
    %v1179 = vunpack.c.0.s8 %v1178
    %v1180 = vlaneseq
    %v1181 = vshrl.u32 %v1180, 7
    %v1182 = vsub.s32 %v1179, %v1181
    %v1183 = vrot.slane %v1169, %v1182
    %v1184 = vcombine.high %v1176, %v1176
    %v1185 = vcombine.high %v1183, %v1183
    %v1186 = vcombine.high %v27, %v27
    %v1188 = vunpack.c.l.s4 1983009808
    %v1189 = vunpack.c.0.s8 %v1188
    %v1190 = vlaneseq
    %v1191 = vshrl.u32 %v1190, 7
    %v1192 = vsub.s32 %v1189, %v1191
    %v1193 = vrot.slane %v27, %v1192
    %v1195 = vunpack.c.l.s4 1983009808
    %v1196 = vunpack.c.0.s8 %v1195
    %v1197 = vlaneseq
    %v1198 = vshrl.u32 %v1197, 7
    %v1199 = vsub.s32 %v1196, %v1198
    %v1200 = vrot.slane %v1186, %v1199
    %v1201 = vcombine.high %v1193, %v1193
    %v1202 = vcombine.high %v1200, %v1200
    %v1203 = vcombine.high %v28, %v28
    %v1205 = vunpack.c.l.s4 1983009808
    %v1206 = vunpack.c.0.s8 %v1205
    %v1207 = vlaneseq
    %v1208 = vshrl.u32 %v1207, 7
    %v1209 = vsub.s32 %v1206, %v1208
    %v1210 = vrot.slane %v28, %v1209
    %v1212 = vunpack.c.l.s4 1983009808
    %v1213 = vunpack.c.0.s8 %v1212
    %v1214 = vlaneseq
    %v1215 = vshrl.u32 %v1214, 7
    %v1216 = vsub.s32 %v1213, %v1215
    %v1217 = vrot.slane %v1203, %v1216
    %v1218 = vcombine.high %v1210, %v1210
    %v1219 = vcombine.high %v1217, %v1217
    %v1220 = vcombine.high %v29, %v29
    %v1222 = vunpack.c.l.s4 1983009808
    %v1223 = vunpack.c.0.s8 %v1222
    %v1224 = vlaneseq
    %v1225 = vshrl.u32 %v1224, 7
    %v1226 = vsub.s32 %v1223, %v1225
    %v1227 = vrot.slane %v29, %v1226
    %v1229 = vunpack.c.l.s4 1983009808
    %v1230 = vunpack.c.0.s8 %v1229
    %v1231 = vlaneseq
    %v1232 = vshrl.u32 %v1231, 7
    %v1233 = vsub.s32 %v1230, %v1232
    %v1234 = vrot.slane %v1220, %v1233
    %v1235 = vcombine.high %v1227, %v1227
    %v1236 = vcombine.high %v1234, %v1234
    %v1237 = vcombine.high %v30, %v30
    %v1239 = vunpack.c.l.s4 1983009808
    %v1240 = vunpack.c.0.s8 %v1239
    %v1241 = vlaneseq
    %v1242 = vshrl.u32 %v1241, 7
    %v1243 = vsub.s32 %v1240, %v1242
    %v1244 = vrot.slane %v30, %v1243
    %v1246 = vunpack.c.l.s4 1983009808
    %v1247 = vunpack.c.0.s8 %v1246
    %v1248 = vlaneseq
    %v1249 = vshrl.u32 %v1248, 7
    %v1250 = vsub.s32 %v1247, %v1249
    %v1251 = vrot.slane %v1237, %v1250
    %v1252 = vcombine.high %v1244, %v1244
    %v1253 = vcombine.high %v1251, %v1251
    %v1254 = vcombine.high %v31, %v31
    %v1256 = vunpack.c.l.s4 1983009808
    %v1257 = vunpack.c.0.s8 %v1256
    %v1258 = vlaneseq
    %v1259 = vshrl.u32 %v1258, 7
    %v1260 = vsub.s32 %v1257, %v1259
    %v1261 = vrot.slane %v31, %v1260
    %v1263 = vunpack.c.l.s4 1983009808
    %v1264 = vunpack.c.0.s8 %v1263
    %v1265 = vlaneseq
    %v1266 = vshrl.u32 %v1265, 7
    %v1267 = vsub.s32 %v1264, %v1266
    %v1268 = vrot.slane %v1254, %v1267
    %v1269 = vcombine.high %v1261, %v1261
    %v1270 = vcombine.high %v1268, %v1268
    %v1271 = vcombine.high %v32, %v32
    %v1273 = vunpack.c.l.s4 1983009808
    %v1274 = vunpack.c.0.s8 %v1273
    %v1275 = vlaneseq
    %v1276 = vshrl.u32 %v1275, 7
    %v1277 = vsub.s32 %v1274, %v1276
    %v1278 = vrot.slane %v32, %v1277
    %v1280 = vunpack.c.l.s4 1983009808
    %v1281 = vunpack.c.0.s8 %v1280
    %v1282 = vlaneseq
    %v1283 = vshrl.u32 %v1282, 7
    %v1284 = vsub.s32 %v1281, %v1283
    %v1285 = vrot.slane %v1271, %v1284
    %v1286 = vcombine.high %v1278, %v1278
    %v1287 = vcombine.high %v1285, %v1285
    %v1288 = vcombine.high %v33, %v33
    %v1290 = vunpack.c.l.s4 1983009808
    %v1291 = vunpack.c.0.s8 %v1290
    %v1292 = vlaneseq
    %v1293 = vshrl.u32 %v1292, 7
    %v1294 = vsub.s32 %v1291, %v1293
    %v1295 = vrot.slane %v33, %v1294
    %v1297 = vunpack.c.l.s4 1983009808
    %v1298 = vunpack.c.0.s8 %v1297
    %v1299 = vlaneseq
    %v1300 = vshrl.u32 %v1299, 7
    %v1301 = vsub.s32 %v1298, %v1300
    %v1302 = vrot.slane %v1288, %v1301
    %v1303 = vcombine.high %v1295, %v1295
    %v1304 = vcombine.high %v1302, %v1302
    %v1305 = vcombine.high %v34, %v34
    %v1307 = vunpack.c.l.s4 1983009808
    %v1308 = vunpack.c.0.s8 %v1307
    %v1309 = vlaneseq
    %v1310 = vshrl.u32 %v1309, 7
    %v1311 = vsub.s32 %v1308, %v1310
    %v1312 = vrot.slane %v34, %v1311
    %v1314 = vunpack.c.l.s4 1983009808
    %v1315 = vunpack.c.0.s8 %v1314
    %v1316 = vlaneseq
    %v1317 = vshrl.u32 %v1316, 7
    %v1318 = vsub.s32 %v1315, %v1317
    %v1319 = vrot.slane %v1305, %v1318
    %v1320 = vcombine.high %v1312, %v1312
    %v1321 = vcombine.high %v1319, %v1319
    %v1322 = vcombine.high %v35, %v35
    %v1324 = vunpack.c.l.s4 1983009808
    %v1325 = vunpack.c.0.s8 %v1324
    %v1326 = vlaneseq
    %v1327 = vshrl.u32 %v1326, 7
    %v1328 = vsub.s32 %v1325, %v1327
    %v1329 = vrot.slane %v35, %v1328
    %v1331 = vunpack.c.l.s4 1983009808
    %v1332 = vunpack.c.0.s8 %v1331
    %v1333 = vlaneseq
    %v1334 = vshrl.u32 %v1333, 7
    %v1335 = vsub.s32 %v1332, %v1334
    %v1336 = vrot.slane %v1322, %v1335
    %v1337 = vcombine.high %v1329, %v1329
    %v1338 = vcombine.high %v1336, %v1336
    %v1339 = vcombine.high %v36, %v36
    %v1341 = vunpack.c.l.s4 1983009808
    %v1342 = vunpack.c.0.s8 %v1341
    %v1343 = vlaneseq
    %v1344 = vshrl.u32 %v1343, 7
    %v1345 = vsub.s32 %v1342, %v1344
    %v1346 = vrot.slane %v36, %v1345
    %v1348 = vunpack.c.l.s4 1983009808
    %v1349 = vunpack.c.0.s8 %v1348
    %v1350 = vlaneseq
    %v1351 = vshrl.u32 %v1350, 7
    %v1352 = vsub.s32 %v1349, %v1351
    %v1353 = vrot.slane %v1339, %v1352
    %v1354 = vcombine.high %v1346, %v1346
    %v1355 = vcombine.high %v1353, %v1353
    %1420 = vmatprep.subr.mxu0 0.0
    %1421 = vmatpush1.msra.mxu0 %v37
    %1422 = vmatprep.subr.mxu0 0.0
    %1423 = vmatpush1.msra.mxu0 %v38
    %1424 = vmatprep.subr.mxu0 0.0
    %1425 = vmatpush1.msra.mxu0 %v39
    %1426 = vmatprep.subr.mxu0 0.0
    %1427 = vmatpush1.msra.mxu0 %v40
    %1428 = vmatprep.subr.mxu0 0.0
    %1429 = vmatpush1.msra.mxu0 %v41
    %1430 = vmatprep.subr.mxu0 0.0
    %1431 = vmatpush1.msra.mxu0 %v42
    %1432 = vmatprep.subr.mxu0 0.0
    %1433 = vmatpush1.msra.mxu0 %v43
    %1434 = vmatprep.subr.mxu0 0.0
    %1435 = vmatpush1.msra.mxu0 %v44
    %1436 = vmatprep.subr.mxu0 0.0
    %1437 = vmatpush1.msra.mxu0 %v45
    %1438 = vmatprep.subr.mxu0 0.0
    %1439 = vmatpush1.msra.mxu0 %v46
    %1440 = vmatprep.subr.mxu0 0.0
    %1441 = vmatpush1.msra.mxu0 %v47
    %1442 = vmatprep.subr.mxu0 0.0
    %1443 = vmatpush1.msra.mxu0 %v48
    %1444 = vmatprep.subr.mxu0 0.0
    %1445 = vmatpush1.msra.mxu0 %v49
    %1446 = vmatprep.subr.mxu0 0.0
    %1447 = vmatpush1.msra.mxu0 %v50
    %1448 = vmatprep.subr.mxu0 0.0
    %1449 = vmatpush1.msra.mxu0 %v51
    %1450 = vmatprep.subr.mxu0 0.0
    %1451 = vmatpush1.msra.mxu0 %v52
    %1452 = vmatprep.subr.mxu0 0.0
    %1453 = vmatpush1.msra.mxu0 %v53
    %1454 = vmatprep.subr.mxu0 0.0
    %1455 = vmatpush1.msra.mxu0 %v54
    %1456 = vmatprep.subr.mxu0 0.0
    %1457 = vmatpush1.msra.mxu0 %v55
    %1458 = vmatprep.subr.mxu0 0.0
    %1459 = vmatpush1.msra.mxu0 %v56
    %1460 = vmatprep.subr.mxu0 0.0
    %1461 = vmatpush1.msra.mxu0 %v57
    %1462 = vmatprep.subr.mxu0 0.0
    %1463 = vmatpush1.msra.mxu0 %v58
    %1464 = vmatprep.subr.mxu0 0.0
    %1465 = vmatpush1.msra.mxu0 %v59
    %1466 = vmatprep.subr.mxu0 0.0
    %1467 = vmatpush1.msra.mxu0 %v60
    %1468 = vmatprep.subr.mxu0 0.0
    %1469 = vmatpush1.msra.mxu0 %v61
    %1470 = vmatprep.subr.mxu0 0.0
    %1471 = vmatpush1.msra.mxu0 %v62
    %1472 = vmatprep.subr.mxu0 0.0
    %1473 = vmatpush1.msra.mxu0 %v63
    %1474 = vmatprep.subr.mxu0 0.0
    %1475 = vmatpush1.msra.mxu0 %v64
    %1476 = vmatprep.subr.mxu0 0.0
    %1477 = vmatpush1.msra.mxu0 %v65
    %1478 = vmatprep.subr.mxu0 0.0
    %1479 = vmatpush1.msra.mxu0 %v66
    %1480 = vmatprep.subr.mxu0 0.0
    %1481 = vmatpush1.msra.mxu0 %v67
    %1482 = vmatprep.subr.mxu0 0.0
    %1483 = vmatpush1.msra.mxu0 %v68
    %1484 = vmatprep.mubr.f32.mxu0 %v1099
    %1485 = vmatmul.mubr.f32.gmra.mrb[0].mxu0 %v1091
    %v1486 = vpop.f32.mrb[0].mxu0
    %v1487 = vadd.f32 %v1066, %v1486
    %v1488 = vpop.f32.mrb[0].mxu0
    %1489 = vdwg.mxu0
    %1490 = vmatprep.subr.mxu0 0.0
    %1491 = vmatpush1.msra.mxu0 %v69
    %1492 = vmatprep.subr.mxu0 0.0
    %1493 = vmatpush1.msra.mxu0 %v70
    %1494 = vmatprep.subr.mxu0 0.0
    %1495 = vmatpush1.msra.mxu0 %v71
    %1496 = vmatprep.subr.mxu0 0.0
    %1497 = vmatpush1.msra.mxu0 %v72
    %1498 = vmatprep.subr.mxu0 0.0
    %1499 = vmatpush1.msra.mxu0 %v73
    %1500 = vmatprep.subr.mxu0 0.0
    %1501 = vmatpush1.msra.mxu0 %v74
    %1502 = vmatprep.subr.mxu0 0.0
    %1503 = vmatpush1.msra.mxu0 %v75
    %1504 = vmatprep.subr.mxu0 0.0
    %1505 = vmatpush1.msra.mxu0 %v76
    %1506 = vmatprep.subr.mxu0 0.0
    %1507 = vmatpush1.msra.mxu0 %v77
    %1508 = vmatprep.subr.mxu0 0.0
    %1509 = vmatpush1.msra.mxu0 %v78
    %1510 = vmatprep.subr.mxu0 0.0
    %1511 = vmatpush1.msra.mxu0 %v79
    %1512 = vmatprep.subr.mxu0 0.0
    %1513 = vmatpush1.msra.mxu0 %v80
    %1514 = vmatprep.subr.mxu0 0.0
    %1515 = vmatpush1.msra.mxu0 %v81
    %1516 = vmatprep.subr.mxu0 0.0
    %1517 = vmatpush1.msra.mxu0 %v82
    %1518 = vmatprep.subr.mxu0 0.0
    %1519 = vmatpush1.msra.mxu0 %v83
    %1520 = vmatprep.subr.mxu0 0.0
    %1521 = vmatpush1.msra.mxu0 %v84
    %1522 = vmatprep.subr.mxu0 0.0
    %1523 = vmatpush1.msra.mxu0 %v85
    %1524 = vmatprep.subr.mxu0 0.0
    %1525 = vmatpush1.msra.mxu0 %v86
    %1526 = vmatprep.subr.mxu0 0.0
    %1527 = vmatpush1.msra.mxu0 %v87
    %1528 = vmatprep.subr.mxu0 0.0
    %1529 = vmatpush1.msra.mxu0 %v88
    %1530 = vmatprep.subr.mxu0 0.0
    %1531 = vmatpush1.msra.mxu0 %v89
    %1532 = vmatprep.subr.mxu0 0.0
    %1533 = vmatpush1.msra.mxu0 %v90
    %1534 = vmatprep.subr.mxu0 0.0
    %1535 = vmatpush1.msra.mxu0 %v91
    %1536 = vmatprep.subr.mxu0 0.0
    %1537 = vmatpush1.msra.mxu0 %v92
    %1538 = vmatprep.subr.mxu0 0.0
    %1539 = vmatpush1.msra.mxu0 %v93
    %1540 = vmatprep.subr.mxu0 0.0
    %1541 = vmatpush1.msra.mxu0 %v94
    %1542 = vmatprep.subr.mxu0 0.0
    %1543 = vmatpush1.msra.mxu0 %v95
    %1544 = vmatprep.subr.mxu0 0.0
    %1545 = vmatpush1.msra.mxu0 %v96
    %1546 = vmatprep.subr.mxu0 0.0
    %1547 = vmatpush1.msra.mxu0 %v97
    %1548 = vmatprep.subr.mxu0 0.0
    %1549 = vmatpush1.msra.mxu0 %v98
    %1550 = vmatprep.subr.mxu0 0.0
    %1551 = vmatpush1.msra.mxu0 %v99
    %1552 = vmatprep.subr.mxu0 0.0
    %1553 = vmatpush1.msra.mxu0 %v100
    %1554 = vmatprep.mubr.f32.mxu0 %v1100
    %1555 = vmatmul.mubr.f32.gmra.mrb[0].mxu0 %v1098
    %v1556 = vpop.f32.mrb[0].mxu0
    %v1557 = vadd.f32 %v1487, %v1556
    %v1558 = vpop.f32.mrb[0].mxu0
    %1559 = vdwg.mxu0
    %1560 = vmatprep.subr.mxu0 0.0
    %1561 = vmatpush1.msra.mxu0 %v101
    %1562 = vmatprep.subr.mxu0 0.0
    %1563 = vmatpush1.msra.mxu0 %v102
    %1564 = vmatprep.subr.mxu0 0.0
    %1565 = vmatpush1.msra.mxu0 %v103
    %1566 = vmatprep.subr.mxu0 0.0
    %1567 = vmatpush1.msra.mxu0 %v104
    %1568 = vmatprep.subr.mxu0 0.0
    %1569 = vmatpush1.msra.mxu0 %v105
    %1570 = vmatprep.subr.mxu0 0.0
    %1571 = vmatpush1.msra.mxu0 %v106
    %1572 = vmatprep.subr.mxu0 0.0
    %1573 = vmatpush1.msra.mxu0 %v107
    %1574 = vmatprep.subr.mxu0 0.0
    %1575 = vmatpush1.msra.mxu0 %v108
    %1576 = vmatprep.subr.mxu0 0.0
    %1577 = vmatpush1.msra.mxu0 %v109
    %1578 = vmatprep.subr.mxu0 0.0
    %1579 = vmatpush1.msra.mxu0 %v110
    %1580 = vmatprep.subr.mxu0 0.0
    %1581 = vmatpush1.msra.mxu0 %v111
    %1582 = vmatprep.subr.mxu0 0.0
    %1583 = vmatpush1.msra.mxu0 %v112
    %1584 = vmatprep.subr.mxu0 0.0
    %1585 = vmatpush1.msra.mxu0 %v113
    %1586 = vmatprep.subr.mxu0 0.0
    %1587 = vmatpush1.msra.mxu0 %v114
    %1588 = vmatprep.subr.mxu0 0.0
    %1589 = vmatpush1.msra.mxu0 %v115
    %1590 = vmatprep.subr.mxu0 0.0
    %1591 = vmatpush1.msra.mxu0 %v116
    %1592 = vmatprep.subr.mxu0 0.0
    %1593 = vmatpush1.msra.mxu0 %v117
    %1594 = vmatprep.subr.mxu0 0.0
    %1595 = vmatpush1.msra.mxu0 %v118
    %1596 = vmatprep.subr.mxu0 0.0
    %1597 = vmatpush1.msra.mxu0 %v119
    %1598 = vmatprep.subr.mxu0 0.0
    %1599 = vmatpush1.msra.mxu0 %v120
    %1600 = vmatprep.subr.mxu0 0.0
    %1601 = vmatpush1.msra.mxu0 %v121
    %1602 = vmatprep.subr.mxu0 0.0
    %1603 = vmatpush1.msra.mxu0 %v122
    %1604 = vmatprep.subr.mxu0 0.0
    %1605 = vmatpush1.msra.mxu0 %v123
    %1606 = vmatprep.subr.mxu0 0.0
    %1607 = vmatpush1.msra.mxu0 %v124
    %1608 = vmatprep.subr.mxu0 0.0
    %1609 = vmatpush1.msra.mxu0 %v125
    %1610 = vmatprep.subr.mxu0 0.0
    %1611 = vmatpush1.msra.mxu0 %v126
    %1612 = vmatprep.subr.mxu0 0.0
    %1613 = vmatpush1.msra.mxu0 %v127
    %1614 = vmatprep.subr.mxu0 0.0
    %1615 = vmatpush1.msra.mxu0 %v128
    %1616 = vmatprep.subr.mxu0 0.0
    %1617 = vmatpush1.msra.mxu0 %v129
    %1618 = vmatprep.subr.mxu0 0.0
    %1619 = vmatpush1.msra.mxu0 %v130
    %1620 = vmatprep.subr.mxu0 0.0
    %1621 = vmatpush1.msra.mxu0 %v131
    %1622 = vmatprep.subr.mxu0 0.0
    %1623 = vmatpush1.msra.mxu0 %v132
    %1624 = vmatprep.mubr.f32.mxu0 %v1116
    %1625 = vmatmul.mubr.f32.gmra.mrb[0].mxu0 %v1108
    %v1626 = vpop.f32.mrb[0].mxu0
    %v1627 = vadd.f32 %v1557, %v1626
    %v1628 = vpop.f32.mrb[0].mxu0
    %1629 = vdwg.mxu0
    %1630 = vmatprep.subr.mxu0 0.0
    %1631 = vmatpush1.msra.mxu0 %v133
    %1632 = vmatprep.subr.mxu0 0.0
    %1633 = vmatpush1.msra.mxu0 %v134
    %1634 = vmatprep.subr.mxu0 0.0
    %1635 = vmatpush1.msra.mxu0 %v135
    %1636 = vmatprep.subr.mxu0 0.0
    %1637 = vmatpush1.msra.mxu0 %v136
    %1638 = vmatprep.subr.mxu0 0.0
    %1639 = vmatpush1.msra.mxu0 %v137
    %1640 = vmatprep.subr.mxu0 0.0
    %1641 = vmatpush1.msra.mxu0 %v138
    %1642 = vmatprep.subr.mxu0 0.0
    %1643 = vmatpush1.msra.mxu0 %v139
    %1644 = vmatprep.subr.mxu0 0.0
    %1645 = vmatpush1.msra.mxu0 %v140
    %1646 = vmatprep.subr.mxu0 0.0
    %1647 = vmatpush1.msra.mxu0 %v141
    %1648 = vmatprep.subr.mxu0 0.0
    %1649 = vmatpush1.msra.mxu0 %v142
    %1650 = vmatprep.subr.mxu0 0.0
    %1651 = vmatpush1.msra.mxu0 %v143
    %1652 = vmatprep.subr.mxu0 0.0
    %1653 = vmatpush1.msra.mxu0 %v144
    %1654 = vmatprep.subr.mxu0 0.0
    %1655 = vmatpush1.msra.mxu0 %v145
    %1656 = vmatprep.subr.mxu0 0.0
    %1657 = vmatpush1.msra.mxu0 %v146
    %1658 = vmatprep.subr.mxu0 0.0
    %1659 = vmatpush1.msra.mxu0 %v147
    %1660 = vmatprep.subr.mxu0 0.0
    %1661 = vmatpush1.msra.mxu0 %v148
    %1662 = vmatprep.subr.mxu0 0.0
    %1663 = vmatpush1.msra.mxu0 %v149
    %1664 = vmatprep.subr.mxu0 0.0
    %1665 = vmatpush1.msra.mxu0 %v150
    %1666 = vmatprep.subr.mxu0 0.0
    %1667 = vmatpush1.msra.mxu0 %v151
    %1668 = vmatprep.subr.mxu0 0.0
    %1669 = vmatpush1.msra.mxu0 %v152
    %1670 = vmatprep.subr.mxu0 0.0
    %1671 = vmatpush1.msra.mxu0 %v153
    %1672 = vmatprep.subr.mxu0 0.0
    %1673 = vmatpush1.msra.mxu0 %v154
    %1674 = vmatprep.subr.mxu0 0.0
    %1675 = vmatpush1.msra.mxu0 %v155
    %1676 = vmatprep.subr.mxu0 0.0
    %1677 = vmatpush1.msra.mxu0 %v156
    %1678 = vmatprep.subr.mxu0 0.0
    %1679 = vmatpush1.msra.mxu0 %v157
    %1680 = vmatprep.subr.mxu0 0.0
    %1681 = vmatpush1.msra.mxu0 %v158
    %1682 = vmatprep.subr.mxu0 0.0
    %1683 = vmatpush1.msra.mxu0 %v159
    %1684 = vmatprep.subr.mxu0 0.0
    %1685 = vmatpush1.msra.mxu0 %v160
    %1686 = vmatprep.subr.mxu0 0.0
    %1687 = vmatpush1.msra.mxu0 %v161
    %1688 = vmatprep.subr.mxu0 0.0
    %1689 = vmatpush1.msra.mxu0 %v162
    %1690 = vmatprep.subr.mxu0 0.0
    %1691 = vmatpush1.msra.mxu0 %v163
    %1692 = vmatprep.subr.mxu0 0.0
    %1693 = vmatpush1.msra.mxu0 %v164
    %1694 = vmatprep.mubr.f32.mxu0 %v1117
    %1695 = vmatmul.mubr.f32.gmra.mrb[0].mxu0 %v1115
    %v1696 = vpop.f32.mrb[0].mxu0
    %v1697 = vadd.f32 %v1627, %v1696
    %v1698 = vpop.f32.mrb[0].mxu0
    %1699 = vdwg.mxu0
    %1700 = vmatprep.subr.mxu0 0.0
    %1701 = vmatpush1.msra.mxu0 %v165
    %1702 = vmatprep.subr.mxu0 0.0
    %1703 = vmatpush1.msra.mxu0 %v166
    %1704 = vmatprep.subr.mxu0 0.0
    %1705 = vmatpush1.msra.mxu0 %v167
    %1706 = vmatprep.subr.mxu0 0.0
    %1707 = vmatpush1.msra.mxu0 %v168
    %1708 = vmatprep.subr.mxu0 0.0
    %1709 = vmatpush1.msra.mxu0 %v169
    %1710 = vmatprep.subr.mxu0 0.0
    %1711 = vmatpush1.msra.mxu0 %v170
    %1712 = vmatprep.subr.mxu0 0.0
    %1713 = vmatpush1.msra.mxu0 %v171
    %1714 = vmatprep.subr.mxu0 0.0
    %1715 = vmatpush1.msra.mxu0 %v172
    %1716 = vmatprep.subr.mxu0 0.0
    %1717 = vmatpush1.msra.mxu0 %v173
    %1718 = vmatprep.subr.mxu0 0.0
    %1719 = vmatpush1.msra.mxu0 %v174
    %1720 = vmatprep.subr.mxu0 0.0
    %1721 = vmatpush1.msra.mxu0 %v175
    %1722 = vmatprep.subr.mxu0 0.0
    %1723 = vmatpush1.msra.mxu0 %v176
    %1724 = vmatprep.subr.mxu0 0.0
    %1725 = vmatpush1.msra.mxu0 %v177
    %1726 = vmatprep.subr.mxu0 0.0
    %1727 = vmatpush1.msra.mxu0 %v178
    %1728 = vmatprep.subr.mxu0 0.0
    %1729 = vmatpush1.msra.mxu0 %v179
    %1730 = vmatprep.subr.mxu0 0.0
    %1731 = vmatpush1.msra.mxu0 %v180
    %1732 = vmatprep.subr.mxu0 0.0
    %1733 = vmatpush1.msra.mxu0 %v181
    %1734 = vmatprep.subr.mxu0 0.0
    %1735 = vmatpush1.msra.mxu0 %v182
    %1736 = vmatprep.subr.mxu0 0.0
    %1737 = vmatpush1.msra.mxu0 %v183
    %1738 = vmatprep.subr.mxu0 0.0
    %1739 = vmatpush1.msra.mxu0 %v184
    %1740 = vmatprep.subr.mxu0 0.0
    %1741 = vmatpush1.msra.mxu0 %v185
    %1742 = vmatprep.subr.mxu0 0.0
    %1743 = vmatpush1.msra.mxu0 %v186
    %1744 = vmatprep.subr.mxu0 0.0
    %1745 = vmatpush1.msra.mxu0 %v187
    %1746 = vmatprep.subr.mxu0 0.0
    %1747 = vmatpush1.msra.mxu0 %v188
    %1748 = vmatprep.subr.mxu0 0.0
    %1749 = vmatpush1.msra.mxu0 %v189
    %1750 = vmatprep.subr.mxu0 0.0
    %1751 = vmatpush1.msra.mxu0 %v190
    %1752 = vmatprep.subr.mxu0 0.0
    %1753 = vmatpush1.msra.mxu0 %v191
    %1754 = vmatprep.subr.mxu0 0.0
    %1755 = vmatpush1.msra.mxu0 %v192
    %1756 = vmatprep.subr.mxu0 0.0
    %1757 = vmatpush1.msra.mxu0 %v193
    %1758 = vmatprep.subr.mxu0 0.0
    %1759 = vmatpush1.msra.mxu0 %v194
    %1760 = vmatprep.subr.mxu0 0.0
    %1761 = vmatpush1.msra.mxu0 %v195
    %1762 = vmatprep.subr.mxu0 0.0
    %1763 = vmatpush1.msra.mxu0 %v196
    %1764 = vmatprep.mubr.f32.mxu0 %v1133
    %1765 = vmatmul.mubr.f32.gmra.mrb[0].mxu0 %v1125
    %v1766 = vpop.f32.mrb[0].mxu0
    %v1767 = vadd.f32 %v1697, %v1766
    %v1768 = vpop.f32.mrb[0].mxu0
    %1769 = vdwg.mxu0
    %1770 = vmatprep.subr.mxu0 0.0
    %1771 = vmatpush1.msra.mxu0 %v197
    %1772 = vmatprep.subr.mxu0 0.0
    %1773 = vmatpush1.msra.mxu0 %v198
    %1774 = vmatprep.subr.mxu0 0.0
    %1775 = vmatpush1.msra.mxu0 %v199
    %1776 = vmatprep.subr.mxu0 0.0
    %1777 = vmatpush1.msra.mxu0 %v200
    %1778 = vmatprep.subr.mxu0 0.0
    %1779 = vmatpush1.msra.mxu0 %v201
    %1780 = vmatprep.subr.mxu0 0.0
    %1781 = vmatpush1.msra.mxu0 %v202
    %1782 = vmatprep.subr.mxu0 0.0
    %1783 = vmatpush1.msra.mxu0 %v203
    %1784 = vmatprep.subr.mxu0 0.0
    %1785 = vmatpush1.msra.mxu0 %v204
    %1786 = vmatprep.subr.mxu0 0.0
    %1787 = vmatpush1.msra.mxu0 %v205
    %1788 = vmatprep.subr.mxu0 0.0
    %1789 = vmatpush1.msra.mxu0 %v206
    %1790 = vmatprep.subr.mxu0 0.0
    %1791 = vmatpush1.msra.mxu0 %v207
    %1792 = vmatprep.subr.mxu0 0.0
    %1793 = vmatpush1.msra.mxu0 %v208
    %1794 = vmatprep.subr.mxu0 0.0
    %1795 = vmatpush1.msra.mxu0 %v209
    %1796 = vmatprep.subr.mxu0 0.0
    %1797 = vmatpush1.msra.mxu0 %v210
    %1798 = vmatprep.subr.mxu0 0.0
    %1799 = vmatpush1.msra.mxu0 %v211
    %1800 = vmatprep.subr.mxu0 0.0
    %1801 = vmatpush1.msra.mxu0 %v212
    %1802 = vmatprep.subr.mxu0 0.0
    %1803 = vmatpush1.msra.mxu0 %v213
    %1804 = vmatprep.subr.mxu0 0.0
    %1805 = vmatpush1.msra.mxu0 %v214
    %1806 = vmatprep.subr.mxu0 0.0
    %1807 = vmatpush1.msra.mxu0 %v215
    %1808 = vmatprep.subr.mxu0 0.0
    %1809 = vmatpush1.msra.mxu0 %v216
    %1810 = vmatprep.subr.mxu0 0.0
    %1811 = vmatpush1.msra.mxu0 %v217
    %1812 = vmatprep.subr.mxu0 0.0
    %1813 = vmatpush1.msra.mxu0 %v218
    %1814 = vmatprep.subr.mxu0 0.0
    %1815 = vmatpush1.msra.mxu0 %v219
    %1816 = vmatprep.subr.mxu0 0.0
    %1817 = vmatpush1.msra.mxu0 %v220
    %1818 = vmatprep.subr.mxu0 0.0
    %1819 = vmatpush1.msra.mxu0 %v221
    %1820 = vmatprep.subr.mxu0 0.0
    %1821 = vmatpush1.msra.mxu0 %v222
    %1822 = vmatprep.subr.mxu0 0.0
    %1823 = vmatpush1.msra.mxu0 %v223
    %1824 = vmatprep.subr.mxu0 0.0
    %1825 = vmatpush1.msra.mxu0 %v224
    %1826 = vmatprep.subr.mxu0 0.0
    %1827 = vmatpush1.msra.mxu0 %v225
    %1828 = vmatprep.subr.mxu0 0.0
    %1829 = vmatpush1.msra.mxu0 %v226
    %1830 = vmatprep.subr.mxu0 0.0
    %1831 = vmatpush1.msra.mxu0 %v227
    %1832 = vmatprep.subr.mxu0 0.0
    %1833 = vmatpush1.msra.mxu0 %v228
    %1834 = vmatprep.mubr.f32.mxu0 %v1134
    %1835 = vmatmul.mubr.f32.gmra.mrb[0].mxu0 %v1132
    %v1836 = vpop.f32.mrb[0].mxu0
    %v1837 = vadd.f32 %v1767, %v1836
    %v1838 = vpop.f32.mrb[0].mxu0
    %1839 = vdwg.mxu0
    %1840 = vmatprep.subr.mxu0 0.0
    %1841 = vmatpush1.msra.mxu0 %v229
    %1842 = vmatprep.subr.mxu0 0.0
    %1843 = vmatpush1.msra.mxu0 %v230
    %1844 = vmatprep.subr.mxu0 0.0
    %1845 = vmatpush1.msra.mxu0 %v231
    %1846 = vmatprep.subr.mxu0 0.0
    %1847 = vmatpush1.msra.mxu0 %v232
    %1848 = vmatprep.subr.mxu0 0.0
    %1849 = vmatpush1.msra.mxu0 %v233
    %1850 = vmatprep.subr.mxu0 0.0
    %1851 = vmatpush1.msra.mxu0 %v234
    %1852 = vmatprep.subr.mxu0 0.0
    %1853 = vmatpush1.msra.mxu0 %v235
    %1854 = vmatprep.subr.mxu0 0.0
    %1855 = vmatpush1.msra.mxu0 %v236
    %1856 = vmatprep.subr.mxu0 0.0
    %1857 = vmatpush1.msra.mxu0 %v237
    %1858 = vmatprep.subr.mxu0 0.0
    %1859 = vmatpush1.msra.mxu0 %v238
    %1860 = vmatprep.subr.mxu0 0.0
    %1861 = vmatpush1.msra.mxu0 %v239
    %1862 = vmatprep.subr.mxu0 0.0
    %1863 = vmatpush1.msra.mxu0 %v240
    %1864 = vmatprep.subr.mxu0 0.0
    %1865 = vmatpush1.msra.mxu0 %v241
    %1866 = vmatprep.subr.mxu0 0.0
    %1867 = vmatpush1.msra.mxu0 %v242
    %1868 = vmatprep.subr.mxu0 0.0
    %1869 = vmatpush1.msra.mxu0 %v243
    %1870 = vmatprep.subr.mxu0 0.0
    %1871 = vmatpush1.msra.mxu0 %v244
    %1872 = vmatprep.subr.mxu0 0.0
    %1873 = vmatpush1.msra.mxu0 %v245
    %1874 = vmatprep.subr.mxu0 0.0
    %1875 = vmatpush1.msra.mxu0 %v246
    %1876 = vmatprep.subr.mxu0 0.0
    %1877 = vmatpush1.msra.mxu0 %v247
    %1878 = vmatprep.subr.mxu0 0.0
    %1879 = vmatpush1.msra.mxu0 %v248
    %1880 = vmatprep.subr.mxu0 0.0
    %1881 = vmatpush1.msra.mxu0 %v249
    %1882 = vmatprep.subr.mxu0 0.0
    %1883 = vmatpush1.msra.mxu0 %v250
    %1884 = vmatprep.subr.mxu0 0.0
    %1885 = vmatpush1.msra.mxu0 %v251
    %1886 = vmatprep.subr.mxu0 0.0
    %1887 = vmatpush1.msra.mxu0 %v252
    %1888 = vmatprep.subr.mxu0 0.0
    %1889 = vmatpush1.msra.mxu0 %v253
    %1890 = vmatprep.subr.mxu0 0.0
    %1891 = vmatpush1.msra.mxu0 %v254
    %1892 = vmatprep.subr.mxu0 0.0
    %1893 = vmatpush1.msra.mxu0 %v255
    %1894 = vmatprep.subr.mxu0 0.0
    %1895 = vmatpush1.msra.mxu0 %v256
    %1896 = vmatprep.subr.mxu0 0.0
    %1897 = vmatpush1.msra.mxu0 %v257
    %1898 = vmatprep.subr.mxu0 0.0
    %1899 = vmatpush1.msra.mxu0 %v258
    %1900 = vmatprep.subr.mxu0 0.0
    %1901 = vmatpush1.msra.mxu0 %v259
    %1902 = vmatprep.subr.mxu0 0.0
    %1903 = vmatpush1.msra.mxu0 %v260
    %1904 = vmatprep.mubr.f32.mxu0 %v1150
    %1905 = vmatmul.mubr.f32.gmra.mrb[0].mxu0 %v1142
    %v1906 = vpop.f32.mrb[0].mxu0
    %v1907 = vadd.f32 %v1837, %v1906
    %v1908 = vpop.f32.mrb[0].mxu0
    %1909 = vdwg.mxu0
    %1910 = vmatprep.subr.mxu0 0.0
    %1911 = vmatpush1.msra.mxu0 %v261
    %1912 = vmatprep.subr.mxu0 0.0
    %1913 = vmatpush1.msra.mxu0 %v262
    %1914 = vmatprep.subr.mxu0 0.0
    %1915 = vmatpush1.msra.mxu0 %v263
    %1916 = vmatprep.subr.mxu0 0.0
    %1917 = vmatpush1.msra.mxu0 %v264
    %1918 = vmatprep.subr.mxu0 0.0
    %1919 = vmatpush1.msra.mxu0 %v265
    %1920 = vmatprep.subr.mxu0 0.0
    %1921 = vmatpush1.msra.mxu0 %v266
    %1922 = vmatprep.subr.mxu0 0.0
    %1923 = vmatpush1.msra.mxu0 %v267
    %1924 = vmatprep.subr.mxu0 0.0
    %1925 = vmatpush1.msra.mxu0 %v268
    %1926 = vmatprep.subr.mxu0 0.0
    %1927 = vmatpush1.msra.mxu0 %v269
    %1928 = vmatprep.subr.mxu0 0.0
    %1929 = vmatpush1.msra.mxu0 %v270
    %1930 = vmatprep.subr.mxu0 0.0
    %1931 = vmatpush1.msra.mxu0 %v271
    %1932 = vmatprep.subr.mxu0 0.0
    %1933 = vmatpush1.msra.mxu0 %v272
    %1934 = vmatprep.subr.mxu0 0.0
    %1935 = vmatpush1.msra.mxu0 %v273
    %1936 = vmatprep.subr.mxu0 0.0
    %1937 = vmatpush1.msra.mxu0 %v274
    %1938 = vmatprep.subr.mxu0 0.0
    %1939 = vmatpush1.msra.mxu0 %v275
    %1940 = vmatprep.subr.mxu0 0.0
    %1941 = vmatpush1.msra.mxu0 %v276
    %1942 = vmatprep.subr.mxu0 0.0
    %1943 = vmatpush1.msra.mxu0 %v277
    %1944 = vmatprep.subr.mxu0 0.0
    %1945 = vmatpush1.msra.mxu0 %v278
    %1946 = vmatprep.subr.mxu0 0.0
    %1947 = vmatpush1.msra.mxu0 %v279
    %1948 = vmatprep.subr.mxu0 0.0
    %1949 = vmatpush1.msra.mxu0 %v280
    %1950 = vmatprep.subr.mxu0 0.0
    %1951 = vmatpush1.msra.mxu0 %v281
    %1952 = vmatprep.subr.mxu0 0.0
    %1953 = vmatpush1.msra.mxu0 %v282
    %1954 = vmatprep.subr.mxu0 0.0
    %1955 = vmatpush1.msra.mxu0 %v283
    %1956 = vmatprep.subr.mxu0 0.0
    %1957 = vmatpush1.msra.mxu0 %v284
    %1958 = vmatprep.subr.mxu0 0.0
    %1959 = vmatpush1.msra.mxu0 %v285
    %1960 = vmatprep.subr.mxu0 0.0
    %1961 = vmatpush1.msra.mxu0 %v286
    %1962 = vmatprep.subr.mxu0 0.0
    %1963 = vmatpush1.msra.mxu0 %v287
    %1964 = vmatprep.subr.mxu0 0.0
    %1965 = vmatpush1.msra.mxu0 %v288
    %1966 = vmatprep.subr.mxu0 0.0
    %1967 = vmatpush1.msra.mxu0 %v289
    %1968 = vmatprep.subr.mxu0 0.0
    %1969 = vmatpush1.msra.mxu0 %v290
    %1970 = vmatprep.subr.mxu0 0.0
    %1971 = vmatpush1.msra.mxu0 %v291
    %1972 = vmatprep.subr.mxu0 0.0
    %1973 = vmatpush1.msra.mxu0 %v292
    %1974 = vmatprep.mubr.f32.mxu0 %v1151
    %1975 = vmatmul.mubr.f32.gmra.mrb[0].mxu0 %v1149
    %v1976 = vpop.f32.mrb[0].mxu0
    %v1977 = vadd.f32 %v1907, %v1976
    %v1978 = vpop.f32.mrb[0].mxu0
    %1979 = vdwg.mxu0
    %1980 = vmatprep.subr.mxu0 0.0
    %1981 = vmatpush1.msra.mxu0 %v293
    %1982 = vmatprep.subr.mxu0 0.0
    %1983 = vmatpush1.msra.mxu0 %v294
    %1984 = vmatprep.subr.mxu0 0.0
    %1985 = vmatpush1.msra.mxu0 %v295
    %1986 = vmatprep.subr.mxu0 0.0
    %1987 = vmatpush1.msra.mxu0 %v296
    %1988 = vmatprep.subr.mxu0 0.0
    %1989 = vmatpush1.msra.mxu0 %v297
    %1990 = vmatprep.subr.mxu0 0.0
    %1991 = vmatpush1.msra.mxu0 %v298
    %1992 = vmatprep.subr.mxu0 0.0
    %1993 = vmatpush1.msra.mxu0 %v299
    %1994 = vmatprep.subr.mxu0 0.0
    %1995 = vmatpush1.msra.mxu0 %v300
    %1996 = vmatprep.subr.mxu0 0.0
    %1997 = vmatpush1.msra.mxu0 %v301
    %1998 = vmatprep.subr.mxu0 0.0
    %1999 = vmatpush1.msra.mxu0 %v302
    %2000 = vmatprep.subr.mxu0 0.0
    %2001 = vmatpush1.msra.mxu0 %v303
    %2002 = vmatprep.subr.mxu0 0.0
    %2003 = vmatpush1.msra.mxu0 %v304
    %2004 = vmatprep.subr.mxu0 0.0
    %2005 = vmatpush1.msra.mxu0 %v305
    %2006 = vmatprep.subr.mxu0 0.0
    %2007 = vmatpush1.msra.mxu0 %v306
    %2008 = vmatprep.subr.mxu0 0.0
    %2009 = vmatpush1.msra.mxu0 %v307
    %2010 = vmatprep.subr.mxu0 0.0
    %2011 = vmatpush1.msra.mxu0 %v308
    %2012 = vmatprep.subr.mxu0 0.0
    %2013 = vmatpush1.msra.mxu0 %v309
    %2014 = vmatprep.subr.mxu0 0.0
    %2015 = vmatpush1.msra.mxu0 %v310
    %2016 = vmatprep.subr.mxu0 0.0
    %2017 = vmatpush1.msra.mxu0 %v311
    %2018 = vmatprep.subr.mxu0 0.0
    %2019 = vmatpush1.msra.mxu0 %v312
    %2020 = vmatprep.subr.mxu0 0.0
    %2021 = vmatpush1.msra.mxu0 %v313
    %2022 = vmatprep.subr.mxu0 0.0
    %2023 = vmatpush1.msra.mxu0 %v314
    %2024 = vmatprep.subr.mxu0 0.0
    %2025 = vmatpush1.msra.mxu0 %v315
    %2026 = vmatprep.subr.mxu0 0.0
    %2027 = vmatpush1.msra.mxu0 %v316
    %2028 = vmatprep.subr.mxu0 0.0
    %2029 = vmatpush1.msra.mxu0 %v317
    %2030 = vmatprep.subr.mxu0 0.0
    %2031 = vmatpush1.msra.mxu0 %v318
    %2032 = vmatprep.subr.mxu0 0.0
    %2033 = vmatpush1.msra.mxu0 %v319
    %2034 = vmatprep.subr.mxu0 0.0
    %2035 = vmatpush1.msra.mxu0 %v320
    %2036 = vmatprep.subr.mxu0 0.0
    %2037 = vmatpush1.msra.mxu0 %v321
    %2038 = vmatprep.subr.mxu0 0.0
    %2039 = vmatpush1.msra.mxu0 %v322
    %2040 = vmatprep.subr.mxu0 0.0
    %2041 = vmatpush1.msra.mxu0 %v323
    %2042 = vmatprep.subr.mxu0 0.0
    %2043 = vmatpush1.msra.mxu0 %v324
    %2044 = vmatprep.mubr.f32.mxu0 %v1167
    %2045 = vmatmul.mubr.f32.gmra.mrb[0].mxu0 %v1159
    %v2046 = vpop.f32.mrb[0].mxu0
    %v2047 = vadd.f32 %v1977, %v2046
    %v2048 = vpop.f32.mrb[0].mxu0
    %2049 = vdwg.mxu0
    %2050 = vmatprep.subr.mxu0 0.0
    %2051 = vmatpush1.msra.mxu0 %v325
    %2052 = vmatprep.subr.mxu0 0.0
    %2053 = vmatpush1.msra.mxu0 %v326
    %2054 = vmatprep.subr.mxu0 0.0
    %2055 = vmatpush1.msra.mxu0 %v327
    %2056 = vmatprep.subr.mxu0 0.0
    %2057 = vmatpush1.msra.mxu0 %v328
    %2058 = vmatprep.subr.mxu0 0.0
    %2059 = vmatpush1.msra.mxu0 %v329
    %2060 = vmatprep.subr.mxu0 0.0
    %2061 = vmatpush1.msra.mxu0 %v330
    %2062 = vmatprep.subr.mxu0 0.0
    %2063 = vmatpush1.msra.mxu0 %v331
    %2064 = vmatprep.subr.mxu0 0.0
    %2065 = vmatpush1.msra.mxu0 %v332
    %2066 = vmatprep.subr.mxu0 0.0
    %2067 = vmatpush1.msra.mxu0 %v333
    %2068 = vmatprep.subr.mxu0 0.0
    %2069 = vmatpush1.msra.mxu0 %v334
    %2070 = vmatprep.subr.mxu0 0.0
    %2071 = vmatpush1.msra.mxu0 %v335
    %2072 = vmatprep.subr.mxu0 0.0
    %2073 = vmatpush1.msra.mxu0 %v336
    %2074 = vmatprep.subr.mxu0 0.0
    %2075 = vmatpush1.msra.mxu0 %v337
    %2076 = vmatprep.subr.mxu0 0.0
    %2077 = vmatpush1.msra.mxu0 %v338
    %2078 = vmatprep.subr.mxu0 0.0
    %2079 = vmatpush1.msra.mxu0 %v339
    %2080 = vmatprep.subr.mxu0 0.0
    %2081 = vmatpush1.msra.mxu0 %v340
    %2082 = vmatprep.subr.mxu0 0.0
    %2083 = vmatpush1.msra.mxu0 %v341
    %2084 = vmatprep.subr.mxu0 0.0
    %2085 = vmatpush1.msra.mxu0 %v342
    %2086 = vmatprep.subr.mxu0 0.0
    %2087 = vmatpush1.msra.mxu0 %v343
    %2088 = vmatprep.subr.mxu0 0.0
    %2089 = vmatpush1.msra.mxu0 %v344
    %2090 = vmatprep.subr.mxu0 0.0
    %2091 = vmatpush1.msra.mxu0 %v345
    %2092 = vmatprep.subr.mxu0 0.0
    %2093 = vmatpush1.msra.mxu0 %v346
    %2094 = vmatprep.subr.mxu0 0.0
    %2095 = vmatpush1.msra.mxu0 %v347
    %2096 = vmatprep.subr.mxu0 0.0
    %2097 = vmatpush1.msra.mxu0 %v348
    %2098 = vmatprep.subr.mxu0 0.0
    %2099 = vmatpush1.msra.mxu0 %v349
    %2100 = vmatprep.subr.mxu0 0.0
    %2101 = vmatpush1.msra.mxu0 %v350
    %2102 = vmatprep.subr.mxu0 0.0
    %2103 = vmatpush1.msra.mxu0 %v351
    %2104 = vmatprep.subr.mxu0 0.0
    %2105 = vmatpush1.msra.mxu0 %v352
    %2106 = vmatprep.subr.mxu0 0.0
    %2107 = vmatpush1.msra.mxu0 %v353
    %2108 = vmatprep.subr.mxu0 0.0
    %2109 = vmatpush1.msra.mxu0 %v354
    %2110 = vmatprep.subr.mxu0 0.0
    %2111 = vmatpush1.msra.mxu0 %v355
    %2112 = vmatprep.subr.mxu0 0.0
    %2113 = vmatpush1.msra.mxu0 %v356
    %2114 = vmatprep.mubr.f32.mxu0 %v1168
    %2115 = vmatmul.mubr.f32.gmra.mrb[0].mxu0 %v1166
    %v2116 = vpop.f32.mrb[0].mxu0
    %v2117 = vadd.f32 %v2047, %v2116
    %v2118 = vpop.f32.mrb[0].mxu0
    %2119 = vdwg.mxu0
    %2120 = vmatprep.subr.mxu0 0.0
    %2121 = vmatpush1.msra.mxu0 %v357
    %2122 = vmatprep.subr.mxu0 0.0
    %2123 = vmatpush1.msra.mxu0 %v358
    %2124 = vmatprep.subr.mxu0 0.0
    %2125 = vmatpush1.msra.mxu0 %v359
    %2126 = vmatprep.subr.mxu0 0.0
    %2127 = vmatpush1.msra.mxu0 %v360
    %2128 = vmatprep.subr.mxu0 0.0
    %2129 = vmatpush1.msra.mxu0 %v361
    %2130 = vmatprep.subr.mxu0 0.0
    %2131 = vmatpush1.msra.mxu0 %v362
    %2132 = vmatprep.subr.mxu0 0.0
    %2133 = vmatpush1.msra.mxu0 %v363
    %2134 = vmatprep.subr.mxu0 0.0
    %2135 = vmatpush1.msra.mxu0 %v364
    %2136 = vmatprep.subr.mxu0 0.0
    %2137 = vmatpush1.msra.mxu0 %v365
    %2138 = vmatprep.subr.mxu0 0.0
    %2139 = vmatpush1.msra.mxu0 %v366
    %2140 = vmatprep.subr.mxu0 0.0
    %2141 = vmatpush1.msra.mxu0 %v367
    %2142 = vmatprep.subr.mxu0 0.0
    %2143 = vmatpush1.msra.mxu0 %v368
    %2144 = vmatprep.subr.mxu0 0.0
    %2145 = vmatpush1.msra.mxu0 %v369
    %2146 = vmatprep.subr.mxu0 0.0
    %2147 = vmatpush1.msra.mxu0 %v370
    %2148 = vmatprep.subr.mxu0 0.0
    %2149 = vmatpush1.msra.mxu0 %v371
    %2150 = vmatprep.subr.mxu0 0.0
    %2151 = vmatpush1.msra.mxu0 %v372
    %2152 = vmatprep.subr.mxu0 0.0
    %2153 = vmatpush1.msra.mxu0 %v373
    %2154 = vmatprep.subr.mxu0 0.0
    %2155 = vmatpush1.msra.mxu0 %v374
    %2156 = vmatprep.subr.mxu0 0.0
    %2157 = vmatpush1.msra.mxu0 %v375
    %2158 = vmatprep.subr.mxu0 0.0
    %2159 = vmatpush1.msra.mxu0 %v376
    %2160 = vmatprep.subr.mxu0 0.0
    %2161 = vmatpush1.msra.mxu0 %v377
    %2162 = vmatprep.subr.mxu0 0.0
    %2163 = vmatpush1.msra.mxu0 %v378
    %2164 = vmatprep.subr.mxu0 0.0
    %2165 = vmatpush1.msra.mxu0 %v379
    %2166 = vmatprep.subr.mxu0 0.0
    %2167 = vmatpush1.msra.mxu0 %v380
    %2168 = vmatprep.subr.mxu0 0.0
    %2169 = vmatpush1.msra.mxu0 %v381
    %2170 = vmatprep.subr.mxu0 0.0
    %2171 = vmatpush1.msra.mxu0 %v382
    %2172 = vmatprep.subr.mxu0 0.0
    %2173 = vmatpush1.msra.mxu0 %v383
    %2174 = vmatprep.subr.mxu0 0.0
    %2175 = vmatpush1.msra.mxu0 %v384
    %2176 = vmatprep.subr.mxu0 0.0
    %2177 = vmatpush1.msra.mxu0 %v385
    %2178 = vmatprep.subr.mxu0 0.0
    %2179 = vmatpush1.msra.mxu0 %v386
    %2180 = vmatprep.subr.mxu0 0.0
    %2181 = vmatpush1.msra.mxu0 %v387
    %2182 = vmatprep.subr.mxu0 0.0
    %2183 = vmatpush1.msra.mxu0 %v388
    %2184 = vmatprep.mubr.f32.mxu0 %v1184
    %2185 = vmatmul.mubr.f32.gmra.mrb[0].mxu0 %v1176
    %v2186 = vpop.f32.mrb[0].mxu0
    %v2187 = vadd.f32 %v2117, %v2186
    %v2188 = vpop.f32.mrb[0].mxu0
    %2189 = vdwg.mxu0
    %2190 = vmatprep.subr.mxu0 0.0
    %2191 = vmatpush1.msra.mxu0 %v389
    %2192 = vmatprep.subr.mxu0 0.0
    %2193 = vmatpush1.msra.mxu0 %v390
    %2194 = vmatprep.subr.mxu0 0.0
    %2195 = vmatpush1.msra.mxu0 %v391
    %2196 = vmatprep.subr.mxu0 0.0
    %2197 = vmatpush1.msra.mxu0 %v392
    %2198 = vmatprep.subr.mxu0 0.0
    %2199 = vmatpush1.msra.mxu0 %v393
    %2200 = vmatprep.subr.mxu0 0.0
    %2201 = vmatpush1.msra.mxu0 %v394
    %2202 = vmatprep.subr.mxu0 0.0
    %2203 = vmatpush1.msra.mxu0 %v395
    %2204 = vmatprep.subr.mxu0 0.0
    %2205 = vmatpush1.msra.mxu0 %v396
    %2206 = vmatprep.subr.mxu0 0.0
    %2207 = vmatpush1.msra.mxu0 %v397
    %2208 = vmatprep.subr.mxu0 0.0
    %2209 = vmatpush1.msra.mxu0 %v398
    %2210 = vmatprep.subr.mxu0 0.0
    %2211 = vmatpush1.msra.mxu0 %v399
    %2212 = vmatprep.subr.mxu0 0.0
    %2213 = vmatpush1.msra.mxu0 %v400
    %2214 = vmatprep.subr.mxu0 0.0
    %2215 = vmatpush1.msra.mxu0 %v401
    %2216 = vmatprep.subr.mxu0 0.0
    %2217 = vmatpush1.msra.mxu0 %v402
    %2218 = vmatprep.subr.mxu0 0.0
    %2219 = vmatpush1.msra.mxu0 %v403
    %2220 = vmatprep.subr.mxu0 0.0
    %2221 = vmatpush1.msra.mxu0 %v404
    %2222 = vmatprep.subr.mxu0 0.0
    %2223 = vmatpush1.msra.mxu0 %v405
    %2224 = vmatprep.subr.mxu0 0.0
    %2225 = vmatpush1.msra.mxu0 %v406
    %2226 = vmatprep.subr.mxu0 0.0
    %2227 = vmatpush1.msra.mxu0 %v407
    %2228 = vmatprep.subr.mxu0 0.0
    %2229 = vmatpush1.msra.mxu0 %v408
    %2230 = vmatprep.subr.mxu0 0.0
    %2231 = vmatpush1.msra.mxu0 %v409
    %2232 = vmatprep.subr.mxu0 0.0
    %2233 = vmatpush1.msra.mxu0 %v410
    %2234 = vmatprep.subr.mxu0 0.0
    %2235 = vmatpush1.msra.mxu0 %v411
    %2236 = vmatprep.subr.mxu0 0.0
    %2237 = vmatpush1.msra.mxu0 %v412
    %2238 = vmatprep.subr.mxu0 0.0
    %2239 = vmatpush1.msra.mxu0 %v413
    %2240 = vmatprep.subr.mxu0 0.0
    %2241 = vmatpush1.msra.mxu0 %v414
    %2242 = vmatprep.subr.mxu0 0.0
    %2243 = vmatpush1.msra.mxu0 %v415
    %2244 = vmatprep.subr.mxu0 0.0
    %2245 = vmatpush1.msra.mxu0 %v416
    %2246 = vmatprep.subr.mxu0 0.0
    %2247 = vmatpush1.msra.mxu0 %v417
    %2248 = vmatprep.subr.mxu0 0.0
    %2249 = vmatpush1.msra.mxu0 %v418
    %2250 = vmatprep.subr.mxu0 0.0
    %2251 = vmatpush1.msra.mxu0 %v419
    %2252 = vmatprep.subr.mxu0 0.0
    %2253 = vmatpush1.msra.mxu0 %v420
    %2254 = vmatprep.mubr.f32.mxu0 %v1185
    %2255 = vmatmul.mubr.f32.gmra.mrb[0].mxu0 %v1183
    %v2256 = vpop.f32.mrb[0].mxu0
    %v2257 = vadd.f32 %v2187, %v2256
    %v2258 = vpop.f32.mrb[0].mxu0
    %2259 = vdwg.mxu0
    %2260 = vmatprep.subr.mxu0 0.0
    %2261 = vmatpush1.msra.mxu0 %v421
    %2262 = vmatprep.subr.mxu0 0.0
    %2263 = vmatpush1.msra.mxu0 %v422
    %2264 = vmatprep.subr.mxu0 0.0
    %2265 = vmatpush1.msra.mxu0 %v423
    %2266 = vmatprep.subr.mxu0 0.0
    %2267 = vmatpush1.msra.mxu0 %v424
    %2268 = vmatprep.subr.mxu0 0.0
    %2269 = vmatpush1.msra.mxu0 %v425
    %2270 = vmatprep.subr.mxu0 0.0
    %2271 = vmatpush1.msra.mxu0 %v426
    %2272 = vmatprep.subr.mxu0 0.0
    %2273 = vmatpush1.msra.mxu0 %v427
    %2274 = vmatprep.subr.mxu0 0.0
    %2275 = vmatpush1.msra.mxu0 %v428
    %2276 = vmatprep.subr.mxu0 0.0
    %2277 = vmatpush1.msra.mxu0 %v429
    %2278 = vmatprep.subr.mxu0 0.0
    %2279 = vmatpush1.msra.mxu0 %v430
    %2280 = vmatprep.subr.mxu0 0.0
    %2281 = vmatpush1.msra.mxu0 %v431
    %2282 = vmatprep.subr.mxu0 0.0
    %2283 = vmatpush1.msra.mxu0 %v432
    %2284 = vmatprep.subr.mxu0 0.0
    %2285 = vmatpush1.msra.mxu0 %v433
    %2286 = vmatprep.subr.mxu0 0.0
    %2287 = vmatpush1.msra.mxu0 %v434
    %2288 = vmatprep.subr.mxu0 0.0
    %2289 = vmatpush1.msra.mxu0 %v435
    %2290 = vmatprep.subr.mxu0 0.0
    %2291 = vmatpush1.msra.mxu0 %v436
    %2292 = vmatprep.subr.mxu0 0.0
    %2293 = vmatpush1.msra.mxu0 %v437
    %2294 = vmatprep.subr.mxu0 0.0
    %2295 = vmatpush1.msra.mxu0 %v438
    %2296 = vmatprep.subr.mxu0 0.0
    %2297 = vmatpush1.msra.mxu0 %v439
    %2298 = vmatprep.subr.mxu0 0.0
    %2299 = vmatpush1.msra.mxu0 %v440
    %2300 = vmatprep.subr.mxu0 0.0
    %2301 = vmatpush1.msra.mxu0 %v441
    %2302 = vmatprep.subr.mxu0 0.0
    %2303 = vmatpush1.msra.mxu0 %v442
    %2304 = vmatprep.subr.mxu0 0.0
    %2305 = vmatpush1.msra.mxu0 %v443
    %2306 = vmatprep.subr.mxu0 0.0
    %2307 = vmatpush1.msra.mxu0 %v444
    %2308 = vmatprep.subr.mxu0 0.0
    %2309 = vmatpush1.msra.mxu0 %v445
    %2310 = vmatprep.subr.mxu0 0.0
    %2311 = vmatpush1.msra.mxu0 %v446
    %2312 = vmatprep.subr.mxu0 0.0
    %2313 = vmatpush1.msra.mxu0 %v447
    %2314 = vmatprep.subr.mxu0 0.0
    %2315 = vmatpush1.msra.mxu0 %v448
    %2316 = vmatprep.subr.mxu0 0.0
    %2317 = vmatpush1.msra.mxu0 %v449
    %2318 = vmatprep.subr.mxu0 0.0
    %2319 = vmatpush1.msra.mxu0 %v450
    %2320 = vmatprep.subr.mxu0 0.0
    %2321 = vmatpush1.msra.mxu0 %v451
    %2322 = vmatprep.subr.mxu0 0.0
    %2323 = vmatpush1.msra.mxu0 %v452
    %2324 = vmatprep.mubr.f32.mxu0 %v1201
    %2325 = vmatmul.mubr.f32.gmra.mrb[0].mxu0 %v1193
    %v2326 = vpop.f32.mrb[0].mxu0
    %v2327 = vadd.f32 %v2257, %v2326
    %v2328 = vpop.f32.mrb[0].mxu0
    %2329 = vdwg.mxu0
    %2330 = vmatprep.subr.mxu0 0.0
    %2331 = vmatpush1.msra.mxu0 %v453
    %2332 = vmatprep.subr.mxu0 0.0
    %2333 = vmatpush1.msra.mxu0 %v454
    %2334 = vmatprep.subr.mxu0 0.0
    %2335 = vmatpush1.msra.mxu0 %v455
    %2336 = vmatprep.subr.mxu0 0.0
    %2337 = vmatpush1.msra.mxu0 %v456
    %2338 = vmatprep.subr.mxu0 0.0
    %2339 = vmatpush1.msra.mxu0 %v457
    %2340 = vmatprep.subr.mxu0 0.0
    %2341 = vmatpush1.msra.mxu0 %v458
    %2342 = vmatprep.subr.mxu0 0.0
    %2343 = vmatpush1.msra.mxu0 %v459
    %2344 = vmatprep.subr.mxu0 0.0
    %2345 = vmatpush1.msra.mxu0 %v460
    %2346 = vmatprep.subr.mxu0 0.0
    %2347 = vmatpush1.msra.mxu0 %v461
    %2348 = vmatprep.subr.mxu0 0.0
    %2349 = vmatpush1.msra.mxu0 %v462
    %2350 = vmatprep.subr.mxu0 0.0
    %2351 = vmatpush1.msra.mxu0 %v463
    %2352 = vmatprep.subr.mxu0 0.0
    %2353 = vmatpush1.msra.mxu0 %v464
    %2354 = vmatprep.subr.mxu0 0.0
    %2355 = vmatpush1.msra.mxu0 %v465
    %2356 = vmatprep.subr.mxu0 0.0
    %2357 = vmatpush1.msra.mxu0 %v466
    %2358 = vmatprep.subr.mxu0 0.0
    %2359 = vmatpush1.msra.mxu0 %v467
    %2360 = vmatprep.subr.mxu0 0.0
    %2361 = vmatpush1.msra.mxu0 %v468
    %2362 = vmatprep.subr.mxu0 0.0
    %2363 = vmatpush1.msra.mxu0 %v469
    %2364 = vmatprep.subr.mxu0 0.0
    %2365 = vmatpush1.msra.mxu0 %v470
    %2366 = vmatprep.subr.mxu0 0.0
    %2367 = vmatpush1.msra.mxu0 %v471
    %2368 = vmatprep.subr.mxu0 0.0
    %2369 = vmatpush1.msra.mxu0 %v472
    %2370 = vmatprep.subr.mxu0 0.0
    %2371 = vmatpush1.msra.mxu0 %v473
    %2372 = vmatprep.subr.mxu0 0.0
    %2373 = vmatpush1.msra.mxu0 %v474
    %2374 = vmatprep.subr.mxu0 0.0
    %2375 = vmatpush1.msra.mxu0 %v475
    %2376 = vmatprep.subr.mxu0 0.0
    %2377 = vmatpush1.msra.mxu0 %v476
    %2378 = vmatprep.subr.mxu0 0.0
    %2379 = vmatpush1.msra.mxu0 %v477
    %2380 = vmatprep.subr.mxu0 0.0
    %2381 = vmatpush1.msra.mxu0 %v478
    %2382 = vmatprep.subr.mxu0 0.0
    %2383 = vmatpush1.msra.mxu0 %v479
    %2384 = vmatprep.subr.mxu0 0.0
    %2385 = vmatpush1.msra.mxu0 %v480
    %2386 = vmatprep.subr.mxu0 0.0
    %2387 = vmatpush1.msra.mxu0 %v481
    %2388 = vmatprep.subr.mxu0 0.0
    %2389 = vmatpush1.msra.mxu0 %v482
    %2390 = vmatprep.subr.mxu0 0.0
    %2391 = vmatpush1.msra.mxu0 %v483
    %2392 = vmatprep.subr.mxu0 0.0
    %2393 = vmatpush1.msra.mxu0 %v484
    %2394 = vmatprep.mubr.f32.mxu0 %v1202
    %2395 = vmatmul.mubr.f32.gmra.mrb[0].mxu0 %v1200
    %v2396 = vpop.f32.mrb[0].mxu0
    %v2397 = vadd.f32 %v2327, %v2396
    %v2398 = vpop.f32.mrb[0].mxu0
    %2399 = vdwg.mxu0
    %2400 = vmatprep.subr.mxu0 0.0
    %2401 = vmatpush1.msra.mxu0 %v485
    %2402 = vmatprep.subr.mxu0 0.0
    %2403 = vmatpush1.msra.mxu0 %v486
    %2404 = vmatprep.subr.mxu0 0.0
    %2405 = vmatpush1.msra.mxu0 %v487
    %2406 = vmatprep.subr.mxu0 0.0
    %2407 = vmatpush1.msra.mxu0 %v488
    %2408 = vmatprep.subr.mxu0 0.0
    %2409 = vmatpush1.msra.mxu0 %v489
    %2410 = vmatprep.subr.mxu0 0.0
    %2411 = vmatpush1.msra.mxu0 %v490
    %2412 = vmatprep.subr.mxu0 0.0
    %2413 = vmatpush1.msra.mxu0 %v491
    %2414 = vmatprep.subr.mxu0 0.0
    %2415 = vmatpush1.msra.mxu0 %v492
    %2416 = vmatprep.subr.mxu0 0.0
    %2417 = vmatpush1.msra.mxu0 %v493
    %2418 = vmatprep.subr.mxu0 0.0
    %2419 = vmatpush1.msra.mxu0 %v494
    %2420 = vmatprep.subr.mxu0 0.0
    %2421 = vmatpush1.msra.mxu0 %v495
    %2422 = vmatprep.subr.mxu0 0.0
    %2423 = vmatpush1.msra.mxu0 %v496
    %2424 = vmatprep.subr.mxu0 0.0
    %2425 = vmatpush1.msra.mxu0 %v497
    %2426 = vmatprep.subr.mxu0 0.0
    %2427 = vmatpush1.msra.mxu0 %v498
    %2428 = vmatprep.subr.mxu0 0.0
    %2429 = vmatpush1.msra.mxu0 %v499
    %2430 = vmatprep.subr.mxu0 0.0
    %2431 = vmatpush1.msra.mxu0 %v500
    %2432 = vmatprep.subr.mxu0 0.0
    %2433 = vmatpush1.msra.mxu0 %v501
    %2434 = vmatprep.subr.mxu0 0.0
    %2435 = vmatpush1.msra.mxu0 %v502
    %2436 = vmatprep.subr.mxu0 0.0
    %2437 = vmatpush1.msra.mxu0 %v503
    %2438 = vmatprep.subr.mxu0 0.0
    %2439 = vmatpush1.msra.mxu0 %v504
    %2440 = vmatprep.subr.mxu0 0.0
    %2441 = vmatpush1.msra.mxu0 %v505
    %2442 = vmatprep.subr.mxu0 0.0
    %2443 = vmatpush1.msra.mxu0 %v506
    %2444 = vmatprep.subr.mxu0 0.0
    %2445 = vmatpush1.msra.mxu0 %v507
    %2446 = vmatprep.subr.mxu0 0.0
    %2447 = vmatpush1.msra.mxu0 %v508
    %2448 = vmatprep.subr.mxu0 0.0
    %2449 = vmatpush1.msra.mxu0 %v509
    %2450 = vmatprep.subr.mxu0 0.0
    %2451 = vmatpush1.msra.mxu0 %v510
    %2452 = vmatprep.subr.mxu0 0.0
    %2453 = vmatpush1.msra.mxu0 %v511
    %2454 = vmatprep.subr.mxu0 0.0
    %2455 = vmatpush1.msra.mxu0 %v512
    %2456 = vmatprep.subr.mxu0 0.0
    %2457 = vmatpush1.msra.mxu0 %v513
    %2458 = vmatprep.subr.mxu0 0.0
    %2459 = vmatpush1.msra.mxu0 %v514
    %2460 = vmatprep.subr.mxu0 0.0
    %2461 = vmatpush1.msra.mxu0 %v515
    %2462 = vmatprep.subr.mxu0 0.0
    %2463 = vmatpush1.msra.mxu0 %v516
    %2464 = vmatprep.mubr.f32.mxu0 %v1218
    %2465 = vmatmul.mubr.f32.gmra.mrb[0].mxu0 %v1210
    %v2466 = vpop.f32.mrb[0].mxu0
    %v2467 = vadd.f32 %v2397, %v2466
    %v2468 = vpop.f32.mrb[0].mxu0
    %2469 = vdwg.mxu0
    %2470 = vmatprep.subr.mxu0 0.0
    %2471 = vmatpush1.msra.mxu0 %v517
    %2472 = vmatprep.subr.mxu0 0.0
    %2473 = vmatpush1.msra.mxu0 %v518
    %2474 = vmatprep.subr.mxu0 0.0
    %2475 = vmatpush1.msra.mxu0 %v519
    %2476 = vmatprep.subr.mxu0 0.0
    %2477 = vmatpush1.msra.mxu0 %v520
    %2478 = vmatprep.subr.mxu0 0.0
    %2479 = vmatpush1.msra.mxu0 %v521
    %2480 = vmatprep.subr.mxu0 0.0
    %2481 = vmatpush1.msra.mxu0 %v522
    %2482 = vmatprep.subr.mxu0 0.0
    %2483 = vmatpush1.msra.mxu0 %v523
    %2484 = vmatprep.subr.mxu0 0.0
    %2485 = vmatpush1.msra.mxu0 %v524
    %2486 = vmatprep.subr.mxu0 0.0
    %2487 = vmatpush1.msra.mxu0 %v525
    %2488 = vmatprep.subr.mxu0 0.0
    %2489 = vmatpush1.msra.mxu0 %v526
    %2490 = vmatprep.subr.mxu0 0.0
    %2491 = vmatpush1.msra.mxu0 %v527
    %2492 = vmatprep.subr.mxu0 0.0
    %2493 = vmatpush1.msra.mxu0 %v528
    %2494 = vmatprep.subr.mxu0 0.0
    %2495 = vmatpush1.msra.mxu0 %v529
    %2496 = vmatprep.subr.mxu0 0.0
    %2497 = vmatpush1.msra.mxu0 %v530
    %2498 = vmatprep.subr.mxu0 0.0
    %2499 = vmatpush1.msra.mxu0 %v531
    %2500 = vmatprep.subr.mxu0 0.0
    %2501 = vmatpush1.msra.mxu0 %v532
    %2502 = vmatprep.subr.mxu0 0.0
    %2503 = vmatpush1.msra.mxu0 %v533
    %2504 = vmatprep.subr.mxu0 0.0
    %2505 = vmatpush1.msra.mxu0 %v534
    %2506 = vmatprep.subr.mxu0 0.0
    %2507 = vmatpush1.msra.mxu0 %v535
    %2508 = vmatprep.subr.mxu0 0.0
    %2509 = vmatpush1.msra.mxu0 %v536
    %2510 = vmatprep.subr.mxu0 0.0
    %2511 = vmatpush1.msra.mxu0 %v537
    %2512 = vmatprep.subr.mxu0 0.0
    %2513 = vmatpush1.msra.mxu0 %v538
    %2514 = vmatprep.subr.mxu0 0.0
    %2515 = vmatpush1.msra.mxu0 %v539
    %2516 = vmatprep.subr.mxu0 0.0
    %2517 = vmatpush1.msra.mxu0 %v540
    %2518 = vmatprep.subr.mxu0 0.0
    %2519 = vmatpush1.msra.mxu0 %v541
    %2520 = vmatprep.subr.mxu0 0.0
    %2521 = vmatpush1.msra.mxu0 %v542
    %2522 = vmatprep.subr.mxu0 0.0
    %2523 = vmatpush1.msra.mxu0 %v543
    %2524 = vmatprep.subr.mxu0 0.0
    %2525 = vmatpush1.msra.mxu0 %v544
    %2526 = vmatprep.subr.mxu0 0.0
    %2527 = vmatpush1.msra.mxu0 %v545
    %2528 = vmatprep.subr.mxu0 0.0
    %2529 = vmatpush1.msra.mxu0 %v546
    %2530 = vmatprep.subr.mxu0 0.0
    %2531 = vmatpush1.msra.mxu0 %v547
    %2532 = vmatprep.subr.mxu0 0.0
    %2533 = vmatpush1.msra.mxu0 %v548
    %2534 = vmatprep.mubr.f32.mxu0 %v1219
    %2535 = vmatmul.mubr.f32.gmra.mrb[0].mxu0 %v1217
    %v2536 = vpop.f32.mrb[0].mxu0
    %v2537 = vadd.f32 %v2467, %v2536
    %v2538 = vpop.f32.mrb[0].mxu0
    %2539 = vdwg.mxu0
    %2540 = vmatprep.subr.mxu0 0.0
    %2541 = vmatpush1.msra.mxu0 %v549
    %2542 = vmatprep.subr.mxu0 0.0
    %2543 = vmatpush1.msra.mxu0 %v550
    %2544 = vmatprep.subr.mxu0 0.0
    %2545 = vmatpush1.msra.mxu0 %v551
    %2546 = vmatprep.subr.mxu0 0.0
    %2547 = vmatpush1.msra.mxu0 %v552
    %2548 = vmatprep.subr.mxu0 0.0
    %2549 = vmatpush1.msra.mxu0 %v553
    %2550 = vmatprep.subr.mxu0 0.0
    %2551 = vmatpush1.msra.mxu0 %v554
    %2552 = vmatprep.subr.mxu0 0.0
    %2553 = vmatpush1.msra.mxu0 %v555
    %2554 = vmatprep.subr.mxu0 0.0
    %2555 = vmatpush1.msra.mxu0 %v556
    %2556 = vmatprep.subr.mxu0 0.0
    %2557 = vmatpush1.msra.mxu0 %v557
    %2558 = vmatprep.subr.mxu0 0.0
    %2559 = vmatpush1.msra.mxu0 %v558
    %2560 = vmatprep.subr.mxu0 0.0
    %2561 = vmatpush1.msra.mxu0 %v559
    %2562 = vmatprep.subr.mxu0 0.0
    %2563 = vmatpush1.msra.mxu0 %v560
    %2564 = vmatprep.subr.mxu0 0.0
    %2565 = vmatpush1.msra.mxu0 %v561
    %2566 = vmatprep.subr.mxu0 0.0
    %2567 = vmatpush1.msra.mxu0 %v562
    %2568 = vmatprep.subr.mxu0 0.0
    %2569 = vmatpush1.msra.mxu0 %v563
    %2570 = vmatprep.subr.mxu0 0.0
    %2571 = vmatpush1.msra.mxu0 %v564
    %2572 = vmatprep.subr.mxu0 0.0
    %2573 = vmatpush1.msra.mxu0 %v565
    %2574 = vmatprep.subr.mxu0 0.0
    %2575 = vmatpush1.msra.mxu0 %v566
    %2576 = vmatprep.subr.mxu0 0.0
    %2577 = vmatpush1.msra.mxu0 %v567
    %2578 = vmatprep.subr.mxu0 0.0
    %2579 = vmatpush1.msra.mxu0 %v568
    %2580 = vmatprep.subr.mxu0 0.0
    %2581 = vmatpush1.msra.mxu0 %v569
    %2582 = vmatprep.subr.mxu0 0.0
    %2583 = vmatpush1.msra.mxu0 %v570
    %2584 = vmatprep.subr.mxu0 0.0
    %2585 = vmatpush1.msra.mxu0 %v571
    %2586 = vmatprep.subr.mxu0 0.0
    %2587 = vmatpush1.msra.mxu0 %v572
    %2588 = vmatprep.subr.mxu0 0.0
    %2589 = vmatpush1.msra.mxu0 %v573
    %2590 = vmatprep.subr.mxu0 0.0
    %2591 = vmatpush1.msra.mxu0 %v574
    %2592 = vmatprep.subr.mxu0 0.0
    %2593 = vmatpush1.msra.mxu0 %v575
    %2594 = vmatprep.subr.mxu0 0.0
    %2595 = vmatpush1.msra.mxu0 %v576
    %2596 = vmatprep.subr.mxu0 0.0
    %2597 = vmatpush1.msra.mxu0 %v577
    %2598 = vmatprep.subr.mxu0 0.0
    %2599 = vmatpush1.msra.mxu0 %v578
    %2600 = vmatprep.subr.mxu0 0.0
    %2601 = vmatpush1.msra.mxu0 %v579
    %2602 = vmatprep.subr.mxu0 0.0
    %2603 = vmatpush1.msra.mxu0 %v580
    %2604 = vmatprep.mubr.f32.mxu0 %v1235
    %2605 = vmatmul.mubr.f32.gmra.mrb[0].mxu0 %v1227
    %v2606 = vpop.f32.mrb[0].mxu0
    %v2607 = vadd.f32 %v2537, %v2606
    %v2608 = vpop.f32.mrb[0].mxu0
    %2609 = vdwg.mxu0
    %2610 = vmatprep.subr.mxu0 0.0
    %2611 = vmatpush1.msra.mxu0 %v581
    %2612 = vmatprep.subr.mxu0 0.0
    %2613 = vmatpush1.msra.mxu0 %v582
    %2614 = vmatprep.subr.mxu0 0.0
    %2615 = vmatpush1.msra.mxu0 %v583
    %2616 = vmatprep.subr.mxu0 0.0
    %2617 = vmatpush1.msra.mxu0 %v584
    %2618 = vmatprep.subr.mxu0 0.0
    %2619 = vmatpush1.msra.mxu0 %v585
    %2620 = vmatprep.subr.mxu0 0.0
    %2621 = vmatpush1.msra.mxu0 %v586
    %2622 = vmatprep.subr.mxu0 0.0
    %2623 = vmatpush1.msra.mxu0 %v587
    %2624 = vmatprep.subr.mxu0 0.0
    %2625 = vmatpush1.msra.mxu0 %v588
    %2626 = vmatprep.subr.mxu0 0.0
    %2627 = vmatpush1.msra.mxu0 %v589
    %2628 = vmatprep.subr.mxu0 0.0
    %2629 = vmatpush1.msra.mxu0 %v590
    %2630 = vmatprep.subr.mxu0 0.0
    %2631 = vmatpush1.msra.mxu0 %v591
    %2632 = vmatprep.subr.mxu0 0.0
    %2633 = vmatpush1.msra.mxu0 %v592
    %2634 = vmatprep.subr.mxu0 0.0
    %2635 = vmatpush1.msra.mxu0 %v593
    %2636 = vmatprep.subr.mxu0 0.0
    %2637 = vmatpush1.msra.mxu0 %v594
    %2638 = vmatprep.subr.mxu0 0.0
    %2639 = vmatpush1.msra.mxu0 %v595
    %2640 = vmatprep.subr.mxu0 0.0
    %2641 = vmatpush1.msra.mxu0 %v596
    %2642 = vmatprep.subr.mxu0 0.0
    %2643 = vmatpush1.msra.mxu0 %v597
    %2644 = vmatprep.subr.mxu0 0.0
    %2645 = vmatpush1.msra.mxu0 %v598
    %2646 = vmatprep.subr.mxu0 0.0
    %2647 = vmatpush1.msra.mxu0 %v599
    %2648 = vmatprep.subr.mxu0 0.0
    %2649 = vmatpush1.msra.mxu0 %v600
    %2650 = vmatprep.subr.mxu0 0.0
    %2651 = vmatpush1.msra.mxu0 %v601
    %2652 = vmatprep.subr.mxu0 0.0
    %2653 = vmatpush1.msra.mxu0 %v602
    %2654 = vmatprep.subr.mxu0 0.0
    %2655 = vmatpush1.msra.mxu0 %v603
    %2656 = vmatprep.subr.mxu0 0.0
    %2657 = vmatpush1.msra.mxu0 %v604
    %2658 = vmatprep.subr.mxu0 0.0
    %2659 = vmatpush1.msra.mxu0 %v605
    %2660 = vmatprep.subr.mxu0 0.0
    %2661 = vmatpush1.msra.mxu0 %v606
    %2662 = vmatprep.subr.mxu0 0.0
    %2663 = vmatpush1.msra.mxu0 %v607
    %2664 = vmatprep.subr.mxu0 0.0
    %2665 = vmatpush1.msra.mxu0 %v608
    %2666 = vmatprep.subr.mxu0 0.0
    %2667 = vmatpush1.msra.mxu0 %v609
    %2668 = vmatprep.subr.mxu0 0.0
    %2669 = vmatpush1.msra.mxu0 %v610
    %2670 = vmatprep.subr.mxu0 0.0
    %2671 = vmatpush1.msra.mxu0 %v611
    %2672 = vmatprep.subr.mxu0 0.0
    %2673 = vmatpush1.msra.mxu0 %v612
    %2674 = vmatprep.mubr.f32.mxu0 %v1236
    %2675 = vmatmul.mubr.f32.gmra.mrb[0].mxu0 %v1234
    %v2676 = vpop.f32.mrb[0].mxu0
    %v2677 = vadd.f32 %v2607, %v2676
    %v2678 = vpop.f32.mrb[0].mxu0
    %2679 = vdwg.mxu0
    %2680 = vmatprep.subr.mxu0 0.0
    %2681 = vmatpush1.msra.mxu0 %v613
    %2682 = vmatprep.subr.mxu0 0.0
    %2683 = vmatpush1.msra.mxu0 %v614
    %2684 = vmatprep.subr.mxu0 0.0
    %2685 = vmatpush1.msra.mxu0 %v615
    %2686 = vmatprep.subr.mxu0 0.0
    %2687 = vmatpush1.msra.mxu0 %v616
    %2688 = vmatprep.subr.mxu0 0.0
    %2689 = vmatpush1.msra.mxu0 %v617
    %2690 = vmatprep.subr.mxu0 0.0
    %2691 = vmatpush1.msra.mxu0 %v618
    %2692 = vmatprep.subr.mxu0 0.0
    %2693 = vmatpush1.msra.mxu0 %v619
    %2694 = vmatprep.subr.mxu0 0.0
    %2695 = vmatpush1.msra.mxu0 %v620
    %2696 = vmatprep.subr.mxu0 0.0
    %2697 = vmatpush1.msra.mxu0 %v621
    %2698 = vmatprep.subr.mxu0 0.0
    %2699 = vmatpush1.msra.mxu0 %v622
    %2700 = vmatprep.subr.mxu0 0.0
    %2701 = vmatpush1.msra.mxu0 %v623
    %2702 = vmatprep.subr.mxu0 0.0
    %2703 = vmatpush1.msra.mxu0 %v624
    %2704 = vmatprep.subr.mxu0 0.0
    %2705 = vmatpush1.msra.mxu0 %v625
    %2706 = vmatprep.subr.mxu0 0.0
    %2707 = vmatpush1.msra.mxu0 %v626
    %2708 = vmatprep.subr.mxu0 0.0
    %2709 = vmatpush1.msra.mxu0 %v627
    %2710 = vmatprep.subr.mxu0 0.0
    %2711 = vmatpush1.msra.mxu0 %v628
    %2712 = vmatprep.subr.mxu0 0.0
    %2713 = vmatpush1.msra.mxu0 %v629
    %2714 = vmatprep.subr.mxu0 0.0
    %2715 = vmatpush1.msra.mxu0 %v630
    %2716 = vmatprep.subr.mxu0 0.0
    %2717 = vmatpush1.msra.mxu0 %v631
    %2718 = vmatprep.subr.mxu0 0.0
    %2719 = vmatpush1.msra.mxu0 %v632
    %2720 = vmatprep.subr.mxu0 0.0
    %2721 = vmatpush1.msra.mxu0 %v633
    %2722 = vmatprep.subr.mxu0 0.0
    %2723 = vmatpush1.msra.mxu0 %v634
    %2724 = vmatprep.subr.mxu0 0.0
    %2725 = vmatpush1.msra.mxu0 %v635
    %2726 = vmatprep.subr.mxu0 0.0
    %2727 = vmatpush1.msra.mxu0 %v636
    %2728 = vmatprep.subr.mxu0 0.0
    %2729 = vmatpush1.msra.mxu0 %v637
    %2730 = vmatprep.subr.mxu0 0.0
    %2731 = vmatpush1.msra.mxu0 %v638
    %2732 = vmatprep.subr.mxu0 0.0
    %2733 = vmatpush1.msra.mxu0 %v639
    %2734 = vmatprep.subr.mxu0 0.0
    %2735 = vmatpush1.msra.mxu0 %v640
    %2736 = vmatprep.subr.mxu0 0.0
    %2737 = vmatpush1.msra.mxu0 %v641
    %2738 = vmatprep.subr.mxu0 0.0
    %2739 = vmatpush1.msra.mxu0 %v642
    %2740 = vmatprep.subr.mxu0 0.0
    %2741 = vmatpush1.msra.mxu0 %v643
    %2742 = vmatprep.subr.mxu0 0.0
    %2743 = vmatpush1.msra.mxu0 %v644
    %2744 = vmatprep.mubr.f32.mxu0 %v1252
    %2745 = vmatmul.mubr.f32.gmra.mrb[0].mxu0 %v1244
    %v2746 = vpop.f32.mrb[0].mxu0
    %v2747 = vadd.f32 %v2677, %v2746
    %v2748 = vpop.f32.mrb[0].mxu0
    %2749 = vdwg.mxu0
    %2750 = vmatprep.subr.mxu0 0.0
    %2751 = vmatpush1.msra.mxu0 %v645
    %2752 = vmatprep.subr.mxu0 0.0
    %2753 = vmatpush1.msra.mxu0 %v646
    %2754 = vmatprep.subr.mxu0 0.0
    %2755 = vmatpush1.msra.mxu0 %v647
    %2756 = vmatprep.subr.mxu0 0.0
    %2757 = vmatpush1.msra.mxu0 %v648
    %2758 = vmatprep.subr.mxu0 0.0
    %2759 = vmatpush1.msra.mxu0 %v649
    %2760 = vmatprep.subr.mxu0 0.0
    %2761 = vmatpush1.msra.mxu0 %v650
    %2762 = vmatprep.subr.mxu0 0.0
    %2763 = vmatpush1.msra.mxu0 %v651
    %2764 = vmatprep.subr.mxu0 0.0
    %2765 = vmatpush1.msra.mxu0 %v652
    %2766 = vmatprep.subr.mxu0 0.0
    %2767 = vmatpush1.msra.mxu0 %v653
    %2768 = vmatprep.subr.mxu0 0.0
    %2769 = vmatpush1.msra.mxu0 %v654
    %2770 = vmatprep.subr.mxu0 0.0
    %2771 = vmatpush1.msra.mxu0 %v655
    %2772 = vmatprep.subr.mxu0 0.0
    %2773 = vmatpush1.msra.mxu0 %v656
    %2774 = vmatprep.subr.mxu0 0.0
    %2775 = vmatpush1.msra.mxu0 %v657
    %2776 = vmatprep.subr.mxu0 0.0
    %2777 = vmatpush1.msra.mxu0 %v658
    %2778 = vmatprep.subr.mxu0 0.0
    %2779 = vmatpush1.msra.mxu0 %v659
    %2780 = vmatprep.subr.mxu0 0.0
    %2781 = vmatpush1.msra.mxu0 %v660
    %2782 = vmatprep.subr.mxu0 0.0
    %2783 = vmatpush1.msra.mxu0 %v661
    %2784 = vmatprep.subr.mxu0 0.0
    %2785 = vmatpush1.msra.mxu0 %v662
    %2786 = vmatprep.subr.mxu0 0.0
    %2787 = vmatpush1.msra.mxu0 %v663
    %2788 = vmatprep.subr.mxu0 0.0
    %2789 = vmatpush1.msra.mxu0 %v664
    %2790 = vmatprep.subr.mxu0 0.0
    %2791 = vmatpush1.msra.mxu0 %v665
    %2792 = vmatprep.subr.mxu0 0.0
    %2793 = vmatpush1.msra.mxu0 %v666
    %2794 = vmatprep.subr.mxu0 0.0
    %2795 = vmatpush1.msra.mxu0 %v667
    %2796 = vmatprep.subr.mxu0 0.0
    %2797 = vmatpush1.msra.mxu0 %v668
    %2798 = vmatprep.subr.mxu0 0.0
    %2799 = vmatpush1.msra.mxu0 %v669
    %2800 = vmatprep.subr.mxu0 0.0
    %2801 = vmatpush1.msra.mxu0 %v670
    %2802 = vmatprep.subr.mxu0 0.0
    %2803 = vmatpush1.msra.mxu0 %v671
    %2804 = vmatprep.subr.mxu0 0.0
    %2805 = vmatpush1.msra.mxu0 %v672
    %2806 = vmatprep.subr.mxu0 0.0
    %2807 = vmatpush1.msra.mxu0 %v673
    %2808 = vmatprep.subr.mxu0 0.0
    %2809 = vmatpush1.msra.mxu0 %v674
    %2810 = vmatprep.subr.mxu0 0.0
    %2811 = vmatpush1.msra.mxu0 %v675
    %2812 = vmatprep.subr.mxu0 0.0
    %2813 = vmatpush1.msra.mxu0 %v676
    %2814 = vmatprep.mubr.f32.mxu0 %v1253
    %2815 = vmatmul.mubr.f32.gmra.mrb[0].mxu0 %v1251
    %v2816 = vpop.f32.mrb[0].mxu0
    %v2817 = vadd.f32 %v2747, %v2816
    %v2818 = vpop.f32.mrb[0].mxu0
    %2819 = vdwg.mxu0
    %2820 = vmatprep.subr.mxu0 0.0
    %2821 = vmatpush1.msra.mxu0 %v677
    %2822 = vmatprep.subr.mxu0 0.0
    %2823 = vmatpush1.msra.mxu0 %v678
    %2824 = vmatprep.subr.mxu0 0.0
    %2825 = vmatpush1.msra.mxu0 %v679
    %2826 = vmatprep.subr.mxu0 0.0
    %2827 = vmatpush1.msra.mxu0 %v680
    %2828 = vmatprep.subr.mxu0 0.0
    %2829 = vmatpush1.msra.mxu0 %v681
    %2830 = vmatprep.subr.mxu0 0.0
    %2831 = vmatpush1.msra.mxu0 %v682
    %2832 = vmatprep.subr.mxu0 0.0
    %2833 = vmatpush1.msra.mxu0 %v683
    %2834 = vmatprep.subr.mxu0 0.0
    %2835 = vmatpush1.msra.mxu0 %v684
    %2836 = vmatprep.subr.mxu0 0.0
    %2837 = vmatpush1.msra.mxu0 %v685
    %2838 = vmatprep.subr.mxu0 0.0
    %2839 = vmatpush1.msra.mxu0 %v686
    %2840 = vmatprep.subr.mxu0 0.0
    %2841 = vmatpush1.msra.mxu0 %v687
    %2842 = vmatprep.subr.mxu0 0.0
    %2843 = vmatpush1.msra.mxu0 %v688
    %2844 = vmatprep.subr.mxu0 0.0
    %2845 = vmatpush1.msra.mxu0 %v689
    %2846 = vmatprep.subr.mxu0 0.0
    %2847 = vmatpush1.msra.mxu0 %v690
    %2848 = vmatprep.subr.mxu0 0.0
    %2849 = vmatpush1.msra.mxu0 %v691
    %2850 = vmatprep.subr.mxu0 0.0
    %2851 = vmatpush1.msra.mxu0 %v692
    %2852 = vmatprep.subr.mxu0 0.0
    %2853 = vmatpush1.msra.mxu0 %v693
    %2854 = vmatprep.subr.mxu0 0.0
    %2855 = vmatpush1.msra.mxu0 %v694
    %2856 = vmatprep.subr.mxu0 0.0
    %2857 = vmatpush1.msra.mxu0 %v695
    %2858 = vmatprep.subr.mxu0 0.0
    %2859 = vmatpush1.msra.mxu0 %v696
    %2860 = vmatprep.subr.mxu0 0.0
    %2861 = vmatpush1.msra.mxu0 %v697
    %2862 = vmatprep.subr.mxu0 0.0
    %2863 = vmatpush1.msra.mxu0 %v698
    %2864 = vmatprep.subr.mxu0 0.0
    %2865 = vmatpush1.msra.mxu0 %v699
    %2866 = vmatprep.subr.mxu0 0.0
    %2867 = vmatpush1.msra.mxu0 %v700
    %2868 = vmatprep.subr.mxu0 0.0
    %2869 = vmatpush1.msra.mxu0 %v701
    %2870 = vmatprep.subr.mxu0 0.0
    %2871 = vmatpush1.msra.mxu0 %v702
    %2872 = vmatprep.subr.mxu0 0.0
    %2873 = vmatpush1.msra.mxu0 %v703
    %2874 = vmatprep.subr.mxu0 0.0
    %2875 = vmatpush1.msra.mxu0 %v704
    %2876 = vmatprep.subr.mxu0 0.0
    %2877 = vmatpush1.msra.mxu0 %v705
    %2878 = vmatprep.subr.mxu0 0.0
    %2879 = vmatpush1.msra.mxu0 %v706
    %2880 = vmatprep.subr.mxu0 0.0
    %2881 = vmatpush1.msra.mxu0 %v707
    %2882 = vmatprep.subr.mxu0 0.0
    %2883 = vmatpush1.msra.mxu0 %v708
    %2884 = vmatprep.mubr.f32.mxu0 %v1269
    %2885 = vmatmul.mubr.f32.gmra.mrb[0].mxu0 %v1261
    %v2886 = vpop.f32.mrb[0].mxu0
    %v2887 = vadd.f32 %v2817, %v2886
    %v2888 = vpop.f32.mrb[0].mxu0
    %2889 = vdwg.mxu0
    %2890 = vmatprep.subr.mxu0 0.0
    %2891 = vmatpush1.msra.mxu0 %v709
    %2892 = vmatprep.subr.mxu0 0.0
    %2893 = vmatpush1.msra.mxu0 %v710
    %2894 = vmatprep.subr.mxu0 0.0
    %2895 = vmatpush1.msra.mxu0 %v711
    %2896 = vmatprep.subr.mxu0 0.0
    %2897 = vmatpush1.msra.mxu0 %v712
    %2898 = vmatprep.subr.mxu0 0.0
    %2899 = vmatpush1.msra.mxu0 %v713
    %2900 = vmatprep.subr.mxu0 0.0
    %2901 = vmatpush1.msra.mxu0 %v714
    %2902 = vmatprep.subr.mxu0 0.0
    %2903 = vmatpush1.msra.mxu0 %v715
    %2904 = vmatprep.subr.mxu0 0.0
    %2905 = vmatpush1.msra.mxu0 %v716
    %2906 = vmatprep.subr.mxu0 0.0
    %2907 = vmatpush1.msra.mxu0 %v717
    %2908 = vmatprep.subr.mxu0 0.0
    %2909 = vmatpush1.msra.mxu0 %v718
    %2910 = vmatprep.subr.mxu0 0.0
    %2911 = vmatpush1.msra.mxu0 %v719
    %2912 = vmatprep.subr.mxu0 0.0
    %2913 = vmatpush1.msra.mxu0 %v720
    %2914 = vmatprep.subr.mxu0 0.0
    %2915 = vmatpush1.msra.mxu0 %v721
    %2916 = vmatprep.subr.mxu0 0.0
    %2917 = vmatpush1.msra.mxu0 %v722
    %2918 = vmatprep.subr.mxu0 0.0
    %2919 = vmatpush1.msra.mxu0 %v723
    %2920 = vmatprep.subr.mxu0 0.0
    %2921 = vmatpush1.msra.mxu0 %v724
    %2922 = vmatprep.subr.mxu0 0.0
    %2923 = vmatpush1.msra.mxu0 %v725
    %2924 = vmatprep.subr.mxu0 0.0
    %2925 = vmatpush1.msra.mxu0 %v726
    %2926 = vmatprep.subr.mxu0 0.0
    %2927 = vmatpush1.msra.mxu0 %v727
    %2928 = vmatprep.subr.mxu0 0.0
    %2929 = vmatpush1.msra.mxu0 %v728
    %2930 = vmatprep.subr.mxu0 0.0
    %2931 = vmatpush1.msra.mxu0 %v729
    %2932 = vmatprep.subr.mxu0 0.0
    %2933 = vmatpush1.msra.mxu0 %v730
    %2934 = vmatprep.subr.mxu0 0.0
    %2935 = vmatpush1.msra.mxu0 %v731
    %2936 = vmatprep.subr.mxu0 0.0
    %2937 = vmatpush1.msra.mxu0 %v732
    %2938 = vmatprep.subr.mxu0 0.0
    %2939 = vmatpush1.msra.mxu0 %v733
    %2940 = vmatprep.subr.mxu0 0.0
    %2941 = vmatpush1.msra.mxu0 %v734
    %2942 = vmatprep.subr.mxu0 0.0
    %2943 = vmatpush1.msra.mxu0 %v735
    %2944 = vmatprep.subr.mxu0 0.0
    %2945 = vmatpush1.msra.mxu0 %v736
    %2946 = vmatprep.subr.mxu0 0.0
    %2947 = vmatpush1.msra.mxu0 %v737
    %2948 = vmatprep.subr.mxu0 0.0
    %2949 = vmatpush1.msra.mxu0 %v738
    %2950 = vmatprep.subr.mxu0 0.0
    %2951 = vmatpush1.msra.mxu0 %v739
    %2952 = vmatprep.subr.mxu0 0.0
    %2953 = vmatpush1.msra.mxu0 %v740
    %2954 = vmatprep.mubr.f32.mxu0 %v1270
    %2955 = vmatmul.mubr.f32.gmra.mrb[0].mxu0 %v1268
    %v2956 = vpop.f32.mrb[0].mxu0
    %v2957 = vadd.f32 %v2887, %v2956
    %v2958 = vpop.f32.mrb[0].mxu0
    %2959 = vdwg.mxu0
    %2960 = vmatprep.subr.mxu0 0.0
    %2961 = vmatpush1.msra.mxu0 %v741
    %2962 = vmatprep.subr.mxu0 0.0
    %2963 = vmatpush1.msra.mxu0 %v742
    %2964 = vmatprep.subr.mxu0 0.0
    %2965 = vmatpush1.msra.mxu0 %v743
    %2966 = vmatprep.subr.mxu0 0.0
    %2967 = vmatpush1.msra.mxu0 %v744
    %2968 = vmatprep.subr.mxu0 0.0
    %2969 = vmatpush1.msra.mxu0 %v745
    %2970 = vmatprep.subr.mxu0 0.0
    %2971 = vmatpush1.msra.mxu0 %v746
    %2972 = vmatprep.subr.mxu0 0.0
    %2973 = vmatpush1.msra.mxu0 %v747
    %2974 = vmatprep.subr.mxu0 0.0
    %2975 = vmatpush1.msra.mxu0 %v748
    %2976 = vmatprep.subr.mxu0 0.0
    %2977 = vmatpush1.msra.mxu0 %v749
    %2978 = vmatprep.subr.mxu0 0.0
    %2979 = vmatpush1.msra.mxu0 %v750
    %2980 = vmatprep.subr.mxu0 0.0
    %2981 = vmatpush1.msra.mxu0 %v751
    %2982 = vmatprep.subr.mxu0 0.0
    %2983 = vmatpush1.msra.mxu0 %v752
    %2984 = vmatprep.subr.mxu0 0.0
    %2985 = vmatpush1.msra.mxu0 %v753
    %2986 = vmatprep.subr.mxu0 0.0
    %2987 = vmatpush1.msra.mxu0 %v754
    %2988 = vmatprep.subr.mxu0 0.0
    %2989 = vmatpush1.msra.mxu0 %v755
    %2990 = vmatprep.subr.mxu0 0.0
    %2991 = vmatpush1.msra.mxu0 %v756
    %2992 = vmatprep.subr.mxu0 0.0
    %2993 = vmatpush1.msra.mxu0 %v757
    %2994 = vmatprep.subr.mxu0 0.0
    %2995 = vmatpush1.msra.mxu0 %v758
    %2996 = vmatprep.subr.mxu0 0.0
    %2997 = vmatpush1.msra.mxu0 %v759
    %2998 = vmatprep.subr.mxu0 0.0
    %2999 = vmatpush1.msra.mxu0 %v760
    %3000 = vmatprep.subr.mxu0 0.0
    %3001 = vmatpush1.msra.mxu0 %v761
    %3002 = vmatprep.subr.mxu0 0.0
    %3003 = vmatpush1.msra.mxu0 %v762
    %3004 = vmatprep.subr.mxu0 0.0
    %3005 = vmatpush1.msra.mxu0 %v763
    %3006 = vmatprep.subr.mxu0 0.0
    %3007 = vmatpush1.msra.mxu0 %v764
    %3008 = vmatprep.subr.mxu0 0.0
    %3009 = vmatpush1.msra.mxu0 %v765
    %3010 = vmatprep.subr.mxu0 0.0
    %3011 = vmatpush1.msra.mxu0 %v766
    %3012 = vmatprep.subr.mxu0 0.0
    %3013 = vmatpush1.msra.mxu0 %v767
    %3014 = vmatprep.subr.mxu0 0.0
    %3015 = vmatpush1.msra.mxu0 %v768
    %3016 = vmatprep.subr.mxu0 0.0
    %3017 = vmatpush1.msra.mxu0 %v769
    %3018 = vmatprep.subr.mxu0 0.0
    %3019 = vmatpush1.msra.mxu0 %v770
    %3020 = vmatprep.subr.mxu0 0.0
    %3021 = vmatpush1.msra.mxu0 %v771
    %3022 = vmatprep.subr.mxu0 0.0
    %3023 = vmatpush1.msra.mxu0 %v772
    %3024 = vmatprep.mubr.f32.mxu0 %v1286
    %3025 = vmatmul.mubr.f32.gmra.mrb[0].mxu0 %v1278
    %v3026 = vpop.f32.mrb[0].mxu0
    %v3027 = vadd.f32 %v2957, %v3026
    %v3028 = vpop.f32.mrb[0].mxu0
    %3029 = vdwg.mxu0
    %3030 = vmatprep.subr.mxu0 0.0
    %3031 = vmatpush1.msra.mxu0 %v773
    %3032 = vmatprep.subr.mxu0 0.0
    %3033 = vmatpush1.msra.mxu0 %v774
    %3034 = vmatprep.subr.mxu0 0.0
    %3035 = vmatpush1.msra.mxu0 %v775
    %3036 = vmatprep.subr.mxu0 0.0
    %3037 = vmatpush1.msra.mxu0 %v776
    %3038 = vmatprep.subr.mxu0 0.0
    %3039 = vmatpush1.msra.mxu0 %v777
    %3040 = vmatprep.subr.mxu0 0.0
    %3041 = vmatpush1.msra.mxu0 %v778
    %3042 = vmatprep.subr.mxu0 0.0
    %3043 = vmatpush1.msra.mxu0 %v779
    %3044 = vmatprep.subr.mxu0 0.0
    %3045 = vmatpush1.msra.mxu0 %v780
    %3046 = vmatprep.subr.mxu0 0.0
    %3047 = vmatpush1.msra.mxu0 %v781
    %3048 = vmatprep.subr.mxu0 0.0
    %3049 = vmatpush1.msra.mxu0 %v782
    %3050 = vmatprep.subr.mxu0 0.0
    %3051 = vmatpush1.msra.mxu0 %v783
    %3052 = vmatprep.subr.mxu0 0.0
    %3053 = vmatpush1.msra.mxu0 %v784
    %3054 = vmatprep.subr.mxu0 0.0
    %3055 = vmatpush1.msra.mxu0 %v785
    %3056 = vmatprep.subr.mxu0 0.0
    %3057 = vmatpush1.msra.mxu0 %v786
    %3058 = vmatprep.subr.mxu0 0.0
    %3059 = vmatpush1.msra.mxu0 %v787
    %3060 = vmatprep.subr.mxu0 0.0
    %3061 = vmatpush1.msra.mxu0 %v788
    %3062 = vmatprep.subr.mxu0 0.0
    %3063 = vmatpush1.msra.mxu0 %v789
    %3064 = vmatprep.subr.mxu0 0.0
    %3065 = vmatpush1.msra.mxu0 %v790
    %3066 = vmatprep.subr.mxu0 0.0
    %3067 = vmatpush1.msra.mxu0 %v791
    %3068 = vmatprep.subr.mxu0 0.0
    %3069 = vmatpush1.msra.mxu0 %v792
    %3070 = vmatprep.subr.mxu0 0.0
    %3071 = vmatpush1.msra.mxu0 %v793
    %3072 = vmatprep.subr.mxu0 0.0
    %3073 = vmatpush1.msra.mxu0 %v794
    %3074 = vmatprep.subr.mxu0 0.0
    %3075 = vmatpush1.msra.mxu0 %v795
    %3076 = vmatprep.subr.mxu0 0.0
    %3077 = vmatpush1.msra.mxu0 %v796
    %3078 = vmatprep.subr.mxu0 0.0
    %3079 = vmatpush1.msra.mxu0 %v797
    %3080 = vmatprep.subr.mxu0 0.0
    %3081 = vmatpush1.msra.mxu0 %v798
    %3082 = vmatprep.subr.mxu0 0.0
    %3083 = vmatpush1.msra.mxu0 %v799
    %3084 = vmatprep.subr.mxu0 0.0
    %3085 = vmatpush1.msra.mxu0 %v800
    %3086 = vmatprep.subr.mxu0 0.0
    %3087 = vmatpush1.msra.mxu0 %v801
    %3088 = vmatprep.subr.mxu0 0.0
    %3089 = vmatpush1.msra.mxu0 %v802
    %3090 = vmatprep.subr.mxu0 0.0
    %3091 = vmatpush1.msra.mxu0 %v803
    %3092 = vmatprep.subr.mxu0 0.0
    %3093 = vmatpush1.msra.mxu0 %v804
    %3094 = vmatprep.mubr.f32.mxu0 %v1287
    %3095 = vmatmul.mubr.f32.gmra.mrb[0].mxu0 %v1285
    %v3096 = vpop.f32.mrb[0].mxu0
    %v3097 = vadd.f32 %v3027, %v3096
    %v3098 = vpop.f32.mrb[0].mxu0
    %3099 = vdwg.mxu0
    %3100 = vmatprep.subr.mxu0 0.0
    %3101 = vmatpush1.msra.mxu0 %v805
    %3102 = vmatprep.subr.mxu0 0.0
    %3103 = vmatpush1.msra.mxu0 %v806
    %3104 = vmatprep.subr.mxu0 0.0
    %3105 = vmatpush1.msra.mxu0 %v807
    %3106 = vmatprep.subr.mxu0 0.0
    %3107 = vmatpush1.msra.mxu0 %v808
    %3108 = vmatprep.subr.mxu0 0.0
    %3109 = vmatpush1.msra.mxu0 %v809
    %3110 = vmatprep.subr.mxu0 0.0
    %3111 = vmatpush1.msra.mxu0 %v810
    %3112 = vmatprep.subr.mxu0 0.0
    %3113 = vmatpush1.msra.mxu0 %v811
    %3114 = vmatprep.subr.mxu0 0.0
    %3115 = vmatpush1.msra.mxu0 %v812
    %3116 = vmatprep.subr.mxu0 0.0
    %3117 = vmatpush1.msra.mxu0 %v813
    %3118 = vmatprep.subr.mxu0 0.0
    %3119 = vmatpush1.msra.mxu0 %v814
    %3120 = vmatprep.subr.mxu0 0.0
    %3121 = vmatpush1.msra.mxu0 %v815
    %3122 = vmatprep.subr.mxu0 0.0
    %3123 = vmatpush1.msra.mxu0 %v816
    %3124 = vmatprep.subr.mxu0 0.0
    %3125 = vmatpush1.msra.mxu0 %v817
    %3126 = vmatprep.subr.mxu0 0.0
    %3127 = vmatpush1.msra.mxu0 %v818
    %3128 = vmatprep.subr.mxu0 0.0
    %3129 = vmatpush1.msra.mxu0 %v819
    %3130 = vmatprep.subr.mxu0 0.0
    %3131 = vmatpush1.msra.mxu0 %v820
    %3132 = vmatprep.subr.mxu0 0.0
    %3133 = vmatpush1.msra.mxu0 %v821
    %3134 = vmatprep.subr.mxu0 0.0
    %3135 = vmatpush1.msra.mxu0 %v822
    %3136 = vmatprep.subr.mxu0 0.0
    %3137 = vmatpush1.msra.mxu0 %v823
    %3138 = vmatprep.subr.mxu0 0.0
    %3139 = vmatpush1.msra.mxu0 %v824
    %3140 = vmatprep.subr.mxu0 0.0
    %3141 = vmatpush1.msra.mxu0 %v825
    %3142 = vmatprep.subr.mxu0 0.0
    %3143 = vmatpush1.msra.mxu0 %v826
    %3144 = vmatprep.subr.mxu0 0.0
    %3145 = vmatpush1.msra.mxu0 %v827
    %3146 = vmatprep.subr.mxu0 0.0
    %3147 = vmatpush1.msra.mxu0 %v828
    %3148 = vmatprep.subr.mxu0 0.0
    %3149 = vmatpush1.msra.mxu0 %v829
    %3150 = vmatprep.subr.mxu0 0.0
    %3151 = vmatpush1.msra.mxu0 %v830
    %3152 = vmatprep.subr.mxu0 0.0
    %3153 = vmatpush1.msra.mxu0 %v831
    %3154 = vmatprep.subr.mxu0 0.0
    %3155 = vmatpush1.msra.mxu0 %v832
    %3156 = vmatprep.subr.mxu0 0.0
    %3157 = vmatpush1.msra.mxu0 %v833
    %3158 = vmatprep.subr.mxu0 0.0
    %3159 = vmatpush1.msra.mxu0 %v834
    %3160 = vmatprep.subr.mxu0 0.0
    %3161 = vmatpush1.msra.mxu0 %v835
    %3162 = vmatprep.subr.mxu0 0.0
    %3163 = vmatpush1.msra.mxu0 %v836
    %3164 = vmatprep.mubr.f32.mxu0 %v1303
    %3165 = vmatmul.mubr.f32.gmra.mrb[0].mxu0 %v1295
    %v3166 = vpop.f32.mrb[0].mxu0
    %v3167 = vadd.f32 %v3097, %v3166
    %v3168 = vpop.f32.mrb[0].mxu0
    %3169 = vdwg.mxu0
    %3170 = vmatprep.subr.mxu0 0.0
    %3171 = vmatpush1.msra.mxu0 %v837
    %3172 = vmatprep.subr.mxu0 0.0
    %3173 = vmatpush1.msra.mxu0 %v838
    %3174 = vmatprep.subr.mxu0 0.0
    %3175 = vmatpush1.msra.mxu0 %v839
    %3176 = vmatprep.subr.mxu0 0.0
    %3177 = vmatpush1.msra.mxu0 %v840
    %3178 = vmatprep.subr.mxu0 0.0
    %3179 = vmatpush1.msra.mxu0 %v841
    %3180 = vmatprep.subr.mxu0 0.0
    %3181 = vmatpush1.msra.mxu0 %v842
    %3182 = vmatprep.subr.mxu0 0.0
    %3183 = vmatpush1.msra.mxu0 %v843
    %3184 = vmatprep.subr.mxu0 0.0
    %3185 = vmatpush1.msra.mxu0 %v844
    %3186 = vmatprep.subr.mxu0 0.0
    %3187 = vmatpush1.msra.mxu0 %v845
    %3188 = vmatprep.subr.mxu0 0.0
    %3189 = vmatpush1.msra.mxu0 %v846
    %3190 = vmatprep.subr.mxu0 0.0
    %3191 = vmatpush1.msra.mxu0 %v847
    %3192 = vmatprep.subr.mxu0 0.0
    %3193 = vmatpush1.msra.mxu0 %v848
    %3194 = vmatprep.subr.mxu0 0.0
    %3195 = vmatpush1.msra.mxu0 %v849
    %3196 = vmatprep.subr.mxu0 0.0
    %3197 = vmatpush1.msra.mxu0 %v850
    %3198 = vmatprep.subr.mxu0 0.0
    %3199 = vmatpush1.msra.mxu0 %v851
    %3200 = vmatprep.subr.mxu0 0.0
    %3201 = vmatpush1.msra.mxu0 %v852
    %3202 = vmatprep.subr.mxu0 0.0
    %3203 = vmatpush1.msra.mxu0 %v853
    %3204 = vmatprep.subr.mxu0 0.0
    %3205 = vmatpush1.msra.mxu0 %v854
    %3206 = vmatprep.subr.mxu0 0.0
    %3207 = vmatpush1.msra.mxu0 %v855
    %3208 = vmatprep.subr.mxu0 0.0
    %3209 = vmatpush1.msra.mxu0 %v856
    %3210 = vmatprep.subr.mxu0 0.0
    %3211 = vmatpush1.msra.mxu0 %v857
    %3212 = vmatprep.subr.mxu0 0.0
    %3213 = vmatpush1.msra.mxu0 %v858
    %3214 = vmatprep.subr.mxu0 0.0
    %3215 = vmatpush1.msra.mxu0 %v859
    %3216 = vmatprep.subr.mxu0 0.0
    %3217 = vmatpush1.msra.mxu0 %v860
    %3218 = vmatprep.subr.mxu0 0.0
    %3219 = vmatpush1.msra.mxu0 %v861
    %3220 = vmatprep.subr.mxu0 0.0
    %3221 = vmatpush1.msra.mxu0 %v862
    %3222 = vmatprep.subr.mxu0 0.0
    %3223 = vmatpush1.msra.mxu0 %v863
    %3224 = vmatprep.subr.mxu0 0.0
    %3225 = vmatpush1.msra.mxu0 %v864
    %3226 = vmatprep.subr.mxu0 0.0
    %3227 = vmatpush1.msra.mxu0 %v865
    %3228 = vmatprep.subr.mxu0 0.0
    %3229 = vmatpush1.msra.mxu0 %v866
    %3230 = vmatprep.subr.mxu0 0.0
    %3231 = vmatpush1.msra.mxu0 %v867
    %3232 = vmatprep.subr.mxu0 0.0
    %3233 = vmatpush1.msra.mxu0 %v868
    %3234 = vmatprep.mubr.f32.mxu0 %v1304
    %3235 = vmatmul.mubr.f32.gmra.mrb[0].mxu0 %v1302
    %v3236 = vpop.f32.mrb[0].mxu0
    %v3237 = vadd.f32 %v3167, %v3236
    %v3238 = vpop.f32.mrb[0].mxu0
    %3239 = vdwg.mxu0
    %3240 = vmatprep.subr.mxu0 0.0
    %3241 = vmatpush1.msra.mxu0 %v869
    %3242 = vmatprep.subr.mxu0 0.0
    %3243 = vmatpush1.msra.mxu0 %v870
    %3244 = vmatprep.subr.mxu0 0.0
    %3245 = vmatpush1.msra.mxu0 %v871
    %3246 = vmatprep.subr.mxu0 0.0
    %3247 = vmatpush1.msra.mxu0 %v872
    %3248 = vmatprep.subr.mxu0 0.0
    %3249 = vmatpush1.msra.mxu0 %v873
    %3250 = vmatprep.subr.mxu0 0.0
    %3251 = vmatpush1.msra.mxu0 %v874
    %3252 = vmatprep.subr.mxu0 0.0
    %3253 = vmatpush1.msra.mxu0 %v875
    %3254 = vmatprep.subr.mxu0 0.0
    %3255 = vmatpush1.msra.mxu0 %v876
    %3256 = vmatprep.subr.mxu0 0.0
    %3257 = vmatpush1.msra.mxu0 %v877
    %3258 = vmatprep.subr.mxu0 0.0
    %3259 = vmatpush1.msra.mxu0 %v878
    %3260 = vmatprep.subr.mxu0 0.0
    %3261 = vmatpush1.msra.mxu0 %v879
    %3262 = vmatprep.subr.mxu0 0.0
    %3263 = vmatpush1.msra.mxu0 %v880
    %3264 = vmatprep.subr.mxu0 0.0
    %3265 = vmatpush1.msra.mxu0 %v881
    %3266 = vmatprep.subr.mxu0 0.0
    %3267 = vmatpush1.msra.mxu0 %v882
    %3268 = vmatprep.subr.mxu0 0.0
    %3269 = vmatpush1.msra.mxu0 %v883
    %3270 = vmatprep.subr.mxu0 0.0
    %3271 = vmatpush1.msra.mxu0 %v884
    %3272 = vmatprep.subr.mxu0 0.0
    %3273 = vmatpush1.msra.mxu0 %v885
    %3274 = vmatprep.subr.mxu0 0.0
    %3275 = vmatpush1.msra.mxu0 %v886
    %3276 = vmatprep.subr.mxu0 0.0
    %3277 = vmatpush1.msra.mxu0 %v887
    %3278 = vmatprep.subr.mxu0 0.0
    %3279 = vmatpush1.msra.mxu0 %v888
    %3280 = vmatprep.subr.mxu0 0.0
    %3281 = vmatpush1.msra.mxu0 %v889
    %3282 = vmatprep.subr.mxu0 0.0
    %3283 = vmatpush1.msra.mxu0 %v890
    %3284 = vmatprep.subr.mxu0 0.0
    %3285 = vmatpush1.msra.mxu0 %v891
    %3286 = vmatprep.subr.mxu0 0.0
    %3287 = vmatpush1.msra.mxu0 %v892
    %3288 = vmatprep.subr.mxu0 0.0
    %3289 = vmatpush1.msra.mxu0 %v893
    %3290 = vmatprep.subr.mxu0 0.0
    %3291 = vmatpush1.msra.mxu0 %v894
    %3292 = vmatprep.subr.mxu0 0.0
    %3293 = vmatpush1.msra.mxu0 %v895
    %3294 = vmatprep.subr.mxu0 0.0
    %3295 = vmatpush1.msra.mxu0 %v896
    %3296 = vmatprep.subr.mxu0 0.0
    %3297 = vmatpush1.msra.mxu0 %v897
    %3298 = vmatprep.subr.mxu0 0.0
    %3299 = vmatpush1.msra.mxu0 %v898
    %3300 = vmatprep.subr.mxu0 0.0
    %3301 = vmatpush1.msra.mxu0 %v899
    %3302 = vmatprep.subr.mxu0 0.0
    %3303 = vmatpush1.msra.mxu0 %v900
    %3304 = vmatprep.mubr.f32.mxu0 %v1320
    %3305 = vmatmul.mubr.f32.gmra.mrb[0].mxu0 %v1312
    %v3306 = vpop.f32.mrb[0].mxu0
    %v3307 = vadd.f32 %v3237, %v3306
    %v3308 = vpop.f32.mrb[0].mxu0
    %3309 = vdwg.mxu0
    %3310 = vmatprep.subr.mxu0 0.0
    %3311 = vmatpush1.msra.mxu0 %v901
    %3312 = vmatprep.subr.mxu0 0.0
    %3313 = vmatpush1.msra.mxu0 %v902
    %3314 = vmatprep.subr.mxu0 0.0
    %3315 = vmatpush1.msra.mxu0 %v903
    %3316 = vmatprep.subr.mxu0 0.0
    %3317 = vmatpush1.msra.mxu0 %v904
    %3318 = vmatprep.subr.mxu0 0.0
    %3319 = vmatpush1.msra.mxu0 %v905
    %3320 = vmatprep.subr.mxu0 0.0
    %3321 = vmatpush1.msra.mxu0 %v906
    %3322 = vmatprep.subr.mxu0 0.0
    %3323 = vmatpush1.msra.mxu0 %v907
    %3324 = vmatprep.subr.mxu0 0.0
    %3325 = vmatpush1.msra.mxu0 %v908
    %3326 = vmatprep.subr.mxu0 0.0
    %3327 = vmatpush1.msra.mxu0 %v909
    %3328 = vmatprep.subr.mxu0 0.0
    %3329 = vmatpush1.msra.mxu0 %v910
    %3330 = vmatprep.subr.mxu0 0.0
    %3331 = vmatpush1.msra.mxu0 %v911
    %3332 = vmatprep.subr.mxu0 0.0
    %3333 = vmatpush1.msra.mxu0 %v912
    %3334 = vmatprep.subr.mxu0 0.0
    %3335 = vmatpush1.msra.mxu0 %v913
    %3336 = vmatprep.subr.mxu0 0.0
    %3337 = vmatpush1.msra.mxu0 %v914
    %3338 = vmatprep.subr.mxu0 0.0
    %3339 = vmatpush1.msra.mxu0 %v915
    %3340 = vmatprep.subr.mxu0 0.0
    %3341 = vmatpush1.msra.mxu0 %v916
    %3342 = vmatprep.subr.mxu0 0.0
    %3343 = vmatpush1.msra.mxu0 %v917
    %3344 = vmatprep.subr.mxu0 0.0
    %3345 = vmatpush1.msra.mxu0 %v918
    %3346 = vmatprep.subr.mxu0 0.0
    %3347 = vmatpush1.msra.mxu0 %v919
    %3348 = vmatprep.subr.mxu0 0.0
    %3349 = vmatpush1.msra.mxu0 %v920
    %3350 = vmatprep.subr.mxu0 0.0
    %3351 = vmatpush1.msra.mxu0 %v921
    %3352 = vmatprep.subr.mxu0 0.0
    %3353 = vmatpush1.msra.mxu0 %v922
    %3354 = vmatprep.subr.mxu0 0.0
    %3355 = vmatpush1.msra.mxu0 %v923
    %3356 = vmatprep.subr.mxu0 0.0
    %3357 = vmatpush1.msra.mxu0 %v924
    %3358 = vmatprep.subr.mxu0 0.0
    %3359 = vmatpush1.msra.mxu0 %v925
    %3360 = vmatprep.subr.mxu0 0.0
    %3361 = vmatpush1.msra.mxu0 %v926
    %3362 = vmatprep.subr.mxu0 0.0
    %3363 = vmatpush1.msra.mxu0 %v927
    %3364 = vmatprep.subr.mxu0 0.0
    %3365 = vmatpush1.msra.mxu0 %v928
    %3366 = vmatprep.subr.mxu0 0.0
    %3367 = vmatpush1.msra.mxu0 %v929
    %3368 = vmatprep.subr.mxu0 0.0
    %3369 = vmatpush1.msra.mxu0 %v930
    %3370 = vmatprep.subr.mxu0 0.0
    %3371 = vmatpush1.msra.mxu0 %v931
    %3372 = vmatprep.subr.mxu0 0.0
    %3373 = vmatpush1.msra.mxu0 %v932
    %3374 = vmatprep.mubr.f32.mxu0 %v1321
    %3375 = vmatmul.mubr.f32.gmra.mrb[0].mxu0 %v1319
    %v3376 = vpop.f32.mrb[0].mxu0
    %v3377 = vadd.f32 %v3307, %v3376
    %v3378 = vpop.f32.mrb[0].mxu0
    %3379 = vdwg.mxu0
    %3380 = vmatprep.subr.mxu0 0.0
    %3381 = vmatpush1.msra.mxu0 %v933
    %3382 = vmatprep.subr.mxu0 0.0
    %3383 = vmatpush1.msra.mxu0 %v934
    %3384 = vmatprep.subr.mxu0 0.0
    %3385 = vmatpush1.msra.mxu0 %v935
    %3386 = vmatprep.subr.mxu0 0.0
    %3387 = vmatpush1.msra.mxu0 %v936
    %3388 = vmatprep.subr.mxu0 0.0
    %3389 = vmatpush1.msra.mxu0 %v937
    %3390 = vmatprep.subr.mxu0 0.0
    %3391 = vmatpush1.msra.mxu0 %v938
    %3392 = vmatprep.subr.mxu0 0.0
    %3393 = vmatpush1.msra.mxu0 %v939
    %3394 = vmatprep.subr.mxu0 0.0
    %3395 = vmatpush1.msra.mxu0 %v940
    %3396 = vmatprep.subr.mxu0 0.0
    %3397 = vmatpush1.msra.mxu0 %v941
    %3398 = vmatprep.subr.mxu0 0.0
    %3399 = vmatpush1.msra.mxu0 %v942
    %3400 = vmatprep.subr.mxu0 0.0
    %3401 = vmatpush1.msra.mxu0 %v943
    %3402 = vmatprep.subr.mxu0 0.0
    %3403 = vmatpush1.msra.mxu0 %v944
    %3404 = vmatprep.subr.mxu0 0.0
    %3405 = vmatpush1.msra.mxu0 %v945
    %3406 = vmatprep.subr.mxu0 0.0
    %3407 = vmatpush1.msra.mxu0 %v946
    %3408 = vmatprep.subr.mxu0 0.0
    %3409 = vmatpush1.msra.mxu0 %v947
    %3410 = vmatprep.subr.mxu0 0.0
    %3411 = vmatpush1.msra.mxu0 %v948
    %3412 = vmatprep.subr.mxu0 0.0
    %3413 = vmatpush1.msra.mxu0 %v949
    %3414 = vmatprep.subr.mxu0 0.0
    %3415 = vmatpush1.msra.mxu0 %v950
    %3416 = vmatprep.subr.mxu0 0.0
    %3417 = vmatpush1.msra.mxu0 %v951
    %3418 = vmatprep.subr.mxu0 0.0
    %3419 = vmatpush1.msra.mxu0 %v952
    %3420 = vmatprep.subr.mxu0 0.0
    %3421 = vmatpush1.msra.mxu0 %v953
    %3422 = vmatprep.subr.mxu0 0.0
    %3423 = vmatpush1.msra.mxu0 %v954
    %3424 = vmatprep.subr.mxu0 0.0
    %3425 = vmatpush1.msra.mxu0 %v955
    %3426 = vmatprep.subr.mxu0 0.0
    %3427 = vmatpush1.msra.mxu0 %v956
    %3428 = vmatprep.subr.mxu0 0.0
    %3429 = vmatpush1.msra.mxu0 %v957
    %3430 = vmatprep.subr.mxu0 0.0
    %3431 = vmatpush1.msra.mxu0 %v958
    %3432 = vmatprep.subr.mxu0 0.0
    %3433 = vmatpush1.msra.mxu0 %v959
    %3434 = vmatprep.subr.mxu0 0.0
    %3435 = vmatpush1.msra.mxu0 %v960
    %3436 = vmatprep.subr.mxu0 0.0
    %3437 = vmatpush1.msra.mxu0 %v961
    %3438 = vmatprep.subr.mxu0 0.0
    %3439 = vmatpush1.msra.mxu0 %v962
    %3440 = vmatprep.subr.mxu0 0.0
    %3441 = vmatpush1.msra.mxu0 %v963
    %3442 = vmatprep.subr.mxu0 0.0
    %3443 = vmatpush1.msra.mxu0 %v964
    %3444 = vmatprep.mubr.f32.mxu0 %v1337
    %3445 = vmatmul.mubr.f32.gmra.mrb[0].mxu0 %v1329
    %v3446 = vpop.f32.mrb[0].mxu0
    %v3447 = vadd.f32 %v3377, %v3446
    %v3448 = vpop.f32.mrb[0].mxu0
    %3449 = vdwg.mxu0
    %3450 = vmatprep.subr.mxu0 0.0
    %3451 = vmatpush1.msra.mxu0 %v965
    %3452 = vmatprep.subr.mxu0 0.0
    %3453 = vmatpush1.msra.mxu0 %v966
    %3454 = vmatprep.subr.mxu0 0.0
    %3455 = vmatpush1.msra.mxu0 %v967
    %3456 = vmatprep.subr.mxu0 0.0
    %3457 = vmatpush1.msra.mxu0 %v968
    %3458 = vmatprep.subr.mxu0 0.0
    %3459 = vmatpush1.msra.mxu0 %v969
    %3460 = vmatprep.subr.mxu0 0.0
    %3461 = vmatpush1.msra.mxu0 %v970
    %3462 = vmatprep.subr.mxu0 0.0
    %3463 = vmatpush1.msra.mxu0 %v971
    %3464 = vmatprep.subr.mxu0 0.0
    %3465 = vmatpush1.msra.mxu0 %v972
    %3466 = vmatprep.subr.mxu0 0.0
    %3467 = vmatpush1.msra.mxu0 %v973
    %3468 = vmatprep.subr.mxu0 0.0
    %3469 = vmatpush1.msra.mxu0 %v974
    %3470 = vmatprep.subr.mxu0 0.0
    %3471 = vmatpush1.msra.mxu0 %v975
    %3472 = vmatprep.subr.mxu0 0.0
    %3473 = vmatpush1.msra.mxu0 %v976
    %3474 = vmatprep.subr.mxu0 0.0
    %3475 = vmatpush1.msra.mxu0 %v977
    %3476 = vmatprep.subr.mxu0 0.0
    %3477 = vmatpush1.msra.mxu0 %v978
    %3478 = vmatprep.subr.mxu0 0.0
    %3479 = vmatpush1.msra.mxu0 %v979
    %3480 = vmatprep.subr.mxu0 0.0
    %3481 = vmatpush1.msra.mxu0 %v980
    %3482 = vmatprep.subr.mxu0 0.0
    %3483 = vmatpush1.msra.mxu0 %v981
    %3484 = vmatprep.subr.mxu0 0.0
    %3485 = vmatpush1.msra.mxu0 %v982
    %3486 = vmatprep.subr.mxu0 0.0
    %3487 = vmatpush1.msra.mxu0 %v983
    %3488 = vmatprep.subr.mxu0 0.0
    %3489 = vmatpush1.msra.mxu0 %v984
    %3490 = vmatprep.subr.mxu0 0.0
    %3491 = vmatpush1.msra.mxu0 %v985
    %3492 = vmatprep.subr.mxu0 0.0
    %3493 = vmatpush1.msra.mxu0 %v986
    %3494 = vmatprep.subr.mxu0 0.0
    %3495 = vmatpush1.msra.mxu0 %v987
    %3496 = vmatprep.subr.mxu0 0.0
    %3497 = vmatpush1.msra.mxu0 %v988
    %3498 = vmatprep.subr.mxu0 0.0
    %3499 = vmatpush1.msra.mxu0 %v989
    %3500 = vmatprep.subr.mxu0 0.0
    %3501 = vmatpush1.msra.mxu0 %v990
    %3502 = vmatprep.subr.mxu0 0.0
    %3503 = vmatpush1.msra.mxu0 %v991
    %3504 = vmatprep.subr.mxu0 0.0
    %3505 = vmatpush1.msra.mxu0 %v992
    %3506 = vmatprep.subr.mxu0 0.0
    %3507 = vmatpush1.msra.mxu0 %v993
    %3508 = vmatprep.subr.mxu0 0.0
    %3509 = vmatpush1.msra.mxu0 %v994
    %3510 = vmatprep.subr.mxu0 0.0
    %3511 = vmatpush1.msra.mxu0 %v995
    %3512 = vmatprep.subr.mxu0 0.0
    %3513 = vmatpush1.msra.mxu0 %v996
    %3514 = vmatprep.mubr.f32.mxu0 %v1338
    %3515 = vmatmul.mubr.f32.gmra.mrb[0].mxu0 %v1336
    %v3516 = vpop.f32.mrb[0].mxu0
    %v3517 = vadd.f32 %v3447, %v3516
    %v3518 = vpop.f32.mrb[0].mxu0
    %3519 = vdwg.mxu0
    %3520 = vmatprep.subr.mxu0 0.0
    %3521 = vmatpush1.msra.mxu0 %v997
    %3522 = vmatprep.subr.mxu0 0.0
    %3523 = vmatpush1.msra.mxu0 %v998
    %3524 = vmatprep.subr.mxu0 0.0
    %3525 = vmatpush1.msra.mxu0 %v999
    %3526 = vmatprep.subr.mxu0 0.0
    %3527 = vmatpush1.msra.mxu0 %v1000
    %3528 = vmatprep.subr.mxu0 0.0
    %3529 = vmatpush1.msra.mxu0 %v1001
    %3530 = vmatprep.subr.mxu0 0.0
    %3531 = vmatpush1.msra.mxu0 %v1002
    %3532 = vmatprep.subr.mxu0 0.0
    %3533 = vmatpush1.msra.mxu0 %v1003
    %3534 = vmatprep.subr.mxu0 0.0
    %3535 = vmatpush1.msra.mxu0 %v1004
    %3536 = vmatprep.subr.mxu0 0.0
    %3537 = vmatpush1.msra.mxu0 %v1005
    %3538 = vmatprep.subr.mxu0 0.0
    %3539 = vmatpush1.msra.mxu0 %v1006
    %3540 = vmatprep.subr.mxu0 0.0
    %3541 = vmatpush1.msra.mxu0 %v1007
    %3542 = vmatprep.subr.mxu0 0.0
    %3543 = vmatpush1.msra.mxu0 %v1008
    %3544 = vmatprep.subr.mxu0 0.0
    %3545 = vmatpush1.msra.mxu0 %v1009
    %3546 = vmatprep.subr.mxu0 0.0
    %3547 = vmatpush1.msra.mxu0 %v1010
    %3548 = vmatprep.subr.mxu0 0.0
    %3549 = vmatpush1.msra.mxu0 %v1011
    %3550 = vmatprep.subr.mxu0 0.0
    %3551 = vmatpush1.msra.mxu0 %v1012
    %3552 = vmatprep.subr.mxu0 0.0
    %3553 = vmatpush1.msra.mxu0 %v1013
    %3554 = vmatprep.subr.mxu0 0.0
    %3555 = vmatpush1.msra.mxu0 %v1014
    %3556 = vmatprep.subr.mxu0 0.0
    %3557 = vmatpush1.msra.mxu0 %v1015
    %3558 = vmatprep.subr.mxu0 0.0
    %3559 = vmatpush1.msra.mxu0 %v1016
    %3560 = vmatprep.subr.mxu0 0.0
    %3561 = vmatpush1.msra.mxu0 %v1017
    %3562 = vmatprep.subr.mxu0 0.0
    %3563 = vmatpush1.msra.mxu0 %v1018
    %3564 = vmatprep.subr.mxu0 0.0
    %3565 = vmatpush1.msra.mxu0 %v1019
    %3566 = vmatprep.subr.mxu0 0.0
    %3567 = vmatpush1.msra.mxu0 %v1020
    %3568 = vmatprep.subr.mxu0 0.0
    %3569 = vmatpush1.msra.mxu0 %v1021
    %3570 = vmatprep.subr.mxu0 0.0
    %3571 = vmatpush1.msra.mxu0 %v1022
    %3572 = vmatprep.subr.mxu0 0.0
    %3573 = vmatpush1.msra.mxu0 %v1023
    %3574 = vmatprep.subr.mxu0 0.0
    %3575 = vmatpush1.msra.mxu0 %v1024
    %3576 = vmatprep.subr.mxu0 0.0
    %3577 = vmatpush1.msra.mxu0 %v1025
    %3578 = vmatprep.subr.mxu0 0.0
    %3579 = vmatpush1.msra.mxu0 %v1026
    %3580 = vmatprep.subr.mxu0 0.0
    %3581 = vmatpush1.msra.mxu0 %v1027
    %3582 = vmatprep.subr.mxu0 0.0
    %3583 = vmatpush1.msra.mxu0 %v1028
    %3584 = vmatprep.mubr.f32.mxu0 %v1354
    %3585 = vmatmul.mubr.f32.gmra.mrb[0].mxu0 %v1346
    %v3586 = vpop.f32.mrb[0].mxu0
    %v3587 = vadd.f32 %v3517, %v3586
    %v3588 = vpop.f32.mrb[0].mxu0
    %3589 = vdwg.mxu0
    %3590 = vmatprep.subr.mxu0 0.0
    %3591 = vmatpush1.msra.mxu0 %v1029
    %3592 = vmatprep.subr.mxu0 0.0
    %3593 = vmatpush1.msra.mxu0 %v1030
    %3594 = vmatprep.subr.mxu0 0.0
    %3595 = vmatpush1.msra.mxu0 %v1031
    %3596 = vmatprep.subr.mxu0 0.0
    %3597 = vmatpush1.msra.mxu0 %v1032
    %3598 = vmatprep.subr.mxu0 0.0
    %3599 = vmatpush1.msra.mxu0 %v1033
    %3600 = vmatprep.subr.mxu0 0.0
    %3601 = vmatpush1.msra.mxu0 %v1034
    %3602 = vmatprep.subr.mxu0 0.0
    %3603 = vmatpush1.msra.mxu0 %v1035
    %3604 = vmatprep.subr.mxu0 0.0
    %3605 = vmatpush1.msra.mxu0 %v1036
    %3606 = vmatprep.subr.mxu0 0.0
    %3607 = vmatpush1.msra.mxu0 %v1037
    %3608 = vmatprep.subr.mxu0 0.0
    %3609 = vmatpush1.msra.mxu0 %v1038
    %3610 = vmatprep.subr.mxu0 0.0
    %3611 = vmatpush1.msra.mxu0 %v1039
    %3612 = vmatprep.subr.mxu0 0.0
    %3613 = vmatpush1.msra.mxu0 %v1040
    %3614 = vmatprep.subr.mxu0 0.0
    %3615 = vmatpush1.msra.mxu0 %v1041
    %3616 = vmatprep.subr.mxu0 0.0
    %3617 = vmatpush1.msra.mxu0 %v1042
    %3618 = vmatprep.subr.mxu0 0.0
    %3619 = vmatpush1.msra.mxu0 %v1043
    %3620 = vmatprep.subr.mxu0 0.0
    %3621 = vmatpush1.msra.mxu0 %v1044
    %3622 = vmatprep.subr.mxu0 0.0
    %3623 = vmatpush1.msra.mxu0 %v1045
    %3624 = vmatprep.subr.mxu0 0.0
    %3625 = vmatpush1.msra.mxu0 %v1046
    %3626 = vmatprep.subr.mxu0 0.0
    %3627 = vmatpush1.msra.mxu0 %v1047
    %3628 = vmatprep.subr.mxu0 0.0
    %3629 = vmatpush1.msra.mxu0 %v1048
    %3630 = vmatprep.subr.mxu0 0.0
    %3631 = vmatpush1.msra.mxu0 %v1049
    %3632 = vmatprep.subr.mxu0 0.0
    %3633 = vmatpush1.msra.mxu0 %v1050
    %3634 = vmatprep.subr.mxu0 0.0
    %3635 = vmatpush1.msra.mxu0 %v1051
    %3636 = vmatprep.subr.mxu0 0.0
    %3637 = vmatpush1.msra.mxu0 %v1052
    %3638 = vmatprep.subr.mxu0 0.0
    %3639 = vmatpush1.msra.mxu0 %v1053
    %3640 = vmatprep.subr.mxu0 0.0
    %3641 = vmatpush1.msra.mxu0 %v1054
    %3642 = vmatprep.subr.mxu0 0.0
    %3643 = vmatpush1.msra.mxu0 %v1055
    %3644 = vmatprep.subr.mxu0 0.0
    %3645 = vmatpush1.msra.mxu0 %v1056
    %3646 = vmatprep.subr.mxu0 0.0
    %3647 = vmatpush1.msra.mxu0 %v1057
    %3648 = vmatprep.subr.mxu0 0.0
    %3649 = vmatpush1.msra.mxu0 %v1058
    %3650 = vmatprep.subr.mxu0 0.0
    %3651 = vmatpush1.msra.mxu0 %v1059
    %3652 = vmatprep.subr.mxu0 0.0
    %3653 = vmatpush1.msra.mxu0 %v1060
    %3654 = vmatprep.mubr.f32.mxu0 %v1355
    %3655 = vmatmul.mubr.f32.gmra.mrb[0].mxu0 %v1353
    %v3656 = vpop.f32.mrb[0].mxu0
    %v3657 = vadd.f32 %v3587, %v3656
    %v3658 = vpop.f32.mrb[0].mxu0
    %3659 = vdwg.mxu0
    %v3660 = vmax.f32 %v3657, 0.0
    %v3661 = vld [vmem:[%s3] sm:$0xff]
    %v3662 = vld [vmem:[%s3 + $0x8] sm:$0xff]
    %v3663 = vld [vmem:[%s3 + $0x10] sm:$0xff]
    %v3664 = vld [vmem:[%s3 + $0x18] sm:$0xff]
    %v3665 = vld [vmem:[%s3 + $0x20] sm:$0xff]
    %v3666 = vld [vmem:[%s3 + $0x28] sm:$0xff]
    %v3667 = vld [vmem:[%s3 + $0x30] sm:$0xff]
    %v3668 = vld [vmem:[%s3 + $0x38] sm:$0xff]
    %v3669 = vld [vmem:[%s3 + $0x40] sm:$0xff]
    %v3670 = vld [vmem:[%s3 + $0x48] sm:$0xff]
    %v3671 = vld [vmem:[%s3 + $0x50] sm:$0xff]
    %v3672 = vld [vmem:[%s3 + $0x58] sm:$0xff]
    %v3673 = vld [vmem:[%s3 + $0x60] sm:$0xff]
    %v3674 = vld [vmem:[%s3 + $0x68] sm:$0xff]
    %v3675 = vld [vmem:[%s3 + $0x70] sm:$0xff]
    %v3676 = vld [vmem:[%s3 + $0x78] sm:$0xff]
    %v3677 = vld [vmem:[%s4] sm:$0x1]
    %v3679 = vlaneseq
    %v3680 = vshrl.u32 %v3679, 7
    %v3681 = vsub.s32 0, %v3680
    %v3682 = vrot.slane %v3677, %v3681
    %3684 = vmatprep.subr.mxu0 0.0
    %3685 = vmatpush1.msra.mxu0 %v3661
    %3686 = vmatprep.subr.mxu0 0.0
    %3687 = vmatpush1.msra.mxu0 %v3662
    %3688 = vmatprep.subr.mxu0 0.0
    %3689 = vmatpush1.msra.mxu0 %v3663
    %3690 = vmatprep.subr.mxu0 0.0
    %3691 = vmatpush1.msra.mxu0 %v3664
    %3692 = vmatprep.subr.mxu0 0.0
    %3693 = vmatpush1.msra.mxu0 %v3665
    %3694 = vmatprep.subr.mxu0 0.0
    %3695 = vmatpush1.msra.mxu0 %v3666
    %3696 = vmatprep.subr.mxu0 0.0
    %3697 = vmatpush1.msra.mxu0 %v3667
    %3698 = vmatprep.subr.mxu0 0.0
    %3699 = vmatpush1.msra.mxu0 %v3668
    %3700 = vmatprep.subr.mxu0 0.0
    %3701 = vmatpush1.msra.mxu0 %v3669
    %3702 = vmatprep.subr.mxu0 0.0
    %3703 = vmatpush1.msra.mxu0 %v3670
    %3704 = vmatprep.subr.mxu0 0.0
    %3705 = vmatpush1.msra.mxu0 %v3671
    %3706 = vmatprep.subr.mxu0 0.0
    %3707 = vmatpush1.msra.mxu0 %v3672
    %3708 = vmatprep.subr.mxu0 0.0
    %3709 = vmatpush1.msra.mxu0 %v3673
    %3710 = vmatprep.subr.mxu0 0.0
    %3711 = vmatpush1.msra.mxu0 %v3674
    %3712 = vmatprep.subr.mxu0 0.0
    %3713 = vmatpush1.msra.mxu0 %v3675
    %3714 = vmatprep.subr.mxu0 0.0
    %3715 = vmatpush1.msra.mxu0 %v3676
    %3716 = vmatprep.subr.mxu0 0.0
    %3717 = vmatpush1.msra.mxu0 0.0
    %3718 = vmatprep.subr.mxu0 0.0
    %3719 = vmatpush1.msra.mxu0 0.0
    %3720 = vmatprep.subr.mxu0 0.0
    %3721 = vmatpush1.msra.mxu0 0.0
    %3722 = vmatprep.subr.mxu0 0.0
    %3723 = vmatpush1.msra.mxu0 0.0
    %3724 = vmatprep.subr.mxu0 0.0
    %3725 = vmatpush1.msra.mxu0 0.0
    %3726 = vmatprep.subr.mxu0 0.0
    %3727 = vmatpush1.msra.mxu0 0.0
    %3728 = vmatprep.subr.mxu0 0.0
    %3729 = vmatpush1.msra.mxu0 0.0
    %3730 = vmatprep.subr.mxu0 0.0
    %3731 = vmatpush1.msra.mxu0 0.0
    %3732 = vmatprep.subr.mxu0 0.0
    %3733 = vmatpush1.msra.mxu0 0.0
    %3734 = vmatprep.subr.mxu0 0.0
    %3735 = vmatpush1.msra.mxu0 0.0
    %3736 = vmatprep.subr.mxu0 0.0
    %3737 = vmatpush1.msra.mxu0 0.0
    %3738 = vmatprep.subr.mxu0 0.0
    %3739 = vmatpush1.msra.mxu0 0.0
    %3740 = vmatprep.subr.mxu0 0.0
    %3741 = vmatpush1.msra.mxu0 0.0
    %3742 = vmatprep.subr.mxu0 0.0
    %3743 = vmatpush1.msra.mxu0 0.0
    %3744 = vmatprep.subr.mxu0 0.0
    %3745 = vmatpush1.msra.mxu0 0.0
    %3746 = vmatprep.subr.mxu0 0.0
    %3747 = vmatpush1.msra.mxu0 0.0
    %3748 = vmatprep.mubr.f32.mxu0 0.0
    %3749 = vmatmul.mubr.f32.gmra.mrb[0].mxu0 %v3660
    %v3750 = vpop.f32.mrb[0].mxu0
    %v3751 = vadd.f32 %v3682, %v3750
    %v3752 = vpop.f32.mrb[0].mxu0
    %3753 = vdwg.mxu0
    %3754 = vst [vmem:[#allocation2] sm:$0x3] %v3751
    // Predicated region
    $region22: #{forward.5} parent=1 // pred_check
      _
    $region23: #{forward.5} parent=1 // pred_check_branch
      %3756 = sbr.rel (0) target = $region25
    $region24: #{forward.5} parent=1 // pred_region
      %s3758 = ssub.s32 32, 32
      %3759 = vsyncadd [#allocation3], %s3758
      %s3761 = sshll.u32 [#allocation2], 4
      %s3762 = int_to_ptr.vmem [resolvable:$true] %s3761
      %3764 = dma.vmem_to_hbm [thread:$0]  %s3762, 32, %s5, [#allocation3]
    $region25: #{forward.5} parent=1 // pred_fallthru
      _
    // Predicated region
    $region26: #{forward.5} parent=1 // pred_check
      _
    $region27: #{forward.5} parent=1 // pred_check_branch
      %3766 = sbr.rel (0) target = $region29
    $region28: #{forward.5} parent=1 // pred_region
      %3767 = dma.done [#allocation3], 32
    $region29: #{forward.5} parent=1 // pred_fallthru
      _
    %3768 = vsyncpa [#allocation3], 1

</llo_original>
